<compile_context>
chip_gen: v5e
topology: v5e:2x2
jax: 0.10.0
libtpu: 0.0.40
codegen_flags: <defaults>
</compile_context>

<pallas_src>
from functools import partial

import jax
import jax.numpy as jnp
from jax import lax
from jax.experimental import pallas as pl
from jax.experimental.pallas import tpu as pltpu


# ----------------------------------------------------------------------------
# helpers
# ----------------------------------------------------------------------------
def _round_up(x, m):
    return ((x + m - 1) // m) * m


def _pad_tile(d, unit, max_tile):
    """Return (padded_dim, tile) with padded_dim % tile == 0, tile % unit == 0."""
    r = _round_up(d, unit)
    if r <= max_tile:
        return r, r
    return _round_up(d, max_tile), max_tile


# ----------------------------------------------------------------------------
# Pallas kernel 1: tiled GEMM + bias + (optional) ReLU, bf16 MXU / f32 acc.
# Grid = (M tiles, N tiles, K tiles); accumulator scratch in VMEM.
# ----------------------------------------------------------------------------
def _matmul_bias_act_kernel(x_ref, w_ref, b_ref, o_ref, acc_ref, *, relu):
    @pl.when(pl.program_id(2) == 0)
    def _init():
        acc_ref[...] = jnp.zeros_like(acc_ref)

    acc_ref[...] += jnp.dot(x_ref[...], w_ref[...],
                            preferred_element_type=jnp.float32)

    @pl.when(pl.program_id(2) == pl.num_programs(2) - 1)
    def _finalize():
        y = acc_ref[...] + b_ref[...]
        if relu:
            y = jnp.maximum(y, 0.0)
        o_ref[...] = y.astype(o_ref.dtype)


def linear_pallas(x, w, b, *, relu):
    """y = act(x @ w + b).  x:[M,K] f32, w:[K,N] f32, b:[N] f32 -> [M,N] f32."""
    M, K = x.shape
    K2, N = w.shape
    assert K == K2
    M_pad, TM = _pad_tile(M, 16, 256)    # 16: safe sublane multiple for bf16
    K_pad, TK = _pad_tile(K, 128, 512)
    N_pad, TN = _pad_tile(N, 128, 512)

    x_p = jnp.pad(x.astype(jnp.bfloat16), ((0, M_pad - M), (0, K_pad - K)))
    w_p = jnp.pad(w.astype(jnp.bfloat16), ((0, K_pad - K), (0, N_pad - N)))
    b_p = jnp.pad(b.astype(jnp.float32), ((0, N_pad - N),)).reshape(1, N_pad)

    grid = (M_pad // TM, N_pad // TN, K_pad // TK)
    out = pl.pallas_call(
        partial(_matmul_bias_act_kernel, relu=relu),
        out_shape=jax.ShapeDtypeStruct((M_pad, N_pad), jnp.float32),
        grid_spec=pltpu.PrefetchScalarGridSpec(
            num_scalar_prefetch=0,
            grid=grid,
            in_specs=[
                pl.BlockSpec((TM, TK), lambda i, j, k: (i, k)),
                pl.BlockSpec((TK, TN), lambda i, j, k: (k, j)),
                pl.BlockSpec((1, TN), lambda i, j, k: (0, j)),
            ],
            out_specs=pl.BlockSpec((TM, TN), lambda i, j, k: (i, j)),
            scratch_shapes=[pltpu.VMEM((TM, TN), jnp.float32)],
        ),
        compiler_params=pltpu.CompilerParams(
            dimension_semantics=("parallel", "parallel", "arbitrary"),
            vmem_limit_bytes=32 * 1024 * 1024,
        ),
    )(x_p, w_p, b_p)
    return out[:M, :N]


# ----------------------------------------------------------------------------
# Pallas kernel 2: fused FC head
#   logits = fcn3( ReLU(fcn2( ReLU(fcn1(x)) )) ); out = sum over batch rows.
# The 4096-wide hidden dim of fcn1/fcn2 is streamed in TK-chunks (pipelined);
# x, W3, biases stay VMEM-resident. Dropout layers are identity (inference).
# ----------------------------------------------------------------------------
def _fc_head_kernel(x_ref, w1_ref, b1_ref, w2_ref, b2_ref, w3_ref, b3_ref,
                    o_ref, acc_ref, *, batch):
    k = pl.program_id(0)

    @pl.when(k == 0)
    def _init():
        acc_ref[...] = jnp.zeros_like(acc_ref)

    # chunk of fcn1: ReLU(x @ W1[:, chunk] + b1[chunk])
    h = jnp.dot(x_ref[...], w1_ref[...],
                preferred_element_type=jnp.float32) + b1_ref[...]
    h = jnp.maximum(h, 0.0)
    # TODO(synk): drop1/drop2 (p=0.5) treated as identity (inference forward).
    # chunk contribution to fcn2 pre-activation
    acc_ref[...] += jnp.dot(h.astype(jnp.bfloat16), w2_ref[...],
                            preferred_element_type=jnp.float32)

    @pl.when(k == pl.num_programs(0) - 1)
    def _finalize():
        h2 = jnp.maximum(acc_ref[...] + b2_ref[...], 0.0)          # fcn2 + ReLU
        o = jnp.dot(h2.astype(jnp.bfloat16), w3_ref[...],
                    preferred_element_type=jnp.float32) + b3_ref[...]  # fcn3
        row = lax.broadcasted_iota(jnp.int32, o.shape, 0)
        o = jnp.where(row < batch, o, 0.0)        # mask padded batch rows
        o_ref[...] = jnp.sum(o, axis=0, keepdims=True)             # sum(dim=0)


def fc_head_pallas(x, w1, b1, w2, b2, w3, b3):
    """x:[B,256] -> [117] (batch-summed logits)."""
    B, K1 = x.shape
    H1 = w1.shape[1]            # 4096
    N2 = w2.shape[1]            # 117
    N3 = w3.shape[1]            # 117
    B_pad = _round_up(B, 16)
    K1_pad = _round_up(K1, 128)
    TK = 512
    H1_pad = _round_up(H1, TK)
    N_pad = _round_up(max(N2, N3, w3.shape[0]), 128)

    x_p = jnp.pad(x.astype(jnp.bfloat16), ((0, B_pad - B), (0, K1_pad - K1)))
    w1_p = jnp.pad(w1.astype(jnp.bfloat16), ((0, K1_pad - K1), (0, H1_pad - H1)))
    b1_p = jnp.pad(b1.astype(jnp.float32), ((0, H1_pad - H1),)).reshape(1, H1_pad)
    w2_p = jnp.pad(w2.astype(jnp.bfloat16), ((0, H1_pad - H1), (0, N_pad - N2)))
    b2_p = jnp.pad(b2.astype(jnp.float32), ((0, N_pad - N2),)).reshape(1, N_pad)
    w3_p = jnp.pad(w3.astype(jnp.bfloat16),
                   ((0, N_pad - w3.shape[0]), (0, N_pad - N3)))
    b3_p = jnp.pad(b3.astype(jnp.float32), ((0, N_pad - N3),)).reshape(1, N_pad)

    out = pl.pallas_call(
        partial(_fc_head_kernel, batch=B),
        out_shape=jax.ShapeDtypeStruct((1, N_pad), jnp.float32),
        grid_spec=pltpu.PrefetchScalarGridSpec(
            num_scalar_prefetch=0,
            grid=(H1_pad // TK,),
            in_specs=[
                pl.BlockSpec((B_pad, K1_pad), lambda k: (0, 0)),   # x (resident)
                pl.BlockSpec((K1_pad, TK), lambda k: (0, k)),      # W1 chunk
                pl.BlockSpec((1, TK), lambda k: (0, k)),           # b1 chunk
                pl.BlockSpec((TK, N_pad), lambda k: (k, 0)),       # W2 chunk
                pl.BlockSpec((1, N_pad), lambda k: (0, 0)),        # b2 (resident)
                pl.BlockSpec((N_pad, N_pad), lambda k: (0, 0)),    # W3 (resident)
                pl.BlockSpec((1, N_pad), lambda k: (0, 0)),        # b3 (resident)
            ],
            out_specs=pl.BlockSpec((1, N_pad), lambda k: (0, 0)),
            scratch_shapes=[pltpu.VMEM((B_pad, N_pad), jnp.float32)],
        ),
        compiler_params=pltpu.CompilerParams(
            dimension_semantics=("arbitrary",),
            vmem_limit_bytes=32 * 1024 * 1024,
        ),
    )(x_p, w1_p, b1_p, w2_p, b2_p, w3_p, b3_p)
    return out[0, :N3]


# ----------------------------------------------------------------------------
# JAX glue: im2col conv wrapper, maxpool, batchnorm (eval-mode affine)
# ----------------------------------------------------------------------------
def conv2d_relu(x_nhwc, w_khwcio, b, *, stride, pad):
    """Conv2d + ReLU via im2col (glue) + Pallas GEMM.  w: [kh,kw,Cin,Cout]."""
    kh, kw, cin, cout = w_khwcio.shape
    if pad:
        x_nhwc = jnp.pad(x_nhwc, ((0, 0), (pad, pad), (pad, pad), (0, 0)))
    B, H, W, C = x_nhwc.shape
    oh = (H - kh) // stride + 1
    ow = (W - kw) // stride + 1
    cols = []
    for dy in range(kh):
        for dx in range(kw):
            cols.append(x_nhwc[:, dy:dy + stride * (oh - 1) + 1:stride,
                               dx:dx + stride * (ow - 1) + 1:stride, :])
    patches = jnp.concatenate(cols, axis=-1).reshape(B * oh * ow, kh * kw * C)
    wmat = w_khwcio.reshape(kh * kw * cin, cout)
    y = linear_pallas(patches, wmat, b, relu=True)
    return y.reshape(B, oh, ow, cout)


def maxpool2d(x, k, stride, pad):
    # TODO(synk): pooling kept as JAX slice+max glue (tiny elementwise work).
    if pad:
        x = jnp.pad(x, ((0, 0), (pad, pad), (pad, pad), (0, 0)),
                    constant_values=-jnp.inf)
    B, H, W, C = x.shape
    oh = (H - k) // stride + 1
    ow = (W - k) // stride + 1
    out = None
    for dy in range(k):
        for dx in range(k):
            p = x[:, dy:dy + stride * (oh - 1) + 1:stride,
                  dx:dx + stride * (ow - 1) + 1:stride, :]
            out = p if out is None else jnp.maximum(out, p)
    return out


def batchnorm2d(x_nhwc, gamma, beta, mean, var, eps=1e-5):
    # TODO(synk): eval-mode BN (running stats); train-mode batch stats not done.
    scale = gamma / jnp.sqrt(var + eps)
    shift = beta - mean * scale
    return x_nhwc * scale + shift


# ----------------------------------------------------------------------------
# BGCNN forward
# ----------------------------------------------------------------------------
@jax.jit
def bgcnn_forward(x_nchw, params):
    x = jnp.transpose(x_nchw, (0, 2, 3, 1))                       # NHWC
    x = conv2d_relu(x, params["w1c"], params["b1c"], stride=4, pad=0)   # conv1
    x = maxpool2d(x, 3, 2, 1)                                           # pool1
    x = batchnorm2d(x, *params["bn1"])                                  # norm1
    x = conv2d_relu(x, params["w2c"], params["b2c"], stride=1, pad=2)   # conv2
    x = maxpool2d(x, 3, 2, 0)                                           # pool2
    x = batchnorm2d(x, *params["bn2"])                                  # norm2
    x = conv2d_relu(x, params["w3c"], params["b3c"], stride=1, pad=1)   # conv3
    x = conv2d_relu(x, params["w4c"], params["b4c"], stride=1, pad=1)   # conv4
    x = conv2d_relu(x, params["w5c"], params["b5c"], stride=1, pad=1)   # conv5
    x = maxpool2d(x, 3, 2, 0)                                           # pool3
    B = x.shape[0]
    x = x.reshape(B, -1)                                                # Flatten -> [B, 256]
    return fc_head_pallas(x, params["wf1"], params["bf1"],
                          params["wf2"], params["bf2"],
                          params["wf3"], params["bf3"])                 # fcn1..3 + sum(dim=0)


# ----------------------------------------------------------------------------
if __name__ == "__main__":
    key = jax.random.PRNGKey(0)
    keys = jax.random.split(key, 17)

    # Small input consistent with the module: Linear(256, 4096) after flatten
    # requires the pool3 output to be 256 x 1 x 1 -> 64x64 input works.
    B, H, W = 2, 64, 64
    x = jax.random.normal(keys[0], (B, 3, H, W), jnp.float32)

    def conv_w(k, kh, kw, cin, cout):
        std = (2.0 / (kh * kw * cin)) ** 0.5
        return std * jax.random.normal(k, (kh, kw, cin, cout), jnp.float32)

    def lin_w(k, cin, cout):
        std = (2.0 / cin) ** 0.5
        return std * jax.random.normal(k, (cin, cout), jnp.float32)

    params = {
        "w1c": conv_w(keys[1], 11, 11, 3, 96),
        "b1c": 0.01 * jax.random.normal(keys[2], (96,), jnp.float32),
        "w2c": conv_w(keys[3], 5, 5, 96, 256),
        "b2c": 0.01 * jax.random.normal(keys[4], (256,), jnp.float32),
        "w3c": conv_w(keys[5], 3, 3, 256, 384),
        "b3c": 0.01 * jax.random.normal(keys[6], (384,), jnp.float32),
        "w4c": conv_w(keys[7], 3, 3, 384, 384),
        "b4c": 0.01 * jax.random.normal(keys[8], (384,), jnp.float32),
        "w5c": conv_w(keys[9], 3, 3, 384, 256),
        "b5c": 0.01 * jax.random.normal(keys[10], (256,), jnp.float32),
        # BatchNorm params: (gamma, beta, running_mean, running_var)
        "bn1": (jnp.ones((96,), jnp.float32), jnp.zeros((96,), jnp.float32),
                jnp.zeros((96,), jnp.float32), jnp.ones((96,), jnp.float32)),
        "bn2": (jnp.ones((256,), jnp.float32), jnp.zeros((256,), jnp.float32),
                jnp.zeros((256,), jnp.float32), jnp.ones((256,), jnp.float32)),
        "wf1": lin_w(keys[11], 256, 4096),
        "bf1": 0.01 * jax.random.normal(keys[12], (4096,), jnp.float32),
        "wf2": lin_w(keys[13], 4096, 117),
        "bf2": 0.01 * jax.random.normal(keys[14], (117,), jnp.float32),
        "wf3": lin_w(keys[15], 117, 117),
        "bf3": 0.01 * jax.random.normal(keys[16], (117,), jnp.float32),
    }

    out = bgcnn_forward(x, params)
    out = jax.block_until_ready(out)

    assert out.shape == (117,), out.shape
    assert bool(jnp.all(jnp.isfinite(out)))
    print("KERNEL_OK")
</pallas_src>

<mosaic_0001>
module attributes {stable_mosaic.version = 11 : i64} {
  func.func @_matmul_bias_act_kernel(%arg0: i32, %arg1: i32, %arg2: i32, %arg3: memref<256x384xbf16, #tpu.memory_space<vmem>>, %arg4: memref<384x128xbf16, #tpu.memory_space<vmem>>, %arg5: memref<1x128xf32, #tpu.memory_space<vmem>>, %arg6: memref<256x128xf32, #tpu.memory_space<vmem>>, %arg7: memref<256x128xf32, #tpu.memory_space<vmem>>) attributes {dimension_semantics = [#tpu.dimension_semantics<parallel>, #tpu.dimension_semantics<parallel>, #tpu.dimension_semantics<arbitrary>], iteration_bounds = array<i64: 2, 1, 1>, scalar_prefetch = 0 : i64, scratch_operands = 1 : i64, tpu.core_type = #tpu.core_type<tc>, window_params = [{transform_indices = @transform_0, window_bounds = array<i64: 256, 384>}, {transform_indices = @transform_1, window_bounds = array<i64: 384, 128>}, {transform_indices = @transform_2, window_bounds = array<i64: 1, 128>}, {transform_indices = @transform_3, window_bounds = array<i64: 256, 128>}]} {
    %c0_i32 = arith.constant 0 : i32
    %0 = arith.cmpi eq, %arg2, %c0_i32 : i32
    %1 = arith.extui %0 : i1 to i32
    %c0_i32_0 = arith.constant 0 : i32
    %2 = arith.cmpi ne, %1, %c0_i32_0 : i32
    scf.if %2 {
      %cst_10 = arith.constant 0.000000e+00 : f32
      %12 = vector.broadcast %cst_10 : f32 to vector<256x128xf32>
      %c0_11 = arith.constant 0 : index
      %c0_12 = arith.constant 0 : index
      %13 = vector.load %arg7[%c0_11, %c0_12] : memref<256x128xf32, #tpu.memory_space<vmem>>, vector<256x128xf32>
      tpu.vector_store %arg7[%c0_11, %c0_12], %12 {strides = array<i32>} : memref<256x128xf32, #tpu.memory_space<vmem>>, vector<256x128xf32>,
    } else {
    }
    %c0 = arith.constant 0 : index
    %c0_1 = arith.constant 0 : index
    %3 = vector.load %arg7[%c0, %c0_1] : memref<256x128xf32, #tpu.memory_space<vmem>>, vector<256x128xf32>
    %c0_2 = arith.constant 0 : index
    %c0_3 = arith.constant 0 : index
    %4 = vector.load %arg3[%c0_2, %c0_3] : memref<256x384xbf16, #tpu.memory_space<vmem>>, vector<256x384xbf16>
    %c0_4 = arith.constant 0 : index
    %c0_5 = arith.constant 0 : index
    %5 = vector.load %arg4[%c0_4, %c0_5] : memref<384x128xbf16, #tpu.memory_space<vmem>>, vector<384x128xbf16>
    %cst = arith.constant dense<0.000000e+00> : vector<256x128xf32>
    %6 = tpu.matmul %4, %5, %cst {dimension_numbers = #tpu.dot_dimension_numbers<[1], [0], [0], [1], [0, 0, 1, 1], [], []>} : vector<256x384xbf16>, vector<384x128xbf16>, vector<256x128xf32> -> vector<256x128xf32>
    %7 = arith.addf %3, %6 : vector<256x128xf32>
    %c0_6 = arith.constant 0 : index
    %c0_7 = arith.constant 0 : index
    %8 = vector.load %arg7[%c0_6, %c0_7] : memref<256x128xf32, #tpu.memory_space<vmem>>, vector<256x128xf32>
    tpu.vector_store %arg7[%c0_6, %c0_7], %7 {strides = array<i32>} : memref<256x128xf32, #tpu.memory_space<vmem>>, vector<256x128xf32>,
    %c0_i32_8 = arith.constant 0 : i32
    %9 = arith.cmpi eq, %arg2, %c0_i32_8 : i32
    %10 = arith.extui %9 : i1 to i32
    %c0_i32_9 = arith.constant 0 : i32
    %11 = arith.cmpi ne, %10, %c0_i32_9 : i32
    scf.if %11 {
      %c0_10 = arith.constant 0 : index
      %c0_11 = arith.constant 0 : index
      %12 = vector.load %arg7[%c0_10, %c0_11] : memref<256x128xf32, #tpu.memory_space<vmem>>, vector<256x128xf32>
      %c0_12 = arith.constant 0 : index
      %c0_13 = arith.constant 0 : index
      %13 = vector.load %arg5[%c0_12, %c0_13] : memref<1x128xf32, #tpu.memory_space<vmem>>, vector<1x128xf32>
      %14 = vector.broadcast %13 : vector<1x128xf32> to vector<256x128xf32>
      %15 = arith.addf %12, %14 : vector<256x128xf32>
      %cst_14 = arith.constant 0.000000e+00 : f32
      %16 = vector.broadcast %cst_14 : f32 to vector<256x128xf32>
      %17 = arith.maximumf %15, %16 : vector<256x128xf32>
      %c0_15 = arith.constant 0 : index
      %c0_16 = arith.constant 0 : index
      %18 = vector.load %arg6[%c0_15, %c0_16] : memref<256x128xf32, #tpu.memory_space<vmem>>, vector<256x128xf32>
      tpu.vector_store %arg6[%c0_15, %c0_16], %17 {strides = array<i32>} : memref<256x128xf32, #tpu.memory_space<vmem>>, vector<256x128xf32>,
    } else {
    }
    return
  }
  func.func @transform_0(%arg0: i32, %arg1: i32, %arg2: i32) -> (i32, i32) {
    %c0_i32 = arith.constant 0 : i32
    return %arg0, %arg2 : i32, i32
  }
  func.func @transform_1(%arg0: i32, %arg1: i32, %arg2: i32) -> (i32, i32) {
    %c0_i32 = arith.constant 0 : i32
    return %arg2, %arg1 : i32, i32
  }
  func.func @transform_2(%arg0: i32, %arg1: i32, %arg2: i32) -> (i32, i32) {
    %c0_i32 = arith.constant 0 : i32
    %c0_i32_0 = arith.constant 0 : i32
    return %c0_i32, %arg1 : i32, i32
  }
  func.func @transform_3(%arg0: i32, %arg1: i32, %arg2: i32) -> (i32, i32) {
    %c0_i32 = arith.constant 0 : i32
    return %arg0, %arg1 : i32, i32
  }
}

module attributes {stable_mosaic.version = 11 : i64} {
  func.func @_matmul_bias_act_kernel(%arg0: i32, %arg1: i32, %arg2: i32, %arg3: memref<112x512xbf16, #tpu.memory_space<vmem>>, %arg4: memref<512x256xbf16, #tpu.memory_space<vmem>>, %arg5: memref<1x256xf32, #tpu.memory_space<vmem>>, %arg6: memref<112x256xf32, #tpu.memory_space<vmem>>, %arg7: memref<112x256xf32, #tpu.memory_space<vmem>>) attributes {dimension_semantics = [#tpu.dimension_semantics<parallel>, #tpu.dimension_semantics<parallel>, #tpu.dimension_semantics<arbitrary>], iteration_bounds = array<i64: 1, 1, 5>, scalar_prefetch = 0 : i64, scratch_operands = 1 : i64, tpu.core_type = #tpu.core_type<tc>, window_params = [{transform_indices = @transform_0, window_bounds = array<i64: 112, 512>}, {transform_indices = @transform_1, window_bounds = array<i64: 512, 256>}, {transform_indices = @transform_2, window_bounds = array<i64: 1, 256>}, {transform_indices = @transform_3, window_bounds = array<i64: 112, 256>}]} {
    %c0_i32 = arith.constant 0 : i32
    %0 = arith.cmpi eq, %arg2, %c0_i32 : i32
    %1 = arith.extui %0 : i1 to i32
    %c0_i32_0 = arith.constant 0 : i32
    %2 = arith.cmpi ne, %1, %c0_i32_0 : i32
    scf.if %2 {
      %cst_9 = arith.constant 0.000000e+00 : f32
      %12 = vector.broadcast %cst_9 : f32 to vector<112x256xf32>
      %c0_10 = arith.constant 0 : index
      %c0_11 = arith.constant 0 : index
      %13 = vector.load %arg7[%c0_10, %c0_11] : memref<112x256xf32, #tpu.memory_space<vmem>>, vector<112x256xf32>
      tpu.vector_store %arg7[%c0_10, %c0_11], %12 {strides = array<i32>} : memref<112x256xf32, #tpu.memory_space<vmem>>, vector<112x256xf32>,
    } else {
    }
    %c0 = arith.constant 0 : index
    %c0_1 = arith.constant 0 : index
    %3 = vector.load %arg7[%c0, %c0_1] : memref<112x256xf32, #tpu.memory_space<vmem>>, vector<112x256xf32>
    %c0_2 = arith.constant 0 : index
    %c0_3 = arith.constant 0 : index
    %4 = vector.load %arg3[%c0_2, %c0_3] : memref<112x512xbf16, #tpu.memory_space<vmem>>, vector<112x512xbf16>
    %c0_4 = arith.constant 0 : index
    %c0_5 = arith.constant 0 : index
    %5 = vector.load %arg4[%c0_4, %c0_5] : memref<512x256xbf16, #tpu.memory_space<vmem>>, vector<512x256xbf16>
    %cst = arith.constant dense<0.000000e+00> : vector<112x256xf32>
    %6 = tpu.matmul %4, %5, %cst {dimension_numbers = #tpu.dot_dimension_numbers<[1], [0], [0], [1], [0, 0, 1, 1], [], []>} : vector<112x512xbf16>, vector<512x256xbf16>, vector<112x256xf32> -> vector<112x256xf32>
    %7 = arith.addf %3, %6 : vector<112x256xf32>
    %c0_6 = arith.constant 0 : index
    %c0_7 = arith.constant 0 : index
    %8 = vector.load %arg7[%c0_6, %c0_7] : memref<112x256xf32, #tpu.memory_space<vmem>>, vector<112x256xf32>
    tpu.vector_store %arg7[%c0_6, %c0_7], %7 {strides = array<i32>} : memref<112x256xf32, #tpu.memory_space<vmem>>, vector<112x256xf32>,
    %c4_i32 = arith.constant 4 : i32
    %9 = arith.cmpi eq, %arg2, %c4_i32 : i32
    %10 = arith.extui %9 : i1 to i32
    %c0_i32_8 = arith.constant 0 : i32
    %11 = arith.cmpi ne, %10, %c0_i32_8 : i32
    scf.if %11 {
      %c0_9 = arith.constant 0 : index
      %c0_10 = arith.constant 0 : index
      %12 = vector.load %arg7[%c0_9, %c0_10] : memref<112x256xf32, #tpu.memory_space<vmem>>, vector<112x256xf32>
      %c0_11 = arith.constant 0 : index
      %c0_12 = arith.constant 0 : index
      %13 = vector.load %arg5[%c0_11, %c0_12] : memref<1x256xf32, #tpu.memory_space<vmem>>, vector<1x256xf32>
      %14 = vector.broadcast %13 : vector<1x256xf32> to vector<112x256xf32>
      %15 = arith.addf %12, %14 : vector<112x256xf32>
      %cst_13 = arith.constant 0.000000e+00 : f32
      %16 = vector.broadcast %cst_13 : f32 to vector<112x256xf32>
      %17 = arith.maximumf %15, %16 : vector<112x256xf32>
      %c0_14 = arith.constant 0 : index
      %c0_15 = arith.constant 0 : index
      %18 = vector.load %arg6[%c0_14, %c0_15] : memref<112x256xf32, #tpu.memory_space<vmem>>, vector<112x256xf32>
      tpu.vector_store %arg6[%c0_14, %c0_15], %17 {strides = array<i32>} : memref<112x256xf32, #tpu.memory_space<vmem>>, vector<112x256xf32>,
    } else {
    }
    return
  }
  func.func @transform_0(%arg0: i32, %arg1: i32, %arg2: i32) -> (i32, i32) {
    %c0_i32 = arith.constant 0 : i32
    return %arg0, %arg2 : i32, i32
  }
  func.func @transform_1(%arg0: i32, %arg1: i32, %arg2: i32) -> (i32, i32) {
    %c0_i32 = arith.constant 0 : i32
    return %arg2, %arg1 : i32, i32
  }
  func.func @transform_2(%arg0: i32, %arg1: i32, %arg2: i32) -> (i32, i32) {
    %c0_i32 = arith.constant 0 : i32
    %c0_i32_0 = arith.constant 0 : i32
    return %c0_i32, %arg1 : i32, i32
  }
  func.func @transform_3(%arg0: i32, %arg1: i32, %arg2: i32) -> (i32, i32) {
    %c0_i32 = arith.constant 0 : i32
    return %arg0, %arg1 : i32, i32
  }
}

module attributes {stable_mosaic.version = 11 : i64} {
  func.func @_matmul_bias_act_kernel(%arg0: i32, %arg1: i32, %arg2: i32, %arg3: memref<32x512xbf16, #tpu.memory_space<vmem>>, %arg4: memref<512x384xbf16, #tpu.memory_space<vmem>>, %arg5: memref<1x384xf32, #tpu.memory_space<vmem>>, %arg6: memref<32x384xf32, #tpu.memory_space<vmem>>, %arg7: memref<32x384xf32, #tpu.memory_space<vmem>>) attributes {dimension_semantics = [#tpu.dimension_semantics<parallel>, #tpu.dimension_semantics<parallel>, #tpu.dimension_semantics<arbitrary>], iteration_bounds = array<i64: 1, 1, 5>, scalar_prefetch = 0 : i64, scratch_operands = 1 : i64, tpu.core_type = #tpu.core_type<tc>, window_params = [{transform_indices = @transform_0, window_bounds = array<i64: 32, 512>}, {transform_indices = @transform_1, window_bounds = array<i64: 512, 384>}, {transform_indices = @transform_2, window_bounds = array<i64: 1, 384>}, {transform_indices = @transform_3, window_bounds = array<i64: 32, 384>}]} {
    %c0_i32 = arith.constant 0 : i32
    %0 = arith.cmpi eq, %arg2, %c0_i32 : i32
    %1 = arith.extui %0 : i1 to i32
    %c0_i32_0 = arith.constant 0 : i32
    %2 = arith.cmpi ne, %1, %c0_i32_0 : i32
    scf.if %2 {
      %cst_9 = arith.constant 0.000000e+00 : f32
      %12 = vector.broadcast %cst_9 : f32 to vector<32x384xf32>
      %c0_10 = arith.constant 0 : index
      %c0_11 = arith.constant 0 : index
      %13 = vector.load %arg7[%c0_10, %c0_11] : memref<32x384xf32, #tpu.memory_space<vmem>>, vector<32x384xf32>
      tpu.vector_store %arg7[%c0_10, %c0_11], %12 {strides = array<i32>} : memref<32x384xf32, #tpu.memory_space<vmem>>, vector<32x384xf32>,
    } else {
    }
    %c0 = arith.constant 0 : index
    %c0_1 = arith.constant 0 : index
    %3 = vector.load %arg7[%c0, %c0_1] : memref<32x384xf32, #tpu.memory_space<vmem>>, vector<32x384xf32>
    %c0_2 = arith.constant 0 : index
    %c0_3 = arith.constant 0 : index
    %4 = vector.load %arg3[%c0_2, %c0_3] : memref<32x512xbf16, #tpu.memory_space<vmem>>, vector<32x512xbf16>
    %c0_4 = arith.constant 0 : index
    %c0_5 = arith.constant 0 : index
    %5 = vector.load %arg4[%c0_4, %c0_5] : memref<512x384xbf16, #tpu.memory_space<vmem>>, vector<512x384xbf16>
    %cst = arith.constant dense<0.000000e+00> : vector<32x384xf32>
    %6 = tpu.matmul %4, %5, %cst {dimension_numbers = #tpu.dot_dimension_numbers<[1], [0], [0], [1], [0, 0, 1, 1], [], []>} : vector<32x512xbf16>, vector<512x384xbf16>, vector<32x384xf32> -> vector<32x384xf32>
    %7 = arith.addf %3, %6 : vector<32x384xf32>
    %c0_6 = arith.constant 0 : index
    %c0_7 = arith.constant 0 : index
    %8 = vector.load %arg7[%c0_6, %c0_7] : memref<32x384xf32, #tpu.memory_space<vmem>>, vector<32x384xf32>
    tpu.vector_store %arg7[%c0_6, %c0_7], %7 {strides = array<i32>} : memref<32x384xf32, #tpu.memory_space<vmem>>, vector<32x384xf32>,
    %c4_i32 = arith.constant 4 : i32
    %9 = arith.cmpi eq, %arg2, %c4_i32 : i32
    %10 = arith.extui %9 : i1 to i32
    %c0_i32_8 = arith.constant 0 : i32
    %11 = arith.cmpi ne, %10, %c0_i32_8 : i32
    scf.if %11 {
      %c0_9 = arith.constant 0 : index
      %c0_10 = arith.constant 0 : index
      %12 = vector.load %arg7[%c0_9, %c0_10] : memref<32x384xf32, #tpu.memory_space<vmem>>, vector<32x384xf32>
      %c0_11 = arith.constant 0 : index
      %c0_12 = arith.constant 0 : index
      %13 = vector.load %arg5[%c0_11, %c0_12] : memref<1x384xf32, #tpu.memory_space<vmem>>, vector<1x384xf32>
      %14 = vector.broadcast %13 : vector<1x384xf32> to vector<32x384xf32>
      %15 = arith.addf %12, %14 : vector<32x384xf32>
      %cst_13 = arith.constant 0.000000e+00 : f32
      %16 = vector.broadcast %cst_13 : f32 to vector<32x384xf32>
      %17 = arith.maximumf %15, %16 : vector<32x384xf32>
      %c0_14 = arith.constant 0 : index
      %c0_15 = arith.constant 0 : index
      %18 = vector.load %arg6[%c0_14, %c0_15] : memref<32x384xf32, #tpu.memory_space<vmem>>, vector<32x384xf32>
      tpu.vector_store %arg6[%c0_14, %c0_15], %17 {strides = array<i32>} : memref<32x384xf32, #tpu.memory_space<vmem>>, vector<32x384xf32>,
    } else {
    }
    return
  }
  func.func @transform_0(%arg0: i32, %arg1: i32, %arg2: i32) -> (i32, i32) {
    %c0_i32 = arith.constant 0 : i32
    return %arg0, %arg2 : i32, i32
  }
  func.func @transform_1(%arg0: i32, %arg1: i32, %arg2: i32) -> (i32, i32) {
    %c0_i32 = arith.constant 0 : i32
    return %arg2, %arg1 : i32, i32
  }
  func.func @transform_2(%arg0: i32, %arg1: i32, %arg2: i32) -> (i32, i32) {
    %c0_i32 = arith.constant 0 : i32
    %c0_i32_0 = arith.constant 0 : i32
    return %c0_i32, %arg1 : i32, i32
  }
  func.func @transform_3(%arg0: i32, %arg1: i32, %arg2: i32) -> (i32, i32) {
    %c0_i32 = arith.constant 0 : i32
    return %arg0, %arg1 : i32, i32
  }
}

module attributes {stable_mosaic.version = 11 : i64} {
  func.func @_matmul_bias_act_kernel(%arg0: i32, %arg1: i32, %arg2: i32, %arg3: memref<32x512xbf16, #tpu.memory_space<vmem>>, %arg4: memref<512x384xbf16, #tpu.memory_space<vmem>>, %arg5: memref<1x384xf32, #tpu.memory_space<vmem>>, %arg6: memref<32x384xf32, #tpu.memory_space<vmem>>, %arg7: memref<32x384xf32, #tpu.memory_space<vmem>>) attributes {dimension_semantics = [#tpu.dimension_semantics<parallel>, #tpu.dimension_semantics<parallel>, #tpu.dimension_semantics<arbitrary>], iteration_bounds = array<i64: 1, 1, 7>, scalar_prefetch = 0 : i64, scratch_operands = 1 : i64, tpu.core_type = #tpu.core_type<tc>, window_params = [{transform_indices = @transform_0, window_bounds = array<i64: 32, 512>}, {transform_indices = @transform_1, window_bounds = array<i64: 512, 384>}, {transform_indices = @transform_2, window_bounds = array<i64: 1, 384>}, {transform_indices = @transform_3, window_bounds = array<i64: 32, 384>}]} {
    %c0_i32 = arith.constant 0 : i32
    %0 = arith.cmpi eq, %arg2, %c0_i32 : i32
    %1 = arith.extui %0 : i1 to i32
    %c0_i32_0 = arith.constant 0 : i32
    %2 = arith.cmpi ne, %1, %c0_i32_0 : i32
    scf.if %2 {
      %cst_9 = arith.constant 0.000000e+00 : f32
      %12 = vector.broadcast %cst_9 : f32 to vector<32x384xf32>
      %c0_10 = arith.constant 0 : index
      %c0_11 = arith.constant 0 : index
      %13 = vector.load %arg7[%c0_10, %c0_11] : memref<32x384xf32, #tpu.memory_space<vmem>>, vector<32x384xf32>
      tpu.vector_store %arg7[%c0_10, %c0_11], %12 {strides = array<i32>} : memref<32x384xf32, #tpu.memory_space<vmem>>, vector<32x384xf32>,
    } else {
    }
    %c0 = arith.constant 0 : index
    %c0_1 = arith.constant 0 : index
    %3 = vector.load %arg7[%c0, %c0_1] : memref<32x384xf32, #tpu.memory_space<vmem>>, vector<32x384xf32>
    %c0_2 = arith.constant 0 : index
    %c0_3 = arith.constant 0 : index
    %4 = vector.load %arg3[%c0_2, %c0_3] : memref<32x512xbf16, #tpu.memory_space<vmem>>, vector<32x512xbf16>
    %c0_4 = arith.constant 0 : index
    %c0_5 = arith.constant 0 : index
    %5 = vector.load %arg4[%c0_4, %c0_5] : memref<512x384xbf16, #tpu.memory_space<vmem>>, vector<512x384xbf16>
    %cst = arith.constant dense<0.000000e+00> : vector<32x384xf32>
    %6 = tpu.matmul %4, %5, %cst {dimension_numbers = #tpu.dot_dimension_numbers<[1], [0], [0], [1], [0, 0, 1, 1], [], []>} : vector<32x512xbf16>, vector<512x384xbf16>, vector<32x384xf32> -> vector<32x384xf32>
    %7 = arith.addf %3, %6 : vector<32x384xf32>
    %c0_6 = arith.constant 0 : index
    %c0_7 = arith.constant 0 : index
    %8 = vector.load %arg7[%c0_6, %c0_7] : memref<32x384xf32, #tpu.memory_space<vmem>>, vector<32x384xf32>
    tpu.vector_store %arg7[%c0_6, %c0_7], %7 {strides = array<i32>} : memref<32x384xf32, #tpu.memory_space<vmem>>, vector<32x384xf32>,
    %c6_i32 = arith.constant 6 : i32
    %9 = arith.cmpi eq, %arg2, %c6_i32 : i32
    %10 = arith.extui %9 : i1 to i32
    %c0_i32_8 = arith.constant 0 : i32
    %11 = arith.cmpi ne, %10, %c0_i32_8 : i32
    scf.if %11 {
      %c0_9 = arith.constant 0 : index
      %c0_10 = arith.constant 0 : index
      %12 = vector.load %arg7[%c0_9, %c0_10] : memref<32x384xf32, #tpu.memory_space<vmem>>, vector<32x384xf32>
      %c0_11 = arith.constant 0 : index
      %c0_12 = arith.constant 0 : index
      %13 = vector.load %arg5[%c0_11, %c0_12] : memref<1x384xf32, #tpu.memory_space<vmem>>, vector<1x384xf32>
      %14 = vector.broadcast %13 : vector<1x384xf32> to vector<32x384xf32>
      %15 = arith.addf %12, %14 : vector<32x384xf32>
      %cst_13 = arith.constant 0.000000e+00 : f32
      %16 = vector.broadcast %cst_13 : f32 to vector<32x384xf32>
      %17 = arith.maximumf %15, %16 : vector<32x384xf32>
      %c0_14 = arith.constant 0 : index
      %c0_15 = arith.constant 0 : index
      %18 = vector.load %arg6[%c0_14, %c0_15] : memref<32x384xf32, #tpu.memory_space<vmem>>, vector<32x384xf32>
      tpu.vector_store %arg6[%c0_14, %c0_15], %17 {strides = array<i32>} : memref<32x384xf32, #tpu.memory_space<vmem>>, vector<32x384xf32>,
    } else {
    }
    return
  }
  func.func @transform_0(%arg0: i32, %arg1: i32, %arg2: i32) -> (i32, i32) {
    %c0_i32 = arith.constant 0 : i32
    return %arg0, %arg2 : i32, i32
  }
  func.func @transform_1(%arg0: i32, %arg1: i32, %arg2: i32) -> (i32, i32) {
    %c0_i32 = arith.constant 0 : i32
    return %arg2, %arg1 : i32, i32
  }
  func.func @transform_2(%arg0: i32, %arg1: i32, %arg2: i32) -> (i32, i32) {
    %c0_i32 = arith.constant 0 : i32
    %c0_i32_0 = arith.constant 0 : i32
    return %c0_i32, %arg1 : i32, i32
  }
  func.func @transform_3(%arg0: i32, %arg1: i32, %arg2: i32) -> (i32, i32) {
    %c0_i32 = arith.constant 0 : i32
    return %arg0, %arg1 : i32, i32
  }
}

module attributes {stable_mosaic.version = 11 : i64} {
  func.func @_matmul_bias_act_kernel(%arg0: i32, %arg1: i32, %arg2: i32, %arg3: memref<32x512xbf16, #tpu.memory_space<vmem>>, %arg4: memref<512x256xbf16, #tpu.memory_space<vmem>>, %arg5: memref<1x256xf32, #tpu.memory_space<vmem>>, %arg6: memref<32x256xf32, #tpu.memory_space<vmem>>, %arg7: memref<32x256xf32, #tpu.memory_space<vmem>>) attributes {dimension_semantics = [#tpu.dimension_semantics<parallel>, #tpu.dimension_semantics<parallel>, #tpu.dimension_semantics<arbitrary>], iteration_bounds = array<i64: 1, 1, 7>, scalar_prefetch = 0 : i64, scratch_operands = 1 : i64, tpu.core_type = #tpu.core_type<tc>, window_params = [{transform_indices = @transform_0, window_bounds = array<i64: 32, 512>}, {transform_indices = @transform_1, window_bounds = array<i64: 512, 256>}, {transform_indices = @transform_2, window_bounds = array<i64: 1, 256>}, {transform_indices = @transform_3, window_bounds = array<i64: 32, 256>}]} {
    %c0_i32 = arith.constant 0 : i32
    %0 = arith.cmpi eq, %arg2, %c0_i32 : i32
    %1 = arith.extui %0 : i1 to i32
    %c0_i32_0 = arith.constant 0 : i32
    %2 = arith.cmpi ne, %1, %c0_i32_0 : i32
    scf.if %2 {
      %cst_9 = arith.constant 0.000000e+00 : f32
      %12 = vector.broadcast %cst_9 : f32 to vector<32x256xf32>
      %c0_10 = arith.constant 0 : index
      %c0_11 = arith.constant 0 : index
      %13 = vector.load %arg7[%c0_10, %c0_11] : memref<32x256xf32, #tpu.memory_space<vmem>>, vector<32x256xf32>
      tpu.vector_store %arg7[%c0_10, %c0_11], %12 {strides = array<i32>} : memref<32x256xf32, #tpu.memory_space<vmem>>, vector<32x256xf32>,
    } else {
    }
    %c0 = arith.constant 0 : index
    %c0_1 = arith.constant 0 : index
    %3 = vector.load %arg7[%c0, %c0_1] : memref<32x256xf32, #tpu.memory_space<vmem>>, vector<32x256xf32>
    %c0_2 = arith.constant 0 : index
    %c0_3 = arith.constant 0 : index
    %4 = vector.load %arg3[%c0_2, %c0_3] : memref<32x512xbf16, #tpu.memory_space<vmem>>, vector<32x512xbf16>
    %c0_4 = arith.constant 0 : index
    %c0_5 = arith.constant 0 : index
    %5 = vector.load %arg4[%c0_4, %c0_5] : memref<512x256xbf16, #tpu.memory_space<vmem>>, vector<512x256xbf16>
    %cst = arith.constant dense<0.000000e+00> : vector<32x256xf32>
    %6 = tpu.matmul %4, %5, %cst {dimension_numbers = #tpu.dot_dimension_numbers<[1], [0], [0], [1], [0, 0, 1, 1], [], []>} : vector<32x512xbf16>, vector<512x256xbf16>, vector<32x256xf32> -> vector<32x256xf32>
    %7 = arith.addf %3, %6 : vector<32x256xf32>
    %c0_6 = arith.constant 0 : index
    %c0_7 = arith.constant 0 : index
    %8 = vector.load %arg7[%c0_6, %c0_7] : memref<32x256xf32, #tpu.memory_space<vmem>>, vector<32x256xf32>
    tpu.vector_store %arg7[%c0_6, %c0_7], %7 {strides = array<i32>} : memref<32x256xf32, #tpu.memory_space<vmem>>, vector<32x256xf32>,
    %c6_i32 = arith.constant 6 : i32
    %9 = arith.cmpi eq, %arg2, %c6_i32 : i32
    %10 = arith.extui %9 : i1 to i32
    %c0_i32_8 = arith.constant 0 : i32
    %11 = arith.cmpi ne, %10, %c0_i32_8 : i32
    scf.if %11 {
      %c0_9 = arith.constant 0 : index
      %c0_10 = arith.constant 0 : index
      %12 = vector.load %arg7[%c0_9, %c0_10] : memref<32x256xf32, #tpu.memory_space<vmem>>, vector<32x256xf32>
      %c0_11 = arith.constant 0 : index
      %c0_12 = arith.constant 0 : index
      %13 = vector.load %arg5[%c0_11, %c0_12] : memref<1x256xf32, #tpu.memory_space<vmem>>, vector<1x256xf32>
      %14 = vector.broadcast %13 : vector<1x256xf32> to vector<32x256xf32>
      %15 = arith.addf %12, %14 : vector<32x256xf32>
      %cst_13 = arith.constant 0.000000e+00 : f32
      %16 = vector.broadcast %cst_13 : f32 to vector<32x256xf32>
      %17 = arith.maximumf %15, %16 : vector<32x256xf32>
      %c0_14 = arith.constant 0 : index
      %c0_15 = arith.constant 0 : index
      %18 = vector.load %arg6[%c0_14, %c0_15] : memref<32x256xf32, #tpu.memory_space<vmem>>, vector<32x256xf32>
      tpu.vector_store %arg6[%c0_14, %c0_15], %17 {strides = array<i32>} : memref<32x256xf32, #tpu.memory_space<vmem>>, vector<32x256xf32>,
    } else {
    }
    return
  }
  func.func @transform_0(%arg0: i32, %arg1: i32, %arg2: i32) -> (i32, i32) {
    %c0_i32 = arith.constant 0 : i32
    return %arg0, %arg2 : i32, i32
  }
  func.func @transform_1(%arg0: i32, %arg1: i32, %arg2: i32) -> (i32, i32) {
    %c0_i32 = arith.constant 0 : i32
    return %arg2, %arg1 : i32, i32
  }
  func.func @transform_2(%arg0: i32, %arg1: i32, %arg2: i32) -> (i32, i32) {
    %c0_i32 = arith.constant 0 : i32
    %c0_i32_0 = arith.constant 0 : i32
    return %c0_i32, %arg1 : i32, i32
  }
  func.func @transform_3(%arg0: i32, %arg1: i32, %arg2: i32) -> (i32, i32) {
    %c0_i32 = arith.constant 0 : i32
    return %arg0, %arg1 : i32, i32
  }
}

module attributes {stable_mosaic.version = 11 : i64} {
  func.func @_fc_head_kernel(%arg0: i32, %arg1: memref<16x256xbf16, #tpu.memory_space<vmem>>, %arg2: memref<256x512xbf16, #tpu.memory_space<vmem>>, %arg3: memref<1x512xf32, #tpu.memory_space<vmem>>, %arg4: memref<512x128xbf16, #tpu.memory_space<vmem>>, %arg5: memref<1x128xf32, #tpu.memory_space<vmem>>, %arg6: memref<128x128xbf16, #tpu.memory_space<vmem>>, %arg7: memref<1x128xf32, #tpu.memory_space<vmem>>, %arg8: memref<1x128xf32, #tpu.memory_space<vmem>>, %arg9: memref<16x128xf32, #tpu.memory_space<vmem>>) attributes {dimension_semantics = [#tpu.dimension_semantics<arbitrary>], iteration_bounds = array<i64: 8>, scalar_prefetch = 0 : i64, scratch_operands = 1 : i64, tpu.core_type = #tpu.core_type<tc>, window_params = [{pipeline_mode = #tpu.pipeline_mode<synchronous>, transform_indices = @transform_0, window_bounds = array<i64: 16, 256>}, {transform_indices = @transform_1, window_bounds = array<i64: 256, 512>}, {transform_indices = @transform_2, window_bounds = array<i64: 1, 512>}, {transform_indices = @transform_3, window_bounds = array<i64: 512, 128>}, {pipeline_mode = #tpu.pipeline_mode<synchronous>, transform_indices = @transform_4, window_bounds = array<i64: 1, 128>}, {pipeline_mode = #tpu.pipeline_mode<synchronous>, transform_indices = @transform_5, window_bounds = array<i64: 128, 128>}, {pipeline_mode = #tpu.pipeline_mode<synchronous>, transform_indices = @transform_6, window_bounds = array<i64: 1, 128>}, {pipeline_mode = #tpu.pipeline_mode<synchronous>, transform_indices = @transform_7, window_bounds = array<i64: 1, 128>}]} {
    %c0_i32 = arith.constant 0 : i32
    %0 = arith.cmpi eq, %arg0, %c0_i32 : i32
    %1 = arith.extui %0 : i1 to i32
    %c0_i32_0 = arith.constant 0 : i32
    %2 = arith.cmpi ne, %1, %c0_i32_0 : i32
    scf.if %2 {
      %cst_15 = arith.constant 0.000000e+00 : f32
      %20 = vector.broadcast %cst_15 : f32 to vector<16x128xf32>
      %c0_16 = arith.constant 0 : index
      %c0_17 = arith.constant 0 : index
      %21 = vector.load %arg9[%c0_16, %c0_17] : memref<16x128xf32, #tpu.memory_space<vmem>>, vector<16x128xf32>
      tpu.vector_store %arg9[%c0_16, %c0_17], %20 {strides = array<i32>} : memref<16x128xf32, #tpu.memory_space<vmem>>, vector<16x128xf32>,
    } else {
    }
    %c0 = arith.constant 0 : index
    %c0_1 = arith.constant 0 : index
    %3 = vector.load %arg1[%c0, %c0_1] : memref<16x256xbf16, #tpu.memory_space<vmem>>, vector<16x256xbf16>
    %c0_2 = arith.constant 0 : index
    %c0_3 = arith.constant 0 : index
    %4 = vector.load %arg2[%c0_2, %c0_3] : memref<256x512xbf16, #tpu.memory_space<vmem>>, vector<256x512xbf16>
    %cst = arith.constant dense<0.000000e+00> : vector<16x512xf32>
    %5 = tpu.matmul %3, %4, %cst {dimension_numbers = #tpu.dot_dimension_numbers<[1], [0], [0], [1], [0, 0, 1, 1], [], []>} : vector<16x256xbf16>, vector<256x512xbf16>, vector<16x512xf32> -> vector<16x512xf32>
    %c0_4 = arith.constant 0 : index
    %c0_5 = arith.constant 0 : index
    %6 = vector.load %arg3[%c0_4, %c0_5] : memref<1x512xf32, #tpu.memory_space<vmem>>, vector<1x512xf32>
    %7 = vector.broadcast %6 : vector<1x512xf32> to vector<16x512xf32>
    %8 = arith.addf %5, %7 : vector<16x512xf32>
    %cst_6 = arith.constant 0.000000e+00 : f32
    %9 = vector.broadcast %cst_6 : f32 to vector<16x512xf32>
    %10 = arith.maximumf %8, %9 : vector<16x512xf32>
    %c0_7 = arith.constant 0 : index
    %c0_8 = arith.constant 0 : index
    %11 = vector.load %arg9[%c0_7, %c0_8] : memref<16x128xf32, #tpu.memory_space<vmem>>, vector<16x128xf32>
    %12 = arith.truncf %10 : vector<16x512xf32> to vector<16x512xbf16>
    %c0_9 = arith.constant 0 : index
    %c0_10 = arith.constant 0 : index
    %13 = vector.load %arg4[%c0_9, %c0_10] : memref<512x128xbf16, #tpu.memory_space<vmem>>, vector<512x128xbf16>
    %cst_11 = arith.constant dense<0.000000e+00> : vector<16x128xf32>
    %14 = tpu.matmul %12, %13, %cst_11 {dimension_numbers = #tpu.dot_dimension_numbers<[1], [0], [0], [1], [0, 0, 1, 1], [], []>} : vector<16x512xbf16>, vector<512x128xbf16>, vector<16x128xf32> -> vector<16x128xf32>
    %15 = arith.addf %11, %14 : vector<16x128xf32>
    %c0_12 = arith.constant 0 : index
    %c0_13 = arith.constant 0 : index
    %16 = vector.load %arg9[%c0_12, %c0_13] : memref<16x128xf32, #tpu.memory_space<vmem>>, vector<16x128xf32>
    tpu.vector_store %arg9[%c0_12, %c0_13], %15 {strides = array<i32>} : memref<16x128xf32, #tpu.memory_space<vmem>>, vector<16x128xf32>,
    %c7_i32 = arith.constant 7 : i32
    %17 = arith.cmpi eq, %arg0, %c7_i32 : i32
    %18 = arith.extui %17 : i1 to i32
    %c0_i32_14 = arith.constant 0 : i32
    %19 = arith.cmpi ne, %18, %c0_i32_14 : i32
    scf.if %19 {
      %c0_15 = arith.constant 0 : index
      %c0_16 = arith.constant 0 : index
      %20 = vector.load %arg9[%c0_15, %c0_16] : memref<16x128xf32, #tpu.memory_space<vmem>>, vector<16x128xf32>
      %c0_17 = arith.constant 0 : index
      %c0_18 = arith.constant 0 : index
      %21 = vector.load %arg5[%c0_17, %c0_18] : memref<1x128xf32, #tpu.memory_space<vmem>>, vector<1x128xf32>
      %22 = vector.broadcast %21 : vector<1x128xf32> to vector<16x128xf32>
      %23 = arith.addf %20, %22 : vector<16x128xf32>
      %cst_19 = arith.constant 0.000000e+00 : f32
      %24 = vector.broadcast %cst_19 : f32 to vector<16x128xf32>
      %25 = arith.maximumf %23, %24 : vector<16x128xf32>
      %26 = arith.truncf %25 : vector<16x128xf32> to vector<16x128xbf16>
      %c0_20 = arith.constant 0 : index
      %c0_21 = arith.constant 0 : index
      %27 = vector.load %arg6[%c0_20, %c0_21] : memref<128x128xbf16, #tpu.memory_space<vmem>>, vector<128x128xbf16>
      %cst_22 = arith.constant dense<0.000000e+00> : vector<16x128xf32>
      %28 = tpu.matmul %26, %27, %cst_22 {dimension_numbers = #tpu.dot_dimension_numbers<[1], [0], [0], [1], [0, 0, 1, 1], [], []>} : vector<16x128xbf16>, vector<128x128xbf16>, vector<16x128xf32> -> vector<16x128xf32>
      %c0_23 = arith.constant 0 : index
      %c0_24 = arith.constant 0 : index
      %29 = vector.load %arg7[%c0_23, %c0_24] : memref<1x128xf32, #tpu.memory_space<vmem>>, vector<1x128xf32>
      %30 = vector.broadcast %29 : vector<1x128xf32> to vector<16x128xf32>
      %31 = arith.addf %28, %30 : vector<16x128xf32>
      %32 = tpu.iota {dimensions = array<i32: 0>} : vector<16x128xi32>
      %c2_i32 = arith.constant 2 : i32
      %33 = vector.broadcast %c2_i32 : i32 to vector<16x128xi32>
      %34 = arith.cmpi slt, %32, %33 : vector<16x128xi32>
      %cst_25 = arith.constant 0.000000e+00 : f32
      %35 = vector.broadcast %cst_25 : f32 to vector<16x128xf32>
      %36 = arith.select %34, %31, %35 : vector<16x128xi1>, vector<16x128xf32>
      %cst_26 = arith.constant dense<0.000000e+00> : vector<128xf32>
      %37 = vector.multi_reduction <add>, %36, %cst_26 [0] : vector<16x128xf32> to vector<128xf32>
      %38 = vector.shape_cast %37 : vector<128xf32> to vector<1x128xf32>
      %c0_27 = arith.constant 0 : index
      %c0_28 = arith.constant 0 : index
      %39 = vector.load %arg8[%c0_27, %c0_28] : memref<1x128xf32, #tpu.memory_space<vmem>>, vector<1x128xf32>
      tpu.vector_store %arg8[%c0_27, %c0_28], %38 {strides = array<i32>} : memref<1x128xf32, #tpu.memory_space<vmem>>, vector<1x128xf32>,
    } else {
    }
    return
  }
  func.func @transform_0(%arg0: i32) -> (i32, i32) {
    %c0_i32 = arith.constant 0 : i32
    %c0_i32_0 = arith.constant 0 : i32
    %c0_i32_1 = arith.constant 0 : i32
    return %c0_i32, %c0_i32_0 : i32, i32
  }
  func.func @transform_1(%arg0: i32) -> (i32, i32) {
    %c0_i32 = arith.constant 0 : i32
    %c0_i32_0 = arith.constant 0 : i32
    return %c0_i32, %arg0 : i32, i32
  }
  func.func @transform_2(%arg0: i32) -> (i32, i32) {
    %c0_i32 = arith.constant 0 : i32
    %c0_i32_0 = arith.constant 0 : i32
    return %c0_i32, %arg0 : i32, i32
  }
  func.func @transform_3(%arg0: i32) -> (i32, i32) {
    %c0_i32 = arith.constant 0 : i32
    %c0_i32_0 = arith.constant 0 : i32
    return %arg0, %c0_i32 : i32, i32
  }
  func.func @transform_4(%arg0: i32) -> (i32, i32) {
    %c0_i32 = arith.constant 0 : i32
    %c0_i32_0 = arith.constant 0 : i32
    %c0_i32_1 = arith.constant 0 : i32
    return %c0_i32, %c0_i32_0 : i32, i32
  }
  func.func @transform_5(%arg0: i32) -> (i32, i32) {
    %c0_i32 = arith.constant 0 : i32
    %c0_i32_0 = arith.constant 0 : i32
    %c0_i32_1 = arith.constant 0 : i32
    return %c0_i32, %c0_i32_0 : i32, i32
  }
  func.func @transform_6(%arg0: i32) -> (i32, i32) {
    %c0_i32 = arith.constant 0 : i32
    %c0_i32_0 = arith.constant 0 : i32
    %c0_i32_1 = arith.constant 0 : i32
    return %c0_i32, %c0_i32_0 : i32, i32
  }
  func.func @transform_7(%arg0: i32) -> (i32, i32) {
    %c0_i32 = arith.constant 0 : i32
    %c0_i32_0 = arith.constant 0 : i32
    %c0_i32_1 = arith.constant 0 : i32
    return %c0_i32, %c0_i32_0 : i32, i32
  }
}

</mosaic_0001>

<llo_original>
// kernel: bgcnn_forward.6
$region0: #{bgcnn_forward.6}
  #allocation0 [shape = 'u32[]', space=smem, size = 0x4, offset = 0x4, fixed_abs, tag = 'smem constant byte address 0x4 - core index']
  #allocation1 [shape = 'u32[72,128]{1,0:T(1,128)}', space=vmem, size = 0x9000, scoped, tag = 'internal scratch']
  #allocation2 [shape = 'f32[256,128]{1,0:T(8,128)}', space=vmem, size = 0x20000, scoped, tag = 'scratch operand']
  %s0 = inlined_call_operand.vmem [shape: bf16[512,384], index: 0, kind: input, shape index: {}]
  %s1 = inlined_call_operand.vmem [shape: bf16[384,128], index: 1, kind: input, shape index: {}]
  %s2 = inlined_call_operand.vmem [shape: f32[1,128], index: 2, kind: input, shape index: {}]
  %s3 = inlined_call_operand.vmem [shape: f32[512,128], index: 3, kind: output, shape index: {}]
  %s4 = sld [smem:[#allocation0]]
  $region53: #{bgcnn_forward.6} parent=0
    _
  %s6 = ssub.s32 1, %s4
  %s7 = scalar_select 0, %s6, %s4
  loop: start=0, step=1, limit=4
  $region2: #{bgcnn_forward.6} parent=0 // loop_pre_header
    _
  $region3: #{bgcnn_forward.6} parent=0 // loop_header
    %s9 = sphi 0, %s13
    %p10 = scmp.ge.s32.totalorder %s9, 4
    %s16 = sphi 0, %s35
    %s17 = sphi 0, %s31
    %s18 = sphi 0, %s27
    %s19 = sphi 0, %s16
    %s20 = sphi 0, %s17
    %s21 = sphi 0, %s18
    %s22 = sphi 0, %s19
    %s23 = sphi 0, %s20
    %s24 = sphi 0, %s21
    %s40 = sphi 0, %s42
    %s43 = sphi 0, %s40
    %s44 = sphi 0, %s43
    %s60 = sphi 0, %s44
    %s68 = sphi 0, %s70
    %s71 = sphi 0, %s68
    %s72 = sphi 0, %s71
    %s88 = sphi 0, %s72
    %s94 = sphi 0, %s96
    %s97 = sphi 0, %s94
    %s98 = sphi 0, %s97
    %s114 = sphi 0, %s98
    %s122 = sphi 0, %s124
    %s125 = sphi 0, %s122
    %s126 = sphi 0, %s125
    %s142 = sphi 0, %s126
  $region4: #{bgcnn_forward.6} parent=0 // loop_header_branch
    %12 = sbr.rel (%p10) target = $region8
  $region5: #{bgcnn_forward.6} parent=0 // loop_body
    %s14 = ssub.s32 %s9, 1
    %s15 = ssub.s32 %s9, 2
    %s25 = sadd.s32 1, %s18
    %p26 = scmp.ge.s32.totalorder %s25, 1
    %s27 = scalar_select %p26, 0, %s25
    %s28 = sadd.s32 1, %s17
    %s29 = scalar_select %p26, %s28, %s17
    %p30 = scmp.ge.s32.totalorder %s29, 1
    %s31 = scalar_select %p30, 0, %s29
    %s32 = sadd.s32 1, %s16
    %s33 = scalar_select %p30, %s32, %s16
    %p34 = scmp.ge.s32.totalorder %s33, 2
    %s35 = scalar_select %p34, 0, %s33
    %s36 = ssub.s32 %s16, %s35
    %s37 = ssub.s32 %s18, %s27
    %s38 = sor.u32 %s36, %s37
    %p39 = scmp.eq.s32.totalorder %s38, 0
    %s41 = sadd.s32 %s40, 1
    %s42 = scalar_select %p39, %s40, %s41
    %p45 = pneg %p39
    %p46 = scmp.eq.s32.totalorder %s9, 1
    %p47 = por %p45, %p46
    %p48 = scmp.ne.s32.totalorder %s40, %s43
    %p49 = scmp.eq.s32.totalorder %s9, 0
    %p50 = por %p48, %p49
    %p51 = scmp.ne.s32.totalorder %s40, %s43
    %p52 = scmp.eq.s32.totalorder %s14, 1
    %p53 = por %p51, %p52
    %p54 = scmp.ne.s32.totalorder %s43, %s44
    %p55 = scmp.eq.s32.totalorder %s14, 0
    %p56 = por %p54, %p55
    %p57 = scmp.ne.s32.totalorder %s43, %s44
    %p58 = scmp.eq.s32.totalorder %s15, 1
    %p59 = por %p57, %p58
    %p61 = scmp.ne.s32.totalorder %s44, %s60
    %p62 = scmp.eq.s32.totalorder %s15, 0
    %p63 = por %p61, %p62
    %s64 = ssub.s32 %s18, %s27
    %s65 = ssub.s32 %s17, %s31
    %s66 = sor.u32 %s64, %s65
    %p67 = scmp.eq.s32.totalorder %s66, 0
    %s69 = sadd.s32 %s68, 1
    %s70 = scalar_select %p67, %s68, %s69
    %p73 = pneg %p67
    %p74 = scmp.eq.s32.totalorder %s9, 1
    %p75 = por %p73, %p74
    %p76 = scmp.ne.s32.totalorder %s68, %s71
    %p77 = scmp.eq.s32.totalorder %s9, 0
    %p78 = por %p76, %p77
    %p79 = scmp.ne.s32.totalorder %s68, %s71
    %p80 = scmp.eq.s32.totalorder %s14, 1
    %p81 = por %p79, %p80
    %p82 = scmp.ne.s32.totalorder %s71, %s72
    %p83 = scmp.eq.s32.totalorder %s14, 0
    %p84 = por %p82, %p83
    %p85 = scmp.ne.s32.totalorder %s71, %s72
    %p86 = scmp.eq.s32.totalorder %s15, 1
    %p87 = por %p85, %p86
    %p89 = scmp.ne.s32.totalorder %s72, %s88
    %p90 = scmp.eq.s32.totalorder %s15, 0
    %p91 = por %p89, %p90
    %s92 = ssub.s32 %s17, %s31
    %p93 = scmp.eq.s32.totalorder %s92, 0
    %s95 = sadd.s32 %s94, 1
    %s96 = scalar_select %p93, %s94, %s95
    %p99 = pneg %p93
    %p100 = scmp.eq.s32.totalorder %s9, 1
    %p101 = por %p99, %p100
    %p102 = scmp.ne.s32.totalorder %s94, %s97
    %p103 = scmp.eq.s32.totalorder %s9, 0
    %p104 = por %p102, %p103
    %p105 = scmp.ne.s32.totalorder %s94, %s97
    %p106 = scmp.eq.s32.totalorder %s14, 1
    %p107 = por %p105, %p106
    %p108 = scmp.ne.s32.totalorder %s97, %s98
    %p109 = scmp.eq.s32.totalorder %s14, 0
    %p110 = por %p108, %p109
    %p111 = scmp.ne.s32.totalorder %s97, %s98
    %p112 = scmp.eq.s32.totalorder %s15, 1
    %p113 = por %p111, %p112
    %p115 = scmp.ne.s32.totalorder %s98, %s114
    %p116 = scmp.eq.s32.totalorder %s15, 0
    %p117 = por %p115, %p116
    %s118 = ssub.s32 %s16, %s35
    %s119 = ssub.s32 %s17, %s31
    %s120 = sor.u32 %s118, %s119
    %p121 = scmp.eq.s32.totalorder %s120, 0
    %s123 = sadd.s32 %s122, 1
    %s124 = scalar_select %p121, %s122, %s123
    %p127 = pneg %p121
    %p128 = scmp.eq.s32.totalorder %s9, 1
    %p129 = por %p127, %p128
    %p130 = scmp.ne.s32.totalorder %s122, %s125
    %p131 = scmp.eq.s32.totalorder %s9, 0
    %p132 = por %p130, %p131
    %p133 = scmp.ne.s32.totalorder %s122, %s125
    %p134 = scmp.eq.s32.totalorder %s14, 1
    %p135 = por %p133, %p134
    %p136 = scmp.ne.s32.totalorder %s125, %s126
    %p137 = scmp.eq.s32.totalorder %s14, 0
    %p138 = por %p136, %p137
    %p139 = scmp.ne.s32.totalorder %s125, %s126
    %p140 = scmp.eq.s32.totalorder %s15, 1
    %p141 = por %p139, %p140
    %p143 = scmp.ne.s32.totalorder %s126, %s142
    %p144 = scmp.eq.s32.totalorder %s15, 0
    %p145 = por %p143, %p144
    %p146 = scmp.le.s32.totalorder 1, %s9
    %p147 = scmp.lt.s32.totalorder %s9, 3
    %p148 = pnand %p146, %p147
    %p149 = pneg %p148
    // Predicated region
    $region9: #{bgcnn_forward.6} parent=5 // pred_check
      _
    $region10: #{bgcnn_forward.6} parent=5 // pred_check_branch
      %151 = sbr.rel (%p148) target = $region12
    $region11: #{bgcnn_forward.6} parent=5 // pred_region
      %s152 = ssub.s32 %s9, 1
      // Predicated region
      $region13: #{bgcnn_forward.6} parent=11 // pred_check
        %p153 = pneg %p84
      $region14: #{bgcnn_forward.6} parent=11 // pred_check_branch
        %155 = sbr.rel (%p153) target = $region16
      $region15: #{bgcnn_forward.6} parent=11 // pred_region
        %s156 = smul.u32 48, %s21
        %p157 = scmp.lt.s32.totalorder %s156, 47
        %s158 = scalar_select %p157, %s156, 47
        %p159 = scmp.lt.s32.totalorder %s20, 0
        %s160 = scalar_select %p159, %s20, 0
        %s161 = sadd.s32 %s160, %s158
        %s162 = smul.addr %s161, 4
        %s163 = scalar_lea.vmem %s1, %s162
        %s164 = smul.u32 48, %s21
      $region16: #{bgcnn_forward.6} parent=11 // pred_fallthru
        _
      // Predicated region
      $region17: #{bgcnn_forward.6} parent=11 // pred_check
        %p165 = pneg %p110
      $region18: #{bgcnn_forward.6} parent=11 // pred_check_branch
        %167 = sbr.rel (%p165) target = $region20
      $region19: #{bgcnn_forward.6} parent=11 // pred_region
        %p168 = scmp.lt.s32.totalorder %s20, 0
        %s169 = scalar_select %p168, %s20, 0
        %s170 = scalar_lea.vmem %s2, %s169
      $region20: #{bgcnn_forward.6} parent=11 // pred_fallthru
        _
    $region12: #{bgcnn_forward.6} parent=5 // pred_fallthru
      _
    %p171 = scmp.lt.s32.totalorder %s9, 2
    // Predicated region
    $region21: #{bgcnn_forward.6} parent=5 // pred_check
      %p172 = pneg %p171
    $region22: #{bgcnn_forward.6} parent=5 // pred_check_branch
      %174 = sbr.rel (%p172) target = $region24
    $region23: #{bgcnn_forward.6} parent=5 // pred_region
      // Predicated region
      $region25: #{bgcnn_forward.6} parent=23 // pred_check
        %p175 = pneg %p50
      $region26: #{bgcnn_forward.6} parent=23 // pred_check_branch
        %177 = sbr.rel (%p175) target = $region28
      $region27: #{bgcnn_forward.6} parent=23 // pred_region
        %s178 = smul.u32 32, %s16
        %s179 = smul.u32 3, %s18
        %p180 = scmp.lt.s32.totalorder %s178, 63
        %s181 = scalar_select %p180, %s178, 63
        %p182 = scmp.lt.s32.totalorder %s179, 2
        %s183 = scalar_select %p182, %s179, 2
        %s184 = smul.addr %s181, 3
        %s185 = sadd.s32 %s183, %s184
        %s186 = smul.addr %s185, 4
        %s187 = scalar_lea.vmem %s0, %s186
        %s188 = smul.u32 32, %s16
        %s189 = smul.u32 3, %s18
      $region28: #{bgcnn_forward.6} parent=23 // pred_fallthru
        _
    $region24: #{bgcnn_forward.6} parent=5 // pred_fallthru
      _
    %p190 = scmp.le.s32.totalorder 1, %s9
    %p191 = scmp.lt.s32.totalorder %s9, 3
    %p192 = pnand %p190, %p191
    %p193 = pneg %p192
    // Predicated region
    $region29: #{bgcnn_forward.6} parent=5 // pred_check
      _
    $region30: #{bgcnn_forward.6} parent=5 // pred_check_branch
      %195 = sbr.rel (%p192) target = $region32
    $region31: #{bgcnn_forward.6} parent=5 // pred_region
      %s196 = ssub.s32 %s9, 1
      %s197 = smul.u32 32, %s19
      %s198 = smul.u32 3, %s21
      %p199 = scmp.lt.s32.totalorder %s197, 63
      %s200 = scalar_select %p199, %s197, 63
      %p201 = scmp.lt.s32.totalorder %s198, 2
      %s202 = scalar_select %p201, %s198, 2
      %s203 = smul.addr %s200, 3
      %s204 = sadd.s32 %s202, %s203
      %s205 = smul.addr %s204, 4
      %s206 = scalar_lea.vmem %s0, %s205
      %p207 = pneg %p56
      %p208 = pneg %p53
      %s209 = smul.u32 48, %s21
      %p210 = scmp.lt.s32.totalorder %s209, 47
      %s211 = scalar_select %p210, %s209, 47
      %p212 = scmp.lt.s32.totalorder %s20, 0
      %s213 = scalar_select %p212, %s20, 0
      %s214 = sadd.s32 %s213, %s211
      %s215 = smul.addr %s214, 4
      %s216 = scalar_lea.vmem %s1, %s215
      %p217 = pneg %p84
      %p218 = pneg %p81
      %p219 = scmp.lt.s32.totalorder %s20, 0
      %s220 = scalar_select %p219, %s20, 0
      %s221 = scalar_lea.vmem %s2, %s220
      %p222 = pneg %p110
      %p223 = pneg %p107
      %p224 = pneg %p138
      %p225 = pneg %p135
      %s226 = smul.u32 32, %s19
      %p227 = scmp.lt.s32.totalorder %s226, 63
      %s228 = scalar_select %p227, %s226, 63
      %p229 = scmp.lt.s32.totalorder %s20, 0
      %s230 = scalar_select %p229, %s20, 0
      %s231 = sadd.s32 %s230, %s228
      %s232 = smul.addr %s231, 8
      %s233 = scalar_lea.vmem %s3, %s232
      %s234 = smul.u32 32, %s19
      %s235 = smul.u32 3, %s21
      %p236 = scmp.lt.s32.totalorder %s234, 63
      %s237 = scalar_select %p236, %s234, 63
      %p238 = scmp.lt.s32.totalorder %s235, 2
      %s239 = scalar_select %p238, %s235, 2
      %s240 = smul.addr %s237, 3
      %s241 = sadd.s32 %s239, %s240
      %s242 = smul.addr %s241, 4
      %s243 = scalar_lea.vmem %s0, %s242
      %s244 = smul.u32 32, %s19
      %s245 = smul.u32 3, %s21
      %s246 = smul.u32 48, %s21
      %p247 = scmp.lt.s32.totalorder %s246, 47
      %s248 = scalar_select %p247, %s246, 47
      %p249 = scmp.lt.s32.totalorder %s20, 0
      %s250 = scalar_select %p249, %s20, 0
      %s251 = sadd.s32 %s250, %s248
      %s252 = smul.addr %s251, 4
      %s253 = scalar_lea.vmem %s1, %s252
      %s254 = smul.u32 48, %s21
      %p255 = scmp.lt.s32.totalorder %s20, 0
      %s256 = scalar_select %p255, %s20, 0
      %s257 = scalar_lea.vmem %s2, %s256
      %s258 = smul.u32 32, %s19
      %p259 = scmp.lt.s32.totalorder %s258, 63
      %s260 = scalar_select %p259, %s258, 63
      %p261 = scmp.lt.s32.totalorder %s20, 0
      %s262 = scalar_select %p261, %s20, 0
      %s263 = sadd.s32 %s262, %s260
      %s264 = smul.addr %s263, 8
      %s265 = scalar_lea.vmem %s3, %s264
      %s266 = smul.u32 32, %s19
      %p267 = scmp.eq.s32.totalorder %s21, 0
      // Predicated region
      $region33: #{bgcnn_forward.6} parent=31 // pred_check
        %p268 = pneg %p267
      $region34: #{bgcnn_forward.6} parent=31 // pred_check_branch
        %270 = sbr.rel (%p268) target = $region36
      $region35: #{bgcnn_forward.6} parent=31 // pred_region
        %271 = vst [vmem:[#allocation2] sm:$0xff] 0.0
        %272 = vst [vmem:[#allocation2 + $0x8] sm:$0xff] 0.0
        %273 = vst [vmem:[#allocation2 + $0x10] sm:$0xff] 0.0
        %274 = vst [vmem:[#allocation2 + $0x18] sm:$0xff] 0.0
        %275 = vst [vmem:[#allocation2 + $0x20] sm:$0xff] 0.0
        %276 = vst [vmem:[#allocation2 + $0x28] sm:$0xff] 0.0
        %277 = vst [vmem:[#allocation2 + $0x30] sm:$0xff] 0.0
        %278 = vst [vmem:[#allocation2 + $0x38] sm:$0xff] 0.0
        %279 = vst [vmem:[#allocation2 + $0x40] sm:$0xff] 0.0
        %280 = vst [vmem:[#allocation2 + $0x48] sm:$0xff] 0.0
        %281 = vst [vmem:[#allocation2 + $0x50] sm:$0xff] 0.0
        %282 = vst [vmem:[#allocation2 + $0x58] sm:$0xff] 0.0
        %283 = vst [vmem:[#allocation2 + $0x60] sm:$0xff] 0.0
        %284 = vst [vmem:[#allocation2 + $0x68] sm:$0xff] 0.0
        %285 = vst [vmem:[#allocation2 + $0x70] sm:$0xff] 0.0
        %286 = vst [vmem:[#allocation2 + $0x78] sm:$0xff] 0.0
        %287 = vst [vmem:[#allocation2 + $0x80] sm:$0xff] 0.0
        %288 = vst [vmem:[#allocation2 + $0x88] sm:$0xff] 0.0
        %289 = vst [vmem:[#allocation2 + $0x90] sm:$0xff] 0.0
        %290 = vst [vmem:[#allocation2 + $0x98] sm:$0xff] 0.0
        %291 = vst [vmem:[#allocation2 + $0xa0] sm:$0xff] 0.0
        %292 = vst [vmem:[#allocation2 + $0xa8] sm:$0xff] 0.0
        %293 = vst [vmem:[#allocation2 + $0xb0] sm:$0xff] 0.0
        %294 = vst [vmem:[#allocation2 + $0xb8] sm:$0xff] 0.0
        %295 = vst [vmem:[#allocation2 + $0xc0] sm:$0xff] 0.0
        %296 = vst [vmem:[#allocation2 + $0xc8] sm:$0xff] 0.0
        %297 = vst [vmem:[#allocation2 + $0xd0] sm:$0xff] 0.0
        %298 = vst [vmem:[#allocation2 + $0xd8] sm:$0xff] 0.0
        %299 = vst [vmem:[#allocation2 + $0xe0] sm:$0xff] 0.0
        %300 = vst [vmem:[#allocation2 + $0xe8] sm:$0xff] 0.0
        %301 = vst [vmem:[#allocation2 + $0xf0] sm:$0xff] 0.0
        %302 = vst [vmem:[#allocation2 + $0xf8] sm:$0xff] 0.0
      $region36: #{bgcnn_forward.6} parent=31 // pred_fallthru
        _
      %v303 = vld [vmem:[#allocation2] sm:$0xff]
      %v304 = vld [vmem:[#allocation2 + $0x8] sm:$0xff]
      %v305 = vld [vmem:[#allocation2 + $0x10] sm:$0xff]
      %v306 = vld [vmem:[#allocation2 + $0x18] sm:$0xff]
      %v307 = vld [vmem:[#allocation2 + $0x20] sm:$0xff]
      %v308 = vld [vmem:[#allocation2 + $0x28] sm:$0xff]
      %v309 = vld [vmem:[#allocation2 + $0x30] sm:$0xff]
      %v310 = vld [vmem:[#allocation2 + $0x38] sm:$0xff]
      %v311 = vld [vmem:[#allocation2 + $0x40] sm:$0xff]
      %v312 = vld [vmem:[#allocation2 + $0x48] sm:$0xff]
      %v313 = vld [vmem:[#allocation2 + $0x50] sm:$0xff]
      %v314 = vld [vmem:[#allocation2 + $0x58] sm:$0xff]
      %v315 = vld [vmem:[#allocation2 + $0x60] sm:$0xff]
      %v316 = vld [vmem:[#allocation2 + $0x68] sm:$0xff]
      %v317 = vld [vmem:[#allocation2 + $0x70] sm:$0xff]
      %v318 = vld [vmem:[#allocation2 + $0x78] sm:$0xff]
      %v319 = vld [vmem:[#allocation2 + $0x80] sm:$0xff]
      %v320 = vld [vmem:[#allocation2 + $0x88] sm:$0xff]
      %v321 = vld [vmem:[#allocation2 + $0x90] sm:$0xff]
      %v322 = vld [vmem:[#allocation2 + $0x98] sm:$0xff]
      %v323 = vld [vmem:[#allocation2 + $0xa0] sm:$0xff]
      %v324 = vld [vmem:[#allocation2 + $0xa8] sm:$0xff]
      %v325 = vld [vmem:[#allocation2 + $0xb0] sm:$0xff]
      %v326 = vld [vmem:[#allocation2 + $0xb8] sm:$0xff]
      %v327 = vld [vmem:[#allocation2 + $0xc0] sm:$0xff]
      %v328 = vld [vmem:[#allocation2 + $0xc8] sm:$0xff]
      %v329 = vld [vmem:[#allocation2 + $0xd0] sm:$0xff]
      %v330 = vld [vmem:[#allocation2 + $0xd8] sm:$0xff]
      %v331 = vld [vmem:[#allocation2 + $0xe0] sm:$0xff]
      %v332 = vld [vmem:[#allocation2 + $0xe8] sm:$0xff]
      %v333 = vld [vmem:[#allocation2 + $0xf0] sm:$0xff]
      %v334 = vld [vmem:[#allocation2 + $0xf8] sm:$0xff]
      %v335 = vld [vmem:[%s243] sm:$0xff]
      %v336 = vld [vmem:[%s243 + $0x8] sm:$0xf]
      %v337 = vld [vmem:[%s243 + $0xc] sm:$0xff]
      %v338 = vld [vmem:[%s243 + $0x14] sm:$0xf]
      %v339 = vld [vmem:[%s243 + $0x18] sm:$0xff]
      %v340 = vld [vmem:[%s243 + $0x20] sm:$0xf]
      %v341 = vld [vmem:[%s243 + $0x24] sm:$0xff]
      %v342 = vld [vmem:[%s243 + $0x2c] sm:$0xf]
      %v343 = vld [vmem:[%s243 + $0x30] sm:$0xff]
      %v344 = vld [vmem:[%s243 + $0x38] sm:$0xf]
      %v345 = vld [vmem:[%s243 + $0x3c] sm:$0xff]
      %v346 = vld [vmem:[%s243 + $0x44] sm:$0xf]
      %v347 = vld [vmem:[%s243 + $0x48] sm:$0xff]
      %v348 = vld [vmem:[%s243 + $0x50] sm:$0xf]
      %v349 = vld [vmem:[%s243 + $0x54] sm:$0xff]
      %v350 = vld [vmem:[%s243 + $0x5c] sm:$0xf]
      %v351 = vld [vmem:[%s243 + $0x60] sm:$0xff]
      %v352 = vld [vmem:[%s243 + $0x68] sm:$0xf]
      %v353 = vld [vmem:[%s243 + $0x6c] sm:$0xff]
      %v354 = vld [vmem:[%s243 + $0x74] sm:$0xf]
      %v355 = vld [vmem:[%s243 + $0x78] sm:$0xff]
      %v356 = vld [vmem:[%s243 + $0x80] sm:$0xf]
      %v357 = vld [vmem:[%s243 + $0x84] sm:$0xff]
      %v358 = vld [vmem:[%s243 + $0x8c] sm:$0xf]
      %v359 = vld [vmem:[%s243 + $0x90] sm:$0xff]
      %v360 = vld [vmem:[%s243 + $0x98] sm:$0xf]
      %v361 = vld [vmem:[%s243 + $0x9c] sm:$0xff]
      %v362 = vld [vmem:[%s243 + $0xa4] sm:$0xf]
      %v363 = vld [vmem:[%s243 + $0xa8] sm:$0xff]
      %v364 = vld [vmem:[%s243 + $0xb0] sm:$0xf]
      %v365 = vld [vmem:[%s243 + $0xb4] sm:$0xff]
      %v366 = vld [vmem:[%s243 + $0xbc] sm:$0xf]
      %v367 = vld [vmem:[%s243 + $0xc0] sm:$0xff]
      %v368 = vld [vmem:[%s243 + $0xc8] sm:$0xf]
      %v369 = vld [vmem:[%s243 + $0xcc] sm:$0xff]
      %v370 = vld [vmem:[%s243 + $0xd4] sm:$0xf]
      %v371 = vld [vmem:[%s243 + $0xd8] sm:$0xff]
      %v372 = vld [vmem:[%s243 + $0xe0] sm:$0xf]
      %v373 = vld [vmem:[%s243 + $0xe4] sm:$0xff]
      %v374 = vld [vmem:[%s243 + $0xec] sm:$0xf]
      %v375 = vld [vmem:[%s243 + $0xf0] sm:$0xff]
      %v376 = vld [vmem:[%s243 + $0xf8] sm:$0xf]
      %v377 = vld [vmem:[%s243 + $0xfc] sm:$0xff]
      %v378 = vld [vmem:[%s243 + $0x104] sm:$0xf]
      %v379 = vld [vmem:[%s243 + $0x108] sm:$0xff]
      %v380 = vld [vmem:[%s243 + $0x110] sm:$0xf]
      %v381 = vld [vmem:[%s243 + $0x114] sm:$0xff]
      %v382 = vld [vmem:[%s243 + $0x11c] sm:$0xf]
      %v383 = vld [vmem:[%s243 + $0x120] sm:$0xff]
      %v384 = vld [vmem:[%s243 + $0x128] sm:$0xf]
      %v385 = vld [vmem:[%s243 + $0x12c] sm:$0xff]
      %v386 = vld [vmem:[%s243 + $0x134] sm:$0xf]
      %v387 = vld [vmem:[%s243 + $0x138] sm:$0xff]
      %v388 = vld [vmem:[%s243 + $0x140] sm:$0xf]
      %v389 = vld [vmem:[%s243 + $0x144] sm:$0xff]
      %v390 = vld [vmem:[%s243 + $0x14c] sm:$0xf]
      %v391 = vld [vmem:[%s243 + $0x150] sm:$0xff]
      %v392 = vld [vmem:[%s243 + $0x158] sm:$0xf]
      %v393 = vld [vmem:[%s243 + $0x15c] sm:$0xff]
      %v394 = vld [vmem:[%s243 + $0x164] sm:$0xf]
      %v395 = vld [vmem:[%s243 + $0x168] sm:$0xff]
      %v396 = vld [vmem:[%s243 + $0x170] sm:$0xf]
      %v397 = vld [vmem:[%s243 + $0x174] sm:$0xff]
      %v398 = vld [vmem:[%s243 + $0x17c] sm:$0xf]
      %v399 = vld [vmem:[%s253] sm:$0xf]
      %v400 = vld [vmem:[%s253 + $0x4] sm:$0xf]
      %v401 = vld [vmem:[%s253 + $0x8] sm:$0xf]
      %v402 = vld [vmem:[%s253 + $0xc] sm:$0xf]
      %v403 = vld [vmem:[%s253 + $0x10] sm:$0xf]
      %v404 = vld [vmem:[%s253 + $0x14] sm:$0xf]
      %v405 = vld [vmem:[%s253 + $0x18] sm:$0xf]
      %v406 = vld [vmem:[%s253 + $0x1c] sm:$0xf]
      %v407 = vld [vmem:[%s253 + $0x20] sm:$0xf]
      %v408 = vld [vmem:[%s253 + $0x24] sm:$0xf]
      %v409 = vld [vmem:[%s253 + $0x28] sm:$0xf]
      %v410 = vld [vmem:[%s253 + $0x2c] sm:$0xf]
      %v411 = vld [vmem:[%s253 + $0x30] sm:$0xf]
      %v412 = vld [vmem:[%s253 + $0x34] sm:$0xf]
      %v413 = vld [vmem:[%s253 + $0x38] sm:$0xf]
      %v414 = vld [vmem:[%s253 + $0x3c] sm:$0xf]
      %v415 = vld [vmem:[%s253 + $0x40] sm:$0xf]
      %v416 = vld [vmem:[%s253 + $0x44] sm:$0xf]
      %v417 = vld [vmem:[%s253 + $0x48] sm:$0xf]
      %v418 = vld [vmem:[%s253 + $0x4c] sm:$0xf]
      %v419 = vld [vmem:[%s253 + $0x50] sm:$0xf]
      %v420 = vld [vmem:[%s253 + $0x54] sm:$0xf]
      %v421 = vld [vmem:[%s253 + $0x58] sm:$0xf]
      %v422 = vld [vmem:[%s253 + $0x5c] sm:$0xf]
      %v423 = vld [vmem:[%s253 + $0x60] sm:$0xf]
      %v424 = vld [vmem:[%s253 + $0x64] sm:$0xf]
      %v425 = vld [vmem:[%s253 + $0x68] sm:$0xf]
      %v426 = vld [vmem:[%s253 + $0x6c] sm:$0xf]
      %v427 = vld [vmem:[%s253 + $0x70] sm:$0xf]
      %v428 = vld [vmem:[%s253 + $0x74] sm:$0xf]
      %v429 = vld [vmem:[%s253 + $0x78] sm:$0xf]
      %v430 = vld [vmem:[%s253 + $0x7c] sm:$0xf]
      %v431 = vld [vmem:[%s253 + $0x80] sm:$0xf]
      %v432 = vld [vmem:[%s253 + $0x84] sm:$0xf]
      %v433 = vld [vmem:[%s253 + $0x88] sm:$0xf]
      %v434 = vld [vmem:[%s253 + $0x8c] sm:$0xf]
      %v435 = vld [vmem:[%s253 + $0x90] sm:$0xf]
      %v436 = vld [vmem:[%s253 + $0x94] sm:$0xf]
      %v437 = vld [vmem:[%s253 + $0x98] sm:$0xf]
      %v438 = vld [vmem:[%s253 + $0x9c] sm:$0xf]
      %v439 = vld [vmem:[%s253 + $0xa0] sm:$0xf]
      %v440 = vld [vmem:[%s253 + $0xa4] sm:$0xf]
      %v441 = vld [vmem:[%s253 + $0xa8] sm:$0xf]
      %v442 = vld [vmem:[%s253 + $0xac] sm:$0xf]
      %v443 = vld [vmem:[%s253 + $0xb0] sm:$0xf]
      %v444 = vld [vmem:[%s253 + $0xb4] sm:$0xf]
      %v445 = vld [vmem:[%s253 + $0xb8] sm:$0xf]
      %v446 = vld [vmem:[%s253 + $0xbc] sm:$0xf]
      %v511 = vunpack.c.l.b16 %v335
      %v512 = vunpack.c.h.b16 %v335
      %v513 = vunpack.c.l.b16 %v336
      %v514 = vunpack.c.l.b16 %v337
      %v515 = vunpack.c.h.b16 %v337
      %v516 = vunpack.c.l.b16 %v338
      %v517 = vunpack.c.l.b16 %v339
      %v518 = vunpack.c.h.b16 %v339
      %v519 = vunpack.c.l.b16 %v340
      %v520 = vunpack.c.l.b16 %v341
      %v521 = vunpack.c.h.b16 %v341
      %v522 = vunpack.c.l.b16 %v342
      %v523 = vunpack.c.l.b16 %v343
      %v524 = vunpack.c.h.b16 %v343
      %v525 = vunpack.c.l.b16 %v344
      %v526 = vunpack.c.l.b16 %v345
      %v527 = vunpack.c.h.b16 %v345
      %v528 = vunpack.c.l.b16 %v346
      %v529 = vunpack.c.l.b16 %v347
      %v530 = vunpack.c.h.b16 %v347
      %v531 = vunpack.c.l.b16 %v348
      %v532 = vunpack.c.l.b16 %v349
      %v533 = vunpack.c.h.b16 %v349
      %v534 = vunpack.c.l.b16 %v350
      %v535 = vunpack.c.l.b16 %v351
      %v536 = vunpack.c.h.b16 %v351
      %v537 = vunpack.c.l.b16 %v352
      %v538 = vunpack.c.l.b16 %v353
      %v539 = vunpack.c.h.b16 %v353
      %v540 = vunpack.c.l.b16 %v354
      %v541 = vunpack.c.l.b16 %v355
      %v542 = vunpack.c.h.b16 %v355
      %v543 = vunpack.c.l.b16 %v356
      %v544 = vunpack.c.l.b16 %v357
      %v545 = vunpack.c.h.b16 %v357
      %v546 = vunpack.c.l.b16 %v358
      %v547 = vunpack.c.l.b16 %v359
      %v548 = vunpack.c.h.b16 %v359
      %v549 = vunpack.c.l.b16 %v360
      %v550 = vunpack.c.l.b16 %v361
      %v551 = vunpack.c.h.b16 %v361
      %v552 = vunpack.c.l.b16 %v362
      %v553 = vunpack.c.l.b16 %v363
      %v554 = vunpack.c.h.b16 %v363
      %v555 = vunpack.c.l.b16 %v364
      %v556 = vunpack.c.l.b16 %v365
      %v557 = vunpack.c.h.b16 %v365
      %v558 = vunpack.c.l.b16 %v366
      %v559 = vunpack.c.l.b16 %v367
      %v560 = vunpack.c.h.b16 %v367
      %v561 = vunpack.c.l.b16 %v368
      %v562 = vunpack.c.l.b16 %v369
      %v563 = vunpack.c.h.b16 %v369
      %v564 = vunpack.c.l.b16 %v370
      %v565 = vunpack.c.l.b16 %v371
      %v566 = vunpack.c.h.b16 %v371
      %v567 = vunpack.c.l.b16 %v372
      %v568 = vunpack.c.l.b16 %v373
      %v569 = vunpack.c.h.b16 %v373
      %v570 = vunpack.c.l.b16 %v374
      %v571 = vunpack.c.l.b16 %v375
      %v572 = vunpack.c.h.b16 %v375
      %v573 = vunpack.c.l.b16 %v376
      %v574 = vunpack.c.l.b16 %v377
      %v575 = vunpack.c.h.b16 %v377
      %v576 = vunpack.c.l.b16 %v378
      %v577 = vunpack.c.l.b16 %v379
      %v578 = vunpack.c.h.b16 %v379
      %v579 = vunpack.c.l.b16 %v380
      %v580 = vunpack.c.l.b16 %v381
      %v581 = vunpack.c.h.b16 %v381
      %v582 = vunpack.c.l.b16 %v382
      %v583 = vunpack.c.l.b16 %v383
      %v584 = vunpack.c.h.b16 %v383
      %v585 = vunpack.c.l.b16 %v384
      %v586 = vunpack.c.l.b16 %v385
      %v587 = vunpack.c.h.b16 %v385
      %v588 = vunpack.c.l.b16 %v386
      %v589 = vunpack.c.l.b16 %v387
      %v590 = vunpack.c.h.b16 %v387
      %v591 = vunpack.c.l.b16 %v388
      %v592 = vunpack.c.l.b16 %v389
      %v593 = vunpack.c.h.b16 %v389
      %v594 = vunpack.c.l.b16 %v390
      %v595 = vunpack.c.l.b16 %v391
      %v596 = vunpack.c.h.b16 %v391
      %v597 = vunpack.c.l.b16 %v392
      %v598 = vunpack.c.l.b16 %v393
      %v599 = vunpack.c.h.b16 %v393
      %v600 = vunpack.c.l.b16 %v394
      %v601 = vunpack.c.l.b16 %v395
      %v602 = vunpack.c.h.b16 %v395
      %v603 = vunpack.c.l.b16 %v396
      %v604 = vunpack.c.l.b16 %v397
      %v605 = vunpack.c.h.b16 %v397
      %v606 = vunpack.c.l.b16 %v398
      %v607 = vpack.c.b16 %v514, %v511
      %v608 = vpack.c.b16 %v515, %v512
      %v609 = vpack.c.b16 %v516, %v513
      %v610 = vpack.c.b16 %v520, %v517
      %v611 = vpack.c.b16 %v521, %v518
      %v612 = vpack.c.b16 %v522, %v519
      %v613 = vpack.c.b16 %v526, %v523
      %v614 = vpack.c.b16 %v527, %v524
      %v615 = vpack.c.b16 %v528, %v525
      %v616 = vpack.c.b16 %v532, %v529
      %v617 = vpack.c.b16 %v533, %v530
      %v618 = vpack.c.b16 %v534, %v531
      %v619 = vpack.c.b16 %v538, %v535
      %v620 = vpack.c.b16 %v539, %v536
      %v621 = vpack.c.b16 %v540, %v537
      %v622 = vpack.c.b16 %v544, %v541
      %v623 = vpack.c.b16 %v545, %v542
      %v624 = vpack.c.b16 %v546, %v543
      %v625 = vpack.c.b16 %v550, %v547
      %v626 = vpack.c.b16 %v551, %v548
      %v627 = vpack.c.b16 %v552, %v549
      %v628 = vpack.c.b16 %v556, %v553
      %v629 = vpack.c.b16 %v557, %v554
      %v630 = vpack.c.b16 %v558, %v555
      %v631 = vpack.c.b16 %v562, %v559
      %v632 = vpack.c.b16 %v563, %v560
      %v633 = vpack.c.b16 %v564, %v561
      %v634 = vpack.c.b16 %v568, %v565
      %v635 = vpack.c.b16 %v569, %v566
      %v636 = vpack.c.b16 %v570, %v567
      %v637 = vpack.c.b16 %v574, %v571
      %v638 = vpack.c.b16 %v575, %v572
      %v639 = vpack.c.b16 %v576, %v573
      %v640 = vpack.c.b16 %v580, %v577
      %v641 = vpack.c.b16 %v581, %v578
      %v642 = vpack.c.b16 %v582, %v579
      %v643 = vpack.c.b16 %v586, %v583
      %v644 = vpack.c.b16 %v587, %v584
      %v645 = vpack.c.b16 %v588, %v585
      %v646 = vpack.c.b16 %v592, %v589
      %v647 = vpack.c.b16 %v593, %v590
      %v648 = vpack.c.b16 %v594, %v591
      %v649 = vpack.c.b16 %v598, %v595
      %v650 = vpack.c.b16 %v599, %v596
      %v651 = vpack.c.b16 %v600, %v597
      %v652 = vpack.c.b16 %v604, %v601
      %v653 = vpack.c.b16 %v605, %v602
      %v654 = vpack.c.b16 %v606, %v603
      %v751 = vunpack.c.l.b16 %v399
      %v752 = vunpack.c.l.b16 %v400
      %v753 = vunpack.c.l.b16 %v401
      %v754 = vunpack.c.l.b16 %v402
      %v755 = vunpack.c.l.b16 %v403
      %v756 = vunpack.c.l.b16 %v404
      %v757 = vunpack.c.l.b16 %v405
      %v758 = vunpack.c.l.b16 %v406
      %v759 = vunpack.c.l.b16 %v407
      %v760 = vunpack.c.l.b16 %v408
      %v761 = vunpack.c.l.b16 %v409
      %v762 = vunpack.c.l.b16 %v410
      %v763 = vunpack.c.l.b16 %v411
      %v764 = vunpack.c.l.b16 %v412
      %v765 = vunpack.c.l.b16 %v413
      %v766 = vunpack.c.l.b16 %v414
      %v767 = vunpack.c.l.b16 %v415
      %v768 = vunpack.c.l.b16 %v416
      %v769 = vunpack.c.l.b16 %v417
      %v770 = vunpack.c.l.b16 %v418
      %v771 = vunpack.c.l.b16 %v419
      %v772 = vunpack.c.l.b16 %v420
      %v773 = vunpack.c.l.b16 %v421
      %v774 = vunpack.c.l.b16 %v422
      %v775 = vunpack.c.l.b16 %v423
      %v776 = vunpack.c.l.b16 %v424
      %v777 = vunpack.c.l.b16 %v425
      %v778 = vunpack.c.l.b16 %v426
      %v779 = vunpack.c.l.b16 %v427
      %v780 = vunpack.c.l.b16 %v428
      %v781 = vunpack.c.l.b16 %v429
      %v782 = vunpack.c.l.b16 %v430
      %v783 = vunpack.c.l.b16 %v431
      %v784 = vunpack.c.l.b16 %v432
      %v785 = vunpack.c.l.b16 %v433
      %v786 = vunpack.c.l.b16 %v434
      %v787 = vunpack.c.l.b16 %v435
      %v788 = vunpack.c.l.b16 %v436
      %v789 = vunpack.c.l.b16 %v437
      %v790 = vunpack.c.l.b16 %v438
      %v791 = vunpack.c.l.b16 %v439
      %v792 = vunpack.c.l.b16 %v440
      %v793 = vunpack.c.l.b16 %v441
      %v794 = vunpack.c.l.b16 %v442
      %v795 = vunpack.c.l.b16 %v443
      %v796 = vunpack.c.l.b16 %v444
      %v797 = vunpack.c.l.b16 %v445
      %v798 = vunpack.c.l.b16 %v446
      %v799 = vpack.c.b16 %v752, %v751
      %v800 = vpack.c.b16 %v754, %v753
      %v801 = vpack.c.b16 %v756, %v755
      %v802 = vpack.c.b16 %v758, %v757
      %v803 = vpack.c.b16 %v760, %v759
      %v804 = vpack.c.b16 %v762, %v761
      %v805 = vpack.c.b16 %v764, %v763
      %v806 = vpack.c.b16 %v766, %v765
      %v807 = vpack.c.b16 %v768, %v767
      %v808 = vpack.c.b16 %v770, %v769
      %v809 = vpack.c.b16 %v772, %v771
      %v810 = vpack.c.b16 %v774, %v773
      %v811 = vpack.c.b16 %v776, %v775
      %v812 = vpack.c.b16 %v778, %v777
      %v813 = vpack.c.b16 %v780, %v779
      %v814 = vpack.c.b16 %v782, %v781
      %v815 = vpack.c.b16 %v784, %v783
      %v816 = vpack.c.b16 %v786, %v785
      %v817 = vpack.c.b16 %v788, %v787
      %v818 = vpack.c.b16 %v790, %v789
      %v819 = vpack.c.b16 %v792, %v791
      %v820 = vpack.c.b16 %v794, %v793
      %v821 = vpack.c.b16 %v796, %v795
      %v822 = vpack.c.b16 %v798, %v797
      %847 = vmatpush.bf16.msra.mxu0 %v806
      %848 = vmatpush.bf16.msra.mxu0 %v805
      %849 = vmatpush.bf16.msra.mxu0 %v804
      %850 = vmatpush.bf16.msra.mxu0 %v803
      %851 = vmatpush.bf16.msra.mxu0 %v802
      %852 = vmatpush.bf16.msra.mxu0 %v801
      %853 = vmatpush.bf16.msra.mxu0 %v800
      %854 = vmatpush.bf16.msra.mxu0 %v799
      %855 = vmatmul.bf16.gmra.mxu0 %v607
      %v856 = vpop.f32.mrf.mxu0
      %v857 = vadd.f32 0.0, %v856
      %v858 = vpop.f32.mrf.mxu0
      %v859 = vadd.f32 0.0, %v858
      %860 = vmatmul.bf16.gmra.mxu0 %v610
      %v861 = vpop.f32.mrf.mxu0
      %v862 = vadd.f32 0.0, %v861
      %v863 = vpop.f32.mrf.mxu0
      %v864 = vadd.f32 0.0, %v863
      %865 = vmatmul.bf16.gmra.mxu0 %v613
      %v866 = vpop.f32.mrf.mxu0
      %v867 = vadd.f32 0.0, %v866
      %v868 = vpop.f32.mrf.mxu0
      %v869 = vadd.f32 0.0, %v868
      %870 = vmatmul.bf16.gmra.mxu0 %v616
      %v871 = vpop.f32.mrf.mxu0
      %v872 = vadd.f32 0.0, %v871
      %v873 = vpop.f32.mrf.mxu0
      %v874 = vadd.f32 0.0, %v873
      %875 = vmatmul.bf16.gmra.mxu0 %v619
      %v876 = vpop.f32.mrf.mxu0
      %v877 = vadd.f32 0.0, %v876
      %v878 = vpop.f32.mrf.mxu0
      %v879 = vadd.f32 0.0, %v878
      %880 = vmatmul.bf16.gmra.mxu0 %v622
      %v881 = vpop.f32.mrf.mxu0
      %v882 = vadd.f32 0.0, %v881
      %v883 = vpop.f32.mrf.mxu0
      %v884 = vadd.f32 0.0, %v883
      %885 = vmatmul.bf16.gmra.mxu0 %v625
      %v886 = vpop.f32.mrf.mxu0
      %v887 = vadd.f32 0.0, %v886
      %v888 = vpop.f32.mrf.mxu0
      %v889 = vadd.f32 0.0, %v888
      %890 = vmatmul.bf16.gmra.mxu0 %v628
      %v891 = vpop.f32.mrf.mxu0
      %v892 = vadd.f32 0.0, %v891
      %v893 = vpop.f32.mrf.mxu0
      %v894 = vadd.f32 0.0, %v893
      %895 = vmatmul.bf16.gmra.mxu0 %v631
      %v896 = vpop.f32.mrf.mxu0
      %v897 = vadd.f32 0.0, %v896
      %v898 = vpop.f32.mrf.mxu0
      %v899 = vadd.f32 0.0, %v898
      %900 = vmatmul.bf16.gmra.mxu0 %v634
      %v901 = vpop.f32.mrf.mxu0
      %v902 = vadd.f32 0.0, %v901
      %v903 = vpop.f32.mrf.mxu0
      %v904 = vadd.f32 0.0, %v903
      %905 = vmatmul.bf16.gmra.mxu0 %v637
      %v906 = vpop.f32.mrf.mxu0
      %v907 = vadd.f32 0.0, %v906
      %v908 = vpop.f32.mrf.mxu0
      %v909 = vadd.f32 0.0, %v908
      %910 = vmatmul.bf16.gmra.mxu0 %v640
      %v911 = vpop.f32.mrf.mxu0
      %v912 = vadd.f32 0.0, %v911
      %v913 = vpop.f32.mrf.mxu0
      %v914 = vadd.f32 0.0, %v913
      %915 = vmatmul.bf16.gmra.mxu0 %v643
      %v916 = vpop.f32.mrf.mxu0
      %v917 = vadd.f32 0.0, %v916
      %v918 = vpop.f32.mrf.mxu0
      %v919 = vadd.f32 0.0, %v918
      %920 = vmatmul.bf16.gmra.mxu0 %v646
      %v921 = vpop.f32.mrf.mxu0
      %v922 = vadd.f32 0.0, %v921
      %v923 = vpop.f32.mrf.mxu0
      %v924 = vadd.f32 0.0, %v923
      %925 = vmatmul.bf16.gmra.mxu0 %v649
      %v926 = vpop.f32.mrf.mxu0
      %v927 = vadd.f32 0.0, %v926
      %v928 = vpop.f32.mrf.mxu0
      %v929 = vadd.f32 0.0, %v928
      %930 = vmatmul.bf16.gmra.mxu0 %v652
      %v931 = vpop.f32.mrf.mxu0
      %v932 = vadd.f32 0.0, %v931
      %v933 = vpop.f32.mrf.mxu0
      %v934 = vadd.f32 0.0, %v933
      %935 = vdwg.mxu0
      %936 = vmatpush.bf16.msra.mxu0 %v814
      %937 = vmatpush.bf16.msra.mxu0 %v813
      %938 = vmatpush.bf16.msra.mxu0 %v812
      %939 = vmatpush.bf16.msra.mxu0 %v811
      %940 = vmatpush.bf16.msra.mxu0 %v810
      %941 = vmatpush.bf16.msra.mxu0 %v809
      %942 = vmatpush.bf16.msra.mxu0 %v808
      %943 = vmatpush.bf16.msra.mxu0 %v807
      %944 = vmatmul.bf16.gmra.mxu0 %v608
      %v945 = vpop.f32.mrf.mxu0
      %v946 = vadd.f32 %v857, %v945
      %v947 = vpop.f32.mrf.mxu0
      %v948 = vadd.f32 %v859, %v947
      %949 = vmatmul.bf16.gmra.mxu0 %v611
      %v950 = vpop.f32.mrf.mxu0
      %v951 = vadd.f32 %v862, %v950
      %v952 = vpop.f32.mrf.mxu0
      %v953 = vadd.f32 %v864, %v952
      %954 = vmatmul.bf16.gmra.mxu0 %v614
      %v955 = vpop.f32.mrf.mxu0
      %v956 = vadd.f32 %v867, %v955
      %v957 = vpop.f32.mrf.mxu0
      %v958 = vadd.f32 %v869, %v957
      %959 = vmatmul.bf16.gmra.mxu0 %v617
      %v960 = vpop.f32.mrf.mxu0
      %v961 = vadd.f32 %v872, %v960
      %v962 = vpop.f32.mrf.mxu0
      %v963 = vadd.f32 %v874, %v962
      %964 = vmatmul.bf16.gmra.mxu0 %v620
      %v965 = vpop.f32.mrf.mxu0
      %v966 = vadd.f32 %v877, %v965
      %v967 = vpop.f32.mrf.mxu0
      %v968 = vadd.f32 %v879, %v967
      %969 = vmatmul.bf16.gmra.mxu0 %v623
      %v970 = vpop.f32.mrf.mxu0
      %v971 = vadd.f32 %v882, %v970
      %v972 = vpop.f32.mrf.mxu0
      %v973 = vadd.f32 %v884, %v972
      %974 = vmatmul.bf16.gmra.mxu0 %v626
      %v975 = vpop.f32.mrf.mxu0
      %v976 = vadd.f32 %v887, %v975
      %v977 = vpop.f32.mrf.mxu0
      %v978 = vadd.f32 %v889, %v977
      %979 = vmatmul.bf16.gmra.mxu0 %v629
      %v980 = vpop.f32.mrf.mxu0
      %v981 = vadd.f32 %v892, %v980
      %v982 = vpop.f32.mrf.mxu0
      %v983 = vadd.f32 %v894, %v982
      %984 = vmatmul.bf16.gmra.mxu0 %v632
      %v985 = vpop.f32.mrf.mxu0
      %v986 = vadd.f32 %v897, %v985
      %v987 = vpop.f32.mrf.mxu0
      %v988 = vadd.f32 %v899, %v987
      %989 = vmatmul.bf16.gmra.mxu0 %v635
      %v990 = vpop.f32.mrf.mxu0
      %v991 = vadd.f32 %v902, %v990
      %v992 = vpop.f32.mrf.mxu0
      %v993 = vadd.f32 %v904, %v992
      %994 = vmatmul.bf16.gmra.mxu0 %v638
      %v995 = vpop.f32.mrf.mxu0
      %v996 = vadd.f32 %v907, %v995
      %v997 = vpop.f32.mrf.mxu0
      %v998 = vadd.f32 %v909, %v997
      %999 = vmatmul.bf16.gmra.mxu0 %v641
      %v1000 = vpop.f32.mrf.mxu0
      %v1001 = vadd.f32 %v912, %v1000
      %v1002 = vpop.f32.mrf.mxu0
      %v1003 = vadd.f32 %v914, %v1002
      %1004 = vmatmul.bf16.gmra.mxu0 %v644
      %v1005 = vpop.f32.mrf.mxu0
      %v1006 = vadd.f32 %v917, %v1005
      %v1007 = vpop.f32.mrf.mxu0
      %v1008 = vadd.f32 %v919, %v1007
      %1009 = vmatmul.bf16.gmra.mxu0 %v647
      %v1010 = vpop.f32.mrf.mxu0
      %v1011 = vadd.f32 %v922, %v1010
      %v1012 = vpop.f32.mrf.mxu0
      %v1013 = vadd.f32 %v924, %v1012
      %1014 = vmatmul.bf16.gmra.mxu0 %v650
      %v1015 = vpop.f32.mrf.mxu0
      %v1016 = vadd.f32 %v927, %v1015
      %v1017 = vpop.f32.mrf.mxu0
      %v1018 = vadd.f32 %v929, %v1017
      %1019 = vmatmul.bf16.gmra.mxu0 %v653
      %v1020 = vpop.f32.mrf.mxu0
      %v1021 = vadd.f32 %v932, %v1020
      %v1022 = vpop.f32.mrf.mxu0
      %v1023 = vadd.f32 %v934, %v1022
      %1024 = vdwg.mxu0
      %1025 = vmatpush.bf16.msra.mxu0 %v822
      %1026 = vmatpush.bf16.msra.mxu0 %v821
      %1027 = vmatpush.bf16.msra.mxu0 %v820
      %1028 = vmatpush.bf16.msra.mxu0 %v819
      %1029 = vmatpush.bf16.msra.mxu0 %v818
      %1030 = vmatpush.bf16.msra.mxu0 %v817
      %1031 = vmatpush.bf16.msra.mxu0 %v816
      %1032 = vmatpush.bf16.msra.mxu0 %v815
      %1033 = vmatmul.bf16.gmra.mxu0 %v609
      %v1034 = vpop.f32.mrf.mxu0
      %v1035 = vadd.f32 %v946, %v1034
      %v1036 = vpop.f32.mrf.mxu0
      %v1037 = vadd.f32 %v948, %v1036
      %1038 = vmatmul.bf16.gmra.mxu0 %v612
      %v1039 = vpop.f32.mrf.mxu0
      %v1040 = vadd.f32 %v951, %v1039
      %v1041 = vpop.f32.mrf.mxu0
      %v1042 = vadd.f32 %v953, %v1041
      %1043 = vmatmul.bf16.gmra.mxu0 %v615
      %v1044 = vpop.f32.mrf.mxu0
      %v1045 = vadd.f32 %v956, %v1044
      %v1046 = vpop.f32.mrf.mxu0
      %v1047 = vadd.f32 %v958, %v1046
      %1048 = vmatmul.bf16.gmra.mxu0 %v618
      %v1049 = vpop.f32.mrf.mxu0
      %v1050 = vadd.f32 %v961, %v1049
      %v1051 = vpop.f32.mrf.mxu0
      %v1052 = vadd.f32 %v963, %v1051
      %1053 = vmatmul.bf16.gmra.mxu0 %v621
      %v1054 = vpop.f32.mrf.mxu0
      %v1055 = vadd.f32 %v966, %v1054
      %v1056 = vpop.f32.mrf.mxu0
      %v1057 = vadd.f32 %v968, %v1056
      %1058 = vmatmul.bf16.gmra.mxu0 %v624
      %v1059 = vpop.f32.mrf.mxu0
      %v1060 = vadd.f32 %v971, %v1059
      %v1061 = vpop.f32.mrf.mxu0
      %v1062 = vadd.f32 %v973, %v1061
      %1063 = vmatmul.bf16.gmra.mxu0 %v627
      %v1064 = vpop.f32.mrf.mxu0
      %v1065 = vadd.f32 %v976, %v1064
      %v1066 = vpop.f32.mrf.mxu0
      %v1067 = vadd.f32 %v978, %v1066
      %1068 = vmatmul.bf16.gmra.mxu0 %v630
      %v1069 = vpop.f32.mrf.mxu0
      %v1070 = vadd.f32 %v981, %v1069
      %v1071 = vpop.f32.mrf.mxu0
      %v1072 = vadd.f32 %v983, %v1071
      %1073 = vmatmul.bf16.gmra.mxu0 %v633
      %v1074 = vpop.f32.mrf.mxu0
      %v1075 = vadd.f32 %v986, %v1074
      %v1076 = vpop.f32.mrf.mxu0
      %v1077 = vadd.f32 %v988, %v1076
      %1078 = vmatmul.bf16.gmra.mxu0 %v636
      %v1079 = vpop.f32.mrf.mxu0
      %v1080 = vadd.f32 %v991, %v1079
      %v1081 = vpop.f32.mrf.mxu0
      %v1082 = vadd.f32 %v993, %v1081
      %1083 = vmatmul.bf16.gmra.mxu0 %v639
      %v1084 = vpop.f32.mrf.mxu0
      %v1085 = vadd.f32 %v996, %v1084
      %v1086 = vpop.f32.mrf.mxu0
      %v1087 = vadd.f32 %v998, %v1086
      %1088 = vmatmul.bf16.gmra.mxu0 %v642
      %v1089 = vpop.f32.mrf.mxu0
      %v1090 = vadd.f32 %v1001, %v1089
      %v1091 = vpop.f32.mrf.mxu0
      %v1092 = vadd.f32 %v1003, %v1091
      %1093 = vmatmul.bf16.gmra.mxu0 %v645
      %v1094 = vpop.f32.mrf.mxu0
      %v1095 = vadd.f32 %v1006, %v1094
      %v1096 = vpop.f32.mrf.mxu0
      %v1097 = vadd.f32 %v1008, %v1096
      %1098 = vmatmul.bf16.gmra.mxu0 %v648
      %v1099 = vpop.f32.mrf.mxu0
      %v1100 = vadd.f32 %v1011, %v1099
      %v1101 = vpop.f32.mrf.mxu0
      %v1102 = vadd.f32 %v1013, %v1101
      %1103 = vmatmul.bf16.gmra.mxu0 %v651
      %v1104 = vpop.f32.mrf.mxu0
      %v1105 = vadd.f32 %v1016, %v1104
      %v1106 = vpop.f32.mrf.mxu0
      %v1107 = vadd.f32 %v1018, %v1106
      %1108 = vmatmul.bf16.gmra.mxu0 %v654
      %v1109 = vpop.f32.mrf.mxu0
      %v1110 = vadd.f32 %v1021, %v1109
      %v1111 = vpop.f32.mrf.mxu0
      %v1112 = vadd.f32 %v1023, %v1111
      %1113 = vdwg.mxu0
      %v1114 = vadd.f32 %v303, %v1035
      %v1115 = vadd.f32 %v304, %v1037
      %v1116 = vadd.f32 %v305, %v1040
      %v1117 = vadd.f32 %v306, %v1042
      %v1118 = vadd.f32 %v307, %v1045
      %v1119 = vadd.f32 %v308, %v1047
      %v1120 = vadd.f32 %v309, %v1050
      %v1121 = vadd.f32 %v310, %v1052
      %v1122 = vadd.f32 %v311, %v1055
      %v1123 = vadd.f32 %v312, %v1057
      %v1124 = vadd.f32 %v313, %v1060
      %v1125 = vadd.f32 %v314, %v1062
      %v1126 = vadd.f32 %v315, %v1065
      %v1127 = vadd.f32 %v316, %v1067
      %v1128 = vadd.f32 %v317, %v1070
      %v1129 = vadd.f32 %v318, %v1072
      %v1130 = vadd.f32 %v319, %v1075
      %v1131 = vadd.f32 %v320, %v1077
      %v1132 = vadd.f32 %v321, %v1080
      %v1133 = vadd.f32 %v322, %v1082
      %v1134 = vadd.f32 %v323, %v1085
      %v1135 = vadd.f32 %v324, %v1087
      %v1136 = vadd.f32 %v325, %v1090
      %v1137 = vadd.f32 %v326, %v1092
      %v1138 = vadd.f32 %v327, %v1095
      %v1139 = vadd.f32 %v328, %v1097
      %v1140 = vadd.f32 %v329, %v1100
      %v1141 = vadd.f32 %v330, %v1102
      %v1142 = vadd.f32 %v331, %v1105
      %v1143 = vadd.f32 %v332, %v1107
      %v1144 = vadd.f32 %v333, %v1110
      %v1145 = vadd.f32 %v334, %v1112
      %1146 = vst [vmem:[#allocation2] sm:$0xff] %v1114
      %1147 = vst [vmem:[#allocation2 + $0x8] sm:$0xff] %v1115
      %1148 = vst [vmem:[#allocation2 + $0x10] sm:$0xff] %v1116
      %1149 = vst [vmem:[#allocation2 + $0x18] sm:$0xff] %v1117
      %1150 = vst [vmem:[#allocation2 + $0x20] sm:$0xff] %v1118
      %1151 = vst [vmem:[#allocation2 + $0x28] sm:$0xff] %v1119
      %1152 = vst [vmem:[#allocation2 + $0x30] sm:$0xff] %v1120
      %1153 = vst [vmem:[#allocation2 + $0x38] sm:$0xff] %v1121
      %1154 = vst [vmem:[#allocation2 + $0x40] sm:$0xff] %v1122
      %1155 = vst [vmem:[#allocation2 + $0x48] sm:$0xff] %v1123
      %1156 = vst [vmem:[#allocation2 + $0x50] sm:$0xff] %v1124
      %1157 = vst [vmem:[#allocation2 + $0x58] sm:$0xff] %v1125
      %1158 = vst [vmem:[#allocation2 + $0x60] sm:$0xff] %v1126
      %1159 = vst [vmem:[#allocation2 + $0x68] sm:$0xff] %v1127
      %1160 = vst [vmem:[#allocation2 + $0x70] sm:$0xff] %v1128
      %1161 = vst [vmem:[#allocation2 + $0x78] sm:$0xff] %v1129
      %1162 = vst [vmem:[#allocation2 + $0x80] sm:$0xff] %v1130
      %1163 = vst [vmem:[#allocation2 + $0x88] sm:$0xff] %v1131
      %1164 = vst [vmem:[#allocation2 + $0x90] sm:$0xff] %v1132
      %1165 = vst [vmem:[#allocation2 + $0x98] sm:$0xff] %v1133
      %1166 = vst [vmem:[#allocation2 + $0xa0] sm:$0xff] %v1134
      %1167 = vst [vmem:[#allocation2 + $0xa8] sm:$0xff] %v1135
      %1168 = vst [vmem:[#allocation2 + $0xb0] sm:$0xff] %v1136
      %1169 = vst [vmem:[#allocation2 + $0xb8] sm:$0xff] %v1137
      %1170 = vst [vmem:[#allocation2 + $0xc0] sm:$0xff] %v1138
      %1171 = vst [vmem:[#allocation2 + $0xc8] sm:$0xff] %v1139
      %1172 = vst [vmem:[#allocation2 + $0xd0] sm:$0xff] %v1140
      %1173 = vst [vmem:[#allocation2 + $0xd8] sm:$0xff] %v1141
      %1174 = vst [vmem:[#allocation2 + $0xe0] sm:$0xff] %v1142
      %1175 = vst [vmem:[#allocation2 + $0xe8] sm:$0xff] %v1143
      %1176 = vst [vmem:[#allocation2 + $0xf0] sm:$0xff] %v1144
      %1177 = vst [vmem:[#allocation2 + $0xf8] sm:$0xff] %v1145
      // Predicated region
      $region37: #{bgcnn_forward.6} parent=31 // pred_check
        %p1178 = pneg %p267
      $region38: #{bgcnn_forward.6} parent=31 // pred_check_branch
        %1180 = sbr.rel (%p1178) target = $region40
      $region39: #{bgcnn_forward.6} parent=31 // pred_region
        %v1181 = vld [vmem:[#allocation2] sm:$0xff]
        %v1182 = vld [vmem:[#allocation2 + $0x8] sm:$0xff]
        %v1183 = vld [vmem:[#allocation2 + $0x10] sm:$0xff]
        %v1184 = vld [vmem:[#allocation2 + $0x18] sm:$0xff]
        %v1185 = vld [vmem:[#allocation2 + $0x20] sm:$0xff]
        %v1186 = vld [vmem:[#allocation2 + $0x28] sm:$0xff]
        %v1187 = vld [vmem:[#allocation2 + $0x30] sm:$0xff]
        %v1188 = vld [vmem:[#allocation2 + $0x38] sm:$0xff]
        %v1189 = vld [vmem:[#allocation2 + $0x40] sm:$0xff]
        %v1190 = vld [vmem:[#allocation2 + $0x48] sm:$0xff]
        %v1191 = vld [vmem:[#allocation2 + $0x50] sm:$0xff]
        %v1192 = vld [vmem:[#allocation2 + $0x58] sm:$0xff]
        %v1193 = vld [vmem:[#allocation2 + $0x60] sm:$0xff]
        %v1194 = vld [vmem:[#allocation2 + $0x68] sm:$0xff]
        %v1195 = vld [vmem:[#allocation2 + $0x70] sm:$0xff]
        %v1196 = vld [vmem:[#allocation2 + $0x78] sm:$0xff]
        %v1197 = vld [vmem:[#allocation2 + $0x80] sm:$0xff]
        %v1198 = vld [vmem:[#allocation2 + $0x88] sm:$0xff]
        %v1199 = vld [vmem:[#allocation2 + $0x90] sm:$0xff]
        %v1200 = vld [vmem:[#allocation2 + $0x98] sm:$0xff]
        %v1201 = vld [vmem:[#allocation2 + $0xa0] sm:$0xff]
        %v1202 = vld [vmem:[#allocation2 + $0xa8] sm:$0xff]
        %v1203 = vld [vmem:[#allocation2 + $0xb0] sm:$0xff]
        %v1204 = vld [vmem:[#allocation2 + $0xb8] sm:$0xff]
        %v1205 = vld [vmem:[#allocation2 + $0xc0] sm:$0xff]
        %v1206 = vld [vmem:[#allocation2 + $0xc8] sm:$0xff]
        %v1207 = vld [vmem:[#allocation2 + $0xd0] sm:$0xff]
        %v1208 = vld [vmem:[#allocation2 + $0xd8] sm:$0xff]
        %v1209 = vld [vmem:[#allocation2 + $0xe0] sm:$0xff]
        %v1210 = vld [vmem:[#allocation2 + $0xe8] sm:$0xff]
        %v1211 = vld [vmem:[#allocation2 + $0xf0] sm:$0xff]
        %v1212 = vld [vmem:[#allocation2 + $0xf8] sm:$0xff]
        %v1213 = vld [vmem:[%s257] sm:$0x1]
        %v1215 = vperm.slane %v1213, 0
        %v1217 = vadd.f32 %v1181, %v1215
        %v1218 = vadd.f32 %v1182, %v1215
        %v1219 = vadd.f32 %v1183, %v1215
        %v1220 = vadd.f32 %v1184, %v1215
        %v1221 = vadd.f32 %v1185, %v1215
        %v1222 = vadd.f32 %v1186, %v1215
        %v1223 = vadd.f32 %v1187, %v1215
        %v1224 = vadd.f32 %v1188, %v1215
        %v1225 = vadd.f32 %v1189, %v1215
        %v1226 = vadd.f32 %v1190, %v1215
        %v1227 = vadd.f32 %v1191, %v1215
        %v1228 = vadd.f32 %v1192, %v1215
        %v1229 = vadd.f32 %v1193, %v1215
        %v1230 = vadd.f32 %v1194, %v1215
        %v1231 = vadd.f32 %v1195, %v1215
        %v1232 = vadd.f32 %v1196, %v1215
        %v1233 = vadd.f32 %v1197, %v1215
        %v1234 = vadd.f32 %v1198, %v1215
        %v1235 = vadd.f32 %v1199, %v1215
        %v1236 = vadd.f32 %v1200, %v1215
        %v1237 = vadd.f32 %v1201, %v1215
        %v1238 = vadd.f32 %v1202, %v1215
        %v1239 = vadd.f32 %v1203, %v1215
        %v1240 = vadd.f32 %v1204, %v1215
        %v1241 = vadd.f32 %v1205, %v1215
        %v1242 = vadd.f32 %v1206, %v1215
        %v1243 = vadd.f32 %v1207, %v1215
        %v1244 = vadd.f32 %v1208, %v1215
        %v1245 = vadd.f32 %v1209, %v1215
        %v1246 = vadd.f32 %v1210, %v1215
        %v1247 = vadd.f32 %v1211, %v1215
        %v1248 = vadd.f32 %v1212, %v1215
        %v1249 = vmax.f32 %v1217, 0.0
        %v1250 = vmax.f32 %v1218, 0.0
        %v1251 = vmax.f32 %v1219, 0.0
        %v1252 = vmax.f32 %v1220, 0.0
        %v1253 = vmax.f32 %v1221, 0.0
        %v1254 = vmax.f32 %v1222, 0.0
        %v1255 = vmax.f32 %v1223, 0.0
        %v1256 = vmax.f32 %v1224, 0.0
        %v1257 = vmax.f32 %v1225, 0.0
        %v1258 = vmax.f32 %v1226, 0.0
        %v1259 = vmax.f32 %v1227, 0.0
        %v1260 = vmax.f32 %v1228, 0.0
        %v1261 = vmax.f32 %v1229, 0.0
        %v1262 = vmax.f32 %v1230, 0.0
        %v1263 = vmax.f32 %v1231, 0.0
        %v1264 = vmax.f32 %v1232, 0.0
        %v1265 = vmax.f32 %v1233, 0.0
        %v1266 = vmax.f32 %v1234, 0.0
        %v1267 = vmax.f32 %v1235, 0.0
        %v1268 = vmax.f32 %v1236, 0.0
        %v1269 = vmax.f32 %v1237, 0.0
        %v1270 = vmax.f32 %v1238, 0.0
        %v1271 = vmax.f32 %v1239, 0.0
        %v1272 = vmax.f32 %v1240, 0.0
        %v1273 = vmax.f32 %v1241, 0.0
        %v1274 = vmax.f32 %v1242, 0.0
        %v1275 = vmax.f32 %v1243, 0.0
        %v1276 = vmax.f32 %v1244, 0.0
        %v1277 = vmax.f32 %v1245, 0.0
        %v1278 = vmax.f32 %v1246, 0.0
        %v1279 = vmax.f32 %v1247, 0.0
        %v1280 = vmax.f32 %v1248, 0.0
        %1281 = vst [vmem:[%s265] sm:$0xff] %v1249
        %1282 = vst [vmem:[%s265 + $0x8] sm:$0xff] %v1250
        %1283 = vst [vmem:[%s265 + $0x10] sm:$0xff] %v1251
        %1284 = vst [vmem:[%s265 + $0x18] sm:$0xff] %v1252
        %1285 = vst [vmem:[%s265 + $0x20] sm:$0xff] %v1253
        %1286 = vst [vmem:[%s265 + $0x28] sm:$0xff] %v1254
        %1287 = vst [vmem:[%s265 + $0x30] sm:$0xff] %v1255
        %1288 = vst [vmem:[%s265 + $0x38] sm:$0xff] %v1256
        %1289 = vst [vmem:[%s265 + $0x40] sm:$0xff] %v1257
        %1290 = vst [vmem:[%s265 + $0x48] sm:$0xff] %v1258
        %1291 = vst [vmem:[%s265 + $0x50] sm:$0xff] %v1259
        %1292 = vst [vmem:[%s265 + $0x58] sm:$0xff] %v1260
        %1293 = vst [vmem:[%s265 + $0x60] sm:$0xff] %v1261
        %1294 = vst [vmem:[%s265 + $0x68] sm:$0xff] %v1262
        %1295 = vst [vmem:[%s265 + $0x70] sm:$0xff] %v1263
        %1296 = vst [vmem:[%s265 + $0x78] sm:$0xff] %v1264
        %1297 = vst [vmem:[%s265 + $0x80] sm:$0xff] %v1265
        %1298 = vst [vmem:[%s265 + $0x88] sm:$0xff] %v1266
        %1299 = vst [vmem:[%s265 + $0x90] sm:$0xff] %v1267
        %1300 = vst [vmem:[%s265 + $0x98] sm:$0xff] %v1268
        %1301 = vst [vmem:[%s265 + $0xa0] sm:$0xff] %v1269
        %1302 = vst [vmem:[%s265 + $0xa8] sm:$0xff] %v1270
        %1303 = vst [vmem:[%s265 + $0xb0] sm:$0xff] %v1271
        %1304 = vst [vmem:[%s265 + $0xb8] sm:$0xff] %v1272
        %1305 = vst [vmem:[%s265 + $0xc0] sm:$0xff] %v1273
        %1306 = vst [vmem:[%s265 + $0xc8] sm:$0xff] %v1274
        %1307 = vst [vmem:[%s265 + $0xd0] sm:$0xff] %v1275
        %1308 = vst [vmem:[%s265 + $0xd8] sm:$0xff] %v1276
        %1309 = vst [vmem:[%s265 + $0xe0] sm:$0xff] %v1277
        %1310 = vst [vmem:[%s265 + $0xe8] sm:$0xff] %v1278
        %1311 = vst [vmem:[%s265 + $0xf0] sm:$0xff] %v1279
        %1312 = vst [vmem:[%s265 + $0xf8] sm:$0xff] %v1280
      $region40: #{bgcnn_forward.6} parent=31 // pred_fallthru
        _
      %s1313 = smul.u32 32, %s19
      %p1314 = scmp.lt.s32.totalorder %s1313, 63
      %s1315 = scalar_select %p1314, %s1313, 63
      %p1316 = scmp.lt.s32.totalorder %s20, 0
      %s1317 = scalar_select %p1316, %s20, 0
      %s1318 = sadd.s32 %s1317, %s1315
      %s1319 = smul.addr %s1318, 8
      %s1320 = scalar_lea.vmem %s3, %s1319
      // Predicated region
      $region41: #{bgcnn_forward.6} parent=31 // pred_check
        %p1321 = pneg %p135
      $region42: #{bgcnn_forward.6} parent=31 // pred_check_branch
        %1323 = sbr.rel (%p1321) target = $region44
      $region43: #{bgcnn_forward.6} parent=31 // pred_region
        %s1324 = smul.u32 32, %s19
      $region44: #{bgcnn_forward.6} parent=31 // pred_fallthru
        _
    $region32: #{bgcnn_forward.6} parent=5 // pred_fallthru
      _
    %p1325 = scmp.le.s32.totalorder 2, %s9
    // Predicated region
    $region45: #{bgcnn_forward.6} parent=5 // pred_check
      %p1326 = pneg %p1325
    $region46: #{bgcnn_forward.6} parent=5 // pred_check_branch
      %1328 = sbr.rel (%p1326) target = $region48
    $region47: #{bgcnn_forward.6} parent=5 // pred_region
      %s1329 = ssub.s32 %s9, 2
      // Predicated region
      $region49: #{bgcnn_forward.6} parent=47 // pred_check
        %p1330 = pneg %p141
      $region50: #{bgcnn_forward.6} parent=47 // pred_check_branch
        %1332 = sbr.rel (%p1330) target = $region52
      $region51: #{bgcnn_forward.6} parent=47 // pred_region
        %s1333 = smul.u32 32, %s22
        %p1334 = scmp.lt.s32.totalorder %s1333, 63
        %s1335 = scalar_select %p1334, %s1333, 63
        %p1336 = scmp.lt.s32.totalorder %s23, 0
        %s1337 = scalar_select %p1336, %s23, 0
        %s1338 = sadd.s32 %s1337, %s1335
        %s1339 = smul.addr %s1338, 8
        %s1340 = scalar_lea.vmem %s3, %s1339
      $region52: #{bgcnn_forward.6} parent=47 // pred_fallthru
        _
    $region48: #{bgcnn_forward.6} parent=5 // pred_fallthru
      _
  $region6: #{bgcnn_forward.6} parent=0 // loop_footer
    %s13 = sadd.s32 1, %s9
  $region7: #{bgcnn_forward.6} parent=0 // loop_footer_branch
    %8 = sbr.rel target = $region3
  $region8: #{bgcnn_forward.6} parent=0 // loop_exit
    _

// kernel: bgcnn_forward.7
$region0: #{bgcnn_forward.7}
  #allocation0 [shape = 'u32[]', space=smem, size = 0x4, offset = 0x4, fixed_abs, tag = 'smem constant byte address 0x4 - core index']
  #allocation1 [shape = 'u32[72,128]{1,0:T(1,128)}', space=vmem, size = 0x9000, scoped, tag = 'internal scratch']
  #allocation2 [shape = 'f32[112,256]{1,0:T(8,128)}', space=vmem, size = 0x1c000, scoped, tag = 'scratch operand']
  %s0 = inlined_call_operand.vmem [shape: bf16[112,2560], index: 0, kind: input, shape index: {}]
  %s1 = inlined_call_operand.vmem [shape: bf16[2560,256], index: 1, kind: input, shape index: {}]
  %s2 = inlined_call_operand.vmem [shape: f32[1,256], index: 2, kind: input, shape index: {}]
  %s3 = inlined_call_operand.vmem [shape: f32[112,256], index: 3, kind: output, shape index: {}]
  %s4 = sld [smem:[#allocation0]]
  $region76: #{bgcnn_forward.7} parent=0
    _
  %s6 = ssub.s32 1, %s4
  %s7 = scalar_select 0, %s6, %s4
  $region1: #{bgcnn_forward.7} parent=0
    #allocation3 [shape = 'u8[229376]{0}', space=vmem, size = 0x38000, scoped, tag = 'input window, operand 0']
    loop: start=0, step=1, limit=7
    $region2: #{bgcnn_forward.7} parent=1 // loop_pre_header
      _
    $region3: #{bgcnn_forward.7} parent=1 // loop_header
      %s9 = sphi 0, %s13
      %p10 = scmp.ge.s32.totalorder %s9, 7
      %s16 = sphi 0, %s35
      %s17 = sphi 0, %s31
      %s18 = sphi 0, %s27
      %s19 = sphi 0, %s16
      %s20 = sphi 0, %s17
      %s21 = sphi 0, %s18
      %s22 = sphi 0, %s19
      %s23 = sphi 0, %s20
      %s24 = sphi 0, %s21
      %s40 = sphi 0, %s42
      %s43 = sphi 0, %s40
      %s44 = sphi 0, %s43
      %s60 = sphi 0, %s44
      %s68 = sphi 0, %s70
      %s71 = sphi 0, %s68
      %s72 = sphi 0, %s71
      %s88 = sphi 0, %s72
      %s94 = sphi 0, %s96
      %s97 = sphi 0, %s94
      %s98 = sphi 0, %s97
      %s114 = sphi 0, %s98
      %s122 = sphi 0, %s124
      %s125 = sphi 0, %s122
      %s126 = sphi 0, %s125
      %s142 = sphi 0, %s126
    $region4: #{bgcnn_forward.7} parent=1 // loop_header_branch
      %12 = sbr.rel (%p10) target = $region8
    $region5: #{bgcnn_forward.7} parent=1 // loop_body
      %s14 = ssub.s32 %s9, 1
      %s15 = ssub.s32 %s9, 2
      %s25 = sadd.s32 1, %s18
      %p26 = scmp.ge.s32.totalorder %s25, 5
      %s27 = scalar_select %p26, 0, %s25
      %s28 = sadd.s32 1, %s17
      %s29 = scalar_select %p26, %s28, %s17
      %p30 = scmp.ge.s32.totalorder %s29, 1
      %s31 = scalar_select %p30, 0, %s29
      %s32 = sadd.s32 1, %s16
      %s33 = scalar_select %p30, %s32, %s16
      %p34 = scmp.ge.s32.totalorder %s33, 1
      %s35 = scalar_select %p34, 0, %s33
      %s36 = ssub.s32 %s16, %s35
      %s37 = ssub.s32 %s18, %s27
      %s38 = sor.u32 %s36, %s37
      %p39 = scmp.eq.s32.totalorder %s38, 0
      %s41 = sadd.s32 %s40, 1
      %s42 = scalar_select %p39, %s40, %s41
      %p45 = pneg %p39
      %p46 = scmp.eq.s32.totalorder %s9, 4
      %p47 = por %p45, %p46
      %p48 = scmp.ne.s32.totalorder %s40, %s43
      %p49 = scmp.eq.s32.totalorder %s9, 0
      %p50 = por %p48, %p49
      %p51 = scmp.ne.s32.totalorder %s40, %s43
      %p52 = scmp.eq.s32.totalorder %s14, 4
      %p53 = por %p51, %p52
      %p54 = scmp.ne.s32.totalorder %s43, %s44
      %p55 = scmp.eq.s32.totalorder %s14, 0
      %p56 = por %p54, %p55
      %p57 = scmp.ne.s32.totalorder %s43, %s44
      %p58 = scmp.eq.s32.totalorder %s15, 4
      %p59 = por %p57, %p58
      %p61 = scmp.ne.s32.totalorder %s44, %s60
      %p62 = scmp.eq.s32.totalorder %s15, 0
      %p63 = por %p61, %p62
      %s64 = ssub.s32 %s18, %s27
      %s65 = ssub.s32 %s17, %s31
      %s66 = sor.u32 %s64, %s65
      %p67 = scmp.eq.s32.totalorder %s66, 0
      %s69 = sadd.s32 %s68, 1
      %s70 = scalar_select %p67, %s68, %s69
      %p73 = pneg %p67
      %p74 = scmp.eq.s32.totalorder %s9, 4
      %p75 = por %p73, %p74
      %p76 = scmp.ne.s32.totalorder %s68, %s71
      %p77 = scmp.eq.s32.totalorder %s9, 0
      %p78 = por %p76, %p77
      %p79 = scmp.ne.s32.totalorder %s68, %s71
      %p80 = scmp.eq.s32.totalorder %s14, 4
      %p81 = por %p79, %p80
      %p82 = scmp.ne.s32.totalorder %s71, %s72
      %p83 = scmp.eq.s32.totalorder %s14, 0
      %p84 = por %p82, %p83
      %p85 = scmp.ne.s32.totalorder %s71, %s72
      %p86 = scmp.eq.s32.totalorder %s15, 4
      %p87 = por %p85, %p86
      %p89 = scmp.ne.s32.totalorder %s72, %s88
      %p90 = scmp.eq.s32.totalorder %s15, 0
      %p91 = por %p89, %p90
      %s92 = ssub.s32 %s17, %s31
      %p93 = scmp.eq.s32.totalorder %s92, 0
      %s95 = sadd.s32 %s94, 1
      %s96 = scalar_select %p93, %s94, %s95
      %p99 = pneg %p93
      %p100 = scmp.eq.s32.totalorder %s9, 4
      %p101 = por %p99, %p100
      %p102 = scmp.ne.s32.totalorder %s94, %s97
      %p103 = scmp.eq.s32.totalorder %s9, 0
      %p104 = por %p102, %p103
      %p105 = scmp.ne.s32.totalorder %s94, %s97
      %p106 = scmp.eq.s32.totalorder %s14, 4
      %p107 = por %p105, %p106
      %p108 = scmp.ne.s32.totalorder %s97, %s98
      %p109 = scmp.eq.s32.totalorder %s14, 0
      %p110 = por %p108, %p109
      %p111 = scmp.ne.s32.totalorder %s97, %s98
      %p112 = scmp.eq.s32.totalorder %s15, 4
      %p113 = por %p111, %p112
      %p115 = scmp.ne.s32.totalorder %s98, %s114
      %p116 = scmp.eq.s32.totalorder %s15, 0
      %p117 = por %p115, %p116
      %s118 = ssub.s32 %s16, %s35
      %s119 = ssub.s32 %s17, %s31
      %s120 = sor.u32 %s118, %s119
      %p121 = scmp.eq.s32.totalorder %s120, 0
      %s123 = sadd.s32 %s122, 1
      %s124 = scalar_select %p121, %s122, %s123
      %p127 = pneg %p121
      %p128 = scmp.eq.s32.totalorder %s9, 4
      %p129 = por %p127, %p128
      %p130 = scmp.ne.s32.totalorder %s122, %s125
      %p131 = scmp.eq.s32.totalorder %s9, 0
      %p132 = por %p130, %p131
      %p133 = scmp.ne.s32.totalorder %s122, %s125
      %p134 = scmp.eq.s32.totalorder %s14, 4
      %p135 = por %p133, %p134
      %p136 = scmp.ne.s32.totalorder %s125, %s126
      %p137 = scmp.eq.s32.totalorder %s14, 0
      %p138 = por %p136, %p137
      %p139 = scmp.ne.s32.totalorder %s125, %s126
      %p140 = scmp.eq.s32.totalorder %s15, 4
      %p141 = por %p139, %p140
      %p143 = scmp.ne.s32.totalorder %s126, %s142
      %p144 = scmp.eq.s32.totalorder %s15, 0
      %p145 = por %p143, %p144
      %p146 = scmp.le.s32.totalorder 1, %s9
      %p147 = scmp.lt.s32.totalorder %s9, 6
      %p148 = pnand %p146, %p147
      %p149 = pneg %p148
      // Predicated region
      $region9: #{bgcnn_forward.7} parent=5 // pred_check
        _
      $region10: #{bgcnn_forward.7} parent=5 // pred_check_branch
        %151 = sbr.rel (%p148) target = $region12
      $region11: #{bgcnn_forward.7} parent=5 // pred_region
        %s152 = ssub.s32 %s9, 1
        // Predicated region
        $region13: #{bgcnn_forward.7} parent=11 // pred_check
          %p153 = pneg %p110
        $region14: #{bgcnn_forward.7} parent=11 // pred_check_branch
          %155 = sbr.rel (%p153) target = $region16
        $region15: #{bgcnn_forward.7} parent=11 // pred_region
          %s156 = smul.u32 2, %s20
          %p157 = scmp.lt.s32.totalorder %s156, 1
          %s158 = scalar_select %p157, %s156, 1
          %s159 = scalar_lea.vmem %s2, %s158
          %s160 = smul.u32 2, %s20
        $region16: #{bgcnn_forward.7} parent=11 // pred_fallthru
          _
      $region12: #{bgcnn_forward.7} parent=5 // pred_fallthru
        _
      %p161 = scmp.lt.s32.totalorder %s9, 5
      // Predicated region
      $region17: #{bgcnn_forward.7} parent=5 // pred_check
        %p162 = pneg %p161
      $region18: #{bgcnn_forward.7} parent=5 // pred_check_branch
        %164 = sbr.rel (%p162) target = $region20
      $region19: #{bgcnn_forward.7} parent=5 // pred_region
        // Predicated region
        $region21: #{bgcnn_forward.7} parent=19 // pred_check
          %p165 = pneg %p50
        $region22: #{bgcnn_forward.7} parent=19 // pred_check_branch
          %167 = sbr.rel (%p165) target = $region24
        $region23: #{bgcnn_forward.7} parent=19 // pred_region
          %s168 = sand.u32 %s40, 1
          %s169 = sand.u32 %s40, 1
          %s170 = smul.addr %s169, 224
          %s171 = scalar_lea.vmem [#allocation3], %s170
          %s172 = smul.u32 14, %s16
          %s173 = smul.u32 4, %s18
          %s174 = smul.addr %s172, 20
          %s175 = sadd.s32 %s173, %s174
          %s176 = smul.addr %s175, 4
          %s177 = scalar_lea.vmem %s0, %s176
          // Predicated region
          $region25: #{bgcnn_forward.7} parent=23 // pred_check
            _
          $region26: #{bgcnn_forward.7} parent=23 // pred_check_branch
            %179 = sbr.rel (0) target = $region28
          $region27: #{bgcnn_forward.7} parent=23 // pred_region
            // Predicated region
            $region29: #{bgcnn_forward.7} parent=27 // pred_check
              _
            $region30: #{bgcnn_forward.7} parent=27 // pred_check_branch
              %181 = sbr.rel (0) target = $region32
            $region31: #{bgcnn_forward.7} parent=27 // pred_region
              loop: start=0, step=1, limit=1
              $region33: #{bgcnn_forward.7} parent=31 // loop_pre_header
                _
              $region34: #{bgcnn_forward.7} parent=31 // loop_header
                %s183 = sphi 0, %s187
                %p184 = scmp.ge.s32.totalorder %s183, 1
                %s188 = sphi %s177, %s177
                %s189 = sphi %s171, %s171
              $region35: #{bgcnn_forward.7} parent=31 // loop_header_branch
                %186 = sbr.rel (%p184) target = $region39
              $region36: #{bgcnn_forward.7} parent=31 // loop_body
                %v190 = vld [vmem:[%s188] sm:$0xff]
                %191 = vst [vmem:[%s189] sm:$0xff] %v190
                %v192 = vld [vmem:[%s188 + $0x8] sm:$0xff]
                %193 = vst [vmem:[%s189 + $0x8] sm:$0xff] %v192
                %v194 = vld [vmem:[%s188 + $0x50] sm:$0xff]
                %195 = vst [vmem:[%s189 + $0x10] sm:$0xff] %v194
                %v196 = vld [vmem:[%s188 + $0x58] sm:$0xff]
                %197 = vst [vmem:[%s189 + $0x18] sm:$0xff] %v196
                %v198 = vld [vmem:[%s188 + $0xa0] sm:$0xff]
                %199 = vst [vmem:[%s189 + $0x20] sm:$0xff] %v198
                %v200 = vld [vmem:[%s188 + $0xa8] sm:$0xff]
                %201 = vst [vmem:[%s189 + $0x28] sm:$0xff] %v200
                %v202 = vld [vmem:[%s188 + $0xf0] sm:$0xff]
                %203 = vst [vmem:[%s189 + $0x30] sm:$0xff] %v202
                %v204 = vld [vmem:[%s188 + $0xf8] sm:$0xff]
                %205 = vst [vmem:[%s189 + $0x38] sm:$0xff] %v204
                %v206 = vld [vmem:[%s188 + $0x140] sm:$0xff]
                %207 = vst [vmem:[%s189 + $0x40] sm:$0xff] %v206
                %v208 = vld [vmem:[%s188 + $0x148] sm:$0xff]
                %209 = vst [vmem:[%s189 + $0x48] sm:$0xff] %v208
                %v210 = vld [vmem:[%s188 + $0x190] sm:$0xff]
                %211 = vst [vmem:[%s189 + $0x50] sm:$0xff] %v210
                %v212 = vld [vmem:[%s188 + $0x198] sm:$0xff]
                %213 = vst [vmem:[%s189 + $0x58] sm:$0xff] %v212
                %v214 = vld [vmem:[%s188 + $0x1e0] sm:$0xff]
                %215 = vst [vmem:[%s189 + $0x60] sm:$0xff] %v214
                %v216 = vld [vmem:[%s188 + $0x1e8] sm:$0xff]
                %217 = vst [vmem:[%s189 + $0x68] sm:$0xff] %v216
                %v218 = vld [vmem:[%s188 + $0x230] sm:$0xff]
                %219 = vst [vmem:[%s189 + $0x70] sm:$0xff] %v218
                %v220 = vld [vmem:[%s188 + $0x238] sm:$0xff]
                %221 = vst [vmem:[%s189 + $0x78] sm:$0xff] %v220
                %v222 = vld [vmem:[%s188 + $0x280] sm:$0xff]
                %223 = vst [vmem:[%s189 + $0x80] sm:$0xff] %v222
                %v224 = vld [vmem:[%s188 + $0x288] sm:$0xff]
                %225 = vst [vmem:[%s189 + $0x88] sm:$0xff] %v224
                %v226 = vld [vmem:[%s188 + $0x2d0] sm:$0xff]
                %227 = vst [vmem:[%s189 + $0x90] sm:$0xff] %v226
                %v228 = vld [vmem:[%s188 + $0x2d8] sm:$0xff]
                %229 = vst [vmem:[%s189 + $0x98] sm:$0xff] %v228
                %v230 = vld [vmem:[%s188 + $0x320] sm:$0xff]
                %231 = vst [vmem:[%s189 + $0xa0] sm:$0xff] %v230
                %v232 = vld [vmem:[%s188 + $0x328] sm:$0xff]
                %233 = vst [vmem:[%s189 + $0xa8] sm:$0xff] %v232
                %v234 = vld [vmem:[%s188 + $0x370] sm:$0xff]
                %235 = vst [vmem:[%s189 + $0xb0] sm:$0xff] %v234
                %v236 = vld [vmem:[%s188 + $0x378] sm:$0xff]
                %237 = vst [vmem:[%s189 + $0xb8] sm:$0xff] %v236
                %v238 = vld [vmem:[%s188 + $0x3c0] sm:$0xff]
                %239 = vst [vmem:[%s189 + $0xc0] sm:$0xff] %v238
                %v240 = vld [vmem:[%s188 + $0x3c8] sm:$0xff]
                %241 = vst [vmem:[%s189 + $0xc8] sm:$0xff] %v240
                %v242 = vld [vmem:[%s188 + $0x410] sm:$0xff]
                %243 = vst [vmem:[%s189 + $0xd0] sm:$0xff] %v242
                %v244 = vld [vmem:[%s188 + $0x418] sm:$0xff]
                %245 = vst [vmem:[%s189 + $0xd8] sm:$0xff] %v244
              $region37: #{bgcnn_forward.7} parent=31 // loop_footer
                %s187 = sadd.s32 1, %s183
              $region38: #{bgcnn_forward.7} parent=31 // loop_footer_branch
                %182 = sbr.rel target = $region34
              $region39: #{bgcnn_forward.7} parent=31 // loop_exit
                _
            $region32: #{bgcnn_forward.7} parent=27 // pred_fallthru
              _
            // Predicated region
            $region40: #{bgcnn_forward.7} parent=27 // pred_check
              _
            $region41: #{bgcnn_forward.7} parent=27 // pred_check_branch
              %247 = sbr.rel target = $region43
            $region42: #{bgcnn_forward.7} parent=27 // pred_region
              _
            $region43: #{bgcnn_forward.7} parent=27 // pred_fallthru
              _
          $region28: #{bgcnn_forward.7} parent=23 // pred_fallthru
            _
          %248 = vnop
        $region24: #{bgcnn_forward.7} parent=19 // pred_fallthru
          _
        // Predicated region
        $region44: #{bgcnn_forward.7} parent=19 // pred_check
          %p249 = pneg %p78
        $region45: #{bgcnn_forward.7} parent=19 // pred_check_branch
          %251 = sbr.rel (%p249) target = $region47
        $region46: #{bgcnn_forward.7} parent=19 // pred_region
          %s252 = smul.u32 64, %s18
          %s253 = smul.u32 2, %s17
          %p254 = scmp.lt.s32.totalorder %s252, 319
          %s255 = scalar_select %p254, %s252, 319
          %p256 = scmp.lt.s32.totalorder %s253, 1
          %s257 = scalar_select %p256, %s253, 1
          %s258 = smul.addr %s255, 2
          %s259 = sadd.s32 %s257, %s258
          %s260 = smul.addr %s259, 4
          %s261 = scalar_lea.vmem %s1, %s260
          %s262 = smul.u32 64, %s18
          %s263 = smul.u32 2, %s17
        $region47: #{bgcnn_forward.7} parent=19 // pred_fallthru
          _
      $region20: #{bgcnn_forward.7} parent=5 // pred_fallthru
        _
      %p264 = scmp.le.s32.totalorder 1, %s9
      %p265 = scmp.lt.s32.totalorder %s9, 6
      %p266 = pnand %p264, %p265
      %p267 = pneg %p266
      // Predicated region
      $region48: #{bgcnn_forward.7} parent=5 // pred_check
        _
      $region49: #{bgcnn_forward.7} parent=5 // pred_check_branch
        %269 = sbr.rel (%p266) target = $region51
      $region50: #{bgcnn_forward.7} parent=5 // pred_region
        %s270 = ssub.s32 %s9, 1
        %s271 = sand.u32 %s43, 1
        %s272 = sand.u32 %s43, 1
        %s273 = smul.addr %s272, 224
        %s274 = scalar_lea.vmem [#allocation3], %s273
        // Predicated region
        $region52: #{bgcnn_forward.7} parent=50 // pred_check
          %p275 = pneg %p56
        $region53: #{bgcnn_forward.7} parent=50 // pred_check_branch
          %277 = sbr.rel (%p275) target = $region55
        $region54: #{bgcnn_forward.7} parent=50 // pred_region
          _
        $region55: #{bgcnn_forward.7} parent=50 // pred_fallthru
          _
        %s278 = sand.u32 %s43, 1
        %s279 = sand.u32 %s43, 1
        %s280 = smul.addr %s279, 224
        %s281 = scalar_lea.vmem [#allocation3], %s280
        %p282 = pneg %p56
        %p283 = pneg %p53
        %s284 = smul.u32 64, %s21
        %s285 = smul.u32 2, %s20
        %p286 = scmp.lt.s32.totalorder %s284, 319
        %s287 = scalar_select %p286, %s284, 319
        %p288 = scmp.lt.s32.totalorder %s285, 1
        %s289 = scalar_select %p288, %s285, 1
        %s290 = smul.addr %s287, 2
        %s291 = sadd.s32 %s289, %s290
        %s292 = smul.addr %s291, 4
        %s293 = scalar_lea.vmem %s1, %s292
        %p294 = pneg %p84
        %p295 = pneg %p81
        %s296 = smul.u32 2, %s20
        %p297 = scmp.lt.s32.totalorder %s296, 1
        %s298 = scalar_select %p297, %s296, 1
        %s299 = scalar_lea.vmem %s2, %s298
        %p300 = pneg %p110
        %p301 = pneg %p107
        %p302 = pneg %p138
        %p303 = pneg %p135
        %s304 = smul.u32 14, %s19
        %s305 = smul.u32 2, %s20
        %p306 = scmp.lt.s32.totalorder %s304, 13
        %s307 = scalar_select %p306, %s304, 13
        %p308 = scmp.lt.s32.totalorder %s305, 1
        %s309 = scalar_select %p308, %s305, 1
        %s310 = smul.addr %s307, 2
        %s311 = sadd.s32 %s309, %s310
        %s312 = smul.addr %s311, 8
        %s313 = scalar_lea.vmem %s3, %s312
        %s314 = smul.u32 14, %s19
        %s315 = smul.u32 4, %s21
        %s316 = smul.u32 64, %s21
        %s317 = smul.u32 2, %s20
        %p318 = scmp.lt.s32.totalorder %s316, 319
        %s319 = scalar_select %p318, %s316, 319
        %p320 = scmp.lt.s32.totalorder %s317, 1
        %s321 = scalar_select %p320, %s317, 1
        %s322 = smul.addr %s319, 2
        %s323 = sadd.s32 %s321, %s322
        %s324 = smul.addr %s323, 4
        %s325 = scalar_lea.vmem %s1, %s324
        %s326 = smul.u32 64, %s21
        %s327 = smul.u32 2, %s20
        %s328 = smul.u32 2, %s20
        %p329 = scmp.lt.s32.totalorder %s328, 1
        %s330 = scalar_select %p329, %s328, 1
        %s331 = scalar_lea.vmem %s2, %s330
        %s332 = smul.u32 2, %s20
        %s333 = smul.u32 14, %s19
        %s334 = smul.u32 2, %s20
        %p335 = scmp.lt.s32.totalorder %s333, 13
        %s336 = scalar_select %p335, %s333, 13
        %p337 = scmp.lt.s32.totalorder %s334, 1
        %s338 = scalar_select %p337, %s334, 1
        %s339 = smul.addr %s336, 2
        %s340 = sadd.s32 %s338, %s339
        %s341 = smul.addr %s340, 8
        %s342 = scalar_lea.vmem %s3, %s341
        %s343 = smul.u32 14, %s19
        %s344 = smul.u32 2, %s20
        %p345 = scmp.eq.s32.totalorder %s21, 0
        // Predicated region
        $region56: #{bgcnn_forward.7} parent=50 // pred_check
          %p346 = pneg %p345
        $region57: #{bgcnn_forward.7} parent=50 // pred_check_branch
          %348 = sbr.rel (%p346) target = $region59
        $region58: #{bgcnn_forward.7} parent=50 // pred_region
          %349 = vst [vmem:[#allocation2] sm:$0xff] 0.0
          %350 = vst [vmem:[#allocation2 + $0x8] sm:$0xff] 0.0
          %351 = vst [vmem:[#allocation2 + $0x10] sm:$0xff] 0.0
          %352 = vst [vmem:[#allocation2 + $0x18] sm:$0xff] 0.0
          %353 = vst [vmem:[#allocation2 + $0x20] sm:$0xff] 0.0
          %354 = vst [vmem:[#allocation2 + $0x28] sm:$0xff] 0.0
          %355 = vst [vmem:[#allocation2 + $0x30] sm:$0xff] 0.0
          %356 = vst [vmem:[#allocation2 + $0x38] sm:$0xff] 0.0
          %357 = vst [vmem:[#allocation2 + $0x40] sm:$0xff] 0.0
          %358 = vst [vmem:[#allocation2 + $0x48] sm:$0xff] 0.0
          %359 = vst [vmem:[#allocation2 + $0x50] sm:$0xff] 0.0
          %360 = vst [vmem:[#allocation2 + $0x58] sm:$0xff] 0.0
          %361 = vst [vmem:[#allocation2 + $0x60] sm:$0xff] 0.0
          %362 = vst [vmem:[#allocation2 + $0x68] sm:$0xff] 0.0
          %363 = vst [vmem:[#allocation2 + $0x70] sm:$0xff] 0.0
          %364 = vst [vmem:[#allocation2 + $0x78] sm:$0xff] 0.0
          %365 = vst [vmem:[#allocation2 + $0x80] sm:$0xff] 0.0
          %366 = vst [vmem:[#allocation2 + $0x88] sm:$0xff] 0.0
          %367 = vst [vmem:[#allocation2 + $0x90] sm:$0xff] 0.0
          %368 = vst [vmem:[#allocation2 + $0x98] sm:$0xff] 0.0
          %369 = vst [vmem:[#allocation2 + $0xa0] sm:$0xff] 0.0
          %370 = vst [vmem:[#allocation2 + $0xa8] sm:$0xff] 0.0
          %371 = vst [vmem:[#allocation2 + $0xb0] sm:$0xff] 0.0
          %372 = vst [vmem:[#allocation2 + $0xb8] sm:$0xff] 0.0
          %373 = vst [vmem:[#allocation2 + $0xc0] sm:$0xff] 0.0
          %374 = vst [vmem:[#allocation2 + $0xc8] sm:$0xff] 0.0
          %375 = vst [vmem:[#allocation2 + $0xd0] sm:$0xff] 0.0
          %376 = vst [vmem:[#allocation2 + $0xd8] sm:$0xff] 0.0
        $region59: #{bgcnn_forward.7} parent=50 // pred_fallthru
          _
        %v377 = vld [vmem:[#allocation2] sm:$0xff]
        %v378 = vld [vmem:[#allocation2 + $0x8] sm:$0xff]
        %v379 = vld [vmem:[#allocation2 + $0x10] sm:$0xff]
        %v380 = vld [vmem:[#allocation2 + $0x18] sm:$0xff]
        %v381 = vld [vmem:[#allocation2 + $0x20] sm:$0xff]
        %v382 = vld [vmem:[#allocation2 + $0x28] sm:$0xff]
        %v383 = vld [vmem:[#allocation2 + $0x30] sm:$0xff]
        %v384 = vld [vmem:[#allocation2 + $0x38] sm:$0xff]
        %v385 = vld [vmem:[#allocation2 + $0x40] sm:$0xff]
        %v386 = vld [vmem:[#allocation2 + $0x48] sm:$0xff]
        %v387 = vld [vmem:[#allocation2 + $0x50] sm:$0xff]
        %v388 = vld [vmem:[#allocation2 + $0x58] sm:$0xff]
        %v389 = vld [vmem:[#allocation2 + $0x60] sm:$0xff]
        %v390 = vld [vmem:[#allocation2 + $0x68] sm:$0xff]
        %v391 = vld [vmem:[#allocation2 + $0x70] sm:$0xff]
        %v392 = vld [vmem:[#allocation2 + $0x78] sm:$0xff]
        %v393 = vld [vmem:[#allocation2 + $0x80] sm:$0xff]
        %v394 = vld [vmem:[#allocation2 + $0x88] sm:$0xff]
        %v395 = vld [vmem:[#allocation2 + $0x90] sm:$0xff]
        %v396 = vld [vmem:[#allocation2 + $0x98] sm:$0xff]
        %v397 = vld [vmem:[#allocation2 + $0xa0] sm:$0xff]
        %v398 = vld [vmem:[#allocation2 + $0xa8] sm:$0xff]
        %v399 = vld [vmem:[#allocation2 + $0xb0] sm:$0xff]
        %v400 = vld [vmem:[#allocation2 + $0xb8] sm:$0xff]
        %v401 = vld [vmem:[#allocation2 + $0xc0] sm:$0xff]
        %v402 = vld [vmem:[#allocation2 + $0xc8] sm:$0xff]
        %v403 = vld [vmem:[#allocation2 + $0xd0] sm:$0xff]
        %v404 = vld [vmem:[#allocation2 + $0xd8] sm:$0xff]
        %v405 = vld [vmem:[%s274] sm:$0xff]
        %v406 = vld [vmem:[%s274 + $0x8] sm:$0xff]
        %v407 = vld [vmem:[%s274 + $0x10] sm:$0xff]
        %v408 = vld [vmem:[%s274 + $0x18] sm:$0xff]
        %v409 = vld [vmem:[%s274 + $0x20] sm:$0xff]
        %v410 = vld [vmem:[%s274 + $0x28] sm:$0xff]
        %v411 = vld [vmem:[%s274 + $0x30] sm:$0xff]
        %v412 = vld [vmem:[%s274 + $0x38] sm:$0xff]
        %v413 = vld [vmem:[%s274 + $0x40] sm:$0xff]
        %v414 = vld [vmem:[%s274 + $0x48] sm:$0xff]
        %v415 = vld [vmem:[%s274 + $0x50] sm:$0xff]
        %v416 = vld [vmem:[%s274 + $0x58] sm:$0xff]
        %v417 = vld [vmem:[%s274 + $0x60] sm:$0xff]
        %v418 = vld [vmem:[%s274 + $0x68] sm:$0xff]
        %v419 = vld [vmem:[%s274 + $0x70] sm:$0xff]
        %v420 = vld [vmem:[%s274 + $0x78] sm:$0xff]
        %v421 = vld [vmem:[%s274 + $0x80] sm:$0xff]
        %v422 = vld [vmem:[%s274 + $0x88] sm:$0xff]
        %v423 = vld [vmem:[%s274 + $0x90] sm:$0xff]
        %v424 = vld [vmem:[%s274 + $0x98] sm:$0xff]
        %v425 = vld [vmem:[%s274 + $0xa0] sm:$0xff]
        %v426 = vld [vmem:[%s274 + $0xa8] sm:$0xff]
        %v427 = vld [vmem:[%s274 + $0xb0] sm:$0xff]
        %v428 = vld [vmem:[%s274 + $0xb8] sm:$0xff]
        %v429 = vld [vmem:[%s274 + $0xc0] sm:$0xff]
        %v430 = vld [vmem:[%s274 + $0xc8] sm:$0xff]
        %v431 = vld [vmem:[%s274 + $0xd0] sm:$0xff]
        %v432 = vld [vmem:[%s274 + $0xd8] sm:$0xff]
        %v433 = vld [vmem:[%s325] sm:$0xff]
        %v434 = vld [vmem:[%s325 + $0x8] sm:$0xff]
        %v435 = vld [vmem:[%s325 + $0x10] sm:$0xff]
        %v436 = vld [vmem:[%s325 + $0x18] sm:$0xff]
        %v437 = vld [vmem:[%s325 + $0x20] sm:$0xff]
        %v438 = vld [vmem:[%s325 + $0x28] sm:$0xff]
        %v439 = vld [vmem:[%s325 + $0x30] sm:$0xff]
        %v440 = vld [vmem:[%s325 + $0x38] sm:$0xff]
        %v441 = vld [vmem:[%s325 + $0x40] sm:$0xff]
        %v442 = vld [vmem:[%s325 + $0x48] sm:$0xff]
        %v443 = vld [vmem:[%s325 + $0x50] sm:$0xff]
        %v444 = vld [vmem:[%s325 + $0x58] sm:$0xff]
        %v445 = vld [vmem:[%s325 + $0x60] sm:$0xff]
        %v446 = vld [vmem:[%s325 + $0x68] sm:$0xff]
        %v447 = vld [vmem:[%s325 + $0x70] sm:$0xff]
        %v448 = vld [vmem:[%s325 + $0x78] sm:$0xff]
        %v449 = vld [vmem:[%s325 + $0x80] sm:$0xff]
        %v450 = vld [vmem:[%s325 + $0x88] sm:$0xff]
        %v451 = vld [vmem:[%s325 + $0x90] sm:$0xff]
        %v452 = vld [vmem:[%s325 + $0x98] sm:$0xff]
        %v453 = vld [vmem:[%s325 + $0xa0] sm:$0xff]
        %v454 = vld [vmem:[%s325 + $0xa8] sm:$0xff]
        %v455 = vld [vmem:[%s325 + $0xb0] sm:$0xff]
        %v456 = vld [vmem:[%s325 + $0xb8] sm:$0xff]
        %v457 = vld [vmem:[%s325 + $0xc0] sm:$0xff]
        %v458 = vld [vmem:[%s325 + $0xc8] sm:$0xff]
        %v459 = vld [vmem:[%s325 + $0xd0] sm:$0xff]
        %v460 = vld [vmem:[%s325 + $0xd8] sm:$0xff]
        %v461 = vld [vmem:[%s325 + $0xe0] sm:$0xff]
        %v462 = vld [vmem:[%s325 + $0xe8] sm:$0xff]
        %v463 = vld [vmem:[%s325 + $0xf0] sm:$0xff]
        %v464 = vld [vmem:[%s325 + $0xf8] sm:$0xff]
        %v465 = vld [vmem:[%s325 + $0x100] sm:$0xff]
        %v466 = vld [vmem:[%s325 + $0x108] sm:$0xff]
        %v467 = vld [vmem:[%s325 + $0x110] sm:$0xff]
        %v468 = vld [vmem:[%s325 + $0x118] sm:$0xff]
        %v469 = vld [vmem:[%s325 + $0x120] sm:$0xff]
        %v470 = vld [vmem:[%s325 + $0x128] sm:$0xff]
        %v471 = vld [vmem:[%s325 + $0x130] sm:$0xff]
        %v472 = vld [vmem:[%s325 + $0x138] sm:$0xff]
        %v473 = vld [vmem:[%s325 + $0x140] sm:$0xff]
        %v474 = vld [vmem:[%s325 + $0x148] sm:$0xff]
        %v475 = vld [vmem:[%s325 + $0x150] sm:$0xff]
        %v476 = vld [vmem:[%s325 + $0x158] sm:$0xff]
        %v477 = vld [vmem:[%s325 + $0x160] sm:$0xff]
        %v478 = vld [vmem:[%s325 + $0x168] sm:$0xff]
        %v479 = vld [vmem:[%s325 + $0x170] sm:$0xff]
        %v480 = vld [vmem:[%s325 + $0x178] sm:$0xff]
        %v481 = vld [vmem:[%s325 + $0x180] sm:$0xff]
        %v482 = vld [vmem:[%s325 + $0x188] sm:$0xff]
        %v483 = vld [vmem:[%s325 + $0x190] sm:$0xff]
        %v484 = vld [vmem:[%s325 + $0x198] sm:$0xff]
        %v485 = vld [vmem:[%s325 + $0x1a0] sm:$0xff]
        %v486 = vld [vmem:[%s325 + $0x1a8] sm:$0xff]
        %v487 = vld [vmem:[%s325 + $0x1b0] sm:$0xff]
        %v488 = vld [vmem:[%s325 + $0x1b8] sm:$0xff]
        %v489 = vld [vmem:[%s325 + $0x1c0] sm:$0xff]
        %v490 = vld [vmem:[%s325 + $0x1c8] sm:$0xff]
        %v491 = vld [vmem:[%s325 + $0x1d0] sm:$0xff]
        %v492 = vld [vmem:[%s325 + $0x1d8] sm:$0xff]
        %v493 = vld [vmem:[%s325 + $0x1e0] sm:$0xff]
        %v494 = vld [vmem:[%s325 + $0x1e8] sm:$0xff]
        %v495 = vld [vmem:[%s325 + $0x1f0] sm:$0xff]
        %v496 = vld [vmem:[%s325 + $0x1f8] sm:$0xff]
        %v525 = vunpack.c.l.b16 %v405
        %v526 = vunpack.c.h.b16 %v405
        %v527 = vunpack.c.l.b16 %v406
        %v528 = vunpack.c.h.b16 %v406
        %v529 = vunpack.c.l.b16 %v407
        %v530 = vunpack.c.h.b16 %v407
        %v531 = vunpack.c.l.b16 %v408
        %v532 = vunpack.c.h.b16 %v408
        %v533 = vunpack.c.l.b16 %v409
        %v534 = vunpack.c.h.b16 %v409
        %v535 = vunpack.c.l.b16 %v410
        %v536 = vunpack.c.h.b16 %v410
        %v537 = vunpack.c.l.b16 %v411
        %v538 = vunpack.c.h.b16 %v411
        %v539 = vunpack.c.l.b16 %v412
        %v540 = vunpack.c.h.b16 %v412
        %v541 = vunpack.c.l.b16 %v413
        %v542 = vunpack.c.h.b16 %v413
        %v543 = vunpack.c.l.b16 %v414
        %v544 = vunpack.c.h.b16 %v414
        %v545 = vunpack.c.l.b16 %v415
        %v546 = vunpack.c.h.b16 %v415
        %v547 = vunpack.c.l.b16 %v416
        %v548 = vunpack.c.h.b16 %v416
        %v549 = vunpack.c.l.b16 %v417
        %v550 = vunpack.c.h.b16 %v417
        %v551 = vunpack.c.l.b16 %v418
        %v552 = vunpack.c.h.b16 %v418
        %v553 = vunpack.c.l.b16 %v419
        %v554 = vunpack.c.h.b16 %v419
        %v555 = vunpack.c.l.b16 %v420
        %v556 = vunpack.c.h.b16 %v420
        %v557 = vunpack.c.l.b16 %v421
        %v558 = vunpack.c.h.b16 %v421
        %v559 = vunpack.c.l.b16 %v422
        %v560 = vunpack.c.h.b16 %v422
        %v561 = vunpack.c.l.b16 %v423
        %v562 = vunpack.c.h.b16 %v423
        %v563 = vunpack.c.l.b16 %v424
        %v564 = vunpack.c.h.b16 %v424
        %v565 = vunpack.c.l.b16 %v425
        %v566 = vunpack.c.h.b16 %v425
        %v567 = vunpack.c.l.b16 %v426
        %v568 = vunpack.c.h.b16 %v426
        %v569 = vunpack.c.l.b16 %v427
        %v570 = vunpack.c.h.b16 %v427
        %v571 = vunpack.c.l.b16 %v428
        %v572 = vunpack.c.h.b16 %v428
        %v573 = vunpack.c.l.b16 %v429
        %v574 = vunpack.c.h.b16 %v429
        %v575 = vunpack.c.l.b16 %v430
        %v576 = vunpack.c.h.b16 %v430
        %v577 = vunpack.c.l.b16 %v431
        %v578 = vunpack.c.h.b16 %v431
        %v579 = vunpack.c.l.b16 %v432
        %v580 = vunpack.c.h.b16 %v432
        %v581 = vpack.c.b16 %v529, %v525
        %v582 = vpack.c.b16 %v530, %v526
        %v583 = vpack.c.b16 %v531, %v527
        %v584 = vpack.c.b16 %v532, %v528
        %v585 = vpack.c.b16 %v537, %v533
        %v586 = vpack.c.b16 %v538, %v534
        %v587 = vpack.c.b16 %v539, %v535
        %v588 = vpack.c.b16 %v540, %v536
        %v589 = vpack.c.b16 %v545, %v541
        %v590 = vpack.c.b16 %v546, %v542
        %v591 = vpack.c.b16 %v547, %v543
        %v592 = vpack.c.b16 %v548, %v544
        %v593 = vpack.c.b16 %v553, %v549
        %v594 = vpack.c.b16 %v554, %v550
        %v595 = vpack.c.b16 %v555, %v551
        %v596 = vpack.c.b16 %v556, %v552
        %v597 = vpack.c.b16 %v561, %v557
        %v598 = vpack.c.b16 %v562, %v558
        %v599 = vpack.c.b16 %v563, %v559
        %v600 = vpack.c.b16 %v564, %v560
        %v601 = vpack.c.b16 %v569, %v565
        %v602 = vpack.c.b16 %v570, %v566
        %v603 = vpack.c.b16 %v571, %v567
        %v604 = vpack.c.b16 %v572, %v568
        %v605 = vpack.c.b16 %v577, %v573
        %v606 = vpack.c.b16 %v578, %v574
        %v607 = vpack.c.b16 %v579, %v575
        %v608 = vpack.c.b16 %v580, %v576
        %v701 = vunpack.c.l.b16 %v433
        %v702 = vunpack.c.h.b16 %v433
        %v703 = vunpack.c.l.b16 %v434
        %v704 = vunpack.c.h.b16 %v434
        %v705 = vunpack.c.l.b16 %v435
        %v706 = vunpack.c.h.b16 %v435
        %v707 = vunpack.c.l.b16 %v436
        %v708 = vunpack.c.h.b16 %v436
        %v709 = vunpack.c.l.b16 %v437
        %v710 = vunpack.c.h.b16 %v437
        %v711 = vunpack.c.l.b16 %v438
        %v712 = vunpack.c.h.b16 %v438
        %v713 = vunpack.c.l.b16 %v439
        %v714 = vunpack.c.h.b16 %v439
        %v715 = vunpack.c.l.b16 %v440
        %v716 = vunpack.c.h.b16 %v440
        %v717 = vunpack.c.l.b16 %v441
        %v718 = vunpack.c.h.b16 %v441
        %v719 = vunpack.c.l.b16 %v442
        %v720 = vunpack.c.h.b16 %v442
        %v721 = vunpack.c.l.b16 %v443
        %v722 = vunpack.c.h.b16 %v443
        %v723 = vunpack.c.l.b16 %v444
        %v724 = vunpack.c.h.b16 %v444
        %v725 = vunpack.c.l.b16 %v445
        %v726 = vunpack.c.h.b16 %v445
        %v727 = vunpack.c.l.b16 %v446
        %v728 = vunpack.c.h.b16 %v446
        %v729 = vunpack.c.l.b16 %v447
        %v730 = vunpack.c.h.b16 %v447
        %v731 = vunpack.c.l.b16 %v448
        %v732 = vunpack.c.h.b16 %v448
        %v733 = vunpack.c.l.b16 %v449
        %v734 = vunpack.c.h.b16 %v449
        %v735 = vunpack.c.l.b16 %v450
        %v736 = vunpack.c.h.b16 %v450
        %v737 = vunpack.c.l.b16 %v451
        %v738 = vunpack.c.h.b16 %v451
        %v739 = vunpack.c.l.b16 %v452
        %v740 = vunpack.c.h.b16 %v452
        %v741 = vunpack.c.l.b16 %v453
        %v742 = vunpack.c.h.b16 %v453
        %v743 = vunpack.c.l.b16 %v454
        %v744 = vunpack.c.h.b16 %v454
        %v745 = vunpack.c.l.b16 %v455
        %v746 = vunpack.c.h.b16 %v455
        %v747 = vunpack.c.l.b16 %v456
        %v748 = vunpack.c.h.b16 %v456
        %v749 = vunpack.c.l.b16 %v457
        %v750 = vunpack.c.h.b16 %v457
        %v751 = vunpack.c.l.b16 %v458
        %v752 = vunpack.c.h.b16 %v458
        %v753 = vunpack.c.l.b16 %v459
        %v754 = vunpack.c.h.b16 %v459
        %v755 = vunpack.c.l.b16 %v460
        %v756 = vunpack.c.h.b16 %v460
        %v757 = vunpack.c.l.b16 %v461
        %v758 = vunpack.c.h.b16 %v461
        %v759 = vunpack.c.l.b16 %v462
        %v760 = vunpack.c.h.b16 %v462
        %v761 = vunpack.c.l.b16 %v463
        %v762 = vunpack.c.h.b16 %v463
        %v763 = vunpack.c.l.b16 %v464
        %v764 = vunpack.c.h.b16 %v464
        %v765 = vunpack.c.l.b16 %v465
        %v766 = vunpack.c.h.b16 %v465
        %v767 = vunpack.c.l.b16 %v466
        %v768 = vunpack.c.h.b16 %v466
        %v769 = vunpack.c.l.b16 %v467
        %v770 = vunpack.c.h.b16 %v467
        %v771 = vunpack.c.l.b16 %v468
        %v772 = vunpack.c.h.b16 %v468
        %v773 = vunpack.c.l.b16 %v469
        %v774 = vunpack.c.h.b16 %v469
        %v775 = vunpack.c.l.b16 %v470
        %v776 = vunpack.c.h.b16 %v470
        %v777 = vunpack.c.l.b16 %v471
        %v778 = vunpack.c.h.b16 %v471
        %v779 = vunpack.c.l.b16 %v472
        %v780 = vunpack.c.h.b16 %v472
        %v781 = vunpack.c.l.b16 %v473
        %v782 = vunpack.c.h.b16 %v473
        %v783 = vunpack.c.l.b16 %v474
        %v784 = vunpack.c.h.b16 %v474
        %v785 = vunpack.c.l.b16 %v475
        %v786 = vunpack.c.h.b16 %v475
        %v787 = vunpack.c.l.b16 %v476
        %v788 = vunpack.c.h.b16 %v476
        %v789 = vunpack.c.l.b16 %v477
        %v790 = vunpack.c.h.b16 %v477
        %v791 = vunpack.c.l.b16 %v478
        %v792 = vunpack.c.h.b16 %v478
        %v793 = vunpack.c.l.b16 %v479
        %v794 = vunpack.c.h.b16 %v479
        %v795 = vunpack.c.l.b16 %v480
        %v796 = vunpack.c.h.b16 %v480
        %v797 = vunpack.c.l.b16 %v481
        %v798 = vunpack.c.h.b16 %v481
        %v799 = vunpack.c.l.b16 %v482
        %v800 = vunpack.c.h.b16 %v482
        %v801 = vunpack.c.l.b16 %v483
        %v802 = vunpack.c.h.b16 %v483
        %v803 = vunpack.c.l.b16 %v484
        %v804 = vunpack.c.h.b16 %v484
        %v805 = vunpack.c.l.b16 %v485
        %v806 = vunpack.c.h.b16 %v485
        %v807 = vunpack.c.l.b16 %v486
        %v808 = vunpack.c.h.b16 %v486
        %v809 = vunpack.c.l.b16 %v487
        %v810 = vunpack.c.h.b16 %v487
        %v811 = vunpack.c.l.b16 %v488
        %v812 = vunpack.c.h.b16 %v488
        %v813 = vunpack.c.l.b16 %v489
        %v814 = vunpack.c.h.b16 %v489
        %v815 = vunpack.c.l.b16 %v490
        %v816 = vunpack.c.h.b16 %v490
        %v817 = vunpack.c.l.b16 %v491
        %v818 = vunpack.c.h.b16 %v491
        %v819 = vunpack.c.l.b16 %v492
        %v820 = vunpack.c.h.b16 %v492
        %v821 = vunpack.c.l.b16 %v493
        %v822 = vunpack.c.h.b16 %v493
        %v823 = vunpack.c.l.b16 %v494
        %v824 = vunpack.c.h.b16 %v494
        %v825 = vunpack.c.l.b16 %v495
        %v826 = vunpack.c.h.b16 %v495
        %v827 = vunpack.c.l.b16 %v496
        %v828 = vunpack.c.h.b16 %v496
        %v829 = vpack.c.b16 %v703, %v701
        %v830 = vpack.c.b16 %v704, %v702
        %v831 = vpack.c.b16 %v707, %v705
        %v832 = vpack.c.b16 %v708, %v706
        %v833 = vpack.c.b16 %v711, %v709
        %v834 = vpack.c.b16 %v712, %v710
        %v835 = vpack.c.b16 %v715, %v713
        %v836 = vpack.c.b16 %v716, %v714
        %v837 = vpack.c.b16 %v719, %v717
        %v838 = vpack.c.b16 %v720, %v718
        %v839 = vpack.c.b16 %v723, %v721
        %v840 = vpack.c.b16 %v724, %v722
        %v841 = vpack.c.b16 %v727, %v725
        %v842 = vpack.c.b16 %v728, %v726
        %v843 = vpack.c.b16 %v731, %v729
        %v844 = vpack.c.b16 %v732, %v730
        %v845 = vpack.c.b16 %v735, %v733
        %v846 = vpack.c.b16 %v736, %v734
        %v847 = vpack.c.b16 %v739, %v737
        %v848 = vpack.c.b16 %v740, %v738
        %v849 = vpack.c.b16 %v743, %v741
        %v850 = vpack.c.b16 %v744, %v742
        %v851 = vpack.c.b16 %v747, %v745
        %v852 = vpack.c.b16 %v748, %v746
        %v853 = vpack.c.b16 %v751, %v749
        %v854 = vpack.c.b16 %v752, %v750
        %v855 = vpack.c.b16 %v755, %v753
        %v856 = vpack.c.b16 %v756, %v754
        %v857 = vpack.c.b16 %v759, %v757
        %v858 = vpack.c.b16 %v760, %v758
        %v859 = vpack.c.b16 %v763, %v761
        %v860 = vpack.c.b16 %v764, %v762
        %v861 = vpack.c.b16 %v767, %v765
        %v862 = vpack.c.b16 %v768, %v766
        %v863 = vpack.c.b16 %v771, %v769
        %v864 = vpack.c.b16 %v772, %v770
        %v865 = vpack.c.b16 %v775, %v773
        %v866 = vpack.c.b16 %v776, %v774
        %v867 = vpack.c.b16 %v779, %v777
        %v868 = vpack.c.b16 %v780, %v778
        %v869 = vpack.c.b16 %v783, %v781
        %v870 = vpack.c.b16 %v784, %v782
        %v871 = vpack.c.b16 %v787, %v785
        %v872 = vpack.c.b16 %v788, %v786
        %v873 = vpack.c.b16 %v791, %v789
        %v874 = vpack.c.b16 %v792, %v790
        %v875 = vpack.c.b16 %v795, %v793
        %v876 = vpack.c.b16 %v796, %v794
        %v877 = vpack.c.b16 %v799, %v797
        %v878 = vpack.c.b16 %v800, %v798
        %v879 = vpack.c.b16 %v803, %v801
        %v880 = vpack.c.b16 %v804, %v802
        %v881 = vpack.c.b16 %v807, %v805
        %v882 = vpack.c.b16 %v808, %v806
        %v883 = vpack.c.b16 %v811, %v809
        %v884 = vpack.c.b16 %v812, %v810
        %v885 = vpack.c.b16 %v815, %v813
        %v886 = vpack.c.b16 %v816, %v814
        %v887 = vpack.c.b16 %v819, %v817
        %v888 = vpack.c.b16 %v820, %v818
        %v889 = vpack.c.b16 %v823, %v821
        %v890 = vpack.c.b16 %v824, %v822
        %v891 = vpack.c.b16 %v827, %v825
        %v892 = vpack.c.b16 %v828, %v826
        %957 = vmatpush.bf16.msra.mxu0 %v843
        %958 = vmatpush.bf16.msra.mxu0 %v841
        %959 = vmatpush.bf16.msra.mxu0 %v839
        %960 = vmatpush.bf16.msra.mxu0 %v837
        %961 = vmatpush.bf16.msra.mxu0 %v835
        %962 = vmatpush.bf16.msra.mxu0 %v833
        %963 = vmatpush.bf16.msra.mxu0 %v831
        %964 = vmatpush.bf16.msra.mxu0 %v829
        %965 = vmatmul.bf16.gmra.mxu0 %v581
        %v966 = vpop.f32.mrf.mxu0
        %v967 = vadd.f32 0.0, %v966
        %v968 = vpop.f32.mrf.mxu0
        %v969 = vadd.f32 0.0, %v968
        %970 = vmatmul.bf16.gmra.mxu0 %v585
        %v971 = vpop.f32.mrf.mxu0
        %v972 = vadd.f32 0.0, %v971
        %v973 = vpop.f32.mrf.mxu0
        %v974 = vadd.f32 0.0, %v973
        %975 = vmatmul.bf16.gmra.mxu0 %v589
        %v976 = vpop.f32.mrf.mxu0
        %v977 = vadd.f32 0.0, %v976
        %v978 = vpop.f32.mrf.mxu0
        %v979 = vadd.f32 0.0, %v978
        %980 = vmatmul.bf16.gmra.mxu0 %v593
        %v981 = vpop.f32.mrf.mxu0
        %v982 = vadd.f32 0.0, %v981
        %v983 = vpop.f32.mrf.mxu0
        %v984 = vadd.f32 0.0, %v983
        %985 = vmatmul.bf16.gmra.mxu0 %v597
        %v986 = vpop.f32.mrf.mxu0
        %v987 = vadd.f32 0.0, %v986
        %v988 = vpop.f32.mrf.mxu0
        %v989 = vadd.f32 0.0, %v988
        %990 = vmatmul.bf16.gmra.mxu0 %v601
        %v991 = vpop.f32.mrf.mxu0
        %v992 = vadd.f32 0.0, %v991
        %v993 = vpop.f32.mrf.mxu0
        %v994 = vadd.f32 0.0, %v993
        %995 = vmatmul.bf16.gmra.mxu0 %v605
        %v996 = vpop.f32.mrf.mxu0
        %v997 = vadd.f32 0.0, %v996
        %v998 = vpop.f32.mrf.mxu0
        %v999 = vadd.f32 0.0, %v998
        %1000 = vdwg.mxu0
        %1001 = vmatpush.bf16.msra.mxu0 %v859
        %1002 = vmatpush.bf16.msra.mxu0 %v857
        %1003 = vmatpush.bf16.msra.mxu0 %v855
        %1004 = vmatpush.bf16.msra.mxu0 %v853
        %1005 = vmatpush.bf16.msra.mxu0 %v851
        %1006 = vmatpush.bf16.msra.mxu0 %v849
        %1007 = vmatpush.bf16.msra.mxu0 %v847
        %1008 = vmatpush.bf16.msra.mxu0 %v845
        %1009 = vmatmul.bf16.gmra.mxu0 %v582
        %v1010 = vpop.f32.mrf.mxu0
        %v1011 = vadd.f32 %v967, %v1010
        %v1012 = vpop.f32.mrf.mxu0
        %v1013 = vadd.f32 %v969, %v1012
        %1014 = vmatmul.bf16.gmra.mxu0 %v586
        %v1015 = vpop.f32.mrf.mxu0
        %v1016 = vadd.f32 %v972, %v1015
        %v1017 = vpop.f32.mrf.mxu0
        %v1018 = vadd.f32 %v974, %v1017
        %1019 = vmatmul.bf16.gmra.mxu0 %v590
        %v1020 = vpop.f32.mrf.mxu0
        %v1021 = vadd.f32 %v977, %v1020
        %v1022 = vpop.f32.mrf.mxu0
        %v1023 = vadd.f32 %v979, %v1022
        %1024 = vmatmul.bf16.gmra.mxu0 %v594
        %v1025 = vpop.f32.mrf.mxu0
        %v1026 = vadd.f32 %v982, %v1025
        %v1027 = vpop.f32.mrf.mxu0
        %v1028 = vadd.f32 %v984, %v1027
        %1029 = vmatmul.bf16.gmra.mxu0 %v598
        %v1030 = vpop.f32.mrf.mxu0
        %v1031 = vadd.f32 %v987, %v1030
        %v1032 = vpop.f32.mrf.mxu0
        %v1033 = vadd.f32 %v989, %v1032
        %1034 = vmatmul.bf16.gmra.mxu0 %v602
        %v1035 = vpop.f32.mrf.mxu0
        %v1036 = vadd.f32 %v992, %v1035
        %v1037 = vpop.f32.mrf.mxu0
        %v1038 = vadd.f32 %v994, %v1037
        %1039 = vmatmul.bf16.gmra.mxu0 %v606
        %v1040 = vpop.f32.mrf.mxu0
        %v1041 = vadd.f32 %v997, %v1040
        %v1042 = vpop.f32.mrf.mxu0
        %v1043 = vadd.f32 %v999, %v1042
        %1044 = vdwg.mxu0
        %1045 = vmatpush.bf16.msra.mxu0 %v875
        %1046 = vmatpush.bf16.msra.mxu0 %v873
        %1047 = vmatpush.bf16.msra.mxu0 %v871
        %1048 = vmatpush.bf16.msra.mxu0 %v869
        %1049 = vmatpush.bf16.msra.mxu0 %v867
        %1050 = vmatpush.bf16.msra.mxu0 %v865
        %1051 = vmatpush.bf16.msra.mxu0 %v863
        %1052 = vmatpush.bf16.msra.mxu0 %v861
        %1053 = vmatmul.bf16.gmra.mxu0 %v583
        %v1054 = vpop.f32.mrf.mxu0
        %v1055 = vadd.f32 %v1011, %v1054
        %v1056 = vpop.f32.mrf.mxu0
        %v1057 = vadd.f32 %v1013, %v1056
        %1058 = vmatmul.bf16.gmra.mxu0 %v587
        %v1059 = vpop.f32.mrf.mxu0
        %v1060 = vadd.f32 %v1016, %v1059
        %v1061 = vpop.f32.mrf.mxu0
        %v1062 = vadd.f32 %v1018, %v1061
        %1063 = vmatmul.bf16.gmra.mxu0 %v591
        %v1064 = vpop.f32.mrf.mxu0
        %v1065 = vadd.f32 %v1021, %v1064
        %v1066 = vpop.f32.mrf.mxu0
        %v1067 = vadd.f32 %v1023, %v1066
        %1068 = vmatmul.bf16.gmra.mxu0 %v595
        %v1069 = vpop.f32.mrf.mxu0
        %v1070 = vadd.f32 %v1026, %v1069
        %v1071 = vpop.f32.mrf.mxu0
        %v1072 = vadd.f32 %v1028, %v1071
        %1073 = vmatmul.bf16.gmra.mxu0 %v599
        %v1074 = vpop.f32.mrf.mxu0
        %v1075 = vadd.f32 %v1031, %v1074
        %v1076 = vpop.f32.mrf.mxu0
        %v1077 = vadd.f32 %v1033, %v1076
        %1078 = vmatmul.bf16.gmra.mxu0 %v603
        %v1079 = vpop.f32.mrf.mxu0
        %v1080 = vadd.f32 %v1036, %v1079
        %v1081 = vpop.f32.mrf.mxu0
        %v1082 = vadd.f32 %v1038, %v1081
        %1083 = vmatmul.bf16.gmra.mxu0 %v607
        %v1084 = vpop.f32.mrf.mxu0
        %v1085 = vadd.f32 %v1041, %v1084
        %v1086 = vpop.f32.mrf.mxu0
        %v1087 = vadd.f32 %v1043, %v1086
        %1088 = vdwg.mxu0
        %1089 = vmatpush.bf16.msra.mxu0 %v891
        %1090 = vmatpush.bf16.msra.mxu0 %v889
        %1091 = vmatpush.bf16.msra.mxu0 %v887
        %1092 = vmatpush.bf16.msra.mxu0 %v885
        %1093 = vmatpush.bf16.msra.mxu0 %v883
        %1094 = vmatpush.bf16.msra.mxu0 %v881
        %1095 = vmatpush.bf16.msra.mxu0 %v879
        %1096 = vmatpush.bf16.msra.mxu0 %v877
        %1097 = vmatmul.bf16.gmra.mxu0 %v584
        %v1098 = vpop.f32.mrf.mxu0
        %v1099 = vadd.f32 %v1055, %v1098
        %v1100 = vpop.f32.mrf.mxu0
        %v1101 = vadd.f32 %v1057, %v1100
        %1102 = vmatmul.bf16.gmra.mxu0 %v588
        %v1103 = vpop.f32.mrf.mxu0
        %v1104 = vadd.f32 %v1060, %v1103
        %v1105 = vpop.f32.mrf.mxu0
        %v1106 = vadd.f32 %v1062, %v1105
        %1107 = vmatmul.bf16.gmra.mxu0 %v592
        %v1108 = vpop.f32.mrf.mxu0
        %v1109 = vadd.f32 %v1065, %v1108
        %v1110 = vpop.f32.mrf.mxu0
        %v1111 = vadd.f32 %v1067, %v1110
        %1112 = vmatmul.bf16.gmra.mxu0 %v596
        %v1113 = vpop.f32.mrf.mxu0
        %v1114 = vadd.f32 %v1070, %v1113
        %v1115 = vpop.f32.mrf.mxu0
        %v1116 = vadd.f32 %v1072, %v1115
        %1117 = vmatmul.bf16.gmra.mxu0 %v600
        %v1118 = vpop.f32.mrf.mxu0
        %v1119 = vadd.f32 %v1075, %v1118
        %v1120 = vpop.f32.mrf.mxu0
        %v1121 = vadd.f32 %v1077, %v1120
        %1122 = vmatmul.bf16.gmra.mxu0 %v604
        %v1123 = vpop.f32.mrf.mxu0
        %v1124 = vadd.f32 %v1080, %v1123
        %v1125 = vpop.f32.mrf.mxu0
        %v1126 = vadd.f32 %v1082, %v1125
        %1127 = vmatmul.bf16.gmra.mxu0 %v608
        %v1128 = vpop.f32.mrf.mxu0
        %v1129 = vadd.f32 %v1085, %v1128
        %v1130 = vpop.f32.mrf.mxu0
        %v1131 = vadd.f32 %v1087, %v1130
        %1132 = vdwg.mxu0
        %1133 = vmatpush.bf16.msra.mxu0 %v844
        %1134 = vmatpush.bf16.msra.mxu0 %v842
        %1135 = vmatpush.bf16.msra.mxu0 %v840
        %1136 = vmatpush.bf16.msra.mxu0 %v838
        %1137 = vmatpush.bf16.msra.mxu0 %v836
        %1138 = vmatpush.bf16.msra.mxu0 %v834
        %1139 = vmatpush.bf16.msra.mxu0 %v832
        %1140 = vmatpush.bf16.msra.mxu0 %v830
        %1141 = vmatmul.bf16.gmra.mxu0 %v581
        %v1142 = vpop.f32.mrf.mxu0
        %v1143 = vadd.f32 0.0, %v1142
        %v1144 = vpop.f32.mrf.mxu0
        %v1145 = vadd.f32 0.0, %v1144
        %1146 = vmatmul.bf16.gmra.mxu0 %v585
        %v1147 = vpop.f32.mrf.mxu0
        %v1148 = vadd.f32 0.0, %v1147
        %v1149 = vpop.f32.mrf.mxu0
        %v1150 = vadd.f32 0.0, %v1149
        %1151 = vmatmul.bf16.gmra.mxu0 %v589
        %v1152 = vpop.f32.mrf.mxu0
        %v1153 = vadd.f32 0.0, %v1152
        %v1154 = vpop.f32.mrf.mxu0
        %v1155 = vadd.f32 0.0, %v1154
        %1156 = vmatmul.bf16.gmra.mxu0 %v593
        %v1157 = vpop.f32.mrf.mxu0
        %v1158 = vadd.f32 0.0, %v1157
        %v1159 = vpop.f32.mrf.mxu0
        %v1160 = vadd.f32 0.0, %v1159
        %1161 = vmatmul.bf16.gmra.mxu0 %v597
        %v1162 = vpop.f32.mrf.mxu0
        %v1163 = vadd.f32 0.0, %v1162
        %v1164 = vpop.f32.mrf.mxu0
        %v1165 = vadd.f32 0.0, %v1164
        %1166 = vmatmul.bf16.gmra.mxu0 %v601
        %v1167 = vpop.f32.mrf.mxu0
        %v1168 = vadd.f32 0.0, %v1167
        %v1169 = vpop.f32.mrf.mxu0
        %v1170 = vadd.f32 0.0, %v1169
        %1171 = vmatmul.bf16.gmra.mxu0 %v605
        %v1172 = vpop.f32.mrf.mxu0
        %v1173 = vadd.f32 0.0, %v1172
        %v1174 = vpop.f32.mrf.mxu0
        %v1175 = vadd.f32 0.0, %v1174
        %1176 = vdwg.mxu0
        %1177 = vmatpush.bf16.msra.mxu0 %v860
        %1178 = vmatpush.bf16.msra.mxu0 %v858
        %1179 = vmatpush.bf16.msra.mxu0 %v856
        %1180 = vmatpush.bf16.msra.mxu0 %v854
        %1181 = vmatpush.bf16.msra.mxu0 %v852
        %1182 = vmatpush.bf16.msra.mxu0 %v850
        %1183 = vmatpush.bf16.msra.mxu0 %v848
        %1184 = vmatpush.bf16.msra.mxu0 %v846
        %1185 = vmatmul.bf16.gmra.mxu0 %v582
        %v1186 = vpop.f32.mrf.mxu0
        %v1187 = vadd.f32 %v1143, %v1186
        %v1188 = vpop.f32.mrf.mxu0
        %v1189 = vadd.f32 %v1145, %v1188
        %1190 = vmatmul.bf16.gmra.mxu0 %v586
        %v1191 = vpop.f32.mrf.mxu0
        %v1192 = vadd.f32 %v1148, %v1191
        %v1193 = vpop.f32.mrf.mxu0
        %v1194 = vadd.f32 %v1150, %v1193
        %1195 = vmatmul.bf16.gmra.mxu0 %v590
        %v1196 = vpop.f32.mrf.mxu0
        %v1197 = vadd.f32 %v1153, %v1196
        %v1198 = vpop.f32.mrf.mxu0
        %v1199 = vadd.f32 %v1155, %v1198
        %1200 = vmatmul.bf16.gmra.mxu0 %v594
        %v1201 = vpop.f32.mrf.mxu0
        %v1202 = vadd.f32 %v1158, %v1201
        %v1203 = vpop.f32.mrf.mxu0
        %v1204 = vadd.f32 %v1160, %v1203
        %1205 = vmatmul.bf16.gmra.mxu0 %v598
        %v1206 = vpop.f32.mrf.mxu0
        %v1207 = vadd.f32 %v1163, %v1206
        %v1208 = vpop.f32.mrf.mxu0
        %v1209 = vadd.f32 %v1165, %v1208
        %1210 = vmatmul.bf16.gmra.mxu0 %v602
        %v1211 = vpop.f32.mrf.mxu0
        %v1212 = vadd.f32 %v1168, %v1211
        %v1213 = vpop.f32.mrf.mxu0
        %v1214 = vadd.f32 %v1170, %v1213
        %1215 = vmatmul.bf16.gmra.mxu0 %v606
        %v1216 = vpop.f32.mrf.mxu0
        %v1217 = vadd.f32 %v1173, %v1216
        %v1218 = vpop.f32.mrf.mxu0
        %v1219 = vadd.f32 %v1175, %v1218
        %1220 = vdwg.mxu0
        %1221 = vmatpush.bf16.msra.mxu0 %v876
        %1222 = vmatpush.bf16.msra.mxu0 %v874
        %1223 = vmatpush.bf16.msra.mxu0 %v872
        %1224 = vmatpush.bf16.msra.mxu0 %v870
        %1225 = vmatpush.bf16.msra.mxu0 %v868
        %1226 = vmatpush.bf16.msra.mxu0 %v866
        %1227 = vmatpush.bf16.msra.mxu0 %v864
        %1228 = vmatpush.bf16.msra.mxu0 %v862
        %1229 = vmatmul.bf16.gmra.mxu0 %v583
        %v1230 = vpop.f32.mrf.mxu0
        %v1231 = vadd.f32 %v1187, %v1230
        %v1232 = vpop.f32.mrf.mxu0
        %v1233 = vadd.f32 %v1189, %v1232
        %1234 = vmatmul.bf16.gmra.mxu0 %v587
        %v1235 = vpop.f32.mrf.mxu0
        %v1236 = vadd.f32 %v1192, %v1235
        %v1237 = vpop.f32.mrf.mxu0
        %v1238 = vadd.f32 %v1194, %v1237
        %1239 = vmatmul.bf16.gmra.mxu0 %v591
        %v1240 = vpop.f32.mrf.mxu0
        %v1241 = vadd.f32 %v1197, %v1240
        %v1242 = vpop.f32.mrf.mxu0
        %v1243 = vadd.f32 %v1199, %v1242
        %1244 = vmatmul.bf16.gmra.mxu0 %v595
        %v1245 = vpop.f32.mrf.mxu0
        %v1246 = vadd.f32 %v1202, %v1245
        %v1247 = vpop.f32.mrf.mxu0
        %v1248 = vadd.f32 %v1204, %v1247
        %1249 = vmatmul.bf16.gmra.mxu0 %v599
        %v1250 = vpop.f32.mrf.mxu0
        %v1251 = vadd.f32 %v1207, %v1250
        %v1252 = vpop.f32.mrf.mxu0
        %v1253 = vadd.f32 %v1209, %v1252
        %1254 = vmatmul.bf16.gmra.mxu0 %v603
        %v1255 = vpop.f32.mrf.mxu0
        %v1256 = vadd.f32 %v1212, %v1255
        %v1257 = vpop.f32.mrf.mxu0
        %v1258 = vadd.f32 %v1214, %v1257
        %1259 = vmatmul.bf16.gmra.mxu0 %v607
        %v1260 = vpop.f32.mrf.mxu0
        %v1261 = vadd.f32 %v1217, %v1260
        %v1262 = vpop.f32.mrf.mxu0
        %v1263 = vadd.f32 %v1219, %v1262
        %1264 = vdwg.mxu0
        %1265 = vmatpush.bf16.msra.mxu0 %v892
        %1266 = vmatpush.bf16.msra.mxu0 %v890
        %1267 = vmatpush.bf16.msra.mxu0 %v888
        %1268 = vmatpush.bf16.msra.mxu0 %v886
        %1269 = vmatpush.bf16.msra.mxu0 %v884
        %1270 = vmatpush.bf16.msra.mxu0 %v882
        %1271 = vmatpush.bf16.msra.mxu0 %v880
        %1272 = vmatpush.bf16.msra.mxu0 %v878
        %1273 = vmatmul.bf16.gmra.mxu0 %v584
        %v1274 = vpop.f32.mrf.mxu0
        %v1275 = vadd.f32 %v1231, %v1274
        %v1276 = vpop.f32.mrf.mxu0
        %v1277 = vadd.f32 %v1233, %v1276
        %1278 = vmatmul.bf16.gmra.mxu0 %v588
        %v1279 = vpop.f32.mrf.mxu0
        %v1280 = vadd.f32 %v1236, %v1279
        %v1281 = vpop.f32.mrf.mxu0
        %v1282 = vadd.f32 %v1238, %v1281
        %1283 = vmatmul.bf16.gmra.mxu0 %v592
        %v1284 = vpop.f32.mrf.mxu0
        %v1285 = vadd.f32 %v1241, %v1284
        %v1286 = vpop.f32.mrf.mxu0
        %v1287 = vadd.f32 %v1243, %v1286
        %1288 = vmatmul.bf16.gmra.mxu0 %v596
        %v1289 = vpop.f32.mrf.mxu0
        %v1290 = vadd.f32 %v1246, %v1289
        %v1291 = vpop.f32.mrf.mxu0
        %v1292 = vadd.f32 %v1248, %v1291
        %1293 = vmatmul.bf16.gmra.mxu0 %v600
        %v1294 = vpop.f32.mrf.mxu0
        %v1295 = vadd.f32 %v1251, %v1294
        %v1296 = vpop.f32.mrf.mxu0
        %v1297 = vadd.f32 %v1253, %v1296
        %1298 = vmatmul.bf16.gmra.mxu0 %v604
        %v1299 = vpop.f32.mrf.mxu0
        %v1300 = vadd.f32 %v1256, %v1299
        %v1301 = vpop.f32.mrf.mxu0
        %v1302 = vadd.f32 %v1258, %v1301
        %1303 = vmatmul.bf16.gmra.mxu0 %v608
        %v1304 = vpop.f32.mrf.mxu0
        %v1305 = vadd.f32 %v1261, %v1304
        %v1306 = vpop.f32.mrf.mxu0
        %v1307 = vadd.f32 %v1263, %v1306
        %1308 = vdwg.mxu0
        %v1309 = vadd.f32 %v377, %v1099
        %v1310 = vadd.f32 %v378, %v1275
        %v1311 = vadd.f32 %v379, %v1101
        %v1312 = vadd.f32 %v380, %v1277
        %v1313 = vadd.f32 %v381, %v1104
        %v1314 = vadd.f32 %v382, %v1280
        %v1315 = vadd.f32 %v383, %v1106
        %v1316 = vadd.f32 %v384, %v1282
        %v1317 = vadd.f32 %v385, %v1109
        %v1318 = vadd.f32 %v386, %v1285
        %v1319 = vadd.f32 %v387, %v1111
        %v1320 = vadd.f32 %v388, %v1287
        %v1321 = vadd.f32 %v389, %v1114
        %v1322 = vadd.f32 %v390, %v1290
        %v1323 = vadd.f32 %v391, %v1116
        %v1324 = vadd.f32 %v392, %v1292
        %v1325 = vadd.f32 %v393, %v1119
        %v1326 = vadd.f32 %v394, %v1295
        %v1327 = vadd.f32 %v395, %v1121
        %v1328 = vadd.f32 %v396, %v1297
        %v1329 = vadd.f32 %v397, %v1124
        %v1330 = vadd.f32 %v398, %v1300
        %v1331 = vadd.f32 %v399, %v1126
        %v1332 = vadd.f32 %v400, %v1302
        %v1333 = vadd.f32 %v401, %v1129
        %v1334 = vadd.f32 %v402, %v1305
        %v1335 = vadd.f32 %v403, %v1131
        %v1336 = vadd.f32 %v404, %v1307
        %1337 = vst [vmem:[#allocation2] sm:$0xff] %v1309
        %1338 = vst [vmem:[#allocation2 + $0x8] sm:$0xff] %v1310
        %1339 = vst [vmem:[#allocation2 + $0x10] sm:$0xff] %v1311
        %1340 = vst [vmem:[#allocation2 + $0x18] sm:$0xff] %v1312
        %1341 = vst [vmem:[#allocation2 + $0x20] sm:$0xff] %v1313
        %1342 = vst [vmem:[#allocation2 + $0x28] sm:$0xff] %v1314
        %1343 = vst [vmem:[#allocation2 + $0x30] sm:$0xff] %v1315
        %1344 = vst [vmem:[#allocation2 + $0x38] sm:$0xff] %v1316
        %1345 = vst [vmem:[#allocation2 + $0x40] sm:$0xff] %v1317
        %1346 = vst [vmem:[#allocation2 + $0x48] sm:$0xff] %v1318
        %1347 = vst [vmem:[#allocation2 + $0x50] sm:$0xff] %v1319
        %1348 = vst [vmem:[#allocation2 + $0x58] sm:$0xff] %v1320
        %1349 = vst [vmem:[#allocation2 + $0x60] sm:$0xff] %v1321
        %1350 = vst [vmem:[#allocation2 + $0x68] sm:$0xff] %v1322
        %1351 = vst [vmem:[#allocation2 + $0x70] sm:$0xff] %v1323
        %1352 = vst [vmem:[#allocation2 + $0x78] sm:$0xff] %v1324
        %1353 = vst [vmem:[#allocation2 + $0x80] sm:$0xff] %v1325
        %1354 = vst [vmem:[#allocation2 + $0x88] sm:$0xff] %v1326
        %1355 = vst [vmem:[#allocation2 + $0x90] sm:$0xff] %v1327
        %1356 = vst [vmem:[#allocation2 + $0x98] sm:$0xff] %v1328
        %1357 = vst [vmem:[#allocation2 + $0xa0] sm:$0xff] %v1329
        %1358 = vst [vmem:[#allocation2 + $0xa8] sm:$0xff] %v1330
        %1359 = vst [vmem:[#allocation2 + $0xb0] sm:$0xff] %v1331
        %1360 = vst [vmem:[#allocation2 + $0xb8] sm:$0xff] %v1332
        %1361 = vst [vmem:[#allocation2 + $0xc0] sm:$0xff] %v1333
        %1362 = vst [vmem:[#allocation2 + $0xc8] sm:$0xff] %v1334
        %1363 = vst [vmem:[#allocation2 + $0xd0] sm:$0xff] %v1335
        %1364 = vst [vmem:[#allocation2 + $0xd8] sm:$0xff] %v1336
        %p1365 = scmp.eq.s32.totalorder %s21, 4
        // Predicated region
        $region60: #{bgcnn_forward.7} parent=50 // pred_check
          %p1366 = pneg %p1365
        $region61: #{bgcnn_forward.7} parent=50 // pred_check_branch
          %1368 = sbr.rel (%p1366) target = $region63
        $region62: #{bgcnn_forward.7} parent=50 // pred_region
          %v1369 = vld [vmem:[#allocation2] sm:$0xff]
          %v1370 = vld [vmem:[#allocation2 + $0x8] sm:$0xff]
          %v1371 = vld [vmem:[#allocation2 + $0x10] sm:$0xff]
          %v1372 = vld [vmem:[#allocation2 + $0x18] sm:$0xff]
          %v1373 = vld [vmem:[#allocation2 + $0x20] sm:$0xff]
          %v1374 = vld [vmem:[#allocation2 + $0x28] sm:$0xff]
          %v1375 = vld [vmem:[#allocation2 + $0x30] sm:$0xff]
          %v1376 = vld [vmem:[#allocation2 + $0x38] sm:$0xff]
          %v1377 = vld [vmem:[#allocation2 + $0x40] sm:$0xff]
          %v1378 = vld [vmem:[#allocation2 + $0x48] sm:$0xff]
          %v1379 = vld [vmem:[#allocation2 + $0x50] sm:$0xff]
          %v1380 = vld [vmem:[#allocation2 + $0x58] sm:$0xff]
          %v1381 = vld [vmem:[#allocation2 + $0x60] sm:$0xff]
          %v1382 = vld [vmem:[#allocation2 + $0x68] sm:$0xff]
          %v1383 = vld [vmem:[#allocation2 + $0x70] sm:$0xff]
          %v1384 = vld [vmem:[#allocation2 + $0x78] sm:$0xff]
          %v1385 = vld [vmem:[#allocation2 + $0x80] sm:$0xff]
          %v1386 = vld [vmem:[#allocation2 + $0x88] sm:$0xff]
          %v1387 = vld [vmem:[#allocation2 + $0x90] sm:$0xff]
          %v1388 = vld [vmem:[#allocation2 + $0x98] sm:$0xff]
          %v1389 = vld [vmem:[#allocation2 + $0xa0] sm:$0xff]
          %v1390 = vld [vmem:[#allocation2 + $0xa8] sm:$0xff]
          %v1391 = vld [vmem:[#allocation2 + $0xb0] sm:$0xff]
          %v1392 = vld [vmem:[#allocation2 + $0xb8] sm:$0xff]
          %v1393 = vld [vmem:[#allocation2 + $0xc0] sm:$0xff]
          %v1394 = vld [vmem:[#allocation2 + $0xc8] sm:$0xff]
          %v1395 = vld [vmem:[#allocation2 + $0xd0] sm:$0xff]
          %v1396 = vld [vmem:[#allocation2 + $0xd8] sm:$0xff]
          %v1397 = vld [vmem:[%s331] sm:$0x3]
          %v1399 = vperm.slane %v1397, 0
          %v1400 = vperm.slane %v1397, 1
          %v1403 = vadd.f32 %v1369, %v1399
          %v1404 = vadd.f32 %v1370, %v1400
          %v1405 = vadd.f32 %v1371, %v1399
          %v1406 = vadd.f32 %v1372, %v1400
          %v1407 = vadd.f32 %v1373, %v1399
          %v1408 = vadd.f32 %v1374, %v1400
          %v1409 = vadd.f32 %v1375, %v1399
          %v1410 = vadd.f32 %v1376, %v1400
          %v1411 = vadd.f32 %v1377, %v1399
          %v1412 = vadd.f32 %v1378, %v1400
          %v1413 = vadd.f32 %v1379, %v1399
          %v1414 = vadd.f32 %v1380, %v1400
          %v1415 = vadd.f32 %v1381, %v1399
          %v1416 = vadd.f32 %v1382, %v1400
          %v1417 = vadd.f32 %v1383, %v1399
          %v1418 = vadd.f32 %v1384, %v1400
          %v1419 = vadd.f32 %v1385, %v1399
          %v1420 = vadd.f32 %v1386, %v1400
          %v1421 = vadd.f32 %v1387, %v1399
          %v1422 = vadd.f32 %v1388, %v1400
          %v1423 = vadd.f32 %v1389, %v1399
          %v1424 = vadd.f32 %v1390, %v1400
          %v1425 = vadd.f32 %v1391, %v1399
          %v1426 = vadd.f32 %v1392, %v1400
          %v1427 = vadd.f32 %v1393, %v1399
          %v1428 = vadd.f32 %v1394, %v1400
          %v1429 = vadd.f32 %v1395, %v1399
          %v1430 = vadd.f32 %v1396, %v1400
          %v1431 = vmax.f32 %v1403, 0.0
          %v1432 = vmax.f32 %v1404, 0.0
          %v1433 = vmax.f32 %v1405, 0.0
          %v1434 = vmax.f32 %v1406, 0.0
          %v1435 = vmax.f32 %v1407, 0.0
          %v1436 = vmax.f32 %v1408, 0.0
          %v1437 = vmax.f32 %v1409, 0.0
          %v1438 = vmax.f32 %v1410, 0.0
          %v1439 = vmax.f32 %v1411, 0.0
          %v1440 = vmax.f32 %v1412, 0.0
          %v1441 = vmax.f32 %v1413, 0.0
          %v1442 = vmax.f32 %v1414, 0.0
          %v1443 = vmax.f32 %v1415, 0.0
          %v1444 = vmax.f32 %v1416, 0.0
          %v1445 = vmax.f32 %v1417, 0.0
          %v1446 = vmax.f32 %v1418, 0.0
          %v1447 = vmax.f32 %v1419, 0.0
          %v1448 = vmax.f32 %v1420, 0.0
          %v1449 = vmax.f32 %v1421, 0.0
          %v1450 = vmax.f32 %v1422, 0.0
          %v1451 = vmax.f32 %v1423, 0.0
          %v1452 = vmax.f32 %v1424, 0.0
          %v1453 = vmax.f32 %v1425, 0.0
          %v1454 = vmax.f32 %v1426, 0.0
          %v1455 = vmax.f32 %v1427, 0.0
          %v1456 = vmax.f32 %v1428, 0.0
          %v1457 = vmax.f32 %v1429, 0.0
          %v1458 = vmax.f32 %v1430, 0.0
          %1459 = vst [vmem:[%s342] sm:$0xff] %v1431
          %1460 = vst [vmem:[%s342 + $0x8] sm:$0xff] %v1432
          %1461 = vst [vmem:[%s342 + $0x10] sm:$0xff] %v1433
          %1462 = vst [vmem:[%s342 + $0x18] sm:$0xff] %v1434
          %1463 = vst [vmem:[%s342 + $0x20] sm:$0xff] %v1435
          %1464 = vst [vmem:[%s342 + $0x28] sm:$0xff] %v1436
          %1465 = vst [vmem:[%s342 + $0x30] sm:$0xff] %v1437
          %1466 = vst [vmem:[%s342 + $0x38] sm:$0xff] %v1438
          %1467 = vst [vmem:[%s342 + $0x40] sm:$0xff] %v1439
          %1468 = vst [vmem:[%s342 + $0x48] sm:$0xff] %v1440
          %1469 = vst [vmem:[%s342 + $0x50] sm:$0xff] %v1441
          %1470 = vst [vmem:[%s342 + $0x58] sm:$0xff] %v1442
          %1471 = vst [vmem:[%s342 + $0x60] sm:$0xff] %v1443
          %1472 = vst [vmem:[%s342 + $0x68] sm:$0xff] %v1444
          %1473 = vst [vmem:[%s342 + $0x70] sm:$0xff] %v1445
          %1474 = vst [vmem:[%s342 + $0x78] sm:$0xff] %v1446
          %1475 = vst [vmem:[%s342 + $0x80] sm:$0xff] %v1447
          %1476 = vst [vmem:[%s342 + $0x88] sm:$0xff] %v1448
          %1477 = vst [vmem:[%s342 + $0x90] sm:$0xff] %v1449
          %1478 = vst [vmem:[%s342 + $0x98] sm:$0xff] %v1450
          %1479 = vst [vmem:[%s342 + $0xa0] sm:$0xff] %v1451
          %1480 = vst [vmem:[%s342 + $0xa8] sm:$0xff] %v1452
          %1481 = vst [vmem:[%s342 + $0xb0] sm:$0xff] %v1453
          %1482 = vst [vmem:[%s342 + $0xb8] sm:$0xff] %v1454
          %1483 = vst [vmem:[%s342 + $0xc0] sm:$0xff] %v1455
          %1484 = vst [vmem:[%s342 + $0xc8] sm:$0xff] %v1456
          %1485 = vst [vmem:[%s342 + $0xd0] sm:$0xff] %v1457
          %1486 = vst [vmem:[%s342 + $0xd8] sm:$0xff] %v1458
        $region63: #{bgcnn_forward.7} parent=50 // pred_fallthru
          _
        %s1487 = smul.u32 14, %s19
        %s1488 = smul.u32 2, %s20
        %p1489 = scmp.lt.s32.totalorder %s1487, 13
        %s1490 = scalar_select %p1489, %s1487, 13
        %p1491 = scmp.lt.s32.totalorder %s1488, 1
        %s1492 = scalar_select %p1491, %s1488, 1
        %s1493 = smul.addr %s1490, 2
        %s1494 = sadd.s32 %s1492, %s1493
        %s1495 = smul.addr %s1494, 8
        %s1496 = scalar_lea.vmem %s3, %s1495
        // Predicated region
        $region64: #{bgcnn_forward.7} parent=50 // pred_check
          %p1497 = pneg %p135
        $region65: #{bgcnn_forward.7} parent=50 // pred_check_branch
          %1499 = sbr.rel (%p1497) target = $region67
        $region66: #{bgcnn_forward.7} parent=50 // pred_region
          %s1500 = smul.u32 14, %s19
          %s1501 = smul.u32 2, %s20
        $region67: #{bgcnn_forward.7} parent=50 // pred_fallthru
          _
        // Predicated region
        $region68: #{bgcnn_forward.7} parent=50 // pred_check
          %p1502 = pneg %p135
        $region69: #{bgcnn_forward.7} parent=50 // pred_check_branch
          %1504 = sbr.rel (%p1502) target = $region71
        $region70: #{bgcnn_forward.7} parent=50 // pred_region
          %s1505 = smul.u32 14, %s19
          %s1506 = smul.u32 2, %s20
          %p1507 = scmp.lt.s32.totalorder %s1505, 13
          %s1508 = scalar_select %p1507, %s1505, 13
          %p1509 = scmp.lt.s32.totalorder %s1506, 1
          %s1510 = scalar_select %p1509, %s1506, 1
          %s1511 = smul.addr %s1508, 2
          %s1512 = sadd.s32 %s1510, %s1511
          %s1513 = smul.addr %s1512, 8
          %s1514 = scalar_lea.vmem %s3, %s1513
        $region71: #{bgcnn_forward.7} parent=50 // pred_fallthru
          _
      $region51: #{bgcnn_forward.7} parent=5 // pred_fallthru
        _
      %p1515 = scmp.le.s32.totalorder 2, %s9
      // Predicated region
      $region72: #{bgcnn_forward.7} parent=5 // pred_check
        %p1516 = pneg %p1515
      $region73: #{bgcnn_forward.7} parent=5 // pred_check_branch
        %1518 = sbr.rel (%p1516) target = $region75
      $region74: #{bgcnn_forward.7} parent=5 // pred_region
        %s1519 = ssub.s32 %s9, 2
      $region75: #{bgcnn_forward.7} parent=5 // pred_fallthru
        _
    $region6: #{bgcnn_forward.7} parent=1 // loop_footer
      %s13 = sadd.s32 1, %s9
    $region7: #{bgcnn_forward.7} parent=1 // loop_footer_branch
      %8 = sbr.rel target = $region3
    $region8: #{bgcnn_forward.7} parent=1 // loop_exit
      _

// kernel: bgcnn_forward.8
$region0: #{bgcnn_forward.8}
  #allocation0 [shape = 'u32[]', space=smem, size = 0x4, offset = 0x4, fixed_abs, tag = 'smem constant byte address 0x4 - core index']
  #allocation1 [shape = 'u32[72,128]{1,0:T(1,128)}', space=vmem, size = 0x9000, scoped, tag = 'internal scratch']
  #allocation2 [shape = 'f32[32,384]{1,0:T(8,128)}', space=vmem, size = 0xc000, scoped, tag = 'scratch operand']
  %s0 = inlined_call_operand.vmem [shape: bf16[32,2560], index: 0, kind: input, shape index: {}]
  %s1 = inlined_call_operand.vmem [shape: bf16[2560,384], index: 1, kind: input, shape index: {}]
  %s2 = inlined_call_operand.vmem [shape: f32[1,384], index: 2, kind: input, shape index: {}]
  %s3 = inlined_call_operand.vmem [shape: f32[32,384], index: 3, kind: output, shape index: {}]
  %s4 = sld [smem:[#allocation0]]
  $region76: #{bgcnn_forward.8} parent=0
    _
  %s6 = ssub.s32 1, %s4
  %s7 = scalar_select 0, %s6, %s4
  $region1: #{bgcnn_forward.8} parent=0
    #allocation3 [shape = 'u8[65536]{0}', space=vmem, size = 0x10000, scoped, tag = 'input window, operand 0']
    loop: start=0, step=1, limit=7
    $region2: #{bgcnn_forward.8} parent=1 // loop_pre_header
      _
    $region3: #{bgcnn_forward.8} parent=1 // loop_header
      %s9 = sphi 0, %s13
      %p10 = scmp.ge.s32.totalorder %s9, 7
      %s16 = sphi 0, %s35
      %s17 = sphi 0, %s31
      %s18 = sphi 0, %s27
      %s19 = sphi 0, %s16
      %s20 = sphi 0, %s17
      %s21 = sphi 0, %s18
      %s22 = sphi 0, %s19
      %s23 = sphi 0, %s20
      %s24 = sphi 0, %s21
      %s40 = sphi 0, %s42
      %s43 = sphi 0, %s40
      %s44 = sphi 0, %s43
      %s60 = sphi 0, %s44
      %s68 = sphi 0, %s70
      %s71 = sphi 0, %s68
      %s72 = sphi 0, %s71
      %s88 = sphi 0, %s72
      %s94 = sphi 0, %s96
      %s97 = sphi 0, %s94
      %s98 = sphi 0, %s97
      %s114 = sphi 0, %s98
      %s122 = sphi 0, %s124
      %s125 = sphi 0, %s122
      %s126 = sphi 0, %s125
      %s142 = sphi 0, %s126
    $region4: #{bgcnn_forward.8} parent=1 // loop_header_branch
      %12 = sbr.rel (%p10) target = $region8
    $region5: #{bgcnn_forward.8} parent=1 // loop_body
      %s14 = ssub.s32 %s9, 1
      %s15 = ssub.s32 %s9, 2
      %s25 = sadd.s32 1, %s18
      %p26 = scmp.ge.s32.totalorder %s25, 5
      %s27 = scalar_select %p26, 0, %s25
      %s28 = sadd.s32 1, %s17
      %s29 = scalar_select %p26, %s28, %s17
      %p30 = scmp.ge.s32.totalorder %s29, 1
      %s31 = scalar_select %p30, 0, %s29
      %s32 = sadd.s32 1, %s16
      %s33 = scalar_select %p30, %s32, %s16
      %p34 = scmp.ge.s32.totalorder %s33, 1
      %s35 = scalar_select %p34, 0, %s33
      %s36 = ssub.s32 %s16, %s35
      %s37 = ssub.s32 %s18, %s27
      %s38 = sor.u32 %s36, %s37
      %p39 = scmp.eq.s32.totalorder %s38, 0
      %s41 = sadd.s32 %s40, 1
      %s42 = scalar_select %p39, %s40, %s41
      %p45 = pneg %p39
      %p46 = scmp.eq.s32.totalorder %s9, 4
      %p47 = por %p45, %p46
      %p48 = scmp.ne.s32.totalorder %s40, %s43
      %p49 = scmp.eq.s32.totalorder %s9, 0
      %p50 = por %p48, %p49
      %p51 = scmp.ne.s32.totalorder %s40, %s43
      %p52 = scmp.eq.s32.totalorder %s14, 4
      %p53 = por %p51, %p52
      %p54 = scmp.ne.s32.totalorder %s43, %s44
      %p55 = scmp.eq.s32.totalorder %s14, 0
      %p56 = por %p54, %p55
      %p57 = scmp.ne.s32.totalorder %s43, %s44
      %p58 = scmp.eq.s32.totalorder %s15, 4
      %p59 = por %p57, %p58
      %p61 = scmp.ne.s32.totalorder %s44, %s60
      %p62 = scmp.eq.s32.totalorder %s15, 0
      %p63 = por %p61, %p62
      %s64 = ssub.s32 %s18, %s27
      %s65 = ssub.s32 %s17, %s31
      %s66 = sor.u32 %s64, %s65
      %p67 = scmp.eq.s32.totalorder %s66, 0
      %s69 = sadd.s32 %s68, 1
      %s70 = scalar_select %p67, %s68, %s69
      %p73 = pneg %p67
      %p74 = scmp.eq.s32.totalorder %s9, 4
      %p75 = por %p73, %p74
      %p76 = scmp.ne.s32.totalorder %s68, %s71
      %p77 = scmp.eq.s32.totalorder %s9, 0
      %p78 = por %p76, %p77
      %p79 = scmp.ne.s32.totalorder %s68, %s71
      %p80 = scmp.eq.s32.totalorder %s14, 4
      %p81 = por %p79, %p80
      %p82 = scmp.ne.s32.totalorder %s71, %s72
      %p83 = scmp.eq.s32.totalorder %s14, 0
      %p84 = por %p82, %p83
      %p85 = scmp.ne.s32.totalorder %s71, %s72
      %p86 = scmp.eq.s32.totalorder %s15, 4
      %p87 = por %p85, %p86
      %p89 = scmp.ne.s32.totalorder %s72, %s88
      %p90 = scmp.eq.s32.totalorder %s15, 0
      %p91 = por %p89, %p90
      %s92 = ssub.s32 %s17, %s31
      %p93 = scmp.eq.s32.totalorder %s92, 0
      %s95 = sadd.s32 %s94, 1
      %s96 = scalar_select %p93, %s94, %s95
      %p99 = pneg %p93
      %p100 = scmp.eq.s32.totalorder %s9, 4
      %p101 = por %p99, %p100
      %p102 = scmp.ne.s32.totalorder %s94, %s97
      %p103 = scmp.eq.s32.totalorder %s9, 0
      %p104 = por %p102, %p103
      %p105 = scmp.ne.s32.totalorder %s94, %s97
      %p106 = scmp.eq.s32.totalorder %s14, 4
      %p107 = por %p105, %p106
      %p108 = scmp.ne.s32.totalorder %s97, %s98
      %p109 = scmp.eq.s32.totalorder %s14, 0
      %p110 = por %p108, %p109
      %p111 = scmp.ne.s32.totalorder %s97, %s98
      %p112 = scmp.eq.s32.totalorder %s15, 4
      %p113 = por %p111, %p112
      %p115 = scmp.ne.s32.totalorder %s98, %s114
      %p116 = scmp.eq.s32.totalorder %s15, 0
      %p117 = por %p115, %p116
      %s118 = ssub.s32 %s16, %s35
      %s119 = ssub.s32 %s17, %s31
      %s120 = sor.u32 %s118, %s119
      %p121 = scmp.eq.s32.totalorder %s120, 0
      %s123 = sadd.s32 %s122, 1
      %s124 = scalar_select %p121, %s122, %s123
      %p127 = pneg %p121
      %p128 = scmp.eq.s32.totalorder %s9, 4
      %p129 = por %p127, %p128
      %p130 = scmp.ne.s32.totalorder %s122, %s125
      %p131 = scmp.eq.s32.totalorder %s9, 0
      %p132 = por %p130, %p131
      %p133 = scmp.ne.s32.totalorder %s122, %s125
      %p134 = scmp.eq.s32.totalorder %s14, 4
      %p135 = por %p133, %p134
      %p136 = scmp.ne.s32.totalorder %s125, %s126
      %p137 = scmp.eq.s32.totalorder %s14, 0
      %p138 = por %p136, %p137
      %p139 = scmp.ne.s32.totalorder %s125, %s126
      %p140 = scmp.eq.s32.totalorder %s15, 4
      %p141 = por %p139, %p140
      %p143 = scmp.ne.s32.totalorder %s126, %s142
      %p144 = scmp.eq.s32.totalorder %s15, 0
      %p145 = por %p143, %p144
      %p146 = scmp.le.s32.totalorder 1, %s9
      %p147 = scmp.lt.s32.totalorder %s9, 6
      %p148 = pnand %p146, %p147
      %p149 = pneg %p148
      // Predicated region
      $region9: #{bgcnn_forward.8} parent=5 // pred_check
        _
      $region10: #{bgcnn_forward.8} parent=5 // pred_check_branch
        %151 = sbr.rel (%p148) target = $region12
      $region11: #{bgcnn_forward.8} parent=5 // pred_region
        %s152 = ssub.s32 %s9, 1
        // Predicated region
        $region13: #{bgcnn_forward.8} parent=11 // pred_check
          %p153 = pneg %p110
        $region14: #{bgcnn_forward.8} parent=11 // pred_check_branch
          %155 = sbr.rel (%p153) target = $region16
        $region15: #{bgcnn_forward.8} parent=11 // pred_region
          %s156 = smul.u32 3, %s20
          %p157 = scmp.lt.s32.totalorder %s156, 2
          %s158 = scalar_select %p157, %s156, 2
          %s159 = scalar_lea.vmem %s2, %s158
          %s160 = smul.u32 3, %s20
        $region16: #{bgcnn_forward.8} parent=11 // pred_fallthru
          _
      $region12: #{bgcnn_forward.8} parent=5 // pred_fallthru
        _
      %p161 = scmp.lt.s32.totalorder %s9, 5
      // Predicated region
      $region17: #{bgcnn_forward.8} parent=5 // pred_check
        %p162 = pneg %p161
      $region18: #{bgcnn_forward.8} parent=5 // pred_check_branch
        %164 = sbr.rel (%p162) target = $region20
      $region19: #{bgcnn_forward.8} parent=5 // pred_region
        // Predicated region
        $region21: #{bgcnn_forward.8} parent=19 // pred_check
          %p165 = pneg %p50
        $region22: #{bgcnn_forward.8} parent=19 // pred_check_branch
          %167 = sbr.rel (%p165) target = $region24
        $region23: #{bgcnn_forward.8} parent=19 // pred_region
          %s168 = sand.u32 %s40, 1
          %s169 = sand.u32 %s40, 1
          %s170 = smul.addr %s169, 64
          %s171 = scalar_lea.vmem [#allocation3], %s170
          %s172 = smul.u32 4, %s16
          %s173 = smul.u32 4, %s18
          %s174 = smul.addr %s172, 20
          %s175 = sadd.s32 %s173, %s174
          %s176 = smul.addr %s175, 4
          %s177 = scalar_lea.vmem %s0, %s176
          // Predicated region
          $region25: #{bgcnn_forward.8} parent=23 // pred_check
            _
          $region26: #{bgcnn_forward.8} parent=23 // pred_check_branch
            %179 = sbr.rel (0) target = $region28
          $region27: #{bgcnn_forward.8} parent=23 // pred_region
            // Predicated region
            $region29: #{bgcnn_forward.8} parent=27 // pred_check
              _
            $region30: #{bgcnn_forward.8} parent=27 // pred_check_branch
              %181 = sbr.rel (0) target = $region32
            $region31: #{bgcnn_forward.8} parent=27 // pred_region
              loop: start=0, step=1, limit=1
              $region33: #{bgcnn_forward.8} parent=31 // loop_pre_header
                _
              $region34: #{bgcnn_forward.8} parent=31 // loop_header
                %s183 = sphi 0, %s187
                %p184 = scmp.ge.s32.totalorder %s183, 1
                %s188 = sphi %s177, %s177
                %s189 = sphi %s171, %s171
              $region35: #{bgcnn_forward.8} parent=31 // loop_header_branch
                %186 = sbr.rel (%p184) target = $region39
              $region36: #{bgcnn_forward.8} parent=31 // loop_body
                %v190 = vld [vmem:[%s188] sm:$0xff]
                %191 = vst [vmem:[%s189] sm:$0xff] %v190
                %v192 = vld [vmem:[%s188 + $0x8] sm:$0xff]
                %193 = vst [vmem:[%s189 + $0x8] sm:$0xff] %v192
                %v194 = vld [vmem:[%s188 + $0x50] sm:$0xff]
                %195 = vst [vmem:[%s189 + $0x10] sm:$0xff] %v194
                %v196 = vld [vmem:[%s188 + $0x58] sm:$0xff]
                %197 = vst [vmem:[%s189 + $0x18] sm:$0xff] %v196
                %v198 = vld [vmem:[%s188 + $0xa0] sm:$0xff]
                %199 = vst [vmem:[%s189 + $0x20] sm:$0xff] %v198
                %v200 = vld [vmem:[%s188 + $0xa8] sm:$0xff]
                %201 = vst [vmem:[%s189 + $0x28] sm:$0xff] %v200
                %v202 = vld [vmem:[%s188 + $0xf0] sm:$0xff]
                %203 = vst [vmem:[%s189 + $0x30] sm:$0xff] %v202
                %v204 = vld [vmem:[%s188 + $0xf8] sm:$0xff]
                %205 = vst [vmem:[%s189 + $0x38] sm:$0xff] %v204
              $region37: #{bgcnn_forward.8} parent=31 // loop_footer
                %s187 = sadd.s32 1, %s183
              $region38: #{bgcnn_forward.8} parent=31 // loop_footer_branch
                %182 = sbr.rel target = $region34
              $region39: #{bgcnn_forward.8} parent=31 // loop_exit
                _
            $region32: #{bgcnn_forward.8} parent=27 // pred_fallthru
              _
            // Predicated region
            $region40: #{bgcnn_forward.8} parent=27 // pred_check
              _
            $region41: #{bgcnn_forward.8} parent=27 // pred_check_branch
              %207 = sbr.rel target = $region43
            $region42: #{bgcnn_forward.8} parent=27 // pred_region
              _
            $region43: #{bgcnn_forward.8} parent=27 // pred_fallthru
              _
          $region28: #{bgcnn_forward.8} parent=23 // pred_fallthru
            _
          %208 = vnop
        $region24: #{bgcnn_forward.8} parent=19 // pred_fallthru
          _
        // Predicated region
        $region44: #{bgcnn_forward.8} parent=19 // pred_check
          %p209 = pneg %p78
        $region45: #{bgcnn_forward.8} parent=19 // pred_check_branch
          %211 = sbr.rel (%p209) target = $region47
        $region46: #{bgcnn_forward.8} parent=19 // pred_region
          %s212 = smul.u32 64, %s18
          %s213 = smul.u32 3, %s17
          %p214 = scmp.lt.s32.totalorder %s212, 319
          %s215 = scalar_select %p214, %s212, 319
          %p216 = scmp.lt.s32.totalorder %s213, 2
          %s217 = scalar_select %p216, %s213, 2
          %s218 = smul.addr %s215, 3
          %s219 = sadd.s32 %s217, %s218
          %s220 = smul.addr %s219, 4
          %s221 = scalar_lea.vmem %s1, %s220
          %s222 = smul.u32 64, %s18
          %s223 = smul.u32 3, %s17
        $region47: #{bgcnn_forward.8} parent=19 // pred_fallthru
          _
      $region20: #{bgcnn_forward.8} parent=5 // pred_fallthru
        _
      %p224 = scmp.le.s32.totalorder 1, %s9
      %p225 = scmp.lt.s32.totalorder %s9, 6
      %p226 = pnand %p224, %p225
      %p227 = pneg %p226
      // Predicated region
      $region48: #{bgcnn_forward.8} parent=5 // pred_check
        _
      $region49: #{bgcnn_forward.8} parent=5 // pred_check_branch
        %229 = sbr.rel (%p226) target = $region51
      $region50: #{bgcnn_forward.8} parent=5 // pred_region
        %s230 = ssub.s32 %s9, 1
        %s231 = sand.u32 %s43, 1
        %s232 = sand.u32 %s43, 1
        %s233 = smul.addr %s232, 64
        %s234 = scalar_lea.vmem [#allocation3], %s233
        // Predicated region
        $region52: #{bgcnn_forward.8} parent=50 // pred_check
          %p235 = pneg %p56
        $region53: #{bgcnn_forward.8} parent=50 // pred_check_branch
          %237 = sbr.rel (%p235) target = $region55
        $region54: #{bgcnn_forward.8} parent=50 // pred_region
          _
        $region55: #{bgcnn_forward.8} parent=50 // pred_fallthru
          _
        %s238 = sand.u32 %s43, 1
        %s239 = sand.u32 %s43, 1
        %s240 = smul.addr %s239, 64
        %s241 = scalar_lea.vmem [#allocation3], %s240
        %p242 = pneg %p56
        %p243 = pneg %p53
        %s244 = smul.u32 64, %s21
        %s245 = smul.u32 3, %s20
        %p246 = scmp.lt.s32.totalorder %s244, 319
        %s247 = scalar_select %p246, %s244, 319
        %p248 = scmp.lt.s32.totalorder %s245, 2
        %s249 = scalar_select %p248, %s245, 2
        %s250 = smul.addr %s247, 3
        %s251 = sadd.s32 %s249, %s250
        %s252 = smul.addr %s251, 4
        %s253 = scalar_lea.vmem %s1, %s252
        %p254 = pneg %p84
        %p255 = pneg %p81
        %s256 = smul.u32 3, %s20
        %p257 = scmp.lt.s32.totalorder %s256, 2
        %s258 = scalar_select %p257, %s256, 2
        %s259 = scalar_lea.vmem %s2, %s258
        %p260 = pneg %p110
        %p261 = pneg %p107
        %p262 = pneg %p138
        %p263 = pneg %p135
        %s264 = smul.u32 4, %s19
        %s265 = smul.u32 3, %s20
        %p266 = scmp.lt.s32.totalorder %s264, 3
        %s267 = scalar_select %p266, %s264, 3
        %p268 = scmp.lt.s32.totalorder %s265, 2
        %s269 = scalar_select %p268, %s265, 2
        %s270 = smul.addr %s267, 3
        %s271 = sadd.s32 %s269, %s270
        %s272 = smul.addr %s271, 8
        %s273 = scalar_lea.vmem %s3, %s272
        %s274 = smul.u32 4, %s19
        %s275 = smul.u32 4, %s21
        %s276 = smul.u32 64, %s21
        %s277 = smul.u32 3, %s20
        %p278 = scmp.lt.s32.totalorder %s276, 319
        %s279 = scalar_select %p278, %s276, 319
        %p280 = scmp.lt.s32.totalorder %s277, 2
        %s281 = scalar_select %p280, %s277, 2
        %s282 = smul.addr %s279, 3
        %s283 = sadd.s32 %s281, %s282
        %s284 = smul.addr %s283, 4
        %s285 = scalar_lea.vmem %s1, %s284
        %s286 = smul.u32 64, %s21
        %s287 = smul.u32 3, %s20
        %s288 = smul.u32 3, %s20
        %p289 = scmp.lt.s32.totalorder %s288, 2
        %s290 = scalar_select %p289, %s288, 2
        %s291 = scalar_lea.vmem %s2, %s290
        %s292 = smul.u32 3, %s20
        %s293 = smul.u32 4, %s19
        %s294 = smul.u32 3, %s20
        %p295 = scmp.lt.s32.totalorder %s293, 3
        %s296 = scalar_select %p295, %s293, 3
        %p297 = scmp.lt.s32.totalorder %s294, 2
        %s298 = scalar_select %p297, %s294, 2
        %s299 = smul.addr %s296, 3
        %s300 = sadd.s32 %s298, %s299
        %s301 = smul.addr %s300, 8
        %s302 = scalar_lea.vmem %s3, %s301
        %s303 = smul.u32 4, %s19
        %s304 = smul.u32 3, %s20
        %p305 = scmp.eq.s32.totalorder %s21, 0
        // Predicated region
        $region56: #{bgcnn_forward.8} parent=50 // pred_check
          %p306 = pneg %p305
        $region57: #{bgcnn_forward.8} parent=50 // pred_check_branch
          %308 = sbr.rel (%p306) target = $region59
        $region58: #{bgcnn_forward.8} parent=50 // pred_region
          %309 = vst [vmem:[#allocation2] sm:$0xff] 0.0
          %310 = vst [vmem:[#allocation2 + $0x8] sm:$0xff] 0.0
          %311 = vst [vmem:[#allocation2 + $0x10] sm:$0xff] 0.0
          %312 = vst [vmem:[#allocation2 + $0x18] sm:$0xff] 0.0
          %313 = vst [vmem:[#allocation2 + $0x20] sm:$0xff] 0.0
          %314 = vst [vmem:[#allocation2 + $0x28] sm:$0xff] 0.0
          %315 = vst [vmem:[#allocation2 + $0x30] sm:$0xff] 0.0
          %316 = vst [vmem:[#allocation2 + $0x38] sm:$0xff] 0.0
          %317 = vst [vmem:[#allocation2 + $0x40] sm:$0xff] 0.0
          %318 = vst [vmem:[#allocation2 + $0x48] sm:$0xff] 0.0
          %319 = vst [vmem:[#allocation2 + $0x50] sm:$0xff] 0.0
          %320 = vst [vmem:[#allocation2 + $0x58] sm:$0xff] 0.0
        $region59: #{bgcnn_forward.8} parent=50 // pred_fallthru
          _
        %v321 = vld [vmem:[#allocation2] sm:$0xff]
        %v322 = vld [vmem:[#allocation2 + $0x8] sm:$0xff]
        %v323 = vld [vmem:[#allocation2 + $0x10] sm:$0xff]
        %v324 = vld [vmem:[#allocation2 + $0x18] sm:$0xff]
        %v325 = vld [vmem:[#allocation2 + $0x20] sm:$0xff]
        %v326 = vld [vmem:[#allocation2 + $0x28] sm:$0xff]
        %v327 = vld [vmem:[#allocation2 + $0x30] sm:$0xff]
        %v328 = vld [vmem:[#allocation2 + $0x38] sm:$0xff]
        %v329 = vld [vmem:[#allocation2 + $0x40] sm:$0xff]
        %v330 = vld [vmem:[#allocation2 + $0x48] sm:$0xff]
        %v331 = vld [vmem:[#allocation2 + $0x50] sm:$0xff]
        %v332 = vld [vmem:[#allocation2 + $0x58] sm:$0xff]
        %v333 = vld [vmem:[%s234] sm:$0xff]
        %v334 = vld [vmem:[%s234 + $0x8] sm:$0xff]
        %v335 = vld [vmem:[%s234 + $0x10] sm:$0xff]
        %v336 = vld [vmem:[%s234 + $0x18] sm:$0xff]
        %v337 = vld [vmem:[%s234 + $0x20] sm:$0xff]
        %v338 = vld [vmem:[%s234 + $0x28] sm:$0xff]
        %v339 = vld [vmem:[%s234 + $0x30] sm:$0xff]
        %v340 = vld [vmem:[%s234 + $0x38] sm:$0xff]
        %v341 = vld [vmem:[%s285] sm:$0xff]
        %v342 = vld [vmem:[%s285 + $0x8] sm:$0xf]
        %v343 = vld [vmem:[%s285 + $0xc] sm:$0xff]
        %v344 = vld [vmem:[%s285 + $0x14] sm:$0xf]
        %v345 = vld [vmem:[%s285 + $0x18] sm:$0xff]
        %v346 = vld [vmem:[%s285 + $0x20] sm:$0xf]
        %v347 = vld [vmem:[%s285 + $0x24] sm:$0xff]
        %v348 = vld [vmem:[%s285 + $0x2c] sm:$0xf]
        %v349 = vld [vmem:[%s285 + $0x30] sm:$0xff]
        %v350 = vld [vmem:[%s285 + $0x38] sm:$0xf]
        %v351 = vld [vmem:[%s285 + $0x3c] sm:$0xff]
        %v352 = vld [vmem:[%s285 + $0x44] sm:$0xf]
        %v353 = vld [vmem:[%s285 + $0x48] sm:$0xff]
        %v354 = vld [vmem:[%s285 + $0x50] sm:$0xf]
        %v355 = vld [vmem:[%s285 + $0x54] sm:$0xff]
        %v356 = vld [vmem:[%s285 + $0x5c] sm:$0xf]
        %v357 = vld [vmem:[%s285 + $0x60] sm:$0xff]
        %v358 = vld [vmem:[%s285 + $0x68] sm:$0xf]
        %v359 = vld [vmem:[%s285 + $0x6c] sm:$0xff]
        %v360 = vld [vmem:[%s285 + $0x74] sm:$0xf]
        %v361 = vld [vmem:[%s285 + $0x78] sm:$0xff]
        %v362 = vld [vmem:[%s285 + $0x80] sm:$0xf]
        %v363 = vld [vmem:[%s285 + $0x84] sm:$0xff]
        %v364 = vld [vmem:[%s285 + $0x8c] sm:$0xf]
        %v365 = vld [vmem:[%s285 + $0x90] sm:$0xff]
        %v366 = vld [vmem:[%s285 + $0x98] sm:$0xf]
        %v367 = vld [vmem:[%s285 + $0x9c] sm:$0xff]
        %v368 = vld [vmem:[%s285 + $0xa4] sm:$0xf]
        %v369 = vld [vmem:[%s285 + $0xa8] sm:$0xff]
        %v370 = vld [vmem:[%s285 + $0xb0] sm:$0xf]
        %v371 = vld [vmem:[%s285 + $0xb4] sm:$0xff]
        %v372 = vld [vmem:[%s285 + $0xbc] sm:$0xf]
        %v373 = vld [vmem:[%s285 + $0xc0] sm:$0xff]
        %v374 = vld [vmem:[%s285 + $0xc8] sm:$0xf]
        %v375 = vld [vmem:[%s285 + $0xcc] sm:$0xff]
        %v376 = vld [vmem:[%s285 + $0xd4] sm:$0xf]
        %v377 = vld [vmem:[%s285 + $0xd8] sm:$0xff]
        %v378 = vld [vmem:[%s285 + $0xe0] sm:$0xf]
        %v379 = vld [vmem:[%s285 + $0xe4] sm:$0xff]
        %v380 = vld [vmem:[%s285 + $0xec] sm:$0xf]
        %v381 = vld [vmem:[%s285 + $0xf0] sm:$0xff]
        %v382 = vld [vmem:[%s285 + $0xf8] sm:$0xf]
        %v383 = vld [vmem:[%s285 + $0xfc] sm:$0xff]
        %v384 = vld [vmem:[%s285 + $0x104] sm:$0xf]
        %v385 = vld [vmem:[%s285 + $0x108] sm:$0xff]
        %v386 = vld [vmem:[%s285 + $0x110] sm:$0xf]
        %v387 = vld [vmem:[%s285 + $0x114] sm:$0xff]
        %v388 = vld [vmem:[%s285 + $0x11c] sm:$0xf]
        %v389 = vld [vmem:[%s285 + $0x120] sm:$0xff]
        %v390 = vld [vmem:[%s285 + $0x128] sm:$0xf]
        %v391 = vld [vmem:[%s285 + $0x12c] sm:$0xff]
        %v392 = vld [vmem:[%s285 + $0x134] sm:$0xf]
        %v393 = vld [vmem:[%s285 + $0x138] sm:$0xff]
        %v394 = vld [vmem:[%s285 + $0x140] sm:$0xf]
        %v395 = vld [vmem:[%s285 + $0x144] sm:$0xff]
        %v396 = vld [vmem:[%s285 + $0x14c] sm:$0xf]
        %v397 = vld [vmem:[%s285 + $0x150] sm:$0xff]
        %v398 = vld [vmem:[%s285 + $0x158] sm:$0xf]
        %v399 = vld [vmem:[%s285 + $0x15c] sm:$0xff]
        %v400 = vld [vmem:[%s285 + $0x164] sm:$0xf]
        %v401 = vld [vmem:[%s285 + $0x168] sm:$0xff]
        %v402 = vld [vmem:[%s285 + $0x170] sm:$0xf]
        %v403 = vld [vmem:[%s285 + $0x174] sm:$0xff]
        %v404 = vld [vmem:[%s285 + $0x17c] sm:$0xf]
        %v405 = vld [vmem:[%s285 + $0x180] sm:$0xff]
        %v406 = vld [vmem:[%s285 + $0x188] sm:$0xf]
        %v407 = vld [vmem:[%s285 + $0x18c] sm:$0xff]
        %v408 = vld [vmem:[%s285 + $0x194] sm:$0xf]
        %v409 = vld [vmem:[%s285 + $0x198] sm:$0xff]
        %v410 = vld [vmem:[%s285 + $0x1a0] sm:$0xf]
        %v411 = vld [vmem:[%s285 + $0x1a4] sm:$0xff]
        %v412 = vld [vmem:[%s285 + $0x1ac] sm:$0xf]
        %v413 = vld [vmem:[%s285 + $0x1b0] sm:$0xff]
        %v414 = vld [vmem:[%s285 + $0x1b8] sm:$0xf]
        %v415 = vld [vmem:[%s285 + $0x1bc] sm:$0xff]
        %v416 = vld [vmem:[%s285 + $0x1c4] sm:$0xf]
        %v417 = vld [vmem:[%s285 + $0x1c8] sm:$0xff]
        %v418 = vld [vmem:[%s285 + $0x1d0] sm:$0xf]
        %v419 = vld [vmem:[%s285 + $0x1d4] sm:$0xff]
        %v420 = vld [vmem:[%s285 + $0x1dc] sm:$0xf]
        %v421 = vld [vmem:[%s285 + $0x1e0] sm:$0xff]
        %v422 = vld [vmem:[%s285 + $0x1e8] sm:$0xf]
        %v423 = vld [vmem:[%s285 + $0x1ec] sm:$0xff]
        %v424 = vld [vmem:[%s285 + $0x1f4] sm:$0xf]
        %v425 = vld [vmem:[%s285 + $0x1f8] sm:$0xff]
        %v426 = vld [vmem:[%s285 + $0x200] sm:$0xf]
        %v427 = vld [vmem:[%s285 + $0x204] sm:$0xff]
        %v428 = vld [vmem:[%s285 + $0x20c] sm:$0xf]
        %v429 = vld [vmem:[%s285 + $0x210] sm:$0xff]
        %v430 = vld [vmem:[%s285 + $0x218] sm:$0xf]
        %v431 = vld [vmem:[%s285 + $0x21c] sm:$0xff]
        %v432 = vld [vmem:[%s285 + $0x224] sm:$0xf]
        %v433 = vld [vmem:[%s285 + $0x228] sm:$0xff]
        %v434 = vld [vmem:[%s285 + $0x230] sm:$0xf]
        %v435 = vld [vmem:[%s285 + $0x234] sm:$0xff]
        %v436 = vld [vmem:[%s285 + $0x23c] sm:$0xf]
        %v437 = vld [vmem:[%s285 + $0x240] sm:$0xff]
        %v438 = vld [vmem:[%s285 + $0x248] sm:$0xf]
        %v439 = vld [vmem:[%s285 + $0x24c] sm:$0xff]
        %v440 = vld [vmem:[%s285 + $0x254] sm:$0xf]
        %v441 = vld [vmem:[%s285 + $0x258] sm:$0xff]
        %v442 = vld [vmem:[%s285 + $0x260] sm:$0xf]
        %v443 = vld [vmem:[%s285 + $0x264] sm:$0xff]
        %v444 = vld [vmem:[%s285 + $0x26c] sm:$0xf]
        %v445 = vld [vmem:[%s285 + $0x270] sm:$0xff]
        %v446 = vld [vmem:[%s285 + $0x278] sm:$0xf]
        %v447 = vld [vmem:[%s285 + $0x27c] sm:$0xff]
        %v448 = vld [vmem:[%s285 + $0x284] sm:$0xf]
        %v449 = vld [vmem:[%s285 + $0x288] sm:$0xff]
        %v450 = vld [vmem:[%s285 + $0x290] sm:$0xf]
        %v451 = vld [vmem:[%s285 + $0x294] sm:$0xff]
        %v452 = vld [vmem:[%s285 + $0x29c] sm:$0xf]
        %v453 = vld [vmem:[%s285 + $0x2a0] sm:$0xff]
        %v454 = vld [vmem:[%s285 + $0x2a8] sm:$0xf]
        %v455 = vld [vmem:[%s285 + $0x2ac] sm:$0xff]
        %v456 = vld [vmem:[%s285 + $0x2b4] sm:$0xf]
        %v457 = vld [vmem:[%s285 + $0x2b8] sm:$0xff]
        %v458 = vld [vmem:[%s285 + $0x2c0] sm:$0xf]
        %v459 = vld [vmem:[%s285 + $0x2c4] sm:$0xff]
        %v460 = vld [vmem:[%s285 + $0x2cc] sm:$0xf]
        %v461 = vld [vmem:[%s285 + $0x2d0] sm:$0xff]
        %v462 = vld [vmem:[%s285 + $0x2d8] sm:$0xf]
        %v463 = vld [vmem:[%s285 + $0x2dc] sm:$0xff]
        %v464 = vld [vmem:[%s285 + $0x2e4] sm:$0xf]
        %v465 = vld [vmem:[%s285 + $0x2e8] sm:$0xff]
        %v466 = vld [vmem:[%s285 + $0x2f0] sm:$0xf]
        %v467 = vld [vmem:[%s285 + $0x2f4] sm:$0xff]
        %v468 = vld [vmem:[%s285 + $0x2fc] sm:$0xf]
        %v477 = vunpack.c.l.b16 %v333
        %v478 = vunpack.c.h.b16 %v333
        %v479 = vunpack.c.l.b16 %v334
        %v480 = vunpack.c.h.b16 %v334
        %v481 = vunpack.c.l.b16 %v335
        %v482 = vunpack.c.h.b16 %v335
        %v483 = vunpack.c.l.b16 %v336
        %v484 = vunpack.c.h.b16 %v336
        %v485 = vunpack.c.l.b16 %v337
        %v486 = vunpack.c.h.b16 %v337
        %v487 = vunpack.c.l.b16 %v338
        %v488 = vunpack.c.h.b16 %v338
        %v489 = vunpack.c.l.b16 %v339
        %v490 = vunpack.c.h.b16 %v339
        %v491 = vunpack.c.l.b16 %v340
        %v492 = vunpack.c.h.b16 %v340
        %v493 = vpack.c.b16 %v481, %v477
        %v494 = vpack.c.b16 %v482, %v478
        %v495 = vpack.c.b16 %v483, %v479
        %v496 = vpack.c.b16 %v484, %v480
        %v497 = vpack.c.b16 %v489, %v485
        %v498 = vpack.c.b16 %v490, %v486
        %v499 = vpack.c.b16 %v491, %v487
        %v500 = vpack.c.b16 %v492, %v488
        %v637 = vunpack.c.l.b16 %v341
        %v638 = vunpack.c.h.b16 %v341
        %v639 = vunpack.c.l.b16 %v342
        %v640 = vunpack.c.l.b16 %v343
        %v641 = vunpack.c.h.b16 %v343
        %v642 = vunpack.c.l.b16 %v344
        %v643 = vunpack.c.l.b16 %v345
        %v644 = vunpack.c.h.b16 %v345
        %v645 = vunpack.c.l.b16 %v346
        %v646 = vunpack.c.l.b16 %v347
        %v647 = vunpack.c.h.b16 %v347
        %v648 = vunpack.c.l.b16 %v348
        %v649 = vunpack.c.l.b16 %v349
        %v650 = vunpack.c.h.b16 %v349
        %v651 = vunpack.c.l.b16 %v350
        %v652 = vunpack.c.l.b16 %v351
        %v653 = vunpack.c.h.b16 %v351
        %v654 = vunpack.c.l.b16 %v352
        %v655 = vunpack.c.l.b16 %v353
        %v656 = vunpack.c.h.b16 %v353
        %v657 = vunpack.c.l.b16 %v354
        %v658 = vunpack.c.l.b16 %v355
        %v659 = vunpack.c.h.b16 %v355
        %v660 = vunpack.c.l.b16 %v356
        %v661 = vunpack.c.l.b16 %v357
        %v662 = vunpack.c.h.b16 %v357
        %v663 = vunpack.c.l.b16 %v358
        %v664 = vunpack.c.l.b16 %v359
        %v665 = vunpack.c.h.b16 %v359
        %v666 = vunpack.c.l.b16 %v360
        %v667 = vunpack.c.l.b16 %v361
        %v668 = vunpack.c.h.b16 %v361
        %v669 = vunpack.c.l.b16 %v362
        %v670 = vunpack.c.l.b16 %v363
        %v671 = vunpack.c.h.b16 %v363
        %v672 = vunpack.c.l.b16 %v364
        %v673 = vunpack.c.l.b16 %v365
        %v674 = vunpack.c.h.b16 %v365
        %v675 = vunpack.c.l.b16 %v366
        %v676 = vunpack.c.l.b16 %v367
        %v677 = vunpack.c.h.b16 %v367
        %v678 = vunpack.c.l.b16 %v368
        %v679 = vunpack.c.l.b16 %v369
        %v680 = vunpack.c.h.b16 %v369
        %v681 = vunpack.c.l.b16 %v370
        %v682 = vunpack.c.l.b16 %v371
        %v683 = vunpack.c.h.b16 %v371
        %v684 = vunpack.c.l.b16 %v372
        %v685 = vunpack.c.l.b16 %v373
        %v686 = vunpack.c.h.b16 %v373
        %v687 = vunpack.c.l.b16 %v374
        %v688 = vunpack.c.l.b16 %v375
        %v689 = vunpack.c.h.b16 %v375
        %v690 = vunpack.c.l.b16 %v376
        %v691 = vunpack.c.l.b16 %v377
        %v692 = vunpack.c.h.b16 %v377
        %v693 = vunpack.c.l.b16 %v378
        %v694 = vunpack.c.l.b16 %v379
        %v695 = vunpack.c.h.b16 %v379
        %v696 = vunpack.c.l.b16 %v380
        %v697 = vunpack.c.l.b16 %v381
        %v698 = vunpack.c.h.b16 %v381
        %v699 = vunpack.c.l.b16 %v382
        %v700 = vunpack.c.l.b16 %v383
        %v701 = vunpack.c.h.b16 %v383
        %v702 = vunpack.c.l.b16 %v384
        %v703 = vunpack.c.l.b16 %v385
        %v704 = vunpack.c.h.b16 %v385
        %v705 = vunpack.c.l.b16 %v386
        %v706 = vunpack.c.l.b16 %v387
        %v707 = vunpack.c.h.b16 %v387
        %v708 = vunpack.c.l.b16 %v388
        %v709 = vunpack.c.l.b16 %v389
        %v710 = vunpack.c.h.b16 %v389
        %v711 = vunpack.c.l.b16 %v390
        %v712 = vunpack.c.l.b16 %v391
        %v713 = vunpack.c.h.b16 %v391
        %v714 = vunpack.c.l.b16 %v392
        %v715 = vunpack.c.l.b16 %v393
        %v716 = vunpack.c.h.b16 %v393
        %v717 = vunpack.c.l.b16 %v394
        %v718 = vunpack.c.l.b16 %v395
        %v719 = vunpack.c.h.b16 %v395
        %v720 = vunpack.c.l.b16 %v396
        %v721 = vunpack.c.l.b16 %v397
        %v722 = vunpack.c.h.b16 %v397
        %v723 = vunpack.c.l.b16 %v398
        %v724 = vunpack.c.l.b16 %v399
        %v725 = vunpack.c.h.b16 %v399
        %v726 = vunpack.c.l.b16 %v400
        %v727 = vunpack.c.l.b16 %v401
        %v728 = vunpack.c.h.b16 %v401
        %v729 = vunpack.c.l.b16 %v402
        %v730 = vunpack.c.l.b16 %v403
        %v731 = vunpack.c.h.b16 %v403
        %v732 = vunpack.c.l.b16 %v404
        %v733 = vunpack.c.l.b16 %v405
        %v734 = vunpack.c.h.b16 %v405
        %v735 = vunpack.c.l.b16 %v406
        %v736 = vunpack.c.l.b16 %v407
        %v737 = vunpack.c.h.b16 %v407
        %v738 = vunpack.c.l.b16 %v408
        %v739 = vunpack.c.l.b16 %v409
        %v740 = vunpack.c.h.b16 %v409
        %v741 = vunpack.c.l.b16 %v410
        %v742 = vunpack.c.l.b16 %v411
        %v743 = vunpack.c.h.b16 %v411
        %v744 = vunpack.c.l.b16 %v412
        %v745 = vunpack.c.l.b16 %v413
        %v746 = vunpack.c.h.b16 %v413
        %v747 = vunpack.c.l.b16 %v414
        %v748 = vunpack.c.l.b16 %v415
        %v749 = vunpack.c.h.b16 %v415
        %v750 = vunpack.c.l.b16 %v416
        %v751 = vunpack.c.l.b16 %v417
        %v752 = vunpack.c.h.b16 %v417
        %v753 = vunpack.c.l.b16 %v418
        %v754 = vunpack.c.l.b16 %v419
        %v755 = vunpack.c.h.b16 %v419
        %v756 = vunpack.c.l.b16 %v420
        %v757 = vunpack.c.l.b16 %v421
        %v758 = vunpack.c.h.b16 %v421
        %v759 = vunpack.c.l.b16 %v422
        %v760 = vunpack.c.l.b16 %v423
        %v761 = vunpack.c.h.b16 %v423
        %v762 = vunpack.c.l.b16 %v424
        %v763 = vunpack.c.l.b16 %v425
        %v764 = vunpack.c.h.b16 %v425
        %v765 = vunpack.c.l.b16 %v426
        %v766 = vunpack.c.l.b16 %v427
        %v767 = vunpack.c.h.b16 %v427
        %v768 = vunpack.c.l.b16 %v428
        %v769 = vunpack.c.l.b16 %v429
        %v770 = vunpack.c.h.b16 %v429
        %v771 = vunpack.c.l.b16 %v430
        %v772 = vunpack.c.l.b16 %v431
        %v773 = vunpack.c.h.b16 %v431
        %v774 = vunpack.c.l.b16 %v432
        %v775 = vunpack.c.l.b16 %v433
        %v776 = vunpack.c.h.b16 %v433
        %v777 = vunpack.c.l.b16 %v434
        %v778 = vunpack.c.l.b16 %v435
        %v779 = vunpack.c.h.b16 %v435
        %v780 = vunpack.c.l.b16 %v436
        %v781 = vunpack.c.l.b16 %v437
        %v782 = vunpack.c.h.b16 %v437
        %v783 = vunpack.c.l.b16 %v438
        %v784 = vunpack.c.l.b16 %v439
        %v785 = vunpack.c.h.b16 %v439
        %v786 = vunpack.c.l.b16 %v440
        %v787 = vunpack.c.l.b16 %v441
        %v788 = vunpack.c.h.b16 %v441
        %v789 = vunpack.c.l.b16 %v442
        %v790 = vunpack.c.l.b16 %v443
        %v791 = vunpack.c.h.b16 %v443
        %v792 = vunpack.c.l.b16 %v444
        %v793 = vunpack.c.l.b16 %v445
        %v794 = vunpack.c.h.b16 %v445
        %v795 = vunpack.c.l.b16 %v446
        %v796 = vunpack.c.l.b16 %v447
        %v797 = vunpack.c.h.b16 %v447
        %v798 = vunpack.c.l.b16 %v448
        %v799 = vunpack.c.l.b16 %v449
        %v800 = vunpack.c.h.b16 %v449
        %v801 = vunpack.c.l.b16 %v450
        %v802 = vunpack.c.l.b16 %v451
        %v803 = vunpack.c.h.b16 %v451
        %v804 = vunpack.c.l.b16 %v452
        %v805 = vunpack.c.l.b16 %v453
        %v806 = vunpack.c.h.b16 %v453
        %v807 = vunpack.c.l.b16 %v454
        %v808 = vunpack.c.l.b16 %v455
        %v809 = vunpack.c.h.b16 %v455
        %v810 = vunpack.c.l.b16 %v456
        %v811 = vunpack.c.l.b16 %v457
        %v812 = vunpack.c.h.b16 %v457
        %v813 = vunpack.c.l.b16 %v458
        %v814 = vunpack.c.l.b16 %v459
        %v815 = vunpack.c.h.b16 %v459
        %v816 = vunpack.c.l.b16 %v460
        %v817 = vunpack.c.l.b16 %v461
        %v818 = vunpack.c.h.b16 %v461
        %v819 = vunpack.c.l.b16 %v462
        %v820 = vunpack.c.l.b16 %v463
        %v821 = vunpack.c.h.b16 %v463
        %v822 = vunpack.c.l.b16 %v464
        %v823 = vunpack.c.l.b16 %v465
        %v824 = vunpack.c.h.b16 %v465
        %v825 = vunpack.c.l.b16 %v466
        %v826 = vunpack.c.l.b16 %v467
        %v827 = vunpack.c.h.b16 %v467
        %v828 = vunpack.c.l.b16 %v468
        %v829 = vpack.c.b16 %v640, %v637
        %v830 = vpack.c.b16 %v641, %v638
        %v831 = vpack.c.b16 %v642, %v639
        %v832 = vpack.c.b16 %v646, %v643
        %v833 = vpack.c.b16 %v647, %v644
        %v834 = vpack.c.b16 %v648, %v645
        %v835 = vpack.c.b16 %v652, %v649
        %v836 = vpack.c.b16 %v653, %v650
        %v837 = vpack.c.b16 %v654, %v651
        %v838 = vpack.c.b16 %v658, %v655
        %v839 = vpack.c.b16 %v659, %v656
        %v840 = vpack.c.b16 %v660, %v657
        %v841 = vpack.c.b16 %v664, %v661
        %v842 = vpack.c.b16 %v665, %v662
        %v843 = vpack.c.b16 %v666, %v663
        %v844 = vpack.c.b16 %v670, %v667
        %v845 = vpack.c.b16 %v671, %v668
        %v846 = vpack.c.b16 %v672, %v669
        %v847 = vpack.c.b16 %v676, %v673
        %v848 = vpack.c.b16 %v677, %v674
        %v849 = vpack.c.b16 %v678, %v675
        %v850 = vpack.c.b16 %v682, %v679
        %v851 = vpack.c.b16 %v683, %v680
        %v852 = vpack.c.b16 %v684, %v681
        %v853 = vpack.c.b16 %v688, %v685
        %v854 = vpack.c.b16 %v689, %v686
        %v855 = vpack.c.b16 %v690, %v687
        %v856 = vpack.c.b16 %v694, %v691
        %v857 = vpack.c.b16 %v695, %v692
        %v858 = vpack.c.b16 %v696, %v693
        %v859 = vpack.c.b16 %v700, %v697
        %v860 = vpack.c.b16 %v701, %v698
        %v861 = vpack.c.b16 %v702, %v699
        %v862 = vpack.c.b16 %v706, %v703
        %v863 = vpack.c.b16 %v707, %v704
        %v864 = vpack.c.b16 %v708, %v705
        %v865 = vpack.c.b16 %v712, %v709
        %v866 = vpack.c.b16 %v713, %v710
        %v867 = vpack.c.b16 %v714, %v711
        %v868 = vpack.c.b16 %v718, %v715
        %v869 = vpack.c.b16 %v719, %v716
        %v870 = vpack.c.b16 %v720, %v717
        %v871 = vpack.c.b16 %v724, %v721
        %v872 = vpack.c.b16 %v725, %v722
        %v873 = vpack.c.b16 %v726, %v723
        %v874 = vpack.c.b16 %v730, %v727
        %v875 = vpack.c.b16 %v731, %v728
        %v876 = vpack.c.b16 %v732, %v729
        %v877 = vpack.c.b16 %v736, %v733
        %v878 = vpack.c.b16 %v737, %v734
        %v879 = vpack.c.b16 %v738, %v735
        %v880 = vpack.c.b16 %v742, %v739
        %v881 = vpack.c.b16 %v743, %v740
        %v882 = vpack.c.b16 %v744, %v741
        %v883 = vpack.c.b16 %v748, %v745
        %v884 = vpack.c.b16 %v749, %v746
        %v885 = vpack.c.b16 %v750, %v747
        %v886 = vpack.c.b16 %v754, %v751
        %v887 = vpack.c.b16 %v755, %v752
        %v888 = vpack.c.b16 %v756, %v753
        %v889 = vpack.c.b16 %v760, %v757
        %v890 = vpack.c.b16 %v761, %v758
        %v891 = vpack.c.b16 %v762, %v759
        %v892 = vpack.c.b16 %v766, %v763
        %v893 = vpack.c.b16 %v767, %v764
        %v894 = vpack.c.b16 %v768, %v765
        %v895 = vpack.c.b16 %v772, %v769
        %v896 = vpack.c.b16 %v773, %v770
        %v897 = vpack.c.b16 %v774, %v771
        %v898 = vpack.c.b16 %v778, %v775
        %v899 = vpack.c.b16 %v779, %v776
        %v900 = vpack.c.b16 %v780, %v777
        %v901 = vpack.c.b16 %v784, %v781
        %v902 = vpack.c.b16 %v785, %v782
        %v903 = vpack.c.b16 %v786, %v783
        %v904 = vpack.c.b16 %v790, %v787
        %v905 = vpack.c.b16 %v791, %v788
        %v906 = vpack.c.b16 %v792, %v789
        %v907 = vpack.c.b16 %v796, %v793
        %v908 = vpack.c.b16 %v797, %v794
        %v909 = vpack.c.b16 %v798, %v795
        %v910 = vpack.c.b16 %v802, %v799
        %v911 = vpack.c.b16 %v803, %v800
        %v912 = vpack.c.b16 %v804, %v801
        %v913 = vpack.c.b16 %v808, %v805
        %v914 = vpack.c.b16 %v809, %v806
        %v915 = vpack.c.b16 %v810, %v807
        %v916 = vpack.c.b16 %v814, %v811
        %v917 = vpack.c.b16 %v815, %v812
        %v918 = vpack.c.b16 %v816, %v813
        %v919 = vpack.c.b16 %v820, %v817
        %v920 = vpack.c.b16 %v821, %v818
        %v921 = vpack.c.b16 %v822, %v819
        %v922 = vpack.c.b16 %v826, %v823
        %v923 = vpack.c.b16 %v827, %v824
        %v924 = vpack.c.b16 %v828, %v825
        %1021 = vmatpush.bf16.msra.mxu0 %v850
        %1022 = vmatpush.bf16.msra.mxu0 %v847
        %1023 = vmatpush.bf16.msra.mxu0 %v844
        %1024 = vmatpush.bf16.msra.mxu0 %v841
        %1025 = vmatpush.bf16.msra.mxu0 %v838
        %1026 = vmatpush.bf16.msra.mxu0 %v835
        %1027 = vmatpush.bf16.msra.mxu0 %v832
        %1028 = vmatpush.bf16.msra.mxu0 %v829
        %1029 = vmatmul.bf16.gmra.mxu0 %v493
        %v1030 = vpop.f32.mrf.mxu0
        %v1031 = vadd.f32 0.0, %v1030
        %v1032 = vpop.f32.mrf.mxu0
        %v1033 = vadd.f32 0.0, %v1032
        %1034 = vmatmul.bf16.gmra.mxu0 %v497
        %v1035 = vpop.f32.mrf.mxu0
        %v1036 = vadd.f32 0.0, %v1035
        %v1037 = vpop.f32.mrf.mxu0
        %v1038 = vadd.f32 0.0, %v1037
        %1039 = vdwg.mxu0
        %1040 = vmatpush.bf16.msra.mxu0 %v874
        %1041 = vmatpush.bf16.msra.mxu0 %v871
        %1042 = vmatpush.bf16.msra.mxu0 %v868
        %1043 = vmatpush.bf16.msra.mxu0 %v865
        %1044 = vmatpush.bf16.msra.mxu0 %v862
        %1045 = vmatpush.bf16.msra.mxu0 %v859
        %1046 = vmatpush.bf16.msra.mxu0 %v856
        %1047 = vmatpush.bf16.msra.mxu0 %v853
        %1048 = vmatmul.bf16.gmra.mxu0 %v494
        %v1049 = vpop.f32.mrf.mxu0
        %v1050 = vadd.f32 %v1031, %v1049
        %v1051 = vpop.f32.mrf.mxu0
        %v1052 = vadd.f32 %v1033, %v1051
        %1053 = vmatmul.bf16.gmra.mxu0 %v498
        %v1054 = vpop.f32.mrf.mxu0
        %v1055 = vadd.f32 %v1036, %v1054
        %v1056 = vpop.f32.mrf.mxu0
        %v1057 = vadd.f32 %v1038, %v1056
        %1058 = vdwg.mxu0
        %1059 = vmatpush.bf16.msra.mxu0 %v898
        %1060 = vmatpush.bf16.msra.mxu0 %v895
        %1061 = vmatpush.bf16.msra.mxu0 %v892
        %1062 = vmatpush.bf16.msra.mxu0 %v889
        %1063 = vmatpush.bf16.msra.mxu0 %v886
        %1064 = vmatpush.bf16.msra.mxu0 %v883
        %1065 = vmatpush.bf16.msra.mxu0 %v880
        %1066 = vmatpush.bf16.msra.mxu0 %v877
        %1067 = vmatmul.bf16.gmra.mxu0 %v495
        %v1068 = vpop.f32.mrf.mxu0
        %v1069 = vadd.f32 %v1050, %v1068
        %v1070 = vpop.f32.mrf.mxu0
        %v1071 = vadd.f32 %v1052, %v1070
        %1072 = vmatmul.bf16.gmra.mxu0 %v499
        %v1073 = vpop.f32.mrf.mxu0
        %v1074 = vadd.f32 %v1055, %v1073
        %v1075 = vpop.f32.mrf.mxu0
        %v1076 = vadd.f32 %v1057, %v1075
        %1077 = vdwg.mxu0
        %1078 = vmatpush.bf16.msra.mxu0 %v922
        %1079 = vmatpush.bf16.msra.mxu0 %v919
        %1080 = vmatpush.bf16.msra.mxu0 %v916
        %1081 = vmatpush.bf16.msra.mxu0 %v913
        %1082 = vmatpush.bf16.msra.mxu0 %v910
        %1083 = vmatpush.bf16.msra.mxu0 %v907
        %1084 = vmatpush.bf16.msra.mxu0 %v904
        %1085 = vmatpush.bf16.msra.mxu0 %v901
        %1086 = vmatmul.bf16.gmra.mxu0 %v496
        %v1087 = vpop.f32.mrf.mxu0
        %v1088 = vadd.f32 %v1069, %v1087
        %v1089 = vpop.f32.mrf.mxu0
        %v1090 = vadd.f32 %v1071, %v1089
        %1091 = vmatmul.bf16.gmra.mxu0 %v500
        %v1092 = vpop.f32.mrf.mxu0
        %v1093 = vadd.f32 %v1074, %v1092
        %v1094 = vpop.f32.mrf.mxu0
        %v1095 = vadd.f32 %v1076, %v1094
        %1096 = vdwg.mxu0
        %1097 = vmatpush.bf16.msra.mxu0 %v851
        %1098 = vmatpush.bf16.msra.mxu0 %v848
        %1099 = vmatpush.bf16.msra.mxu0 %v845
        %1100 = vmatpush.bf16.msra.mxu0 %v842
        %1101 = vmatpush.bf16.msra.mxu0 %v839
        %1102 = vmatpush.bf16.msra.mxu0 %v836
        %1103 = vmatpush.bf16.msra.mxu0 %v833
        %1104 = vmatpush.bf16.msra.mxu0 %v830
        %1105 = vmatmul.bf16.gmra.mxu0 %v493
        %v1106 = vpop.f32.mrf.mxu0
        %v1107 = vadd.f32 0.0, %v1106
        %v1108 = vpop.f32.mrf.mxu0
        %v1109 = vadd.f32 0.0, %v1108
        %1110 = vmatmul.bf16.gmra.mxu0 %v497
        %v1111 = vpop.f32.mrf.mxu0
        %v1112 = vadd.f32 0.0, %v1111
        %v1113 = vpop.f32.mrf.mxu0
        %v1114 = vadd.f32 0.0, %v1113
        %1115 = vdwg.mxu0
        %1116 = vmatpush.bf16.msra.mxu0 %v875
        %1117 = vmatpush.bf16.msra.mxu0 %v872
        %1118 = vmatpush.bf16.msra.mxu0 %v869
        %1119 = vmatpush.bf16.msra.mxu0 %v866
        %1120 = vmatpush.bf16.msra.mxu0 %v863
        %1121 = vmatpush.bf16.msra.mxu0 %v860
        %1122 = vmatpush.bf16.msra.mxu0 %v857
        %1123 = vmatpush.bf16.msra.mxu0 %v854
        %1124 = vmatmul.bf16.gmra.mxu0 %v494
        %v1125 = vpop.f32.mrf.mxu0
        %v1126 = vadd.f32 %v1107, %v1125
        %v1127 = vpop.f32.mrf.mxu0
        %v1128 = vadd.f32 %v1109, %v1127
        %1129 = vmatmul.bf16.gmra.mxu0 %v498
        %v1130 = vpop.f32.mrf.mxu0
        %v1131 = vadd.f32 %v1112, %v1130
        %v1132 = vpop.f32.mrf.mxu0
        %v1133 = vadd.f32 %v1114, %v1132
        %1134 = vdwg.mxu0
        %1135 = vmatpush.bf16.msra.mxu0 %v899
        %1136 = vmatpush.bf16.msra.mxu0 %v896
        %1137 = vmatpush.bf16.msra.mxu0 %v893
        %1138 = vmatpush.bf16.msra.mxu0 %v890
        %1139 = vmatpush.bf16.msra.mxu0 %v887
        %1140 = vmatpush.bf16.msra.mxu0 %v884
        %1141 = vmatpush.bf16.msra.mxu0 %v881
        %1142 = vmatpush.bf16.msra.mxu0 %v878
        %1143 = vmatmul.bf16.gmra.mxu0 %v495
        %v1144 = vpop.f32.mrf.mxu0
        %v1145 = vadd.f32 %v1126, %v1144
        %v1146 = vpop.f32.mrf.mxu0
        %v1147 = vadd.f32 %v1128, %v1146
        %1148 = vmatmul.bf16.gmra.mxu0 %v499
        %v1149 = vpop.f32.mrf.mxu0
        %v1150 = vadd.f32 %v1131, %v1149
        %v1151 = vpop.f32.mrf.mxu0
        %v1152 = vadd.f32 %v1133, %v1151
        %1153 = vdwg.mxu0
        %1154 = vmatpush.bf16.msra.mxu0 %v923
        %1155 = vmatpush.bf16.msra.mxu0 %v920
        %1156 = vmatpush.bf16.msra.mxu0 %v917
        %1157 = vmatpush.bf16.msra.mxu0 %v914
        %1158 = vmatpush.bf16.msra.mxu0 %v911
        %1159 = vmatpush.bf16.msra.mxu0 %v908
        %1160 = vmatpush.bf16.msra.mxu0 %v905
        %1161 = vmatpush.bf16.msra.mxu0 %v902
        %1162 = vmatmul.bf16.gmra.mxu0 %v496
        %v1163 = vpop.f32.mrf.mxu0
        %v1164 = vadd.f32 %v1145, %v1163
        %v1165 = vpop.f32.mrf.mxu0
        %v1166 = vadd.f32 %v1147, %v1165
        %1167 = vmatmul.bf16.gmra.mxu0 %v500
        %v1168 = vpop.f32.mrf.mxu0
        %v1169 = vadd.f32 %v1150, %v1168
        %v1170 = vpop.f32.mrf.mxu0
        %v1171 = vadd.f32 %v1152, %v1170
        %1172 = vdwg.mxu0
        %1173 = vmatpush.bf16.msra.mxu0 %v852
        %1174 = vmatpush.bf16.msra.mxu0 %v849
        %1175 = vmatpush.bf16.msra.mxu0 %v846
        %1176 = vmatpush.bf16.msra.mxu0 %v843
        %1177 = vmatpush.bf16.msra.mxu0 %v840
        %1178 = vmatpush.bf16.msra.mxu0 %v837
        %1179 = vmatpush.bf16.msra.mxu0 %v834
        %1180 = vmatpush.bf16.msra.mxu0 %v831
        %1181 = vmatmul.bf16.gmra.mxu0 %v493
        %v1182 = vpop.f32.mrf.mxu0
        %v1183 = vadd.f32 0.0, %v1182
        %v1184 = vpop.f32.mrf.mxu0
        %v1185 = vadd.f32 0.0, %v1184
        %1186 = vmatmul.bf16.gmra.mxu0 %v497
        %v1187 = vpop.f32.mrf.mxu0
        %v1188 = vadd.f32 0.0, %v1187
        %v1189 = vpop.f32.mrf.mxu0
        %v1190 = vadd.f32 0.0, %v1189
        %1191 = vdwg.mxu0
        %1192 = vmatpush.bf16.msra.mxu0 %v876
        %1193 = vmatpush.bf16.msra.mxu0 %v873
        %1194 = vmatpush.bf16.msra.mxu0 %v870
        %1195 = vmatpush.bf16.msra.mxu0 %v867
        %1196 = vmatpush.bf16.msra.mxu0 %v864
        %1197 = vmatpush.bf16.msra.mxu0 %v861
        %1198 = vmatpush.bf16.msra.mxu0 %v858
        %1199 = vmatpush.bf16.msra.mxu0 %v855
        %1200 = vmatmul.bf16.gmra.mxu0 %v494
        %v1201 = vpop.f32.mrf.mxu0
        %v1202 = vadd.f32 %v1183, %v1201
        %v1203 = vpop.f32.mrf.mxu0
        %v1204 = vadd.f32 %v1185, %v1203
        %1205 = vmatmul.bf16.gmra.mxu0 %v498
        %v1206 = vpop.f32.mrf.mxu0
        %v1207 = vadd.f32 %v1188, %v1206
        %v1208 = vpop.f32.mrf.mxu0
        %v1209 = vadd.f32 %v1190, %v1208
        %1210 = vdwg.mxu0
        %1211 = vmatpush.bf16.msra.mxu0 %v900
        %1212 = vmatpush.bf16.msra.mxu0 %v897
        %1213 = vmatpush.bf16.msra.mxu0 %v894
        %1214 = vmatpush.bf16.msra.mxu0 %v891
        %1215 = vmatpush.bf16.msra.mxu0 %v888
        %1216 = vmatpush.bf16.msra.mxu0 %v885
        %1217 = vmatpush.bf16.msra.mxu0 %v882
        %1218 = vmatpush.bf16.msra.mxu0 %v879
        %1219 = vmatmul.bf16.gmra.mxu0 %v495
        %v1220 = vpop.f32.mrf.mxu0
        %v1221 = vadd.f32 %v1202, %v1220
        %v1222 = vpop.f32.mrf.mxu0
        %v1223 = vadd.f32 %v1204, %v1222
        %1224 = vmatmul.bf16.gmra.mxu0 %v499
        %v1225 = vpop.f32.mrf.mxu0
        %v1226 = vadd.f32 %v1207, %v1225
        %v1227 = vpop.f32.mrf.mxu0
        %v1228 = vadd.f32 %v1209, %v1227
        %1229 = vdwg.mxu0
        %1230 = vmatpush.bf16.msra.mxu0 %v924
        %1231 = vmatpush.bf16.msra.mxu0 %v921
        %1232 = vmatpush.bf16.msra.mxu0 %v918
        %1233 = vmatpush.bf16.msra.mxu0 %v915
        %1234 = vmatpush.bf16.msra.mxu0 %v912
        %1235 = vmatpush.bf16.msra.mxu0 %v909
        %1236 = vmatpush.bf16.msra.mxu0 %v906
        %1237 = vmatpush.bf16.msra.mxu0 %v903
        %1238 = vmatmul.bf16.gmra.mxu0 %v496
        %v1239 = vpop.f32.mrf.mxu0
        %v1240 = vadd.f32 %v1221, %v1239
        %v1241 = vpop.f32.mrf.mxu0
        %v1242 = vadd.f32 %v1223, %v1241
        %1243 = vmatmul.bf16.gmra.mxu0 %v500
        %v1244 = vpop.f32.mrf.mxu0
        %v1245 = vadd.f32 %v1226, %v1244
        %v1246 = vpop.f32.mrf.mxu0
        %v1247 = vadd.f32 %v1228, %v1246
        %1248 = vdwg.mxu0
        %v1249 = vadd.f32 %v321, %v1088
        %v1250 = vadd.f32 %v322, %v1164
        %v1251 = vadd.f32 %v323, %v1240
        %v1252 = vadd.f32 %v324, %v1090
        %v1253 = vadd.f32 %v325, %v1166
        %v1254 = vadd.f32 %v326, %v1242
        %v1255 = vadd.f32 %v327, %v1093
        %v1256 = vadd.f32 %v328, %v1169
        %v1257 = vadd.f32 %v329, %v1245
        %v1258 = vadd.f32 %v330, %v1095
        %v1259 = vadd.f32 %v331, %v1171
        %v1260 = vadd.f32 %v332, %v1247
        %1261 = vst [vmem:[#allocation2] sm:$0xff] %v1249
        %1262 = vst [vmem:[#allocation2 + $0x8] sm:$0xff] %v1250
        %1263 = vst [vmem:[#allocation2 + $0x10] sm:$0xff] %v1251
        %1264 = vst [vmem:[#allocation2 + $0x18] sm:$0xff] %v1252
        %1265 = vst [vmem:[#allocation2 + $0x20] sm:$0xff] %v1253
        %1266 = vst [vmem:[#allocation2 + $0x28] sm:$0xff] %v1254
        %1267 = vst [vmem:[#allocation2 + $0x30] sm:$0xff] %v1255
        %1268 = vst [vmem:[#allocation2 + $0x38] sm:$0xff] %v1256
        %1269 = vst [vmem:[#allocation2 + $0x40] sm:$0xff] %v1257
        %1270 = vst [vmem:[#allocation2 + $0x48] sm:$0xff] %v1258
        %1271 = vst [vmem:[#allocation2 + $0x50] sm:$0xff] %v1259
        %1272 = vst [vmem:[#allocation2 + $0x58] sm:$0xff] %v1260
        %p1273 = scmp.eq.s32.totalorder %s21, 4
        // Predicated region
        $region60: #{bgcnn_forward.8} parent=50 // pred_check
          %p1274 = pneg %p1273
        $region61: #{bgcnn_forward.8} parent=50 // pred_check_branch
          %1276 = sbr.rel (%p1274) target = $region63
        $region62: #{bgcnn_forward.8} parent=50 // pred_region
          %v1277 = vld [vmem:[#allocation2] sm:$0xff]
          %v1278 = vld [vmem:[#allocation2 + $0x8] sm:$0xff]
          %v1279 = vld [vmem:[#allocation2 + $0x10] sm:$0xff]
          %v1280 = vld [vmem:[#allocation2 + $0x18] sm:$0xff]
          %v1281 = vld [vmem:[#allocation2 + $0x20] sm:$0xff]
          %v1282 = vld [vmem:[#allocation2 + $0x28] sm:$0xff]
          %v1283 = vld [vmem:[#allocation2 + $0x30] sm:$0xff]
          %v1284 = vld [vmem:[#allocation2 + $0x38] sm:$0xff]
          %v1285 = vld [vmem:[#allocation2 + $0x40] sm:$0xff]
          %v1286 = vld [vmem:[#allocation2 + $0x48] sm:$0xff]
          %v1287 = vld [vmem:[#allocation2 + $0x50] sm:$0xff]
          %v1288 = vld [vmem:[#allocation2 + $0x58] sm:$0xff]
          %v1289 = vld [vmem:[%s291] sm:$0x7]
          %v1291 = vperm.slane %v1289, 0
          %v1292 = vperm.slane %v1289, 1
          %v1293 = vperm.slane %v1289, 2
          %v1297 = vadd.f32 %v1277, %v1291
          %v1298 = vadd.f32 %v1278, %v1292
          %v1299 = vadd.f32 %v1279, %v1293
          %v1300 = vadd.f32 %v1280, %v1291
          %v1301 = vadd.f32 %v1281, %v1292
          %v1302 = vadd.f32 %v1282, %v1293
          %v1303 = vadd.f32 %v1283, %v1291
          %v1304 = vadd.f32 %v1284, %v1292
          %v1305 = vadd.f32 %v1285, %v1293
          %v1306 = vadd.f32 %v1286, %v1291
          %v1307 = vadd.f32 %v1287, %v1292
          %v1308 = vadd.f32 %v1288, %v1293
          %v1309 = vmax.f32 %v1297, 0.0
          %v1310 = vmax.f32 %v1298, 0.0
          %v1311 = vmax.f32 %v1299, 0.0
          %v1312 = vmax.f32 %v1300, 0.0
          %v1313 = vmax.f32 %v1301, 0.0
          %v1314 = vmax.f32 %v1302, 0.0
          %v1315 = vmax.f32 %v1303, 0.0
          %v1316 = vmax.f32 %v1304, 0.0
          %v1317 = vmax.f32 %v1305, 0.0
          %v1318 = vmax.f32 %v1306, 0.0
          %v1319 = vmax.f32 %v1307, 0.0
          %v1320 = vmax.f32 %v1308, 0.0
          %1321 = vst [vmem:[%s302] sm:$0xff] %v1309
          %1322 = vst [vmem:[%s302 + $0x8] sm:$0xff] %v1310
          %1323 = vst [vmem:[%s302 + $0x10] sm:$0xff] %v1311
          %1324 = vst [vmem:[%s302 + $0x18] sm:$0xff] %v1312
          %1325 = vst [vmem:[%s302 + $0x20] sm:$0xff] %v1313
          %1326 = vst [vmem:[%s302 + $0x28] sm:$0xff] %v1314
          %1327 = vst [vmem:[%s302 + $0x30] sm:$0xff] %v1315
          %1328 = vst [vmem:[%s302 + $0x38] sm:$0xff] %v1316
          %1329 = vst [vmem:[%s302 + $0x40] sm:$0xff] %v1317
          %1330 = vst [vmem:[%s302 + $0x48] sm:$0xff] %v1318
          %1331 = vst [vmem:[%s302 + $0x50] sm:$0xff] %v1319
          %1332 = vst [vmem:[%s302 + $0x58] sm:$0xff] %v1320
        $region63: #{bgcnn_forward.8} parent=50 // pred_fallthru
          _
        %s1333 = smul.u32 4, %s19
        %s1334 = smul.u32 3, %s20
        %p1335 = scmp.lt.s32.totalorder %s1333, 3
        %s1336 = scalar_select %p1335, %s1333, 3
        %p1337 = scmp.lt.s32.totalorder %s1334, 2
        %s1338 = scalar_select %p1337, %s1334, 2
        %s1339 = smul.addr %s1336, 3
        %s1340 = sadd.s32 %s1338, %s1339
        %s1341 = smul.addr %s1340, 8
        %s1342 = scalar_lea.vmem %s3, %s1341
        // Predicated region
        $region64: #{bgcnn_forward.8} parent=50 // pred_check
          %p1343 = pneg %p135
        $region65: #{bgcnn_forward.8} parent=50 // pred_check_branch
          %1345 = sbr.rel (%p1343) target = $region67
        $region66: #{bgcnn_forward.8} parent=50 // pred_region
          %s1346 = smul.u32 4, %s19
          %s1347 = smul.u32 3, %s20
        $region67: #{bgcnn_forward.8} parent=50 // pred_fallthru
          _
        // Predicated region
        $region68: #{bgcnn_forward.8} parent=50 // pred_check
          %p1348 = pneg %p135
        $region69: #{bgcnn_forward.8} parent=50 // pred_check_branch
          %1350 = sbr.rel (%p1348) target = $region71
        $region70: #{bgcnn_forward.8} parent=50 // pred_region
          %s1351 = smul.u32 4, %s19
          %s1352 = smul.u32 3, %s20
          %p1353 = scmp.lt.s32.totalorder %s1351, 3
          %s1354 = scalar_select %p1353, %s1351, 3
          %p1355 = scmp.lt.s32.totalorder %s1352, 2
          %s1356 = scalar_select %p1355, %s1352, 2
          %s1357 = smul.addr %s1354, 3
          %s1358 = sadd.s32 %s1356, %s1357
          %s1359 = smul.addr %s1358, 8
          %s1360 = scalar_lea.vmem %s3, %s1359
        $region71: #{bgcnn_forward.8} parent=50 // pred_fallthru
          _
      $region51: #{bgcnn_forward.8} parent=5 // pred_fallthru
        _
      %p1361 = scmp.le.s32.totalorder 2, %s9
      // Predicated region
      $region72: #{bgcnn_forward.8} parent=5 // pred_check
        %p1362 = pneg %p1361
      $region73: #{bgcnn_forward.8} parent=5 // pred_check_branch
        %1364 = sbr.rel (%p1362) target = $region75
      $region74: #{bgcnn_forward.8} parent=5 // pred_region
        %s1365 = ssub.s32 %s9, 2
      $region75: #{bgcnn_forward.8} parent=5 // pred_fallthru
        _
    $region6: #{bgcnn_forward.8} parent=1 // loop_footer
      %s13 = sadd.s32 1, %s9
    $region7: #{bgcnn_forward.8} parent=1 // loop_footer_branch
      %8 = sbr.rel target = $region3
    $region8: #{bgcnn_forward.8} parent=1 // loop_exit
      _

// kernel: bgcnn_forward.10
$region0: #{bgcnn_forward.10}
  #allocation0 [shape = 'u32[]', space=smem, size = 0x4, offset = 0x4, fixed_abs, tag = 'smem constant byte address 0x4 - core index']
  #allocation1 [shape = 'u32[72,128]{1,0:T(1,128)}', space=vmem, size = 0x9000, scoped, tag = 'internal scratch']
  #allocation2 [shape = 'f32[32,256]{1,0:T(8,128)}', space=vmem, size = 0x8000, scoped, tag = 'scratch operand']
  %s0 = inlined_call_operand.vmem [shape: bf16[32,3584], index: 0, kind: input, shape index: {}]
  %s1 = inlined_call_operand.vmem [shape: bf16[3584,256], index: 1, kind: input, shape index: {}]
  %s2 = inlined_call_operand.vmem [shape: f32[1,256], index: 2, kind: input, shape index: {}]
  %s3 = inlined_call_operand.vmem [shape: f32[32,256], index: 3, kind: output, shape index: {}]
  %s4 = sld [smem:[#allocation0]]
  $region76: #{bgcnn_forward.10} parent=0
    _
  %s6 = ssub.s32 1, %s4
  %s7 = scalar_select 0, %s6, %s4
  $region1: #{bgcnn_forward.10} parent=0
    #allocation3 [shape = 'u8[65536]{0}', space=vmem, size = 0x10000, scoped, tag = 'input window, operand 0']
    loop: start=0, step=1, limit=9
    $region2: #{bgcnn_forward.10} parent=1 // loop_pre_header
      _
    $region3: #{bgcnn_forward.10} parent=1 // loop_header
      %s9 = sphi 0, %s13
      %p10 = scmp.ge.s32.totalorder %s9, 9
      %s16 = sphi 0, %s35
      %s17 = sphi 0, %s31
      %s18 = sphi 0, %s27
      %s19 = sphi 0, %s16
      %s20 = sphi 0, %s17
      %s21 = sphi 0, %s18
      %s22 = sphi 0, %s19
      %s23 = sphi 0, %s20
      %s24 = sphi 0, %s21
      %s40 = sphi 0, %s42
      %s43 = sphi 0, %s40
      %s44 = sphi 0, %s43
      %s60 = sphi 0, %s44
      %s68 = sphi 0, %s70
      %s71 = sphi 0, %s68
      %s72 = sphi 0, %s71
      %s88 = sphi 0, %s72
      %s94 = sphi 0, %s96
      %s97 = sphi 0, %s94
      %s98 = sphi 0, %s97
      %s114 = sphi 0, %s98
      %s122 = sphi 0, %s124
      %s125 = sphi 0, %s122
      %s126 = sphi 0, %s125
      %s142 = sphi 0, %s126
    $region4: #{bgcnn_forward.10} parent=1 // loop_header_branch
      %12 = sbr.rel (%p10) target = $region8
    $region5: #{bgcnn_forward.10} parent=1 // loop_body
      %s14 = ssub.s32 %s9, 1
      %s15 = ssub.s32 %s9, 2
      %s25 = sadd.s32 1, %s18
      %p26 = scmp.ge.s32.totalorder %s25, 7
      %s27 = scalar_select %p26, 0, %s25
      %s28 = sadd.s32 1, %s17
      %s29 = scalar_select %p26, %s28, %s17
      %p30 = scmp.ge.s32.totalorder %s29, 1
      %s31 = scalar_select %p30, 0, %s29
      %s32 = sadd.s32 1, %s16
      %s33 = scalar_select %p30, %s32, %s16
      %p34 = scmp.ge.s32.totalorder %s33, 1
      %s35 = scalar_select %p34, 0, %s33
      %s36 = ssub.s32 %s16, %s35
      %s37 = ssub.s32 %s18, %s27
      %s38 = sor.u32 %s36, %s37
      %p39 = scmp.eq.s32.totalorder %s38, 0
      %s41 = sadd.s32 %s40, 1
      %s42 = scalar_select %p39, %s40, %s41
      %p45 = pneg %p39
      %p46 = scmp.eq.s32.totalorder %s9, 6
      %p47 = por %p45, %p46
      %p48 = scmp.ne.s32.totalorder %s40, %s43
      %p49 = scmp.eq.s32.totalorder %s9, 0
      %p50 = por %p48, %p49
      %p51 = scmp.ne.s32.totalorder %s40, %s43
      %p52 = scmp.eq.s32.totalorder %s14, 6
      %p53 = por %p51, %p52
      %p54 = scmp.ne.s32.totalorder %s43, %s44
      %p55 = scmp.eq.s32.totalorder %s14, 0
      %p56 = por %p54, %p55
      %p57 = scmp.ne.s32.totalorder %s43, %s44
      %p58 = scmp.eq.s32.totalorder %s15, 6
      %p59 = por %p57, %p58
      %p61 = scmp.ne.s32.totalorder %s44, %s60
      %p62 = scmp.eq.s32.totalorder %s15, 0
      %p63 = por %p61, %p62
      %s64 = ssub.s32 %s18, %s27
      %s65 = ssub.s32 %s17, %s31
      %s66 = sor.u32 %s64, %s65
      %p67 = scmp.eq.s32.totalorder %s66, 0
      %s69 = sadd.s32 %s68, 1
      %s70 = scalar_select %p67, %s68, %s69
      %p73 = pneg %p67
      %p74 = scmp.eq.s32.totalorder %s9, 6
      %p75 = por %p73, %p74
      %p76 = scmp.ne.s32.totalorder %s68, %s71
      %p77 = scmp.eq.s32.totalorder %s9, 0
      %p78 = por %p76, %p77
      %p79 = scmp.ne.s32.totalorder %s68, %s71
      %p80 = scmp.eq.s32.totalorder %s14, 6
      %p81 = por %p79, %p80
      %p82 = scmp.ne.s32.totalorder %s71, %s72
      %p83 = scmp.eq.s32.totalorder %s14, 0
      %p84 = por %p82, %p83
      %p85 = scmp.ne.s32.totalorder %s71, %s72
      %p86 = scmp.eq.s32.totalorder %s15, 6
      %p87 = por %p85, %p86
      %p89 = scmp.ne.s32.totalorder %s72, %s88
      %p90 = scmp.eq.s32.totalorder %s15, 0
      %p91 = por %p89, %p90
      %s92 = ssub.s32 %s17, %s31
      %p93 = scmp.eq.s32.totalorder %s92, 0
      %s95 = sadd.s32 %s94, 1
      %s96 = scalar_select %p93, %s94, %s95
      %p99 = pneg %p93
      %p100 = scmp.eq.s32.totalorder %s9, 6
      %p101 = por %p99, %p100
      %p102 = scmp.ne.s32.totalorder %s94, %s97
      %p103 = scmp.eq.s32.totalorder %s9, 0
      %p104 = por %p102, %p103
      %p105 = scmp.ne.s32.totalorder %s94, %s97
      %p106 = scmp.eq.s32.totalorder %s14, 6
      %p107 = por %p105, %p106
      %p108 = scmp.ne.s32.totalorder %s97, %s98
      %p109 = scmp.eq.s32.totalorder %s14, 0
      %p110 = por %p108, %p109
      %p111 = scmp.ne.s32.totalorder %s97, %s98
      %p112 = scmp.eq.s32.totalorder %s15, 6
      %p113 = por %p111, %p112
      %p115 = scmp.ne.s32.totalorder %s98, %s114
      %p116 = scmp.eq.s32.totalorder %s15, 0
      %p117 = por %p115, %p116
      %s118 = ssub.s32 %s16, %s35
      %s119 = ssub.s32 %s17, %s31
      %s120 = sor.u32 %s118, %s119
      %p121 = scmp.eq.s32.totalorder %s120, 0
      %s123 = sadd.s32 %s122, 1
      %s124 = scalar_select %p121, %s122, %s123
      %p127 = pneg %p121
      %p128 = scmp.eq.s32.totalorder %s9, 6
      %p129 = por %p127, %p128
      %p130 = scmp.ne.s32.totalorder %s122, %s125
      %p131 = scmp.eq.s32.totalorder %s9, 0
      %p132 = por %p130, %p131
      %p133 = scmp.ne.s32.totalorder %s122, %s125
      %p134 = scmp.eq.s32.totalorder %s14, 6
      %p135 = por %p133, %p134
      %p136 = scmp.ne.s32.totalorder %s125, %s126
      %p137 = scmp.eq.s32.totalorder %s14, 0
      %p138 = por %p136, %p137
      %p139 = scmp.ne.s32.totalorder %s125, %s126
      %p140 = scmp.eq.s32.totalorder %s15, 6
      %p141 = por %p139, %p140
      %p143 = scmp.ne.s32.totalorder %s126, %s142
      %p144 = scmp.eq.s32.totalorder %s15, 0
      %p145 = por %p143, %p144
      %p146 = scmp.le.s32.totalorder 1, %s9
      %p147 = scmp.lt.s32.totalorder %s9, 8
      %p148 = pnand %p146, %p147
      %p149 = pneg %p148
      // Predicated region
      $region9: #{bgcnn_forward.10} parent=5 // pred_check
        _
      $region10: #{bgcnn_forward.10} parent=5 // pred_check_branch
        %151 = sbr.rel (%p148) target = $region12
      $region11: #{bgcnn_forward.10} parent=5 // pred_region
        %s152 = ssub.s32 %s9, 1
        // Predicated region
        $region13: #{bgcnn_forward.10} parent=11 // pred_check
          %p153 = pneg %p110
        $region14: #{bgcnn_forward.10} parent=11 // pred_check_branch
          %155 = sbr.rel (%p153) target = $region16
        $region15: #{bgcnn_forward.10} parent=11 // pred_region
          %s156 = smul.u32 2, %s20
          %p157 = scmp.lt.s32.totalorder %s156, 1
          %s158 = scalar_select %p157, %s156, 1
          %s159 = scalar_lea.vmem %s2, %s158
          %s160 = smul.u32 2, %s20
        $region16: #{bgcnn_forward.10} parent=11 // pred_fallthru
          _
      $region12: #{bgcnn_forward.10} parent=5 // pred_fallthru
        _
      %p161 = scmp.lt.s32.totalorder %s9, 7
      // Predicated region
      $region17: #{bgcnn_forward.10} parent=5 // pred_check
        %p162 = pneg %p161
      $region18: #{bgcnn_forward.10} parent=5 // pred_check_branch
        %164 = sbr.rel (%p162) target = $region20
      $region19: #{bgcnn_forward.10} parent=5 // pred_region
        // Predicated region
        $region21: #{bgcnn_forward.10} parent=19 // pred_check
          %p165 = pneg %p50
        $region22: #{bgcnn_forward.10} parent=19 // pred_check_branch
          %167 = sbr.rel (%p165) target = $region24
        $region23: #{bgcnn_forward.10} parent=19 // pred_region
          %s168 = sand.u32 %s40, 1
          %s169 = sand.u32 %s40, 1
          %s170 = smul.addr %s169, 64
          %s171 = scalar_lea.vmem [#allocation3], %s170
          %s172 = smul.u32 4, %s16
          %s173 = smul.u32 4, %s18
          %s174 = smul.addr %s172, 28
          %s175 = sadd.s32 %s173, %s174
          %s176 = smul.addr %s175, 4
          %s177 = scalar_lea.vmem %s0, %s176
          // Predicated region
          $region25: #{bgcnn_forward.10} parent=23 // pred_check
            _
          $region26: #{bgcnn_forward.10} parent=23 // pred_check_branch
            %179 = sbr.rel (0) target = $region28
          $region27: #{bgcnn_forward.10} parent=23 // pred_region
            // Predicated region
            $region29: #{bgcnn_forward.10} parent=27 // pred_check
              _
            $region30: #{bgcnn_forward.10} parent=27 // pred_check_branch
              %181 = sbr.rel (0) target = $region32
            $region31: #{bgcnn_forward.10} parent=27 // pred_region
              loop: start=0, step=1, limit=1
              $region33: #{bgcnn_forward.10} parent=31 // loop_pre_header
                _
              $region34: #{bgcnn_forward.10} parent=31 // loop_header
                %s183 = sphi 0, %s187
                %p184 = scmp.ge.s32.totalorder %s183, 1
                %s188 = sphi %s177, %s177
                %s189 = sphi %s171, %s171
              $region35: #{bgcnn_forward.10} parent=31 // loop_header_branch
                %186 = sbr.rel (%p184) target = $region39
              $region36: #{bgcnn_forward.10} parent=31 // loop_body
                %v190 = vld [vmem:[%s188] sm:$0xff]
                %191 = vst [vmem:[%s189] sm:$0xff] %v190
                %v192 = vld [vmem:[%s188 + $0x8] sm:$0xff]
                %193 = vst [vmem:[%s189 + $0x8] sm:$0xff] %v192
                %v194 = vld [vmem:[%s188 + $0x70] sm:$0xff]
                %195 = vst [vmem:[%s189 + $0x10] sm:$0xff] %v194
                %v196 = vld [vmem:[%s188 + $0x78] sm:$0xff]
                %197 = vst [vmem:[%s189 + $0x18] sm:$0xff] %v196
                %v198 = vld [vmem:[%s188 + $0xe0] sm:$0xff]
                %199 = vst [vmem:[%s189 + $0x20] sm:$0xff] %v198
                %v200 = vld [vmem:[%s188 + $0xe8] sm:$0xff]
                %201 = vst [vmem:[%s189 + $0x28] sm:$0xff] %v200
                %v202 = vld [vmem:[%s188 + $0x150] sm:$0xff]
                %203 = vst [vmem:[%s189 + $0x30] sm:$0xff] %v202
                %v204 = vld [vmem:[%s188 + $0x158] sm:$0xff]
                %205 = vst [vmem:[%s189 + $0x38] sm:$0xff] %v204
              $region37: #{bgcnn_forward.10} parent=31 // loop_footer
                %s187 = sadd.s32 1, %s183
              $region38: #{bgcnn_forward.10} parent=31 // loop_footer_branch
                %182 = sbr.rel target = $region34
              $region39: #{bgcnn_forward.10} parent=31 // loop_exit
                _
            $region32: #{bgcnn_forward.10} parent=27 // pred_fallthru
              _
            // Predicated region
            $region40: #{bgcnn_forward.10} parent=27 // pred_check
              _
            $region41: #{bgcnn_forward.10} parent=27 // pred_check_branch
              %207 = sbr.rel target = $region43
            $region42: #{bgcnn_forward.10} parent=27 // pred_region
              _
            $region43: #{bgcnn_forward.10} parent=27 // pred_fallthru
              _
          $region28: #{bgcnn_forward.10} parent=23 // pred_fallthru
            _
          %208 = vnop
        $region24: #{bgcnn_forward.10} parent=19 // pred_fallthru
          _
        // Predicated region
        $region44: #{bgcnn_forward.10} parent=19 // pred_check
          %p209 = pneg %p78
        $region45: #{bgcnn_forward.10} parent=19 // pred_check_branch
          %211 = sbr.rel (%p209) target = $region47
        $region46: #{bgcnn_forward.10} parent=19 // pred_region
          %s212 = smul.u32 64, %s18
          %s213 = smul.u32 2, %s17
          %p214 = scmp.lt.s32.totalorder %s212, 447
          %s215 = scalar_select %p214, %s212, 447
          %p216 = scmp.lt.s32.totalorder %s213, 1
          %s217 = scalar_select %p216, %s213, 1
          %s218 = smul.addr %s215, 2
          %s219 = sadd.s32 %s217, %s218
          %s220 = smul.addr %s219, 4
          %s221 = scalar_lea.vmem %s1, %s220
          %s222 = smul.u32 64, %s18
          %s223 = smul.u32 2, %s17
        $region47: #{bgcnn_forward.10} parent=19 // pred_fallthru
          _
      $region20: #{bgcnn_forward.10} parent=5 // pred_fallthru
        _
      %p224 = scmp.le.s32.totalorder 1, %s9
      %p225 = scmp.lt.s32.totalorder %s9, 8
      %p226 = pnand %p224, %p225
      %p227 = pneg %p226
      // Predicated region
      $region48: #{bgcnn_forward.10} parent=5 // pred_check
        _
      $region49: #{bgcnn_forward.10} parent=5 // pred_check_branch
        %229 = sbr.rel (%p226) target = $region51
      $region50: #{bgcnn_forward.10} parent=5 // pred_region
        %s230 = ssub.s32 %s9, 1
        %s231 = sand.u32 %s43, 1
        %s232 = sand.u32 %s43, 1
        %s233 = smul.addr %s232, 64
        %s234 = scalar_lea.vmem [#allocation3], %s233
        // Predicated region
        $region52: #{bgcnn_forward.10} parent=50 // pred_check
          %p235 = pneg %p56
        $region53: #{bgcnn_forward.10} parent=50 // pred_check_branch
          %237 = sbr.rel (%p235) target = $region55
        $region54: #{bgcnn_forward.10} parent=50 // pred_region
          _
        $region55: #{bgcnn_forward.10} parent=50 // pred_fallthru
          _
        %s238 = sand.u32 %s43, 1
        %s239 = sand.u32 %s43, 1
        %s240 = smul.addr %s239, 64
        %s241 = scalar_lea.vmem [#allocation3], %s240
        %p242 = pneg %p56
        %p243 = pneg %p53
        %s244 = smul.u32 64, %s21
        %s245 = smul.u32 2, %s20
        %p246 = scmp.lt.s32.totalorder %s244, 447
        %s247 = scalar_select %p246, %s244, 447
        %p248 = scmp.lt.s32.totalorder %s245, 1
        %s249 = scalar_select %p248, %s245, 1
        %s250 = smul.addr %s247, 2
        %s251 = sadd.s32 %s249, %s250
        %s252 = smul.addr %s251, 4
        %s253 = scalar_lea.vmem %s1, %s252
        %p254 = pneg %p84
        %p255 = pneg %p81
        %s256 = smul.u32 2, %s20
        %p257 = scmp.lt.s32.totalorder %s256, 1
        %s258 = scalar_select %p257, %s256, 1
        %s259 = scalar_lea.vmem %s2, %s258
        %p260 = pneg %p110
        %p261 = pneg %p107
        %p262 = pneg %p138
        %p263 = pneg %p135
        %s264 = smul.u32 4, %s19
        %s265 = smul.u32 2, %s20
        %p266 = scmp.lt.s32.totalorder %s264, 3
        %s267 = scalar_select %p266, %s264, 3
        %p268 = scmp.lt.s32.totalorder %s265, 1
        %s269 = scalar_select %p268, %s265, 1
        %s270 = smul.addr %s267, 2
        %s271 = sadd.s32 %s269, %s270
        %s272 = smul.addr %s271, 8
        %s273 = scalar_lea.vmem %s3, %s272
        %s274 = smul.u32 4, %s19
        %s275 = smul.u32 4, %s21
        %s276 = smul.u32 64, %s21
        %s277 = smul.u32 2, %s20
        %p278 = scmp.lt.s32.totalorder %s276, 447
        %s279 = scalar_select %p278, %s276, 447
        %p280 = scmp.lt.s32.totalorder %s277, 1
        %s281 = scalar_select %p280, %s277, 1
        %s282 = smul.addr %s279, 2
        %s283 = sadd.s32 %s281, %s282
        %s284 = smul.addr %s283, 4
        %s285 = scalar_lea.vmem %s1, %s284
        %s286 = smul.u32 64, %s21
        %s287 = smul.u32 2, %s20
        %s288 = smul.u32 2, %s20
        %p289 = scmp.lt.s32.totalorder %s288, 1
        %s290 = scalar_select %p289, %s288, 1
        %s291 = scalar_lea.vmem %s2, %s290
        %s292 = smul.u32 2, %s20
        %s293 = smul.u32 4, %s19
        %s294 = smul.u32 2, %s20
        %p295 = scmp.lt.s32.totalorder %s293, 3
        %s296 = scalar_select %p295, %s293, 3
        %p297 = scmp.lt.s32.totalorder %s294, 1
        %s298 = scalar_select %p297, %s294, 1
        %s299 = smul.addr %s296, 2
        %s300 = sadd.s32 %s298, %s299
        %s301 = smul.addr %s300, 8
        %s302 = scalar_lea.vmem %s3, %s301
        %s303 = smul.u32 4, %s19
        %s304 = smul.u32 2, %s20
        %p305 = scmp.eq.s32.totalorder %s21, 0
        // Predicated region
        $region56: #{bgcnn_forward.10} parent=50 // pred_check
          %p306 = pneg %p305
        $region57: #{bgcnn_forward.10} parent=50 // pred_check_branch
          %308 = sbr.rel (%p306) target = $region59
        $region58: #{bgcnn_forward.10} parent=50 // pred_region
          %309 = vst [vmem:[#allocation2] sm:$0xff] 0.0
          %310 = vst [vmem:[#allocation2 + $0x8] sm:$0xff] 0.0
          %311 = vst [vmem:[#allocation2 + $0x10] sm:$0xff] 0.0
          %312 = vst [vmem:[#allocation2 + $0x18] sm:$0xff] 0.0
          %313 = vst [vmem:[#allocation2 + $0x20] sm:$0xff] 0.0
          %314 = vst [vmem:[#allocation2 + $0x28] sm:$0xff] 0.0
          %315 = vst [vmem:[#allocation2 + $0x30] sm:$0xff] 0.0
          %316 = vst [vmem:[#allocation2 + $0x38] sm:$0xff] 0.0
        $region59: #{bgcnn_forward.10} parent=50 // pred_fallthru
          _
        %v317 = vld [vmem:[#allocation2] sm:$0xff]
        %v318 = vld [vmem:[#allocation2 + $0x8] sm:$0xff]
        %v319 = vld [vmem:[#allocation2 + $0x10] sm:$0xff]
        %v320 = vld [vmem:[#allocation2 + $0x18] sm:$0xff]
        %v321 = vld [vmem:[#allocation2 + $0x20] sm:$0xff]
        %v322 = vld [vmem:[#allocation2 + $0x28] sm:$0xff]
        %v323 = vld [vmem:[#allocation2 + $0x30] sm:$0xff]
        %v324 = vld [vmem:[#allocation2 + $0x38] sm:$0xff]
        %v325 = vld [vmem:[%s234] sm:$0xff]
        %v326 = vld [vmem:[%s234 + $0x8] sm:$0xff]
        %v327 = vld [vmem:[%s234 + $0x10] sm:$0xff]
        %v328 = vld [vmem:[%s234 + $0x18] sm:$0xff]
        %v329 = vld [vmem:[%s234 + $0x20] sm:$0xff]
        %v330 = vld [vmem:[%s234 + $0x28] sm:$0xff]
        %v331 = vld [vmem:[%s234 + $0x30] sm:$0xff]
        %v332 = vld [vmem:[%s234 + $0x38] sm:$0xff]
        %v333 = vld [vmem:[%s285] sm:$0xff]
        %v334 = vld [vmem:[%s285 + $0x8] sm:$0xff]
        %v335 = vld [vmem:[%s285 + $0x10] sm:$0xff]
        %v336 = vld [vmem:[%s285 + $0x18] sm:$0xff]
        %v337 = vld [vmem:[%s285 + $0x20] sm:$0xff]
        %v338 = vld [vmem:[%s285 + $0x28] sm:$0xff]
        %v339 = vld [vmem:[%s285 + $0x30] sm:$0xff]
        %v340 = vld [vmem:[%s285 + $0x38] sm:$0xff]
        %v341 = vld [vmem:[%s285 + $0x40] sm:$0xff]
        %v342 = vld [vmem:[%s285 + $0x48] sm:$0xff]
        %v343 = vld [vmem:[%s285 + $0x50] sm:$0xff]
        %v344 = vld [vmem:[%s285 + $0x58] sm:$0xff]
        %v345 = vld [vmem:[%s285 + $0x60] sm:$0xff]
        %v346 = vld [vmem:[%s285 + $0x68] sm:$0xff]
        %v347 = vld [vmem:[%s285 + $0x70] sm:$0xff]
        %v348 = vld [vmem:[%s285 + $0x78] sm:$0xff]
        %v349 = vld [vmem:[%s285 + $0x80] sm:$0xff]
        %v350 = vld [vmem:[%s285 + $0x88] sm:$0xff]
        %v351 = vld [vmem:[%s285 + $0x90] sm:$0xff]
        %v352 = vld [vmem:[%s285 + $0x98] sm:$0xff]
        %v353 = vld [vmem:[%s285 + $0xa0] sm:$0xff]
        %v354 = vld [vmem:[%s285 + $0xa8] sm:$0xff]
        %v355 = vld [vmem:[%s285 + $0xb0] sm:$0xff]
        %v356 = vld [vmem:[%s285 + $0xb8] sm:$0xff]
        %v357 = vld [vmem:[%s285 + $0xc0] sm:$0xff]
        %v358 = vld [vmem:[%s285 + $0xc8] sm:$0xff]
        %v359 = vld [vmem:[%s285 + $0xd0] sm:$0xff]
        %v360 = vld [vmem:[%s285 + $0xd8] sm:$0xff]
        %v361 = vld [vmem:[%s285 + $0xe0] sm:$0xff]
        %v362 = vld [vmem:[%s285 + $0xe8] sm:$0xff]
        %v363 = vld [vmem:[%s285 + $0xf0] sm:$0xff]
        %v364 = vld [vmem:[%s285 + $0xf8] sm:$0xff]
        %v365 = vld [vmem:[%s285 + $0x100] sm:$0xff]
        %v366 = vld [vmem:[%s285 + $0x108] sm:$0xff]
        %v367 = vld [vmem:[%s285 + $0x110] sm:$0xff]
        %v368 = vld [vmem:[%s285 + $0x118] sm:$0xff]
        %v369 = vld [vmem:[%s285 + $0x120] sm:$0xff]
        %v370 = vld [vmem:[%s285 + $0x128] sm:$0xff]
        %v371 = vld [vmem:[%s285 + $0x130] sm:$0xff]
        %v372 = vld [vmem:[%s285 + $0x138] sm:$0xff]
        %v373 = vld [vmem:[%s285 + $0x140] sm:$0xff]
        %v374 = vld [vmem:[%s285 + $0x148] sm:$0xff]
        %v375 = vld [vmem:[%s285 + $0x150] sm:$0xff]
        %v376 = vld [vmem:[%s285 + $0x158] sm:$0xff]
        %v377 = vld [vmem:[%s285 + $0x160] sm:$0xff]
        %v378 = vld [vmem:[%s285 + $0x168] sm:$0xff]
        %v379 = vld [vmem:[%s285 + $0x170] sm:$0xff]
        %v380 = vld [vmem:[%s285 + $0x178] sm:$0xff]
        %v381 = vld [vmem:[%s285 + $0x180] sm:$0xff]
        %v382 = vld [vmem:[%s285 + $0x188] sm:$0xff]
        %v383 = vld [vmem:[%s285 + $0x190] sm:$0xff]
        %v384 = vld [vmem:[%s285 + $0x198] sm:$0xff]
        %v385 = vld [vmem:[%s285 + $0x1a0] sm:$0xff]
        %v386 = vld [vmem:[%s285 + $0x1a8] sm:$0xff]
        %v387 = vld [vmem:[%s285 + $0x1b0] sm:$0xff]
        %v388 = vld [vmem:[%s285 + $0x1b8] sm:$0xff]
        %v389 = vld [vmem:[%s285 + $0x1c0] sm:$0xff]
        %v390 = vld [vmem:[%s285 + $0x1c8] sm:$0xff]
        %v391 = vld [vmem:[%s285 + $0x1d0] sm:$0xff]
        %v392 = vld [vmem:[%s285 + $0x1d8] sm:$0xff]
        %v393 = vld [vmem:[%s285 + $0x1e0] sm:$0xff]
        %v394 = vld [vmem:[%s285 + $0x1e8] sm:$0xff]
        %v395 = vld [vmem:[%s285 + $0x1f0] sm:$0xff]
        %v396 = vld [vmem:[%s285 + $0x1f8] sm:$0xff]
        %v405 = vunpack.c.l.b16 %v325
        %v406 = vunpack.c.h.b16 %v325
        %v407 = vunpack.c.l.b16 %v326
        %v408 = vunpack.c.h.b16 %v326
        %v409 = vunpack.c.l.b16 %v327
        %v410 = vunpack.c.h.b16 %v327
        %v411 = vunpack.c.l.b16 %v328
        %v412 = vunpack.c.h.b16 %v328
        %v413 = vunpack.c.l.b16 %v329
        %v414 = vunpack.c.h.b16 %v329
        %v415 = vunpack.c.l.b16 %v330
        %v416 = vunpack.c.h.b16 %v330
        %v417 = vunpack.c.l.b16 %v331
        %v418 = vunpack.c.h.b16 %v331
        %v419 = vunpack.c.l.b16 %v332
        %v420 = vunpack.c.h.b16 %v332
        %v421 = vpack.c.b16 %v409, %v405
        %v422 = vpack.c.b16 %v410, %v406
        %v423 = vpack.c.b16 %v411, %v407
        %v424 = vpack.c.b16 %v412, %v408
        %v425 = vpack.c.b16 %v417, %v413
        %v426 = vpack.c.b16 %v418, %v414
        %v427 = vpack.c.b16 %v419, %v415
        %v428 = vpack.c.b16 %v420, %v416
        %v501 = vunpack.c.l.b16 %v333
        %v502 = vunpack.c.h.b16 %v333
        %v503 = vunpack.c.l.b16 %v334
        %v504 = vunpack.c.h.b16 %v334
        %v505 = vunpack.c.l.b16 %v335
        %v506 = vunpack.c.h.b16 %v335
        %v507 = vunpack.c.l.b16 %v336
        %v508 = vunpack.c.h.b16 %v336
        %v509 = vunpack.c.l.b16 %v337
        %v510 = vunpack.c.h.b16 %v337
        %v511 = vunpack.c.l.b16 %v338
        %v512 = vunpack.c.h.b16 %v338
        %v513 = vunpack.c.l.b16 %v339
        %v514 = vunpack.c.h.b16 %v339
        %v515 = vunpack.c.l.b16 %v340
        %v516 = vunpack.c.h.b16 %v340
        %v517 = vunpack.c.l.b16 %v341
        %v518 = vunpack.c.h.b16 %v341
        %v519 = vunpack.c.l.b16 %v342
        %v520 = vunpack.c.h.b16 %v342
        %v521 = vunpack.c.l.b16 %v343
        %v522 = vunpack.c.h.b16 %v343
        %v523 = vunpack.c.l.b16 %v344
        %v524 = vunpack.c.h.b16 %v344
        %v525 = vunpack.c.l.b16 %v345
        %v526 = vunpack.c.h.b16 %v345
        %v527 = vunpack.c.l.b16 %v346
        %v528 = vunpack.c.h.b16 %v346
        %v529 = vunpack.c.l.b16 %v347
        %v530 = vunpack.c.h.b16 %v347
        %v531 = vunpack.c.l.b16 %v348
        %v532 = vunpack.c.h.b16 %v348
        %v533 = vunpack.c.l.b16 %v349
        %v534 = vunpack.c.h.b16 %v349
        %v535 = vunpack.c.l.b16 %v350
        %v536 = vunpack.c.h.b16 %v350
        %v537 = vunpack.c.l.b16 %v351
        %v538 = vunpack.c.h.b16 %v351
        %v539 = vunpack.c.l.b16 %v352
        %v540 = vunpack.c.h.b16 %v352
        %v541 = vunpack.c.l.b16 %v353
        %v542 = vunpack.c.h.b16 %v353
        %v543 = vunpack.c.l.b16 %v354
        %v544 = vunpack.c.h.b16 %v354
        %v545 = vunpack.c.l.b16 %v355
        %v546 = vunpack.c.h.b16 %v355
        %v547 = vunpack.c.l.b16 %v356
        %v548 = vunpack.c.h.b16 %v356
        %v549 = vunpack.c.l.b16 %v357
        %v550 = vunpack.c.h.b16 %v357
        %v551 = vunpack.c.l.b16 %v358
        %v552 = vunpack.c.h.b16 %v358
        %v553 = vunpack.c.l.b16 %v359
        %v554 = vunpack.c.h.b16 %v359
        %v555 = vunpack.c.l.b16 %v360
        %v556 = vunpack.c.h.b16 %v360
        %v557 = vunpack.c.l.b16 %v361
        %v558 = vunpack.c.h.b16 %v361
        %v559 = vunpack.c.l.b16 %v362
        %v560 = vunpack.c.h.b16 %v362
        %v561 = vunpack.c.l.b16 %v363
        %v562 = vunpack.c.h.b16 %v363
        %v563 = vunpack.c.l.b16 %v364
        %v564 = vunpack.c.h.b16 %v364
        %v565 = vunpack.c.l.b16 %v365
        %v566 = vunpack.c.h.b16 %v365
        %v567 = vunpack.c.l.b16 %v366
        %v568 = vunpack.c.h.b16 %v366
        %v569 = vunpack.c.l.b16 %v367
        %v570 = vunpack.c.h.b16 %v367
        %v571 = vunpack.c.l.b16 %v368
        %v572 = vunpack.c.h.b16 %v368
        %v573 = vunpack.c.l.b16 %v369
        %v574 = vunpack.c.h.b16 %v369
        %v575 = vunpack.c.l.b16 %v370
        %v576 = vunpack.c.h.b16 %v370
        %v577 = vunpack.c.l.b16 %v371
        %v578 = vunpack.c.h.b16 %v371
        %v579 = vunpack.c.l.b16 %v372
        %v580 = vunpack.c.h.b16 %v372
        %v581 = vunpack.c.l.b16 %v373
        %v582 = vunpack.c.h.b16 %v373
        %v583 = vunpack.c.l.b16 %v374
        %v584 = vunpack.c.h.b16 %v374
        %v585 = vunpack.c.l.b16 %v375
        %v586 = vunpack.c.h.b16 %v375
        %v587 = vunpack.c.l.b16 %v376
        %v588 = vunpack.c.h.b16 %v376
        %v589 = vunpack.c.l.b16 %v377
        %v590 = vunpack.c.h.b16 %v377
        %v591 = vunpack.c.l.b16 %v378
        %v592 = vunpack.c.h.b16 %v378
        %v593 = vunpack.c.l.b16 %v379
        %v594 = vunpack.c.h.b16 %v379
        %v595 = vunpack.c.l.b16 %v380
        %v596 = vunpack.c.h.b16 %v380
        %v597 = vunpack.c.l.b16 %v381
        %v598 = vunpack.c.h.b16 %v381
        %v599 = vunpack.c.l.b16 %v382
        %v600 = vunpack.c.h.b16 %v382
        %v601 = vunpack.c.l.b16 %v383
        %v602 = vunpack.c.h.b16 %v383
        %v603 = vunpack.c.l.b16 %v384
        %v604 = vunpack.c.h.b16 %v384
        %v605 = vunpack.c.l.b16 %v385
        %v606 = vunpack.c.h.b16 %v385
        %v607 = vunpack.c.l.b16 %v386
        %v608 = vunpack.c.h.b16 %v386
        %v609 = vunpack.c.l.b16 %v387
        %v610 = vunpack.c.h.b16 %v387
        %v611 = vunpack.c.l.b16 %v388
        %v612 = vunpack.c.h.b16 %v388
        %v613 = vunpack.c.l.b16 %v389
        %v614 = vunpack.c.h.b16 %v389
        %v615 = vunpack.c.l.b16 %v390
        %v616 = vunpack.c.h.b16 %v390
        %v617 = vunpack.c.l.b16 %v391
        %v618 = vunpack.c.h.b16 %v391
        %v619 = vunpack.c.l.b16 %v392
        %v620 = vunpack.c.h.b16 %v392
        %v621 = vunpack.c.l.b16 %v393
        %v622 = vunpack.c.h.b16 %v393
        %v623 = vunpack.c.l.b16 %v394
        %v624 = vunpack.c.h.b16 %v394
        %v625 = vunpack.c.l.b16 %v395
        %v626 = vunpack.c.h.b16 %v395
        %v627 = vunpack.c.l.b16 %v396
        %v628 = vunpack.c.h.b16 %v396
        %v629 = vpack.c.b16 %v503, %v501
        %v630 = vpack.c.b16 %v504, %v502
        %v631 = vpack.c.b16 %v507, %v505
        %v632 = vpack.c.b16 %v508, %v506
        %v633 = vpack.c.b16 %v511, %v509
        %v634 = vpack.c.b16 %v512, %v510
        %v635 = vpack.c.b16 %v515, %v513
        %v636 = vpack.c.b16 %v516, %v514
        %v637 = vpack.c.b16 %v519, %v517
        %v638 = vpack.c.b16 %v520, %v518
        %v639 = vpack.c.b16 %v523, %v521
        %v640 = vpack.c.b16 %v524, %v522
        %v641 = vpack.c.b16 %v527, %v525
        %v642 = vpack.c.b16 %v528, %v526
        %v643 = vpack.c.b16 %v531, %v529
        %v644 = vpack.c.b16 %v532, %v530
        %v645 = vpack.c.b16 %v535, %v533
        %v646 = vpack.c.b16 %v536, %v534
        %v647 = vpack.c.b16 %v539, %v537
        %v648 = vpack.c.b16 %v540, %v538
        %v649 = vpack.c.b16 %v543, %v541
        %v650 = vpack.c.b16 %v544, %v542
        %v651 = vpack.c.b16 %v547, %v545
        %v652 = vpack.c.b16 %v548, %v546
        %v653 = vpack.c.b16 %v551, %v549
        %v654 = vpack.c.b16 %v552, %v550
        %v655 = vpack.c.b16 %v555, %v553
        %v656 = vpack.c.b16 %v556, %v554
        %v657 = vpack.c.b16 %v559, %v557
        %v658 = vpack.c.b16 %v560, %v558
        %v659 = vpack.c.b16 %v563, %v561
        %v660 = vpack.c.b16 %v564, %v562
        %v661 = vpack.c.b16 %v567, %v565
        %v662 = vpack.c.b16 %v568, %v566
        %v663 = vpack.c.b16 %v571, %v569
        %v664 = vpack.c.b16 %v572, %v570
        %v665 = vpack.c.b16 %v575, %v573
        %v666 = vpack.c.b16 %v576, %v574
        %v667 = vpack.c.b16 %v579, %v577
        %v668 = vpack.c.b16 %v580, %v578
        %v669 = vpack.c.b16 %v583, %v581
        %v670 = vpack.c.b16 %v584, %v582
        %v671 = vpack.c.b16 %v587, %v585
        %v672 = vpack.c.b16 %v588, %v586
        %v673 = vpack.c.b16 %v591, %v589
        %v674 = vpack.c.b16 %v592, %v590
        %v675 = vpack.c.b16 %v595, %v593
        %v676 = vpack.c.b16 %v596, %v594
        %v677 = vpack.c.b16 %v599, %v597
        %v678 = vpack.c.b16 %v600, %v598
        %v679 = vpack.c.b16 %v603, %v601
        %v680 = vpack.c.b16 %v604, %v602
        %v681 = vpack.c.b16 %v607, %v605
        %v682 = vpack.c.b16 %v608, %v606
        %v683 = vpack.c.b16 %v611, %v609
        %v684 = vpack.c.b16 %v612, %v610
        %v685 = vpack.c.b16 %v615, %v613
        %v686 = vpack.c.b16 %v616, %v614
        %v687 = vpack.c.b16 %v619, %v617
        %v688 = vpack.c.b16 %v620, %v618
        %v689 = vpack.c.b16 %v623, %v621
        %v690 = vpack.c.b16 %v624, %v622
        %v691 = vpack.c.b16 %v627, %v625
        %v692 = vpack.c.b16 %v628, %v626
        %757 = vmatpush.bf16.msra.mxu0 %v643
        %758 = vmatpush.bf16.msra.mxu0 %v641
        %759 = vmatpush.bf16.msra.mxu0 %v639
        %760 = vmatpush.bf16.msra.mxu0 %v637
        %761 = vmatpush.bf16.msra.mxu0 %v635
        %762 = vmatpush.bf16.msra.mxu0 %v633
        %763 = vmatpush.bf16.msra.mxu0 %v631
        %764 = vmatpush.bf16.msra.mxu0 %v629
        %765 = vmatmul.bf16.gmra.mxu0 %v421
        %v766 = vpop.f32.mrf.mxu0
        %v767 = vadd.f32 0.0, %v766
        %v768 = vpop.f32.mrf.mxu0
        %v769 = vadd.f32 0.0, %v768
        %770 = vmatmul.bf16.gmra.mxu0 %v425
        %v771 = vpop.f32.mrf.mxu0
        %v772 = vadd.f32 0.0, %v771
        %v773 = vpop.f32.mrf.mxu0
        %v774 = vadd.f32 0.0, %v773
        %775 = vdwg.mxu0
        %776 = vmatpush.bf16.msra.mxu0 %v659
        %777 = vmatpush.bf16.msra.mxu0 %v657
        %778 = vmatpush.bf16.msra.mxu0 %v655
        %779 = vmatpush.bf16.msra.mxu0 %v653
        %780 = vmatpush.bf16.msra.mxu0 %v651
        %781 = vmatpush.bf16.msra.mxu0 %v649
        %782 = vmatpush.bf16.msra.mxu0 %v647
        %783 = vmatpush.bf16.msra.mxu0 %v645
        %784 = vmatmul.bf16.gmra.mxu0 %v422
        %v785 = vpop.f32.mrf.mxu0
        %v786 = vadd.f32 %v767, %v785
        %v787 = vpop.f32.mrf.mxu0
        %v788 = vadd.f32 %v769, %v787
        %789 = vmatmul.bf16.gmra.mxu0 %v426
        %v790 = vpop.f32.mrf.mxu0
        %v791 = vadd.f32 %v772, %v790
        %v792 = vpop.f32.mrf.mxu0
        %v793 = vadd.f32 %v774, %v792
        %794 = vdwg.mxu0
        %795 = vmatpush.bf16.msra.mxu0 %v675
        %796 = vmatpush.bf16.msra.mxu0 %v673
        %797 = vmatpush.bf16.msra.mxu0 %v671
        %798 = vmatpush.bf16.msra.mxu0 %v669
        %799 = vmatpush.bf16.msra.mxu0 %v667
        %800 = vmatpush.bf16.msra.mxu0 %v665
        %801 = vmatpush.bf16.msra.mxu0 %v663
        %802 = vmatpush.bf16.msra.mxu0 %v661
        %803 = vmatmul.bf16.gmra.mxu0 %v423
        %v804 = vpop.f32.mrf.mxu0
        %v805 = vadd.f32 %v786, %v804
        %v806 = vpop.f32.mrf.mxu0
        %v807 = vadd.f32 %v788, %v806
        %808 = vmatmul.bf16.gmra.mxu0 %v427
        %v809 = vpop.f32.mrf.mxu0
        %v810 = vadd.f32 %v791, %v809
        %v811 = vpop.f32.mrf.mxu0
        %v812 = vadd.f32 %v793, %v811
        %813 = vdwg.mxu0
        %814 = vmatpush.bf16.msra.mxu0 %v691
        %815 = vmatpush.bf16.msra.mxu0 %v689
        %816 = vmatpush.bf16.msra.mxu0 %v687
        %817 = vmatpush.bf16.msra.mxu0 %v685
        %818 = vmatpush.bf16.msra.mxu0 %v683
        %819 = vmatpush.bf16.msra.mxu0 %v681
        %820 = vmatpush.bf16.msra.mxu0 %v679
        %821 = vmatpush.bf16.msra.mxu0 %v677
        %822 = vmatmul.bf16.gmra.mxu0 %v424
        %v823 = vpop.f32.mrf.mxu0
        %v824 = vadd.f32 %v805, %v823
        %v825 = vpop.f32.mrf.mxu0
        %v826 = vadd.f32 %v807, %v825
        %827 = vmatmul.bf16.gmra.mxu0 %v428
        %v828 = vpop.f32.mrf.mxu0
        %v829 = vadd.f32 %v810, %v828
        %v830 = vpop.f32.mrf.mxu0
        %v831 = vadd.f32 %v812, %v830
        %832 = vdwg.mxu0
        %833 = vmatpush.bf16.msra.mxu0 %v644
        %834 = vmatpush.bf16.msra.mxu0 %v642
        %835 = vmatpush.bf16.msra.mxu0 %v640
        %836 = vmatpush.bf16.msra.mxu0 %v638
        %837 = vmatpush.bf16.msra.mxu0 %v636
        %838 = vmatpush.bf16.msra.mxu0 %v634
        %839 = vmatpush.bf16.msra.mxu0 %v632
        %840 = vmatpush.bf16.msra.mxu0 %v630
        %841 = vmatmul.bf16.gmra.mxu0 %v421
        %v842 = vpop.f32.mrf.mxu0
        %v843 = vadd.f32 0.0, %v842
        %v844 = vpop.f32.mrf.mxu0
        %v845 = vadd.f32 0.0, %v844
        %846 = vmatmul.bf16.gmra.mxu0 %v425
        %v847 = vpop.f32.mrf.mxu0
        %v848 = vadd.f32 0.0, %v847
        %v849 = vpop.f32.mrf.mxu0
        %v850 = vadd.f32 0.0, %v849
        %851 = vdwg.mxu0
        %852 = vmatpush.bf16.msra.mxu0 %v660
        %853 = vmatpush.bf16.msra.mxu0 %v658
        %854 = vmatpush.bf16.msra.mxu0 %v656
        %855 = vmatpush.bf16.msra.mxu0 %v654
        %856 = vmatpush.bf16.msra.mxu0 %v652
        %857 = vmatpush.bf16.msra.mxu0 %v650
        %858 = vmatpush.bf16.msra.mxu0 %v648
        %859 = vmatpush.bf16.msra.mxu0 %v646
        %860 = vmatmul.bf16.gmra.mxu0 %v422
        %v861 = vpop.f32.mrf.mxu0
        %v862 = vadd.f32 %v843, %v861
        %v863 = vpop.f32.mrf.mxu0
        %v864 = vadd.f32 %v845, %v863
        %865 = vmatmul.bf16.gmra.mxu0 %v426
        %v866 = vpop.f32.mrf.mxu0
        %v867 = vadd.f32 %v848, %v866
        %v868 = vpop.f32.mrf.mxu0
        %v869 = vadd.f32 %v850, %v868
        %870 = vdwg.mxu0
        %871 = vmatpush.bf16.msra.mxu0 %v676
        %872 = vmatpush.bf16.msra.mxu0 %v674
        %873 = vmatpush.bf16.msra.mxu0 %v672
        %874 = vmatpush.bf16.msra.mxu0 %v670
        %875 = vmatpush.bf16.msra.mxu0 %v668
        %876 = vmatpush.bf16.msra.mxu0 %v666
        %877 = vmatpush.bf16.msra.mxu0 %v664
        %878 = vmatpush.bf16.msra.mxu0 %v662
        %879 = vmatmul.bf16.gmra.mxu0 %v423
        %v880 = vpop.f32.mrf.mxu0
        %v881 = vadd.f32 %v862, %v880
        %v882 = vpop.f32.mrf.mxu0
        %v883 = vadd.f32 %v864, %v882
        %884 = vmatmul.bf16.gmra.mxu0 %v427
        %v885 = vpop.f32.mrf.mxu0
        %v886 = vadd.f32 %v867, %v885
        %v887 = vpop.f32.mrf.mxu0
        %v888 = vadd.f32 %v869, %v887
        %889 = vdwg.mxu0
        %890 = vmatpush.bf16.msra.mxu0 %v692
        %891 = vmatpush.bf16.msra.mxu0 %v690
        %892 = vmatpush.bf16.msra.mxu0 %v688
        %893 = vmatpush.bf16.msra.mxu0 %v686
        %894 = vmatpush.bf16.msra.mxu0 %v684
        %895 = vmatpush.bf16.msra.mxu0 %v682
        %896 = vmatpush.bf16.msra.mxu0 %v680
        %897 = vmatpush.bf16.msra.mxu0 %v678
        %898 = vmatmul.bf16.gmra.mxu0 %v424
        %v899 = vpop.f32.mrf.mxu0
        %v900 = vadd.f32 %v881, %v899
        %v901 = vpop.f32.mrf.mxu0
        %v902 = vadd.f32 %v883, %v901
        %903 = vmatmul.bf16.gmra.mxu0 %v428
        %v904 = vpop.f32.mrf.mxu0
        %v905 = vadd.f32 %v886, %v904
        %v906 = vpop.f32.mrf.mxu0
        %v907 = vadd.f32 %v888, %v906
        %908 = vdwg.mxu0
        %v909 = vadd.f32 %v317, %v824
        %v910 = vadd.f32 %v318, %v900
        %v911 = vadd.f32 %v319, %v826
        %v912 = vadd.f32 %v320, %v902
        %v913 = vadd.f32 %v321, %v829
        %v914 = vadd.f32 %v322, %v905
        %v915 = vadd.f32 %v323, %v831
        %v916 = vadd.f32 %v324, %v907
        %917 = vst [vmem:[#allocation2] sm:$0xff] %v909
        %918 = vst [vmem:[#allocation2 + $0x8] sm:$0xff] %v910
        %919 = vst [vmem:[#allocation2 + $0x10] sm:$0xff] %v911
        %920 = vst [vmem:[#allocation2 + $0x18] sm:$0xff] %v912
        %921 = vst [vmem:[#allocation2 + $0x20] sm:$0xff] %v913
        %922 = vst [vmem:[#allocation2 + $0x28] sm:$0xff] %v914
        %923 = vst [vmem:[#allocation2 + $0x30] sm:$0xff] %v915
        %924 = vst [vmem:[#allocation2 + $0x38] sm:$0xff] %v916
        %p925 = scmp.eq.s32.totalorder %s21, 6
        // Predicated region
        $region60: #{bgcnn_forward.10} parent=50 // pred_check
          %p926 = pneg %p925
        $region61: #{bgcnn_forward.10} parent=50 // pred_check_branch
          %928 = sbr.rel (%p926) target = $region63
        $region62: #{bgcnn_forward.10} parent=50 // pred_region
          %v929 = vld [vmem:[#allocation2] sm:$0xff]
          %v930 = vld [vmem:[#allocation2 + $0x8] sm:$0xff]
          %v931 = vld [vmem:[#allocation2 + $0x10] sm:$0xff]
          %v932 = vld [vmem:[#allocation2 + $0x18] sm:$0xff]
          %v933 = vld [vmem:[#allocation2 + $0x20] sm:$0xff]
          %v934 = vld [vmem:[#allocation2 + $0x28] sm:$0xff]
          %v935 = vld [vmem:[#allocation2 + $0x30] sm:$0xff]
          %v936 = vld [vmem:[#allocation2 + $0x38] sm:$0xff]
          %v937 = vld [vmem:[%s291] sm:$0x3]
          %v939 = vperm.slane %v937, 0
          %v940 = vperm.slane %v937, 1
          %v943 = vadd.f32 %v929, %v939
          %v944 = vadd.f32 %v930, %v940
          %v945 = vadd.f32 %v931, %v939
          %v946 = vadd.f32 %v932, %v940
          %v947 = vadd.f32 %v933, %v939
          %v948 = vadd.f32 %v934, %v940
          %v949 = vadd.f32 %v935, %v939
          %v950 = vadd.f32 %v936, %v940
          %v951 = vmax.f32 %v943, 0.0
          %v952 = vmax.f32 %v944, 0.0
          %v953 = vmax.f32 %v945, 0.0
          %v954 = vmax.f32 %v946, 0.0
          %v955 = vmax.f32 %v947, 0.0
          %v956 = vmax.f32 %v948, 0.0
          %v957 = vmax.f32 %v949, 0.0
          %v958 = vmax.f32 %v950, 0.0
          %959 = vst [vmem:[%s302] sm:$0xff] %v951
          %960 = vst [vmem:[%s302 + $0x8] sm:$0xff] %v952
          %961 = vst [vmem:[%s302 + $0x10] sm:$0xff] %v953
          %962 = vst [vmem:[%s302 + $0x18] sm:$0xff] %v954
          %963 = vst [vmem:[%s302 + $0x20] sm:$0xff] %v955
          %964 = vst [vmem:[%s302 + $0x28] sm:$0xff] %v956
          %965 = vst [vmem:[%s302 + $0x30] sm:$0xff] %v957
          %966 = vst [vmem:[%s302 + $0x38] sm:$0xff] %v958
        $region63: #{bgcnn_forward.10} parent=50 // pred_fallthru
          _
        %s967 = smul.u32 4, %s19
        %s968 = smul.u32 2, %s20
        %p969 = scmp.lt.s32.totalorder %s967, 3
        %s970 = scalar_select %p969, %s967, 3
        %p971 = scmp.lt.s32.totalorder %s968, 1
        %s972 = scalar_select %p971, %s968, 1
        %s973 = smul.addr %s970, 2
        %s974 = sadd.s32 %s972, %s973
        %s975 = smul.addr %s974, 8
        %s976 = scalar_lea.vmem %s3, %s975
        // Predicated region
        $region64: #{bgcnn_forward.10} parent=50 // pred_check
          %p977 = pneg %p135
        $region65: #{bgcnn_forward.10} parent=50 // pred_check_branch
          %979 = sbr.rel (%p977) target = $region67
        $region66: #{bgcnn_forward.10} parent=50 // pred_region
          %s980 = smul.u32 4, %s19
          %s981 = smul.u32 2, %s20
        $region67: #{bgcnn_forward.10} parent=50 // pred_fallthru
          _
        // Predicated region
        $region68: #{bgcnn_forward.10} parent=50 // pred_check
          %p982 = pneg %p135
        $region69: #{bgcnn_forward.10} parent=50 // pred_check_branch
          %984 = sbr.rel (%p982) target = $region71
        $region70: #{bgcnn_forward.10} parent=50 // pred_region
          %s985 = smul.u32 4, %s19
          %s986 = smul.u32 2, %s20
          %p987 = scmp.lt.s32.totalorder %s985, 3
          %s988 = scalar_select %p987, %s985, 3
          %p989 = scmp.lt.s32.totalorder %s986, 1
          %s990 = scalar_select %p989, %s986, 1
          %s991 = smul.addr %s988, 2
          %s992 = sadd.s32 %s990, %s991
          %s993 = smul.addr %s992, 8
          %s994 = scalar_lea.vmem %s3, %s993
        $region71: #{bgcnn_forward.10} parent=50 // pred_fallthru
          _
      $region51: #{bgcnn_forward.10} parent=5 // pred_fallthru
        _
      %p995 = scmp.le.s32.totalorder 2, %s9
      // Predicated region
      $region72: #{bgcnn_forward.10} parent=5 // pred_check
        %p996 = pneg %p995
      $region73: #{bgcnn_forward.10} parent=5 // pred_check_branch
        %998 = sbr.rel (%p996) target = $region75
      $region74: #{bgcnn_forward.10} parent=5 // pred_region
        %s999 = ssub.s32 %s9, 2
      $region75: #{bgcnn_forward.10} parent=5 // pred_fallthru
        _
    $region6: #{bgcnn_forward.10} parent=1 // loop_footer
      %s13 = sadd.s32 1, %s9
    $region7: #{bgcnn_forward.10} parent=1 // loop_footer_branch
      %8 = sbr.rel target = $region3
    $region8: #{bgcnn_forward.10} parent=1 // loop_exit
      _

// kernel: bgcnn_forward.9
$region0: #{bgcnn_forward.9}
  #allocation0 [shape = 'u32[]', space=smem, size = 0x4, offset = 0x4, fixed_abs, tag = 'smem constant byte address 0x4 - core index']
  #allocation1 [shape = 'u32[72,128]{1,0:T(1,128)}', space=vmem, size = 0x9000, scoped, tag = 'internal scratch']
  #allocation2 [shape = 'f32[32,384]{1,0:T(8,128)}', space=vmem, size = 0xc000, scoped, tag = 'scratch operand']
  %s0 = inlined_call_operand.vmem [shape: bf16[32,3584], index: 0, kind: input, shape index: {}]
  %s1 = inlined_call_operand.vmem [shape: bf16[3584,384], index: 1, kind: input, shape index: {}]
  %s2 = inlined_call_operand.vmem [shape: f32[1,384], index: 2, kind: input, shape index: {}]
  %s3 = inlined_call_operand.vmem [shape: f32[32,384], index: 3, kind: output, shape index: {}]
  %s4 = sld [smem:[#allocation0]]
  $region76: #{bgcnn_forward.9} parent=0
    _
  %s6 = ssub.s32 1, %s4
  %s7 = scalar_select 0, %s6, %s4
  $region1: #{bgcnn_forward.9} parent=0
    #allocation3 [shape = 'u8[65536]{0}', space=vmem, size = 0x10000, scoped, tag = 'input window, operand 0']
    loop: start=0, step=1, limit=9
    $region2: #{bgcnn_forward.9} parent=1 // loop_pre_header
      _
    $region3: #{bgcnn_forward.9} parent=1 // loop_header
      %s9 = sphi 0, %s13
      %p10 = scmp.ge.s32.totalorder %s9, 9
      %s16 = sphi 0, %s35
      %s17 = sphi 0, %s31
      %s18 = sphi 0, %s27
      %s19 = sphi 0, %s16
      %s20 = sphi 0, %s17
      %s21 = sphi 0, %s18
      %s22 = sphi 0, %s19
      %s23 = sphi 0, %s20
      %s24 = sphi 0, %s21
      %s40 = sphi 0, %s42
      %s43 = sphi 0, %s40
      %s44 = sphi 0, %s43
      %s60 = sphi 0, %s44
      %s68 = sphi 0, %s70
      %s71 = sphi 0, %s68
      %s72 = sphi 0, %s71
      %s88 = sphi 0, %s72
      %s94 = sphi 0, %s96
      %s97 = sphi 0, %s94
      %s98 = sphi 0, %s97
      %s114 = sphi 0, %s98
      %s122 = sphi 0, %s124
      %s125 = sphi 0, %s122
      %s126 = sphi 0, %s125
      %s142 = sphi 0, %s126
    $region4: #{bgcnn_forward.9} parent=1 // loop_header_branch
      %12 = sbr.rel (%p10) target = $region8
    $region5: #{bgcnn_forward.9} parent=1 // loop_body
      %s14 = ssub.s32 %s9, 1
      %s15 = ssub.s32 %s9, 2
      %s25 = sadd.s32 1, %s18
      %p26 = scmp.ge.s32.totalorder %s25, 7
      %s27 = scalar_select %p26, 0, %s25
      %s28 = sadd.s32 1, %s17
      %s29 = scalar_select %p26, %s28, %s17
      %p30 = scmp.ge.s32.totalorder %s29, 1
      %s31 = scalar_select %p30, 0, %s29
      %s32 = sadd.s32 1, %s16
      %s33 = scalar_select %p30, %s32, %s16
      %p34 = scmp.ge.s32.totalorder %s33, 1
      %s35 = scalar_select %p34, 0, %s33
      %s36 = ssub.s32 %s16, %s35
      %s37 = ssub.s32 %s18, %s27
      %s38 = sor.u32 %s36, %s37
      %p39 = scmp.eq.s32.totalorder %s38, 0
      %s41 = sadd.s32 %s40, 1
      %s42 = scalar_select %p39, %s40, %s41
      %p45 = pneg %p39
      %p46 = scmp.eq.s32.totalorder %s9, 6
      %p47 = por %p45, %p46
      %p48 = scmp.ne.s32.totalorder %s40, %s43
      %p49 = scmp.eq.s32.totalorder %s9, 0
      %p50 = por %p48, %p49
      %p51 = scmp.ne.s32.totalorder %s40, %s43
      %p52 = scmp.eq.s32.totalorder %s14, 6
      %p53 = por %p51, %p52
      %p54 = scmp.ne.s32.totalorder %s43, %s44
      %p55 = scmp.eq.s32.totalorder %s14, 0
      %p56 = por %p54, %p55
      %p57 = scmp.ne.s32.totalorder %s43, %s44
      %p58 = scmp.eq.s32.totalorder %s15, 6
      %p59 = por %p57, %p58
      %p61 = scmp.ne.s32.totalorder %s44, %s60
      %p62 = scmp.eq.s32.totalorder %s15, 0
      %p63 = por %p61, %p62
      %s64 = ssub.s32 %s18, %s27
      %s65 = ssub.s32 %s17, %s31
      %s66 = sor.u32 %s64, %s65
      %p67 = scmp.eq.s32.totalorder %s66, 0
      %s69 = sadd.s32 %s68, 1
      %s70 = scalar_select %p67, %s68, %s69
      %p73 = pneg %p67
      %p74 = scmp.eq.s32.totalorder %s9, 6
      %p75 = por %p73, %p74
      %p76 = scmp.ne.s32.totalorder %s68, %s71
      %p77 = scmp.eq.s32.totalorder %s9, 0
      %p78 = por %p76, %p77
      %p79 = scmp.ne.s32.totalorder %s68, %s71
      %p80 = scmp.eq.s32.totalorder %s14, 6
      %p81 = por %p79, %p80
      %p82 = scmp.ne.s32.totalorder %s71, %s72
      %p83 = scmp.eq.s32.totalorder %s14, 0
      %p84 = por %p82, %p83
      %p85 = scmp.ne.s32.totalorder %s71, %s72
      %p86 = scmp.eq.s32.totalorder %s15, 6
      %p87 = por %p85, %p86
      %p89 = scmp.ne.s32.totalorder %s72, %s88
      %p90 = scmp.eq.s32.totalorder %s15, 0
      %p91 = por %p89, %p90
      %s92 = ssub.s32 %s17, %s31
      %p93 = scmp.eq.s32.totalorder %s92, 0
      %s95 = sadd.s32 %s94, 1
      %s96 = scalar_select %p93, %s94, %s95
      %p99 = pneg %p93
      %p100 = scmp.eq.s32.totalorder %s9, 6
      %p101 = por %p99, %p100
      %p102 = scmp.ne.s32.totalorder %s94, %s97
      %p103 = scmp.eq.s32.totalorder %s9, 0
      %p104 = por %p102, %p103
      %p105 = scmp.ne.s32.totalorder %s94, %s97
      %p106 = scmp.eq.s32.totalorder %s14, 6
      %p107 = por %p105, %p106
      %p108 = scmp.ne.s32.totalorder %s97, %s98
      %p109 = scmp.eq.s32.totalorder %s14, 0
      %p110 = por %p108, %p109
      %p111 = scmp.ne.s32.totalorder %s97, %s98
      %p112 = scmp.eq.s32.totalorder %s15, 6
      %p113 = por %p111, %p112
      %p115 = scmp.ne.s32.totalorder %s98, %s114
      %p116 = scmp.eq.s32.totalorder %s15, 0
      %p117 = por %p115, %p116
      %s118 = ssub.s32 %s16, %s35
      %s119 = ssub.s32 %s17, %s31
      %s120 = sor.u32 %s118, %s119
      %p121 = scmp.eq.s32.totalorder %s120, 0
      %s123 = sadd.s32 %s122, 1
      %s124 = scalar_select %p121, %s122, %s123
      %p127 = pneg %p121
      %p128 = scmp.eq.s32.totalorder %s9, 6
      %p129 = por %p127, %p128
      %p130 = scmp.ne.s32.totalorder %s122, %s125
      %p131 = scmp.eq.s32.totalorder %s9, 0
      %p132 = por %p130, %p131
      %p133 = scmp.ne.s32.totalorder %s122, %s125
      %p134 = scmp.eq.s32.totalorder %s14, 6
      %p135 = por %p133, %p134
      %p136 = scmp.ne.s32.totalorder %s125, %s126
      %p137 = scmp.eq.s32.totalorder %s14, 0
      %p138 = por %p136, %p137
      %p139 = scmp.ne.s32.totalorder %s125, %s126
      %p140 = scmp.eq.s32.totalorder %s15, 6
      %p141 = por %p139, %p140
      %p143 = scmp.ne.s32.totalorder %s126, %s142
      %p144 = scmp.eq.s32.totalorder %s15, 0
      %p145 = por %p143, %p144
      %p146 = scmp.le.s32.totalorder 1, %s9
      %p147 = scmp.lt.s32.totalorder %s9, 8
      %p148 = pnand %p146, %p147
      %p149 = pneg %p148
      // Predicated region
      $region9: #{bgcnn_forward.9} parent=5 // pred_check
        _
      $region10: #{bgcnn_forward.9} parent=5 // pred_check_branch
        %151 = sbr.rel (%p148) target = $region12
      $region11: #{bgcnn_forward.9} parent=5 // pred_region
        %s152 = ssub.s32 %s9, 1
        // Predicated region
        $region13: #{bgcnn_forward.9} parent=11 // pred_check
          %p153 = pneg %p110
        $region14: #{bgcnn_forward.9} parent=11 // pred_check_branch
          %155 = sbr.rel (%p153) target = $region16
        $region15: #{bgcnn_forward.9} parent=11 // pred_region
          %s156 = smul.u32 3, %s20
          %p157 = scmp.lt.s32.totalorder %s156, 2
          %s158 = scalar_select %p157, %s156, 2
          %s159 = scalar_lea.vmem %s2, %s158
          %s160 = smul.u32 3, %s20
        $region16: #{bgcnn_forward.9} parent=11 // pred_fallthru
          _
      $region12: #{bgcnn_forward.9} parent=5 // pred_fallthru
        _
      %p161 = scmp.lt.s32.totalorder %s9, 7
      // Predicated region
      $region17: #{bgcnn_forward.9} parent=5 // pred_check
        %p162 = pneg %p161
      $region18: #{bgcnn_forward.9} parent=5 // pred_check_branch
        %164 = sbr.rel (%p162) target = $region20
      $region19: #{bgcnn_forward.9} parent=5 // pred_region
        // Predicated region
        $region21: #{bgcnn_forward.9} parent=19 // pred_check
          %p165 = pneg %p50
        $region22: #{bgcnn_forward.9} parent=19 // pred_check_branch
          %167 = sbr.rel (%p165) target = $region24
        $region23: #{bgcnn_forward.9} parent=19 // pred_region
          %s168 = sand.u32 %s40, 1
          %s169 = sand.u32 %s40, 1
          %s170 = smul.addr %s169, 64
          %s171 = scalar_lea.vmem [#allocation3], %s170
          %s172 = smul.u32 4, %s16
          %s173 = smul.u32 4, %s18
          %s174 = smul.addr %s172, 28
          %s175 = sadd.s32 %s173, %s174
          %s176 = smul.addr %s175, 4
          %s177 = scalar_lea.vmem %s0, %s176
          // Predicated region
          $region25: #{bgcnn_forward.9} parent=23 // pred_check
            _
          $region26: #{bgcnn_forward.9} parent=23 // pred_check_branch
            %179 = sbr.rel (0) target = $region28
          $region27: #{bgcnn_forward.9} parent=23 // pred_region
            // Predicated region
            $region29: #{bgcnn_forward.9} parent=27 // pred_check
              _
            $region30: #{bgcnn_forward.9} parent=27 // pred_check_branch
              %181 = sbr.rel (0) target = $region32
            $region31: #{bgcnn_forward.9} parent=27 // pred_region
              loop: start=0, step=1, limit=1
              $region33: #{bgcnn_forward.9} parent=31 // loop_pre_header
                _
              $region34: #{bgcnn_forward.9} parent=31 // loop_header
                %s183 = sphi 0, %s187
                %p184 = scmp.ge.s32.totalorder %s183, 1
                %s188 = sphi %s177, %s177
                %s189 = sphi %s171, %s171
              $region35: #{bgcnn_forward.9} parent=31 // loop_header_branch
                %186 = sbr.rel (%p184) target = $region39
              $region36: #{bgcnn_forward.9} parent=31 // loop_body
                %v190 = vld [vmem:[%s188] sm:$0xff]
                %191 = vst [vmem:[%s189] sm:$0xff] %v190
                %v192 = vld [vmem:[%s188 + $0x8] sm:$0xff]
                %193 = vst [vmem:[%s189 + $0x8] sm:$0xff] %v192
                %v194 = vld [vmem:[%s188 + $0x70] sm:$0xff]
                %195 = vst [vmem:[%s189 + $0x10] sm:$0xff] %v194
                %v196 = vld [vmem:[%s188 + $0x78] sm:$0xff]
                %197 = vst [vmem:[%s189 + $0x18] sm:$0xff] %v196
                %v198 = vld [vmem:[%s188 + $0xe0] sm:$0xff]
                %199 = vst [vmem:[%s189 + $0x20] sm:$0xff] %v198
                %v200 = vld [vmem:[%s188 + $0xe8] sm:$0xff]
                %201 = vst [vmem:[%s189 + $0x28] sm:$0xff] %v200
                %v202 = vld [vmem:[%s188 + $0x150] sm:$0xff]
                %203 = vst [vmem:[%s189 + $0x30] sm:$0xff] %v202
                %v204 = vld [vmem:[%s188 + $0x158] sm:$0xff]
                %205 = vst [vmem:[%s189 + $0x38] sm:$0xff] %v204
              $region37: #{bgcnn_forward.9} parent=31 // loop_footer
                %s187 = sadd.s32 1, %s183
              $region38: #{bgcnn_forward.9} parent=31 // loop_footer_branch
                %182 = sbr.rel target = $region34
              $region39: #{bgcnn_forward.9} parent=31 // loop_exit
                _
            $region32: #{bgcnn_forward.9} parent=27 // pred_fallthru
              _
            // Predicated region
            $region40: #{bgcnn_forward.9} parent=27 // pred_check
              _
            $region41: #{bgcnn_forward.9} parent=27 // pred_check_branch
              %207 = sbr.rel target = $region43
            $region42: #{bgcnn_forward.9} parent=27 // pred_region
              _
            $region43: #{bgcnn_forward.9} parent=27 // pred_fallthru
              _
          $region28: #{bgcnn_forward.9} parent=23 // pred_fallthru
            _
          %208 = vnop
        $region24: #{bgcnn_forward.9} parent=19 // pred_fallthru
          _
        // Predicated region
        $region44: #{bgcnn_forward.9} parent=19 // pred_check
          %p209 = pneg %p78
        $region45: #{bgcnn_forward.9} parent=19 // pred_check_branch
          %211 = sbr.rel (%p209) target = $region47
        $region46: #{bgcnn_forward.9} parent=19 // pred_region
          %s212 = smul.u32 64, %s18
          %s213 = smul.u32 3, %s17
          %p214 = scmp.lt.s32.totalorder %s212, 447
          %s215 = scalar_select %p214, %s212, 447
          %p216 = scmp.lt.s32.totalorder %s213, 2
          %s217 = scalar_select %p216, %s213, 2
          %s218 = smul.addr %s215, 3
          %s219 = sadd.s32 %s217, %s218
          %s220 = smul.addr %s219, 4
          %s221 = scalar_lea.vmem %s1, %s220
          %s222 = smul.u32 64, %s18
          %s223 = smul.u32 3, %s17
        $region47: #{bgcnn_forward.9} parent=19 // pred_fallthru
          _
      $region20: #{bgcnn_forward.9} parent=5 // pred_fallthru
        _
      %p224 = scmp.le.s32.totalorder 1, %s9
      %p225 = scmp.lt.s32.totalorder %s9, 8
      %p226 = pnand %p224, %p225
      %p227 = pneg %p226
      // Predicated region
      $region48: #{bgcnn_forward.9} parent=5 // pred_check
        _
      $region49: #{bgcnn_forward.9} parent=5 // pred_check_branch
        %229 = sbr.rel (%p226) target = $region51
      $region50: #{bgcnn_forward.9} parent=5 // pred_region
        %s230 = ssub.s32 %s9, 1
        %s231 = sand.u32 %s43, 1
        %s232 = sand.u32 %s43, 1
        %s233 = smul.addr %s232, 64
        %s234 = scalar_lea.vmem [#allocation3], %s233
        // Predicated region
        $region52: #{bgcnn_forward.9} parent=50 // pred_check
          %p235 = pneg %p56
        $region53: #{bgcnn_forward.9} parent=50 // pred_check_branch
          %237 = sbr.rel (%p235) target = $region55
        $region54: #{bgcnn_forward.9} parent=50 // pred_region
          _
        $region55: #{bgcnn_forward.9} parent=50 // pred_fallthru
          _
        %s238 = sand.u32 %s43, 1
        %s239 = sand.u32 %s43, 1
        %s240 = smul.addr %s239, 64
        %s241 = scalar_lea.vmem [#allocation3], %s240
        %p242 = pneg %p56
        %p243 = pneg %p53
        %s244 = smul.u32 64, %s21
        %s245 = smul.u32 3, %s20
        %p246 = scmp.lt.s32.totalorder %s244, 447
        %s247 = scalar_select %p246, %s244, 447
        %p248 = scmp.lt.s32.totalorder %s245, 2
        %s249 = scalar_select %p248, %s245, 2
        %s250 = smul.addr %s247, 3
        %s251 = sadd.s32 %s249, %s250
        %s252 = smul.addr %s251, 4
        %s253 = scalar_lea.vmem %s1, %s252
        %p254 = pneg %p84
        %p255 = pneg %p81
        %s256 = smul.u32 3, %s20
        %p257 = scmp.lt.s32.totalorder %s256, 2
        %s258 = scalar_select %p257, %s256, 2
        %s259 = scalar_lea.vmem %s2, %s258
        %p260 = pneg %p110
        %p261 = pneg %p107
        %p262 = pneg %p138
        %p263 = pneg %p135
        %s264 = smul.u32 4, %s19
        %s265 = smul.u32 3, %s20
        %p266 = scmp.lt.s32.totalorder %s264, 3
        %s267 = scalar_select %p266, %s264, 3
        %p268 = scmp.lt.s32.totalorder %s265, 2
        %s269 = scalar_select %p268, %s265, 2
        %s270 = smul.addr %s267, 3
        %s271 = sadd.s32 %s269, %s270
        %s272 = smul.addr %s271, 8
        %s273 = scalar_lea.vmem %s3, %s272
        %s274 = smul.u32 4, %s19
        %s275 = smul.u32 4, %s21
        %s276 = smul.u32 64, %s21
        %s277 = smul.u32 3, %s20
        %p278 = scmp.lt.s32.totalorder %s276, 447
        %s279 = scalar_select %p278, %s276, 447
        %p280 = scmp.lt.s32.totalorder %s277, 2
        %s281 = scalar_select %p280, %s277, 2
        %s282 = smul.addr %s279, 3
        %s283 = sadd.s32 %s281, %s282
        %s284 = smul.addr %s283, 4
        %s285 = scalar_lea.vmem %s1, %s284
        %s286 = smul.u32 64, %s21
        %s287 = smul.u32 3, %s20
        %s288 = smul.u32 3, %s20
        %p289 = scmp.lt.s32.totalorder %s288, 2
        %s290 = scalar_select %p289, %s288, 2
        %s291 = scalar_lea.vmem %s2, %s290
        %s292 = smul.u32 3, %s20
        %s293 = smul.u32 4, %s19
        %s294 = smul.u32 3, %s20
        %p295 = scmp.lt.s32.totalorder %s293, 3
        %s296 = scalar_select %p295, %s293, 3
        %p297 = scmp.lt.s32.totalorder %s294, 2
        %s298 = scalar_select %p297, %s294, 2
        %s299 = smul.addr %s296, 3
        %s300 = sadd.s32 %s298, %s299
        %s301 = smul.addr %s300, 8
        %s302 = scalar_lea.vmem %s3, %s301
        %s303 = smul.u32 4, %s19
        %s304 = smul.u32 3, %s20
        %p305 = scmp.eq.s32.totalorder %s21, 0
        // Predicated region
        $region56: #{bgcnn_forward.9} parent=50 // pred_check
          %p306 = pneg %p305
        $region57: #{bgcnn_forward.9} parent=50 // pred_check_branch
          %308 = sbr.rel (%p306) target = $region59
        $region58: #{bgcnn_forward.9} parent=50 // pred_region
          %309 = vst [vmem:[#allocation2] sm:$0xff] 0.0
          %310 = vst [vmem:[#allocation2 + $0x8] sm:$0xff] 0.0
          %311 = vst [vmem:[#allocation2 + $0x10] sm:$0xff] 0.0
          %312 = vst [vmem:[#allocation2 + $0x18] sm:$0xff] 0.0
          %313 = vst [vmem:[#allocation2 + $0x20] sm:$0xff] 0.0
          %314 = vst [vmem:[#allocation2 + $0x28] sm:$0xff] 0.0
          %315 = vst [vmem:[#allocation2 + $0x30] sm:$0xff] 0.0
          %316 = vst [vmem:[#allocation2 + $0x38] sm:$0xff] 0.0
          %317 = vst [vmem:[#allocation2 + $0x40] sm:$0xff] 0.0
          %318 = vst [vmem:[#allocation2 + $0x48] sm:$0xff] 0.0
          %319 = vst [vmem:[#allocation2 + $0x50] sm:$0xff] 0.0
          %320 = vst [vmem:[#allocation2 + $0x58] sm:$0xff] 0.0
        $region59: #{bgcnn_forward.9} parent=50 // pred_fallthru
          _
        %v321 = vld [vmem:[#allocation2] sm:$0xff]
        %v322 = vld [vmem:[#allocation2 + $0x8] sm:$0xff]
        %v323 = vld [vmem:[#allocation2 + $0x10] sm:$0xff]
        %v324 = vld [vmem:[#allocation2 + $0x18] sm:$0xff]
        %v325 = vld [vmem:[#allocation2 + $0x20] sm:$0xff]
        %v326 = vld [vmem:[#allocation2 + $0x28] sm:$0xff]
        %v327 = vld [vmem:[#allocation2 + $0x30] sm:$0xff]
        %v328 = vld [vmem:[#allocation2 + $0x38] sm:$0xff]
        %v329 = vld [vmem:[#allocation2 + $0x40] sm:$0xff]
        %v330 = vld [vmem:[#allocation2 + $0x48] sm:$0xff]
        %v331 = vld [vmem:[#allocation2 + $0x50] sm:$0xff]
        %v332 = vld [vmem:[#allocation2 + $0x58] sm:$0xff]
        %v333 = vld [vmem:[%s234] sm:$0xff]
        %v334 = vld [vmem:[%s234 + $0x8] sm:$0xff]
        %v335 = vld [vmem:[%s234 + $0x10] sm:$0xff]
        %v336 = vld [vmem:[%s234 + $0x18] sm:$0xff]
        %v337 = vld [vmem:[%s234 + $0x20] sm:$0xff]
        %v338 = vld [vmem:[%s234 + $0x28] sm:$0xff]
        %v339 = vld [vmem:[%s234 + $0x30] sm:$0xff]
        %v340 = vld [vmem:[%s234 + $0x38] sm:$0xff]
        %v341 = vld [vmem:[%s285] sm:$0xff]
        %v342 = vld [vmem:[%s285 + $0x8] sm:$0xf]
        %v343 = vld [vmem:[%s285 + $0xc] sm:$0xff]
        %v344 = vld [vmem:[%s285 + $0x14] sm:$0xf]
        %v345 = vld [vmem:[%s285 + $0x18] sm:$0xff]
        %v346 = vld [vmem:[%s285 + $0x20] sm:$0xf]
        %v347 = vld [vmem:[%s285 + $0x24] sm:$0xff]
        %v348 = vld [vmem:[%s285 + $0x2c] sm:$0xf]
        %v349 = vld [vmem:[%s285 + $0x30] sm:$0xff]
        %v350 = vld [vmem:[%s285 + $0x38] sm:$0xf]
        %v351 = vld [vmem:[%s285 + $0x3c] sm:$0xff]
        %v352 = vld [vmem:[%s285 + $0x44] sm:$0xf]
        %v353 = vld [vmem:[%s285 + $0x48] sm:$0xff]
        %v354 = vld [vmem:[%s285 + $0x50] sm:$0xf]
        %v355 = vld [vmem:[%s285 + $0x54] sm:$0xff]
        %v356 = vld [vmem:[%s285 + $0x5c] sm:$0xf]
        %v357 = vld [vmem:[%s285 + $0x60] sm:$0xff]
        %v358 = vld [vmem:[%s285 + $0x68] sm:$0xf]
        %v359 = vld [vmem:[%s285 + $0x6c] sm:$0xff]
        %v360 = vld [vmem:[%s285 + $0x74] sm:$0xf]
        %v361 = vld [vmem:[%s285 + $0x78] sm:$0xff]
        %v362 = vld [vmem:[%s285 + $0x80] sm:$0xf]
        %v363 = vld [vmem:[%s285 + $0x84] sm:$0xff]
        %v364 = vld [vmem:[%s285 + $0x8c] sm:$0xf]
        %v365 = vld [vmem:[%s285 + $0x90] sm:$0xff]
        %v366 = vld [vmem:[%s285 + $0x98] sm:$0xf]
        %v367 = vld [vmem:[%s285 + $0x9c] sm:$0xff]
        %v368 = vld [vmem:[%s285 + $0xa4] sm:$0xf]
        %v369 = vld [vmem:[%s285 + $0xa8] sm:$0xff]
        %v370 = vld [vmem:[%s285 + $0xb0] sm:$0xf]
        %v371 = vld [vmem:[%s285 + $0xb4] sm:$0xff]
        %v372 = vld [vmem:[%s285 + $0xbc] sm:$0xf]
        %v373 = vld [vmem:[%s285 + $0xc0] sm:$0xff]
        %v374 = vld [vmem:[%s285 + $0xc8] sm:$0xf]
        %v375 = vld [vmem:[%s285 + $0xcc] sm:$0xff]
        %v376 = vld [vmem:[%s285 + $0xd4] sm:$0xf]
        %v377 = vld [vmem:[%s285 + $0xd8] sm:$0xff]
        %v378 = vld [vmem:[%s285 + $0xe0] sm:$0xf]
        %v379 = vld [vmem:[%s285 + $0xe4] sm:$0xff]
        %v380 = vld [vmem:[%s285 + $0xec] sm:$0xf]
        %v381 = vld [vmem:[%s285 + $0xf0] sm:$0xff]
        %v382 = vld [vmem:[%s285 + $0xf8] sm:$0xf]
        %v383 = vld [vmem:[%s285 + $0xfc] sm:$0xff]
        %v384 = vld [vmem:[%s285 + $0x104] sm:$0xf]
        %v385 = vld [vmem:[%s285 + $0x108] sm:$0xff]
        %v386 = vld [vmem:[%s285 + $0x110] sm:$0xf]
        %v387 = vld [vmem:[%s285 + $0x114] sm:$0xff]
        %v388 = vld [vmem:[%s285 + $0x11c] sm:$0xf]
        %v389 = vld [vmem:[%s285 + $0x120] sm:$0xff]
        %v390 = vld [vmem:[%s285 + $0x128] sm:$0xf]
        %v391 = vld [vmem:[%s285 + $0x12c] sm:$0xff]
        %v392 = vld [vmem:[%s285 + $0x134] sm:$0xf]
        %v393 = vld [vmem:[%s285 + $0x138] sm:$0xff]
        %v394 = vld [vmem:[%s285 + $0x140] sm:$0xf]
        %v395 = vld [vmem:[%s285 + $0x144] sm:$0xff]
        %v396 = vld [vmem:[%s285 + $0x14c] sm:$0xf]
        %v397 = vld [vmem:[%s285 + $0x150] sm:$0xff]
        %v398 = vld [vmem:[%s285 + $0x158] sm:$0xf]
        %v399 = vld [vmem:[%s285 + $0x15c] sm:$0xff]
        %v400 = vld [vmem:[%s285 + $0x164] sm:$0xf]
        %v401 = vld [vmem:[%s285 + $0x168] sm:$0xff]
        %v402 = vld [vmem:[%s285 + $0x170] sm:$0xf]
        %v403 = vld [vmem:[%s285 + $0x174] sm:$0xff]
        %v404 = vld [vmem:[%s285 + $0x17c] sm:$0xf]
        %v405 = vld [vmem:[%s285 + $0x180] sm:$0xff]
        %v406 = vld [vmem:[%s285 + $0x188] sm:$0xf]
        %v407 = vld [vmem:[%s285 + $0x18c] sm:$0xff]
        %v408 = vld [vmem:[%s285 + $0x194] sm:$0xf]
        %v409 = vld [vmem:[%s285 + $0x198] sm:$0xff]
        %v410 = vld [vmem:[%s285 + $0x1a0] sm:$0xf]
        %v411 = vld [vmem:[%s285 + $0x1a4] sm:$0xff]
        %v412 = vld [vmem:[%s285 + $0x1ac] sm:$0xf]
        %v413 = vld [vmem:[%s285 + $0x1b0] sm:$0xff]
        %v414 = vld [vmem:[%s285 + $0x1b8] sm:$0xf]
        %v415 = vld [vmem:[%s285 + $0x1bc] sm:$0xff]
        %v416 = vld [vmem:[%s285 + $0x1c4] sm:$0xf]
        %v417 = vld [vmem:[%s285 + $0x1c8] sm:$0xff]
        %v418 = vld [vmem:[%s285 + $0x1d0] sm:$0xf]
        %v419 = vld [vmem:[%s285 + $0x1d4] sm:$0xff]
        %v420 = vld [vmem:[%s285 + $0x1dc] sm:$0xf]
        %v421 = vld [vmem:[%s285 + $0x1e0] sm:$0xff]
        %v422 = vld [vmem:[%s285 + $0x1e8] sm:$0xf]
        %v423 = vld [vmem:[%s285 + $0x1ec] sm:$0xff]
        %v424 = vld [vmem:[%s285 + $0x1f4] sm:$0xf]
        %v425 = vld [vmem:[%s285 + $0x1f8] sm:$0xff]
        %v426 = vld [vmem:[%s285 + $0x200] sm:$0xf]
        %v427 = vld [vmem:[%s285 + $0x204] sm:$0xff]
        %v428 = vld [vmem:[%s285 + $0x20c] sm:$0xf]
        %v429 = vld [vmem:[%s285 + $0x210] sm:$0xff]
        %v430 = vld [vmem:[%s285 + $0x218] sm:$0xf]
        %v431 = vld [vmem:[%s285 + $0x21c] sm:$0xff]
        %v432 = vld [vmem:[%s285 + $0x224] sm:$0xf]
        %v433 = vld [vmem:[%s285 + $0x228] sm:$0xff]
        %v434 = vld [vmem:[%s285 + $0x230] sm:$0xf]
        %v435 = vld [vmem:[%s285 + $0x234] sm:$0xff]
        %v436 = vld [vmem:[%s285 + $0x23c] sm:$0xf]
        %v437 = vld [vmem:[%s285 + $0x240] sm:$0xff]
        %v438 = vld [vmem:[%s285 + $0x248] sm:$0xf]
        %v439 = vld [vmem:[%s285 + $0x24c] sm:$0xff]
        %v440 = vld [vmem:[%s285 + $0x254] sm:$0xf]
        %v441 = vld [vmem:[%s285 + $0x258] sm:$0xff]
        %v442 = vld [vmem:[%s285 + $0x260] sm:$0xf]
        %v443 = vld [vmem:[%s285 + $0x264] sm:$0xff]
        %v444 = vld [vmem:[%s285 + $0x26c] sm:$0xf]
        %v445 = vld [vmem:[%s285 + $0x270] sm:$0xff]
        %v446 = vld [vmem:[%s285 + $0x278] sm:$0xf]
        %v447 = vld [vmem:[%s285 + $0x27c] sm:$0xff]
        %v448 = vld [vmem:[%s285 + $0x284] sm:$0xf]
        %v449 = vld [vmem:[%s285 + $0x288] sm:$0xff]
        %v450 = vld [vmem:[%s285 + $0x290] sm:$0xf]
        %v451 = vld [vmem:[%s285 + $0x294] sm:$0xff]
        %v452 = vld [vmem:[%s285 + $0x29c] sm:$0xf]
        %v453 = vld [vmem:[%s285 + $0x2a0] sm:$0xff]
        %v454 = vld [vmem:[%s285 + $0x2a8] sm:$0xf]
        %v455 = vld [vmem:[%s285 + $0x2ac] sm:$0xff]
        %v456 = vld [vmem:[%s285 + $0x2b4] sm:$0xf]
        %v457 = vld [vmem:[%s285 + $0x2b8] sm:$0xff]
        %v458 = vld [vmem:[%s285 + $0x2c0] sm:$0xf]
        %v459 = vld [vmem:[%s285 + $0x2c4] sm:$0xff]
        %v460 = vld [vmem:[%s285 + $0x2cc] sm:$0xf]
        %v461 = vld [vmem:[%s285 + $0x2d0] sm:$0xff]
        %v462 = vld [vmem:[%s285 + $0x2d8] sm:$0xf]
        %v463 = vld [vmem:[%s285 + $0x2dc] sm:$0xff]
        %v464 = vld [vmem:[%s285 + $0x2e4] sm:$0xf]
        %v465 = vld [vmem:[%s285 + $0x2e8] sm:$0xff]
        %v466 = vld [vmem:[%s285 + $0x2f0] sm:$0xf]
        %v467 = vld [vmem:[%s285 + $0x2f4] sm:$0xff]
        %v468 = vld [vmem:[%s285 + $0x2fc] sm:$0xf]
        %v477 = vunpack.c.l.b16 %v333
        %v478 = vunpack.c.h.b16 %v333
        %v479 = vunpack.c.l.b16 %v334
        %v480 = vunpack.c.h.b16 %v334
        %v481 = vunpack.c.l.b16 %v335
        %v482 = vunpack.c.h.b16 %v335
        %v483 = vunpack.c.l.b16 %v336
        %v484 = vunpack.c.h.b16 %v336
        %v485 = vunpack.c.l.b16 %v337
        %v486 = vunpack.c.h.b16 %v337
        %v487 = vunpack.c.l.b16 %v338
        %v488 = vunpack.c.h.b16 %v338
        %v489 = vunpack.c.l.b16 %v339
        %v490 = vunpack.c.h.b16 %v339
        %v491 = vunpack.c.l.b16 %v340
        %v492 = vunpack.c.h.b16 %v340
        %v493 = vpack.c.b16 %v481, %v477
        %v494 = vpack.c.b16 %v482, %v478
        %v495 = vpack.c.b16 %v483, %v479
        %v496 = vpack.c.b16 %v484, %v480
        %v497 = vpack.c.b16 %v489, %v485
        %v498 = vpack.c.b16 %v490, %v486
        %v499 = vpack.c.b16 %v491, %v487
        %v500 = vpack.c.b16 %v492, %v488
        %v637 = vunpack.c.l.b16 %v341
        %v638 = vunpack.c.h.b16 %v341
        %v639 = vunpack.c.l.b16 %v342
        %v640 = vunpack.c.l.b16 %v343
        %v641 = vunpack.c.h.b16 %v343
        %v642 = vunpack.c.l.b16 %v344
        %v643 = vunpack.c.l.b16 %v345
        %v644 = vunpack.c.h.b16 %v345
        %v645 = vunpack.c.l.b16 %v346
        %v646 = vunpack.c.l.b16 %v347
        %v647 = vunpack.c.h.b16 %v347
        %v648 = vunpack.c.l.b16 %v348
        %v649 = vunpack.c.l.b16 %v349
        %v650 = vunpack.c.h.b16 %v349
        %v651 = vunpack.c.l.b16 %v350
        %v652 = vunpack.c.l.b16 %v351
        %v653 = vunpack.c.h.b16 %v351
        %v654 = vunpack.c.l.b16 %v352
        %v655 = vunpack.c.l.b16 %v353
        %v656 = vunpack.c.h.b16 %v353
        %v657 = vunpack.c.l.b16 %v354
        %v658 = vunpack.c.l.b16 %v355
        %v659 = vunpack.c.h.b16 %v355
        %v660 = vunpack.c.l.b16 %v356
        %v661 = vunpack.c.l.b16 %v357
        %v662 = vunpack.c.h.b16 %v357
        %v663 = vunpack.c.l.b16 %v358
        %v664 = vunpack.c.l.b16 %v359
        %v665 = vunpack.c.h.b16 %v359
        %v666 = vunpack.c.l.b16 %v360
        %v667 = vunpack.c.l.b16 %v361
        %v668 = vunpack.c.h.b16 %v361
        %v669 = vunpack.c.l.b16 %v362
        %v670 = vunpack.c.l.b16 %v363
        %v671 = vunpack.c.h.b16 %v363
        %v672 = vunpack.c.l.b16 %v364
        %v673 = vunpack.c.l.b16 %v365
        %v674 = vunpack.c.h.b16 %v365
        %v675 = vunpack.c.l.b16 %v366
        %v676 = vunpack.c.l.b16 %v367
        %v677 = vunpack.c.h.b16 %v367
        %v678 = vunpack.c.l.b16 %v368
        %v679 = vunpack.c.l.b16 %v369
        %v680 = vunpack.c.h.b16 %v369
        %v681 = vunpack.c.l.b16 %v370
        %v682 = vunpack.c.l.b16 %v371
        %v683 = vunpack.c.h.b16 %v371
        %v684 = vunpack.c.l.b16 %v372
        %v685 = vunpack.c.l.b16 %v373
        %v686 = vunpack.c.h.b16 %v373
        %v687 = vunpack.c.l.b16 %v374
        %v688 = vunpack.c.l.b16 %v375
        %v689 = vunpack.c.h.b16 %v375
        %v690 = vunpack.c.l.b16 %v376
        %v691 = vunpack.c.l.b16 %v377
        %v692 = vunpack.c.h.b16 %v377
        %v693 = vunpack.c.l.b16 %v378
        %v694 = vunpack.c.l.b16 %v379
        %v695 = vunpack.c.h.b16 %v379
        %v696 = vunpack.c.l.b16 %v380
        %v697 = vunpack.c.l.b16 %v381
        %v698 = vunpack.c.h.b16 %v381
        %v699 = vunpack.c.l.b16 %v382
        %v700 = vunpack.c.l.b16 %v383
        %v701 = vunpack.c.h.b16 %v383
        %v702 = vunpack.c.l.b16 %v384
        %v703 = vunpack.c.l.b16 %v385
        %v704 = vunpack.c.h.b16 %v385
        %v705 = vunpack.c.l.b16 %v386
        %v706 = vunpack.c.l.b16 %v387
        %v707 = vunpack.c.h.b16 %v387
        %v708 = vunpack.c.l.b16 %v388
        %v709 = vunpack.c.l.b16 %v389
        %v710 = vunpack.c.h.b16 %v389
        %v711 = vunpack.c.l.b16 %v390
        %v712 = vunpack.c.l.b16 %v391
        %v713 = vunpack.c.h.b16 %v391
        %v714 = vunpack.c.l.b16 %v392
        %v715 = vunpack.c.l.b16 %v393
        %v716 = vunpack.c.h.b16 %v393
        %v717 = vunpack.c.l.b16 %v394
        %v718 = vunpack.c.l.b16 %v395
        %v719 = vunpack.c.h.b16 %v395
        %v720 = vunpack.c.l.b16 %v396
        %v721 = vunpack.c.l.b16 %v397
        %v722 = vunpack.c.h.b16 %v397
        %v723 = vunpack.c.l.b16 %v398
        %v724 = vunpack.c.l.b16 %v399
        %v725 = vunpack.c.h.b16 %v399
        %v726 = vunpack.c.l.b16 %v400
        %v727 = vunpack.c.l.b16 %v401
        %v728 = vunpack.c.h.b16 %v401
        %v729 = vunpack.c.l.b16 %v402
        %v730 = vunpack.c.l.b16 %v403
        %v731 = vunpack.c.h.b16 %v403
        %v732 = vunpack.c.l.b16 %v404
        %v733 = vunpack.c.l.b16 %v405
        %v734 = vunpack.c.h.b16 %v405
        %v735 = vunpack.c.l.b16 %v406
        %v736 = vunpack.c.l.b16 %v407
        %v737 = vunpack.c.h.b16 %v407
        %v738 = vunpack.c.l.b16 %v408
        %v739 = vunpack.c.l.b16 %v409
        %v740 = vunpack.c.h.b16 %v409
        %v741 = vunpack.c.l.b16 %v410
        %v742 = vunpack.c.l.b16 %v411
        %v743 = vunpack.c.h.b16 %v411
        %v744 = vunpack.c.l.b16 %v412
        %v745 = vunpack.c.l.b16 %v413
        %v746 = vunpack.c.h.b16 %v413
        %v747 = vunpack.c.l.b16 %v414
        %v748 = vunpack.c.l.b16 %v415
        %v749 = vunpack.c.h.b16 %v415
        %v750 = vunpack.c.l.b16 %v416
        %v751 = vunpack.c.l.b16 %v417
        %v752 = vunpack.c.h.b16 %v417
        %v753 = vunpack.c.l.b16 %v418
        %v754 = vunpack.c.l.b16 %v419
        %v755 = vunpack.c.h.b16 %v419
        %v756 = vunpack.c.l.b16 %v420
        %v757 = vunpack.c.l.b16 %v421
        %v758 = vunpack.c.h.b16 %v421
        %v759 = vunpack.c.l.b16 %v422
        %v760 = vunpack.c.l.b16 %v423
        %v761 = vunpack.c.h.b16 %v423
        %v762 = vunpack.c.l.b16 %v424
        %v763 = vunpack.c.l.b16 %v425
        %v764 = vunpack.c.h.b16 %v425
        %v765 = vunpack.c.l.b16 %v426
        %v766 = vunpack.c.l.b16 %v427
        %v767 = vunpack.c.h.b16 %v427
        %v768 = vunpack.c.l.b16 %v428
        %v769 = vunpack.c.l.b16 %v429
        %v770 = vunpack.c.h.b16 %v429
        %v771 = vunpack.c.l.b16 %v430
        %v772 = vunpack.c.l.b16 %v431
        %v773 = vunpack.c.h.b16 %v431
        %v774 = vunpack.c.l.b16 %v432
        %v775 = vunpack.c.l.b16 %v433
        %v776 = vunpack.c.h.b16 %v433
        %v777 = vunpack.c.l.b16 %v434
        %v778 = vunpack.c.l.b16 %v435
        %v779 = vunpack.c.h.b16 %v435
        %v780 = vunpack.c.l.b16 %v436
        %v781 = vunpack.c.l.b16 %v437
        %v782 = vunpack.c.h.b16 %v437
        %v783 = vunpack.c.l.b16 %v438
        %v784 = vunpack.c.l.b16 %v439
        %v785 = vunpack.c.h.b16 %v439
        %v786 = vunpack.c.l.b16 %v440
        %v787 = vunpack.c.l.b16 %v441
        %v788 = vunpack.c.h.b16 %v441
        %v789 = vunpack.c.l.b16 %v442
        %v790 = vunpack.c.l.b16 %v443
        %v791 = vunpack.c.h.b16 %v443
        %v792 = vunpack.c.l.b16 %v444
        %v793 = vunpack.c.l.b16 %v445
        %v794 = vunpack.c.h.b16 %v445
        %v795 = vunpack.c.l.b16 %v446
        %v796 = vunpack.c.l.b16 %v447
        %v797 = vunpack.c.h.b16 %v447
        %v798 = vunpack.c.l.b16 %v448
        %v799 = vunpack.c.l.b16 %v449
        %v800 = vunpack.c.h.b16 %v449
        %v801 = vunpack.c.l.b16 %v450
        %v802 = vunpack.c.l.b16 %v451
        %v803 = vunpack.c.h.b16 %v451
        %v804 = vunpack.c.l.b16 %v452
        %v805 = vunpack.c.l.b16 %v453
        %v806 = vunpack.c.h.b16 %v453
        %v807 = vunpack.c.l.b16 %v454
        %v808 = vunpack.c.l.b16 %v455
        %v809 = vunpack.c.h.b16 %v455
        %v810 = vunpack.c.l.b16 %v456
        %v811 = vunpack.c.l.b16 %v457
        %v812 = vunpack.c.h.b16 %v457
        %v813 = vunpack.c.l.b16 %v458
        %v814 = vunpack.c.l.b16 %v459
        %v815 = vunpack.c.h.b16 %v459
        %v816 = vunpack.c.l.b16 %v460
        %v817 = vunpack.c.l.b16 %v461
        %v818 = vunpack.c.h.b16 %v461
        %v819 = vunpack.c.l.b16 %v462
        %v820 = vunpack.c.l.b16 %v463
        %v821 = vunpack.c.h.b16 %v463
        %v822 = vunpack.c.l.b16 %v464
        %v823 = vunpack.c.l.b16 %v465
        %v824 = vunpack.c.h.b16 %v465
        %v825 = vunpack.c.l.b16 %v466
        %v826 = vunpack.c.l.b16 %v467
        %v827 = vunpack.c.h.b16 %v467
        %v828 = vunpack.c.l.b16 %v468
        %v829 = vpack.c.b16 %v640, %v637
        %v830 = vpack.c.b16 %v641, %v638
        %v831 = vpack.c.b16 %v642, %v639
        %v832 = vpack.c.b16 %v646, %v643
        %v833 = vpack.c.b16 %v647, %v644
        %v834 = vpack.c.b16 %v648, %v645
        %v835 = vpack.c.b16 %v652, %v649
        %v836 = vpack.c.b16 %v653, %v650
        %v837 = vpack.c.b16 %v654, %v651
        %v838 = vpack.c.b16 %v658, %v655
        %v839 = vpack.c.b16 %v659, %v656
        %v840 = vpack.c.b16 %v660, %v657
        %v841 = vpack.c.b16 %v664, %v661
        %v842 = vpack.c.b16 %v665, %v662
        %v843 = vpack.c.b16 %v666, %v663
        %v844 = vpack.c.b16 %v670, %v667
        %v845 = vpack.c.b16 %v671, %v668
        %v846 = vpack.c.b16 %v672, %v669
        %v847 = vpack.c.b16 %v676, %v673
        %v848 = vpack.c.b16 %v677, %v674
        %v849 = vpack.c.b16 %v678, %v675
        %v850 = vpack.c.b16 %v682, %v679
        %v851 = vpack.c.b16 %v683, %v680
        %v852 = vpack.c.b16 %v684, %v681
        %v853 = vpack.c.b16 %v688, %v685
        %v854 = vpack.c.b16 %v689, %v686
        %v855 = vpack.c.b16 %v690, %v687
        %v856 = vpack.c.b16 %v694, %v691
        %v857 = vpack.c.b16 %v695, %v692
        %v858 = vpack.c.b16 %v696, %v693
        %v859 = vpack.c.b16 %v700, %v697
        %v860 = vpack.c.b16 %v701, %v698
        %v861 = vpack.c.b16 %v702, %v699
        %v862 = vpack.c.b16 %v706, %v703
        %v863 = vpack.c.b16 %v707, %v704
        %v864 = vpack.c.b16 %v708, %v705
        %v865 = vpack.c.b16 %v712, %v709
        %v866 = vpack.c.b16 %v713, %v710
        %v867 = vpack.c.b16 %v714, %v711
        %v868 = vpack.c.b16 %v718, %v715
        %v869 = vpack.c.b16 %v719, %v716
        %v870 = vpack.c.b16 %v720, %v717
        %v871 = vpack.c.b16 %v724, %v721
        %v872 = vpack.c.b16 %v725, %v722
        %v873 = vpack.c.b16 %v726, %v723
        %v874 = vpack.c.b16 %v730, %v727
        %v875 = vpack.c.b16 %v731, %v728
        %v876 = vpack.c.b16 %v732, %v729
        %v877 = vpack.c.b16 %v736, %v733
        %v878 = vpack.c.b16 %v737, %v734
        %v879 = vpack.c.b16 %v738, %v735
        %v880 = vpack.c.b16 %v742, %v739
        %v881 = vpack.c.b16 %v743, %v740
        %v882 = vpack.c.b16 %v744, %v741
        %v883 = vpack.c.b16 %v748, %v745
        %v884 = vpack.c.b16 %v749, %v746
        %v885 = vpack.c.b16 %v750, %v747
        %v886 = vpack.c.b16 %v754, %v751
        %v887 = vpack.c.b16 %v755, %v752
        %v888 = vpack.c.b16 %v756, %v753
        %v889 = vpack.c.b16 %v760, %v757
        %v890 = vpack.c.b16 %v761, %v758
        %v891 = vpack.c.b16 %v762, %v759
        %v892 = vpack.c.b16 %v766, %v763
        %v893 = vpack.c.b16 %v767, %v764
        %v894 = vpack.c.b16 %v768, %v765
        %v895 = vpack.c.b16 %v772, %v769
        %v896 = vpack.c.b16 %v773, %v770
        %v897 = vpack.c.b16 %v774, %v771
        %v898 = vpack.c.b16 %v778, %v775
        %v899 = vpack.c.b16 %v779, %v776
        %v900 = vpack.c.b16 %v780, %v777
        %v901 = vpack.c.b16 %v784, %v781
        %v902 = vpack.c.b16 %v785, %v782
        %v903 = vpack.c.b16 %v786, %v783
        %v904 = vpack.c.b16 %v790, %v787
        %v905 = vpack.c.b16 %v791, %v788
        %v906 = vpack.c.b16 %v792, %v789
        %v907 = vpack.c.b16 %v796, %v793
        %v908 = vpack.c.b16 %v797, %v794
        %v909 = vpack.c.b16 %v798, %v795
        %v910 = vpack.c.b16 %v802, %v799
        %v911 = vpack.c.b16 %v803, %v800
        %v912 = vpack.c.b16 %v804, %v801
        %v913 = vpack.c.b16 %v808, %v805
        %v914 = vpack.c.b16 %v809, %v806
        %v915 = vpack.c.b16 %v810, %v807
        %v916 = vpack.c.b16 %v814, %v811
        %v917 = vpack.c.b16 %v815, %v812
        %v918 = vpack.c.b16 %v816, %v813
        %v919 = vpack.c.b16 %v820, %v817
        %v920 = vpack.c.b16 %v821, %v818
        %v921 = vpack.c.b16 %v822, %v819
        %v922 = vpack.c.b16 %v826, %v823
        %v923 = vpack.c.b16 %v827, %v824
        %v924 = vpack.c.b16 %v828, %v825
        %1021 = vmatpush.bf16.msra.mxu0 %v850
        %1022 = vmatpush.bf16.msra.mxu0 %v847
        %1023 = vmatpush.bf16.msra.mxu0 %v844
        %1024 = vmatpush.bf16.msra.mxu0 %v841
        %1025 = vmatpush.bf16.msra.mxu0 %v838
        %1026 = vmatpush.bf16.msra.mxu0 %v835
        %1027 = vmatpush.bf16.msra.mxu0 %v832
        %1028 = vmatpush.bf16.msra.mxu0 %v829
        %1029 = vmatmul.bf16.gmra.mxu0 %v493
        %v1030 = vpop.f32.mrf.mxu0
        %v1031 = vadd.f32 0.0, %v1030
        %v1032 = vpop.f32.mrf.mxu0
        %v1033 = vadd.f32 0.0, %v1032
        %1034 = vmatmul.bf16.gmra.mxu0 %v497
        %v1035 = vpop.f32.mrf.mxu0
        %v1036 = vadd.f32 0.0, %v1035
        %v1037 = vpop.f32.mrf.mxu0
        %v1038 = vadd.f32 0.0, %v1037
        %1039 = vdwg.mxu0
        %1040 = vmatpush.bf16.msra.mxu0 %v874
        %1041 = vmatpush.bf16.msra.mxu0 %v871
        %1042 = vmatpush.bf16.msra.mxu0 %v868
        %1043 = vmatpush.bf16.msra.mxu0 %v865
        %1044 = vmatpush.bf16.msra.mxu0 %v862
        %1045 = vmatpush.bf16.msra.mxu0 %v859
        %1046 = vmatpush.bf16.msra.mxu0 %v856
        %1047 = vmatpush.bf16.msra.mxu0 %v853
        %1048 = vmatmul.bf16.gmra.mxu0 %v494
        %v1049 = vpop.f32.mrf.mxu0
        %v1050 = vadd.f32 %v1031, %v1049
        %v1051 = vpop.f32.mrf.mxu0
        %v1052 = vadd.f32 %v1033, %v1051
        %1053 = vmatmul.bf16.gmra.mxu0 %v498
        %v1054 = vpop.f32.mrf.mxu0
        %v1055 = vadd.f32 %v1036, %v1054
        %v1056 = vpop.f32.mrf.mxu0
        %v1057 = vadd.f32 %v1038, %v1056
        %1058 = vdwg.mxu0
        %1059 = vmatpush.bf16.msra.mxu0 %v898
        %1060 = vmatpush.bf16.msra.mxu0 %v895
        %1061 = vmatpush.bf16.msra.mxu0 %v892
        %1062 = vmatpush.bf16.msra.mxu0 %v889
        %1063 = vmatpush.bf16.msra.mxu0 %v886
        %1064 = vmatpush.bf16.msra.mxu0 %v883
        %1065 = vmatpush.bf16.msra.mxu0 %v880
        %1066 = vmatpush.bf16.msra.mxu0 %v877
        %1067 = vmatmul.bf16.gmra.mxu0 %v495
        %v1068 = vpop.f32.mrf.mxu0
        %v1069 = vadd.f32 %v1050, %v1068
        %v1070 = vpop.f32.mrf.mxu0
        %v1071 = vadd.f32 %v1052, %v1070
        %1072 = vmatmul.bf16.gmra.mxu0 %v499
        %v1073 = vpop.f32.mrf.mxu0
        %v1074 = vadd.f32 %v1055, %v1073
        %v1075 = vpop.f32.mrf.mxu0
        %v1076 = vadd.f32 %v1057, %v1075
        %1077 = vdwg.mxu0
        %1078 = vmatpush.bf16.msra.mxu0 %v922
        %1079 = vmatpush.bf16.msra.mxu0 %v919
        %1080 = vmatpush.bf16.msra.mxu0 %v916
        %1081 = vmatpush.bf16.msra.mxu0 %v913
        %1082 = vmatpush.bf16.msra.mxu0 %v910
        %1083 = vmatpush.bf16.msra.mxu0 %v907
        %1084 = vmatpush.bf16.msra.mxu0 %v904
        %1085 = vmatpush.bf16.msra.mxu0 %v901
        %1086 = vmatmul.bf16.gmra.mxu0 %v496
        %v1087 = vpop.f32.mrf.mxu0
        %v1088 = vadd.f32 %v1069, %v1087
        %v1089 = vpop.f32.mrf.mxu0
        %v1090 = vadd.f32 %v1071, %v1089
        %1091 = vmatmul.bf16.gmra.mxu0 %v500
        %v1092 = vpop.f32.mrf.mxu0
        %v1093 = vadd.f32 %v1074, %v1092
        %v1094 = vpop.f32.mrf.mxu0
        %v1095 = vadd.f32 %v1076, %v1094
        %1096 = vdwg.mxu0
        %1097 = vmatpush.bf16.msra.mxu0 %v851
        %1098 = vmatpush.bf16.msra.mxu0 %v848
        %1099 = vmatpush.bf16.msra.mxu0 %v845
        %1100 = vmatpush.bf16.msra.mxu0 %v842
        %1101 = vmatpush.bf16.msra.mxu0 %v839
        %1102 = vmatpush.bf16.msra.mxu0 %v836
        %1103 = vmatpush.bf16.msra.mxu0 %v833
        %1104 = vmatpush.bf16.msra.mxu0 %v830
        %1105 = vmatmul.bf16.gmra.mxu0 %v493
        %v1106 = vpop.f32.mrf.mxu0
        %v1107 = vadd.f32 0.0, %v1106
        %v1108 = vpop.f32.mrf.mxu0
        %v1109 = vadd.f32 0.0, %v1108
        %1110 = vmatmul.bf16.gmra.mxu0 %v497
        %v1111 = vpop.f32.mrf.mxu0
        %v1112 = vadd.f32 0.0, %v1111
        %v1113 = vpop.f32.mrf.mxu0
        %v1114 = vadd.f32 0.0, %v1113
        %1115 = vdwg.mxu0
        %1116 = vmatpush.bf16.msra.mxu0 %v875
        %1117 = vmatpush.bf16.msra.mxu0 %v872
        %1118 = vmatpush.bf16.msra.mxu0 %v869
        %1119 = vmatpush.bf16.msra.mxu0 %v866
        %1120 = vmatpush.bf16.msra.mxu0 %v863
        %1121 = vmatpush.bf16.msra.mxu0 %v860
        %1122 = vmatpush.bf16.msra.mxu0 %v857
        %1123 = vmatpush.bf16.msra.mxu0 %v854
        %1124 = vmatmul.bf16.gmra.mxu0 %v494
        %v1125 = vpop.f32.mrf.mxu0
        %v1126 = vadd.f32 %v1107, %v1125
        %v1127 = vpop.f32.mrf.mxu0
        %v1128 = vadd.f32 %v1109, %v1127
        %1129 = vmatmul.bf16.gmra.mxu0 %v498
        %v1130 = vpop.f32.mrf.mxu0
        %v1131 = vadd.f32 %v1112, %v1130
        %v1132 = vpop.f32.mrf.mxu0
        %v1133 = vadd.f32 %v1114, %v1132
        %1134 = vdwg.mxu0
        %1135 = vmatpush.bf16.msra.mxu0 %v899
        %1136 = vmatpush.bf16.msra.mxu0 %v896
        %1137 = vmatpush.bf16.msra.mxu0 %v893
        %1138 = vmatpush.bf16.msra.mxu0 %v890
        %1139 = vmatpush.bf16.msra.mxu0 %v887
        %1140 = vmatpush.bf16.msra.mxu0 %v884
        %1141 = vmatpush.bf16.msra.mxu0 %v881
        %1142 = vmatpush.bf16.msra.mxu0 %v878
        %1143 = vmatmul.bf16.gmra.mxu0 %v495
        %v1144 = vpop.f32.mrf.mxu0
        %v1145 = vadd.f32 %v1126, %v1144
        %v1146 = vpop.f32.mrf.mxu0
        %v1147 = vadd.f32 %v1128, %v1146
        %1148 = vmatmul.bf16.gmra.mxu0 %v499
        %v1149 = vpop.f32.mrf.mxu0
        %v1150 = vadd.f32 %v1131, %v1149
        %v1151 = vpop.f32.mrf.mxu0
        %v1152 = vadd.f32 %v1133, %v1151
        %1153 = vdwg.mxu0
        %1154 = vmatpush.bf16.msra.mxu0 %v923
        %1155 = vmatpush.bf16.msra.mxu0 %v920
        %1156 = vmatpush.bf16.msra.mxu0 %v917
        %1157 = vmatpush.bf16.msra.mxu0 %v914
        %1158 = vmatpush.bf16.msra.mxu0 %v911
        %1159 = vmatpush.bf16.msra.mxu0 %v908
        %1160 = vmatpush.bf16.msra.mxu0 %v905
        %1161 = vmatpush.bf16.msra.mxu0 %v902
        %1162 = vmatmul.bf16.gmra.mxu0 %v496
        %v1163 = vpop.f32.mrf.mxu0
        %v1164 = vadd.f32 %v1145, %v1163
        %v1165 = vpop.f32.mrf.mxu0
        %v1166 = vadd.f32 %v1147, %v1165
        %1167 = vmatmul.bf16.gmra.mxu0 %v500
        %v1168 = vpop.f32.mrf.mxu0
        %v1169 = vadd.f32 %v1150, %v1168
        %v1170 = vpop.f32.mrf.mxu0
        %v1171 = vadd.f32 %v1152, %v1170
        %1172 = vdwg.mxu0
        %1173 = vmatpush.bf16.msra.mxu0 %v852
        %1174 = vmatpush.bf16.msra.mxu0 %v849
        %1175 = vmatpush.bf16.msra.mxu0 %v846
        %1176 = vmatpush.bf16.msra.mxu0 %v843
        %1177 = vmatpush.bf16.msra.mxu0 %v840
        %1178 = vmatpush.bf16.msra.mxu0 %v837
        %1179 = vmatpush.bf16.msra.mxu0 %v834
        %1180 = vmatpush.bf16.msra.mxu0 %v831
        %1181 = vmatmul.bf16.gmra.mxu0 %v493
        %v1182 = vpop.f32.mrf.mxu0
        %v1183 = vadd.f32 0.0, %v1182
        %v1184 = vpop.f32.mrf.mxu0
        %v1185 = vadd.f32 0.0, %v1184
        %1186 = vmatmul.bf16.gmra.mxu0 %v497
        %v1187 = vpop.f32.mrf.mxu0
        %v1188 = vadd.f32 0.0, %v1187
        %v1189 = vpop.f32.mrf.mxu0
        %v1190 = vadd.f32 0.0, %v1189
        %1191 = vdwg.mxu0
        %1192 = vmatpush.bf16.msra.mxu0 %v876
        %1193 = vmatpush.bf16.msra.mxu0 %v873
        %1194 = vmatpush.bf16.msra.mxu0 %v870
        %1195 = vmatpush.bf16.msra.mxu0 %v867
        %1196 = vmatpush.bf16.msra.mxu0 %v864
        %1197 = vmatpush.bf16.msra.mxu0 %v861
        %1198 = vmatpush.bf16.msra.mxu0 %v858
        %1199 = vmatpush.bf16.msra.mxu0 %v855
        %1200 = vmatmul.bf16.gmra.mxu0 %v494
        %v1201 = vpop.f32.mrf.mxu0
        %v1202 = vadd.f32 %v1183, %v1201
        %v1203 = vpop.f32.mrf.mxu0
        %v1204 = vadd.f32 %v1185, %v1203
        %1205 = vmatmul.bf16.gmra.mxu0 %v498
        %v1206 = vpop.f32.mrf.mxu0
        %v1207 = vadd.f32 %v1188, %v1206
        %v1208 = vpop.f32.mrf.mxu0
        %v1209 = vadd.f32 %v1190, %v1208
        %1210 = vdwg.mxu0
        %1211 = vmatpush.bf16.msra.mxu0 %v900
        %1212 = vmatpush.bf16.msra.mxu0 %v897
        %1213 = vmatpush.bf16.msra.mxu0 %v894
        %1214 = vmatpush.bf16.msra.mxu0 %v891
        %1215 = vmatpush.bf16.msra.mxu0 %v888
        %1216 = vmatpush.bf16.msra.mxu0 %v885
        %1217 = vmatpush.bf16.msra.mxu0 %v882
        %1218 = vmatpush.bf16.msra.mxu0 %v879
        %1219 = vmatmul.bf16.gmra.mxu0 %v495
        %v1220 = vpop.f32.mrf.mxu0
        %v1221 = vadd.f32 %v1202, %v1220
        %v1222 = vpop.f32.mrf.mxu0
        %v1223 = vadd.f32 %v1204, %v1222
        %1224 = vmatmul.bf16.gmra.mxu0 %v499
        %v1225 = vpop.f32.mrf.mxu0
        %v1226 = vadd.f32 %v1207, %v1225
        %v1227 = vpop.f32.mrf.mxu0
        %v1228 = vadd.f32 %v1209, %v1227
        %1229 = vdwg.mxu0
        %1230 = vmatpush.bf16.msra.mxu0 %v924
        %1231 = vmatpush.bf16.msra.mxu0 %v921
        %1232 = vmatpush.bf16.msra.mxu0 %v918
        %1233 = vmatpush.bf16.msra.mxu0 %v915
        %1234 = vmatpush.bf16.msra.mxu0 %v912
        %1235 = vmatpush.bf16.msra.mxu0 %v909
        %1236 = vmatpush.bf16.msra.mxu0 %v906
        %1237 = vmatpush.bf16.msra.mxu0 %v903
        %1238 = vmatmul.bf16.gmra.mxu0 %v496
        %v1239 = vpop.f32.mrf.mxu0
        %v1240 = vadd.f32 %v1221, %v1239
        %v1241 = vpop.f32.mrf.mxu0
        %v1242 = vadd.f32 %v1223, %v1241
        %1243 = vmatmul.bf16.gmra.mxu0 %v500
        %v1244 = vpop.f32.mrf.mxu0
        %v1245 = vadd.f32 %v1226, %v1244
        %v1246 = vpop.f32.mrf.mxu0
        %v1247 = vadd.f32 %v1228, %v1246
        %1248 = vdwg.mxu0
        %v1249 = vadd.f32 %v321, %v1088
        %v1250 = vadd.f32 %v322, %v1164
        %v1251 = vadd.f32 %v323, %v1240
        %v1252 = vadd.f32 %v324, %v1090
        %v1253 = vadd.f32 %v325, %v1166
        %v1254 = vadd.f32 %v326, %v1242
        %v1255 = vadd.f32 %v327, %v1093
        %v1256 = vadd.f32 %v328, %v1169
        %v1257 = vadd.f32 %v329, %v1245
        %v1258 = vadd.f32 %v330, %v1095
        %v1259 = vadd.f32 %v331, %v1171
        %v1260 = vadd.f32 %v332, %v1247
        %1261 = vst [vmem:[#allocation2] sm:$0xff] %v1249
        %1262 = vst [vmem:[#allocation2 + $0x8] sm:$0xff] %v1250
        %1263 = vst [vmem:[#allocation2 + $0x10] sm:$0xff] %v1251
        %1264 = vst [vmem:[#allocation2 + $0x18] sm:$0xff] %v1252
        %1265 = vst [vmem:[#allocation2 + $0x20] sm:$0xff] %v1253
        %1266 = vst [vmem:[#allocation2 + $0x28] sm:$0xff] %v1254
        %1267 = vst [vmem:[#allocation2 + $0x30] sm:$0xff] %v1255
        %1268 = vst [vmem:[#allocation2 + $0x38] sm:$0xff] %v1256
        %1269 = vst [vmem:[#allocation2 + $0x40] sm:$0xff] %v1257
        %1270 = vst [vmem:[#allocation2 + $0x48] sm:$0xff] %v1258
        %1271 = vst [vmem:[#allocation2 + $0x50] sm:$0xff] %v1259
        %1272 = vst [vmem:[#allocation2 + $0x58] sm:$0xff] %v1260
        %p1273 = scmp.eq.s32.totalorder %s21, 6
        // Predicated region
        $region60: #{bgcnn_forward.9} parent=50 // pred_check
          %p1274 = pneg %p1273
        $region61: #{bgcnn_forward.9} parent=50 // pred_check_branch
          %1276 = sbr.rel (%p1274) target = $region63
        $region62: #{bgcnn_forward.9} parent=50 // pred_region
          %v1277 = vld [vmem:[#allocation2] sm:$0xff]
          %v1278 = vld [vmem:[#allocation2 + $0x8] sm:$0xff]
          %v1279 = vld [vmem:[#allocation2 + $0x10] sm:$0xff]
          %v1280 = vld [vmem:[#allocation2 + $0x18] sm:$0xff]
          %v1281 = vld [vmem:[#allocation2 + $0x20] sm:$0xff]
          %v1282 = vld [vmem:[#allocation2 + $0x28] sm:$0xff]
          %v1283 = vld [vmem:[#allocation2 + $0x30] sm:$0xff]
          %v1284 = vld [vmem:[#allocation2 + $0x38] sm:$0xff]
          %v1285 = vld [vmem:[#allocation2 + $0x40] sm:$0xff]
          %v1286 = vld [vmem:[#allocation2 + $0x48] sm:$0xff]
          %v1287 = vld [vmem:[#allocation2 + $0x50] sm:$0xff]
          %v1288 = vld [vmem:[#allocation2 + $0x58] sm:$0xff]
          %v1289 = vld [vmem:[%s291] sm:$0x7]
          %v1291 = vperm.slane %v1289, 0
          %v1292 = vperm.slane %v1289, 1
          %v1293 = vperm.slane %v1289, 2
          %v1297 = vadd.f32 %v1277, %v1291
          %v1298 = vadd.f32 %v1278, %v1292
          %v1299 = vadd.f32 %v1279, %v1293
          %v1300 = vadd.f32 %v1280, %v1291
          %v1301 = vadd.f32 %v1281, %v1292
          %v1302 = vadd.f32 %v1282, %v1293
          %v1303 = vadd.f32 %v1283, %v1291
          %v1304 = vadd.f32 %v1284, %v1292
          %v1305 = vadd.f32 %v1285, %v1293
          %v1306 = vadd.f32 %v1286, %v1291
          %v1307 = vadd.f32 %v1287, %v1292
          %v1308 = vadd.f32 %v1288, %v1293
          %v1309 = vmax.f32 %v1297, 0.0
          %v1310 = vmax.f32 %v1298, 0.0
          %v1311 = vmax.f32 %v1299, 0.0
          %v1312 = vmax.f32 %v1300, 0.0
          %v1313 = vmax.f32 %v1301, 0.0
          %v1314 = vmax.f32 %v1302, 0.0
          %v1315 = vmax.f32 %v1303, 0.0
          %v1316 = vmax.f32 %v1304, 0.0
          %v1317 = vmax.f32 %v1305, 0.0
          %v1318 = vmax.f32 %v1306, 0.0
          %v1319 = vmax.f32 %v1307, 0.0
          %v1320 = vmax.f32 %v1308, 0.0
          %1321 = vst [vmem:[%s302] sm:$0xff] %v1309
          %1322 = vst [vmem:[%s302 + $0x8] sm:$0xff] %v1310
          %1323 = vst [vmem:[%s302 + $0x10] sm:$0xff] %v1311
          %1324 = vst [vmem:[%s302 + $0x18] sm:$0xff] %v1312
          %1325 = vst [vmem:[%s302 + $0x20] sm:$0xff] %v1313
          %1326 = vst [vmem:[%s302 + $0x28] sm:$0xff] %v1314
          %1327 = vst [vmem:[%s302 + $0x30] sm:$0xff] %v1315
          %1328 = vst [vmem:[%s302 + $0x38] sm:$0xff] %v1316
          %1329 = vst [vmem:[%s302 + $0x40] sm:$0xff] %v1317
          %1330 = vst [vmem:[%s302 + $0x48] sm:$0xff] %v1318
          %1331 = vst [vmem:[%s302 + $0x50] sm:$0xff] %v1319
          %1332 = vst [vmem:[%s302 + $0x58] sm:$0xff] %v1320
        $region63: #{bgcnn_forward.9} parent=50 // pred_fallthru
          _
        %s1333 = smul.u32 4, %s19
        %s1334 = smul.u32 3, %s20
        %p1335 = scmp.lt.s32.totalorder %s1333, 3
        %s1336 = scalar_select %p1335, %s1333, 3
        %p1337 = scmp.lt.s32.totalorder %s1334, 2
        %s1338 = scalar_select %p1337, %s1334, 2
        %s1339 = smul.addr %s1336, 3
        %s1340 = sadd.s32 %s1338, %s1339
        %s1341 = smul.addr %s1340, 8
        %s1342 = scalar_lea.vmem %s3, %s1341
        // Predicated region
        $region64: #{bgcnn_forward.9} parent=50 // pred_check
          %p1343 = pneg %p135
        $region65: #{bgcnn_forward.9} parent=50 // pred_check_branch
          %1345 = sbr.rel (%p1343) target = $region67
        $region66: #{bgcnn_forward.9} parent=50 // pred_region
          %s1346 = smul.u32 4, %s19
          %s1347 = smul.u32 3, %s20
        $region67: #{bgcnn_forward.9} parent=50 // pred_fallthru
          _
        // Predicated region
        $region68: #{bgcnn_forward.9} parent=50 // pred_check
          %p1348 = pneg %p135
        $region69: #{bgcnn_forward.9} parent=50 // pred_check_branch
          %1350 = sbr.rel (%p1348) target = $region71
        $region70: #{bgcnn_forward.9} parent=50 // pred_region
          %s1351 = smul.u32 4, %s19
          %s1352 = smul.u32 3, %s20
          %p1353 = scmp.lt.s32.totalorder %s1351, 3
          %s1354 = scalar_select %p1353, %s1351, 3
          %p1355 = scmp.lt.s32.totalorder %s1352, 2
          %s1356 = scalar_select %p1355, %s1352, 2
          %s1357 = smul.addr %s1354, 3
          %s1358 = sadd.s32 %s1356, %s1357
          %s1359 = smul.addr %s1358, 8
          %s1360 = scalar_lea.vmem %s3, %s1359
        $region71: #{bgcnn_forward.9} parent=50 // pred_fallthru
          _
      $region51: #{bgcnn_forward.9} parent=5 // pred_fallthru
        _
      %p1361 = scmp.le.s32.totalorder 2, %s9
      // Predicated region
      $region72: #{bgcnn_forward.9} parent=5 // pred_check
        %p1362 = pneg %p1361
      $region73: #{bgcnn_forward.9} parent=5 // pred_check_branch
        %1364 = sbr.rel (%p1362) target = $region75
      $region74: #{bgcnn_forward.9} parent=5 // pred_region
        %s1365 = ssub.s32 %s9, 2
      $region75: #{bgcnn_forward.9} parent=5 // pred_fallthru
        _
    $region6: #{bgcnn_forward.9} parent=1 // loop_footer
      %s13 = sadd.s32 1, %s9
    $region7: #{bgcnn_forward.9} parent=1 // loop_footer_branch
      %8 = sbr.rel target = $region3
    $region8: #{bgcnn_forward.9} parent=1 // loop_exit
      _

// kernel: bgcnn_forward.11
$region0: #{bgcnn_forward.11}
  #allocation0 [shape = 'u32[]', space=smem, size = 0x4, offset = 0x4, fixed_abs, tag = 'smem constant byte address 0x4 - core index']
  #allocation1 [shape = 'u32[72,128]{1,0:T(1,128)}', space=vmem, size = 0x9000, scoped, tag = 'internal scratch']
  #allocation2 [shape = 'f32[16,128]{1,0:T(8,128)}', space=vmem, size = 0x2000, scoped, tag = 'scratch operand']
  %s0 = inlined_call_operand.vmem [shape: bf16[16,256], index: 0, kind: input, shape index: {}]
  %s1 = inlined_call_operand.vmem [shape: bf16[256,4096], index: 1, kind: input, shape index: {}]
  %s2 = inlined_call_operand.vmem [shape: f32[1,4096], index: 2, kind: input, shape index: {}]
  %s3 = inlined_call_operand.vmem [shape: bf16[4096,128], index: 3, kind: input, shape index: {}]
  %s4 = inlined_call_operand.vmem [shape: f32[1,128], index: 4, kind: input, shape index: {}]
  %s5 = inlined_call_operand.vmem [shape: bf16[128,128], index: 5, kind: input, shape index: {}]
  %s6 = inlined_call_operand.vmem [shape: f32[1,128], index: 6, kind: input, shape index: {}]
  %s7 = inlined_call_operand.vmem [shape: f32[1,128], index: 7, kind: output, shape index: {}]
  %s8 = sld [smem:[#allocation0]]
  $region92: #{bgcnn_forward.11} parent=0
    _
  %s10 = ssub.s32 1, %s8
  %s11 = scalar_select 0, %s10, %s8
  $region1: #{bgcnn_forward.11} parent=0
    #allocation3 [shape = 'u8[524288]{0}', space=vmem, size = 0x80000, scoped, tag = 'input window, operand 1']
    loop: start=0, step=1, limit=10
    $region2: #{bgcnn_forward.11} parent=1 // loop_pre_header
      _
    $region3: #{bgcnn_forward.11} parent=1 // loop_header
      %s13 = sphi 0, %s17
      %p14 = scmp.ge.s32.totalorder %s13, 10
      %s21 = sphi 0, %s21
      %s23 = sphi 0, %s21
      %s24 = sphi 0, %s23
      %s38 = sphi 0, %s24
      %s44 = sphi 0, %s46
      %s47 = sphi 0, %s44
      %s48 = sphi 0, %s47
      %s64 = sphi 0, %s48
      %s70 = sphi 0, %s72
      %s73 = sphi 0, %s70
      %s74 = sphi 0, %s73
      %s90 = sphi 0, %s74
      %s96 = sphi 0, %s98
      %s99 = sphi 0, %s96
      %s100 = sphi 0, %s99
      %s116 = sphi 0, %s100
      %s120 = sphi 0, %s120
      %s122 = sphi 0, %s120
      %s123 = sphi 0, %s122
      %s137 = sphi 0, %s123
      %s141 = sphi 0, %s141
      %s143 = sphi 0, %s141
      %s144 = sphi 0, %s143
      %s158 = sphi 0, %s144
      %s162 = sphi 0, %s162
      %s164 = sphi 0, %s162
      %s165 = sphi 0, %s164
      %s179 = sphi 0, %s165
      %s183 = sphi 0, %s183
      %s185 = sphi 0, %s183
      %s186 = sphi 0, %s185
      %s200 = sphi 0, %s186
    $region4: #{bgcnn_forward.11} parent=1 // loop_header_branch
      %16 = sbr.rel (%p14) target = $region8
    $region5: #{bgcnn_forward.11} parent=1 // loop_body
      %s18 = ssub.s32 %s13, 1
      %s19 = ssub.s32 %s13, 2
      %s20 = sadd.s32 %s13, 1
      %s22 = sadd.s32 %s21, 1
      %p25 = scmp.eq.s32.totalorder %s13, 7
      %p26 = scmp.ne.s32.totalorder %s21, %s23
      %p27 = scmp.eq.s32.totalorder %s13, 0
      %p28 = por %p26, %p27
      %p29 = scmp.ne.s32.totalorder %s21, %s23
      %p30 = scmp.eq.s32.totalorder %s18, 7
      %p31 = por %p29, %p30
      %p32 = scmp.ne.s32.totalorder %s23, %s24
      %p33 = scmp.eq.s32.totalorder %s18, 0
      %p34 = por %p32, %p33
      %p35 = scmp.ne.s32.totalorder %s23, %s24
      %p36 = scmp.eq.s32.totalorder %s19, 7
      %p37 = por %p35, %p36
      %p39 = scmp.ne.s32.totalorder %s24, %s38
      %p40 = scmp.eq.s32.totalorder %s19, 0
      %p41 = por %p39, %p40
      %s42 = ssub.s32 %s13, %s20
      %p43 = scmp.eq.s32.totalorder %s42, 0
      %s45 = sadd.s32 %s44, 1
      %s46 = scalar_select %p43, %s44, %s45
      %p49 = pneg %p43
      %p50 = scmp.eq.s32.totalorder %s13, 7
      %p51 = por %p49, %p50
      %p52 = scmp.ne.s32.totalorder %s44, %s47
      %p53 = scmp.eq.s32.totalorder %s13, 0
      %p54 = por %p52, %p53
      %p55 = scmp.ne.s32.totalorder %s44, %s47
      %p56 = scmp.eq.s32.totalorder %s18, 7
      %p57 = por %p55, %p56
      %p58 = scmp.ne.s32.totalorder %s47, %s48
      %p59 = scmp.eq.s32.totalorder %s18, 0
      %p60 = por %p58, %p59
      %p61 = scmp.ne.s32.totalorder %s47, %s48
      %p62 = scmp.eq.s32.totalorder %s19, 7
      %p63 = por %p61, %p62
      %p65 = scmp.ne.s32.totalorder %s48, %s64
      %p66 = scmp.eq.s32.totalorder %s19, 0
      %p67 = por %p65, %p66
      %s68 = ssub.s32 %s13, %s20
      %p69 = scmp.eq.s32.totalorder %s68, 0
      %s71 = sadd.s32 %s70, 1
      %s72 = scalar_select %p69, %s70, %s71
      %p75 = pneg %p69
      %p76 = scmp.eq.s32.totalorder %s13, 7
      %p77 = por %p75, %p76
      %p78 = scmp.ne.s32.totalorder %s70, %s73
      %p79 = scmp.eq.s32.totalorder %s13, 0
      %p80 = por %p78, %p79
      %p81 = scmp.ne.s32.totalorder %s70, %s73
      %p82 = scmp.eq.s32.totalorder %s18, 7
      %p83 = por %p81, %p82
      %p84 = scmp.ne.s32.totalorder %s73, %s74
      %p85 = scmp.eq.s32.totalorder %s18, 0
      %p86 = por %p84, %p85
      %p87 = scmp.ne.s32.totalorder %s73, %s74
      %p88 = scmp.eq.s32.totalorder %s19, 7
      %p89 = por %p87, %p88
      %p91 = scmp.ne.s32.totalorder %s74, %s90
      %p92 = scmp.eq.s32.totalorder %s19, 0
      %p93 = por %p91, %p92
      %s94 = ssub.s32 %s13, %s20
      %p95 = scmp.eq.s32.totalorder %s94, 0
      %s97 = sadd.s32 %s96, 1
      %s98 = scalar_select %p95, %s96, %s97
      %p101 = pneg %p95
      %p102 = scmp.eq.s32.totalorder %s13, 7
      %p103 = por %p101, %p102
      %p104 = scmp.ne.s32.totalorder %s96, %s99
      %p105 = scmp.eq.s32.totalorder %s13, 0
      %p106 = por %p104, %p105
      %p107 = scmp.ne.s32.totalorder %s96, %s99
      %p108 = scmp.eq.s32.totalorder %s18, 7
      %p109 = por %p107, %p108
      %p110 = scmp.ne.s32.totalorder %s99, %s100
      %p111 = scmp.eq.s32.totalorder %s18, 0
      %p112 = por %p110, %p111
      %p113 = scmp.ne.s32.totalorder %s99, %s100
      %p114 = scmp.eq.s32.totalorder %s19, 7
      %p115 = por %p113, %p114
      %p117 = scmp.ne.s32.totalorder %s100, %s116
      %p118 = scmp.eq.s32.totalorder %s19, 0
      %p119 = por %p117, %p118
      %s121 = sadd.s32 %s120, 1
      %p124 = scmp.eq.s32.totalorder %s13, 7
      %p125 = scmp.ne.s32.totalorder %s120, %s122
      %p126 = scmp.eq.s32.totalorder %s13, 0
      %p127 = por %p125, %p126
      %p128 = scmp.ne.s32.totalorder %s120, %s122
      %p129 = scmp.eq.s32.totalorder %s18, 7
      %p130 = por %p128, %p129
      %p131 = scmp.ne.s32.totalorder %s122, %s123
      %p132 = scmp.eq.s32.totalorder %s18, 0
      %p133 = por %p131, %p132
      %p134 = scmp.ne.s32.totalorder %s122, %s123
      %p135 = scmp.eq.s32.totalorder %s19, 7
      %p136 = por %p134, %p135
      %p138 = scmp.ne.s32.totalorder %s123, %s137
      %p139 = scmp.eq.s32.totalorder %s19, 0
      %p140 = por %p138, %p139
      %s142 = sadd.s32 %s141, 1
      %p145 = scmp.eq.s32.totalorder %s13, 7
      %p146 = scmp.ne.s32.totalorder %s141, %s143
      %p147 = scmp.eq.s32.totalorder %s13, 0
      %p148 = por %p146, %p147
      %p149 = scmp.ne.s32.totalorder %s141, %s143
      %p150 = scmp.eq.s32.totalorder %s18, 7
      %p151 = por %p149, %p150
      %p152 = scmp.ne.s32.totalorder %s143, %s144
      %p153 = scmp.eq.s32.totalorder %s18, 0
      %p154 = por %p152, %p153
      %p155 = scmp.ne.s32.totalorder %s143, %s144
      %p156 = scmp.eq.s32.totalorder %s19, 7
      %p157 = por %p155, %p156
      %p159 = scmp.ne.s32.totalorder %s144, %s158
      %p160 = scmp.eq.s32.totalorder %s19, 0
      %p161 = por %p159, %p160
      %s163 = sadd.s32 %s162, 1
      %p166 = scmp.eq.s32.totalorder %s13, 7
      %p167 = scmp.ne.s32.totalorder %s162, %s164
      %p168 = scmp.eq.s32.totalorder %s13, 0
      %p169 = por %p167, %p168
      %p170 = scmp.ne.s32.totalorder %s162, %s164
      %p171 = scmp.eq.s32.totalorder %s18, 7
      %p172 = por %p170, %p171
      %p173 = scmp.ne.s32.totalorder %s164, %s165
      %p174 = scmp.eq.s32.totalorder %s18, 0
      %p175 = por %p173, %p174
      %p176 = scmp.ne.s32.totalorder %s164, %s165
      %p177 = scmp.eq.s32.totalorder %s19, 7
      %p178 = por %p176, %p177
      %p180 = scmp.ne.s32.totalorder %s165, %s179
      %p181 = scmp.eq.s32.totalorder %s19, 0
      %p182 = por %p180, %p181
      %s184 = sadd.s32 %s183, 1
      %p187 = scmp.eq.s32.totalorder %s13, 7
      %p188 = scmp.ne.s32.totalorder %s183, %s185
      %p189 = scmp.eq.s32.totalorder %s13, 0
      %p190 = por %p188, %p189
      %p191 = scmp.ne.s32.totalorder %s183, %s185
      %p192 = scmp.eq.s32.totalorder %s18, 7
      %p193 = por %p191, %p192
      %p194 = scmp.ne.s32.totalorder %s185, %s186
      %p195 = scmp.eq.s32.totalorder %s18, 0
      %p196 = por %p194, %p195
      %p197 = scmp.ne.s32.totalorder %s185, %s186
      %p198 = scmp.eq.s32.totalorder %s19, 7
      %p199 = por %p197, %p198
      %p201 = scmp.ne.s32.totalorder %s186, %s200
      %p202 = scmp.eq.s32.totalorder %s19, 0
      %p203 = por %p201, %p202
      %p204 = scmp.le.s32.totalorder 1, %s13
      %p205 = scmp.lt.s32.totalorder %s13, 9
      %p206 = pnand %p204, %p205
      %p207 = pneg %p206
      // Predicated region
      $region9: #{bgcnn_forward.11} parent=5 // pred_check
        _
      $region10: #{bgcnn_forward.11} parent=5 // pred_check_branch
        %209 = sbr.rel (%p206) target = $region12
      $region11: #{bgcnn_forward.11} parent=5 // pred_region
        %s210 = ssub.s32 %s13, 1
        // Predicated region
        $region13: #{bgcnn_forward.11} parent=11 // pred_check
          %p211 = pneg %p34
        $region14: #{bgcnn_forward.11} parent=11 // pred_check_branch
          %213 = sbr.rel (%p211) target = $region16
        $region15: #{bgcnn_forward.11} parent=11 // pred_region
          _
        $region16: #{bgcnn_forward.11} parent=11 // pred_fallthru
          _
        // Predicated region
        $region17: #{bgcnn_forward.11} parent=11 // pred_check
          %p214 = pneg %p133
        $region18: #{bgcnn_forward.11} parent=11 // pred_check_branch
          %216 = sbr.rel (%p214) target = $region20
        $region19: #{bgcnn_forward.11} parent=11 // pred_region
          _
        $region20: #{bgcnn_forward.11} parent=11 // pred_fallthru
          _
        // Predicated region
        $region21: #{bgcnn_forward.11} parent=11 // pred_check
          %p217 = pneg %p154
        $region22: #{bgcnn_forward.11} parent=11 // pred_check_branch
          %219 = sbr.rel (%p217) target = $region24
        $region23: #{bgcnn_forward.11} parent=11 // pred_region
          _
        $region24: #{bgcnn_forward.11} parent=11 // pred_fallthru
          _
        // Predicated region
        $region25: #{bgcnn_forward.11} parent=11 // pred_check
          %p220 = pneg %p175
        $region26: #{bgcnn_forward.11} parent=11 // pred_check_branch
          %222 = sbr.rel (%p220) target = $region28
        $region27: #{bgcnn_forward.11} parent=11 // pred_region
          _
        $region28: #{bgcnn_forward.11} parent=11 // pred_fallthru
          _
      $region12: #{bgcnn_forward.11} parent=5 // pred_fallthru
        _
      %p223 = scmp.lt.s32.totalorder %s13, 8
      // Predicated region
      $region29: #{bgcnn_forward.11} parent=5 // pred_check
        %p224 = pneg %p223
      $region30: #{bgcnn_forward.11} parent=5 // pred_check_branch
        %226 = sbr.rel (%p224) target = $region32
      $region31: #{bgcnn_forward.11} parent=5 // pred_region
        // Predicated region
        $region33: #{bgcnn_forward.11} parent=31 // pred_check
          %p227 = pneg %p54
        $region34: #{bgcnn_forward.11} parent=31 // pred_check_branch
          %229 = sbr.rel (%p227) target = $region36
        $region35: #{bgcnn_forward.11} parent=31 // pred_region
          %s230 = sand.u32 %s44, 1
          %s231 = sand.u32 %s44, 1
          %s232 = smul.addr %s231, 512
          %s233 = scalar_lea.vmem [#allocation3], %s232
          %s234 = smul.u32 4, %s13
          %s235 = smul.addr %s234, 4
          %s236 = scalar_lea.vmem %s1, %s235
          // Predicated region
          $region37: #{bgcnn_forward.11} parent=35 // pred_check
            _
          $region38: #{bgcnn_forward.11} parent=35 // pred_check_branch
            %238 = sbr.rel (0) target = $region40
          $region39: #{bgcnn_forward.11} parent=35 // pred_region
            // Predicated region
            $region41: #{bgcnn_forward.11} parent=39 // pred_check
              _
            $region42: #{bgcnn_forward.11} parent=39 // pred_check_branch
              %240 = sbr.rel (0) target = $region44
            $region43: #{bgcnn_forward.11} parent=39 // pred_region
              loop: start=0, step=1, limit=1
              $region45: #{bgcnn_forward.11} parent=43 // loop_pre_header
                _
              $region46: #{bgcnn_forward.11} parent=43 // loop_header
                %s242 = sphi 0, %s246
                %p243 = scmp.ge.s32.totalorder %s242, 1
                %s247 = sphi %s236, %s236
                %s248 = sphi %s233, %s233
              $region47: #{bgcnn_forward.11} parent=43 // loop_header_branch
                %245 = sbr.rel (%p243) target = $region51
              $region48: #{bgcnn_forward.11} parent=43 // loop_body
                %v249 = vld [vmem:[%s247] sm:$0xff]
                %250 = vst [vmem:[%s248] sm:$0xff] %v249
                %v251 = vld [vmem:[%s247 + $0x8] sm:$0xff]
                %252 = vst [vmem:[%s248 + $0x8] sm:$0xff] %v251
                %v253 = vld [vmem:[%s247 + $0x80] sm:$0xff]
                %254 = vst [vmem:[%s248 + $0x10] sm:$0xff] %v253
                %v255 = vld [vmem:[%s247 + $0x88] sm:$0xff]
                %256 = vst [vmem:[%s248 + $0x18] sm:$0xff] %v255
                %v257 = vld [vmem:[%s247 + $0x100] sm:$0xff]
                %258 = vst [vmem:[%s248 + $0x20] sm:$0xff] %v257
                %v259 = vld [vmem:[%s247 + $0x108] sm:$0xff]
                %260 = vst [vmem:[%s248 + $0x28] sm:$0xff] %v259
                %v261 = vld [vmem:[%s247 + $0x180] sm:$0xff]
                %262 = vst [vmem:[%s248 + $0x30] sm:$0xff] %v261
                %v263 = vld [vmem:[%s247 + $0x188] sm:$0xff]
                %264 = vst [vmem:[%s248 + $0x38] sm:$0xff] %v263
                %v265 = vld [vmem:[%s247 + $0x200] sm:$0xff]
                %266 = vst [vmem:[%s248 + $0x40] sm:$0xff] %v265
                %v267 = vld [vmem:[%s247 + $0x208] sm:$0xff]
                %268 = vst [vmem:[%s248 + $0x48] sm:$0xff] %v267
                %v269 = vld [vmem:[%s247 + $0x280] sm:$0xff]
                %270 = vst [vmem:[%s248 + $0x50] sm:$0xff] %v269
                %v271 = vld [vmem:[%s247 + $0x288] sm:$0xff]
                %272 = vst [vmem:[%s248 + $0x58] sm:$0xff] %v271
                %v273 = vld [vmem:[%s247 + $0x300] sm:$0xff]
                %274 = vst [vmem:[%s248 + $0x60] sm:$0xff] %v273
                %v275 = vld [vmem:[%s247 + $0x308] sm:$0xff]
                %276 = vst [vmem:[%s248 + $0x68] sm:$0xff] %v275
                %v277 = vld [vmem:[%s247 + $0x380] sm:$0xff]
                %278 = vst [vmem:[%s248 + $0x70] sm:$0xff] %v277
                %v279 = vld [vmem:[%s247 + $0x388] sm:$0xff]
                %280 = vst [vmem:[%s248 + $0x78] sm:$0xff] %v279
                %v281 = vld [vmem:[%s247 + $0x400] sm:$0xff]
                %282 = vst [vmem:[%s248 + $0x80] sm:$0xff] %v281
                %v283 = vld [vmem:[%s247 + $0x408] sm:$0xff]
                %284 = vst [vmem:[%s248 + $0x88] sm:$0xff] %v283
                %v285 = vld [vmem:[%s247 + $0x480] sm:$0xff]
                %286 = vst [vmem:[%s248 + $0x90] sm:$0xff] %v285
                %v287 = vld [vmem:[%s247 + $0x488] sm:$0xff]
                %288 = vst [vmem:[%s248 + $0x98] sm:$0xff] %v287
                %v289 = vld [vmem:[%s247 + $0x500] sm:$0xff]
                %290 = vst [vmem:[%s248 + $0xa0] sm:$0xff] %v289
                %v291 = vld [vmem:[%s247 + $0x508] sm:$0xff]
                %292 = vst [vmem:[%s248 + $0xa8] sm:$0xff] %v291
                %v293 = vld [vmem:[%s247 + $0x580] sm:$0xff]
                %294 = vst [vmem:[%s248 + $0xb0] sm:$0xff] %v293
                %v295 = vld [vmem:[%s247 + $0x588] sm:$0xff]
                %296 = vst [vmem:[%s248 + $0xb8] sm:$0xff] %v295
                %v297 = vld [vmem:[%s247 + $0x600] sm:$0xff]
                %298 = vst [vmem:[%s248 + $0xc0] sm:$0xff] %v297
                %v299 = vld [vmem:[%s247 + $0x608] sm:$0xff]
                %300 = vst [vmem:[%s248 + $0xc8] sm:$0xff] %v299
                %v301 = vld [vmem:[%s247 + $0x680] sm:$0xff]
                %302 = vst [vmem:[%s248 + $0xd0] sm:$0xff] %v301
                %v303 = vld [vmem:[%s247 + $0x688] sm:$0xff]
                %304 = vst [vmem:[%s248 + $0xd8] sm:$0xff] %v303
                %v305 = vld [vmem:[%s247 + $0x700] sm:$0xff]
                %306 = vst [vmem:[%s248 + $0xe0] sm:$0xff] %v305
                %v307 = vld [vmem:[%s247 + $0x708] sm:$0xff]
                %308 = vst [vmem:[%s248 + $0xe8] sm:$0xff] %v307
                %v309 = vld [vmem:[%s247 + $0x780] sm:$0xff]
                %310 = vst [vmem:[%s248 + $0xf0] sm:$0xff] %v309
                %v311 = vld [vmem:[%s247 + $0x788] sm:$0xff]
                %312 = vst [vmem:[%s248 + $0xf8] sm:$0xff] %v311
                %v313 = vld [vmem:[%s247 + $0x800] sm:$0xff]
                %314 = vst [vmem:[%s248 + $0x100] sm:$0xff] %v313
                %v315 = vld [vmem:[%s247 + $0x808] sm:$0xff]
                %316 = vst [vmem:[%s248 + $0x108] sm:$0xff] %v315
                %v317 = vld [vmem:[%s247 + $0x880] sm:$0xff]
                %318 = vst [vmem:[%s248 + $0x110] sm:$0xff] %v317
                %v319 = vld [vmem:[%s247 + $0x888] sm:$0xff]
                %320 = vst [vmem:[%s248 + $0x118] sm:$0xff] %v319
                %v321 = vld [vmem:[%s247 + $0x900] sm:$0xff]
                %322 = vst [vmem:[%s248 + $0x120] sm:$0xff] %v321
                %v323 = vld [vmem:[%s247 + $0x908] sm:$0xff]
                %324 = vst [vmem:[%s248 + $0x128] sm:$0xff] %v323
                %v325 = vld [vmem:[%s247 + $0x980] sm:$0xff]
                %326 = vst [vmem:[%s248 + $0x130] sm:$0xff] %v325
                %v327 = vld [vmem:[%s247 + $0x988] sm:$0xff]
                %328 = vst [vmem:[%s248 + $0x138] sm:$0xff] %v327
                %v329 = vld [vmem:[%s247 + $0xa00] sm:$0xff]
                %330 = vst [vmem:[%s248 + $0x140] sm:$0xff] %v329
                %v331 = vld [vmem:[%s247 + $0xa08] sm:$0xff]
                %332 = vst [vmem:[%s248 + $0x148] sm:$0xff] %v331
                %v333 = vld [vmem:[%s247 + $0xa80] sm:$0xff]
                %334 = vst [vmem:[%s248 + $0x150] sm:$0xff] %v333
                %v335 = vld [vmem:[%s247 + $0xa88] sm:$0xff]
                %336 = vst [vmem:[%s248 + $0x158] sm:$0xff] %v335
                %v337 = vld [vmem:[%s247 + $0xb00] sm:$0xff]
                %338 = vst [vmem:[%s248 + $0x160] sm:$0xff] %v337
                %v339 = vld [vmem:[%s247 + $0xb08] sm:$0xff]
                %340 = vst [vmem:[%s248 + $0x168] sm:$0xff] %v339
                %v341 = vld [vmem:[%s247 + $0xb80] sm:$0xff]
                %342 = vst [vmem:[%s248 + $0x170] sm:$0xff] %v341
                %v343 = vld [vmem:[%s247 + $0xb88] sm:$0xff]
                %344 = vst [vmem:[%s248 + $0x178] sm:$0xff] %v343
                %v345 = vld [vmem:[%s247 + $0xc00] sm:$0xff]
                %346 = vst [vmem:[%s248 + $0x180] sm:$0xff] %v345
                %v347 = vld [vmem:[%s247 + $0xc08] sm:$0xff]
                %348 = vst [vmem:[%s248 + $0x188] sm:$0xff] %v347
                %v349 = vld [vmem:[%s247 + $0xc80] sm:$0xff]
                %350 = vst [vmem:[%s248 + $0x190] sm:$0xff] %v349
                %v351 = vld [vmem:[%s247 + $0xc88] sm:$0xff]
                %352 = vst [vmem:[%s248 + $0x198] sm:$0xff] %v351
                %v353 = vld [vmem:[%s247 + $0xd00] sm:$0xff]
                %354 = vst [vmem:[%s248 + $0x1a0] sm:$0xff] %v353
                %v355 = vld [vmem:[%s247 + $0xd08] sm:$0xff]
                %356 = vst [vmem:[%s248 + $0x1a8] sm:$0xff] %v355
                %v357 = vld [vmem:[%s247 + $0xd80] sm:$0xff]
                %358 = vst [vmem:[%s248 + $0x1b0] sm:$0xff] %v357
                %v359 = vld [vmem:[%s247 + $0xd88] sm:$0xff]
                %360 = vst [vmem:[%s248 + $0x1b8] sm:$0xff] %v359
                %v361 = vld [vmem:[%s247 + $0xe00] sm:$0xff]
                %362 = vst [vmem:[%s248 + $0x1c0] sm:$0xff] %v361
                %v363 = vld [vmem:[%s247 + $0xe08] sm:$0xff]
                %364 = vst [vmem:[%s248 + $0x1c8] sm:$0xff] %v363
                %v365 = vld [vmem:[%s247 + $0xe80] sm:$0xff]
                %366 = vst [vmem:[%s248 + $0x1d0] sm:$0xff] %v365
                %v367 = vld [vmem:[%s247 + $0xe88] sm:$0xff]
                %368 = vst [vmem:[%s248 + $0x1d8] sm:$0xff] %v367
                %v369 = vld [vmem:[%s247 + $0xf00] sm:$0xff]
                %370 = vst [vmem:[%s248 + $0x1e0] sm:$0xff] %v369
                %v371 = vld [vmem:[%s247 + $0xf08] sm:$0xff]
                %372 = vst [vmem:[%s248 + $0x1e8] sm:$0xff] %v371
                %v373 = vld [vmem:[%s247 + $0xf80] sm:$0xff]
                %374 = vst [vmem:[%s248 + $0x1f0] sm:$0xff] %v373
                %v375 = vld [vmem:[%s247 + $0xf88] sm:$0xff]
                %376 = vst [vmem:[%s248 + $0x1f8] sm:$0xff] %v375
              $region49: #{bgcnn_forward.11} parent=43 // loop_footer
                %s246 = sadd.s32 1, %s242
              $region50: #{bgcnn_forward.11} parent=43 // loop_footer_branch
                %241 = sbr.rel target = $region46
              $region51: #{bgcnn_forward.11} parent=43 // loop_exit
                _
            $region44: #{bgcnn_forward.11} parent=39 // pred_fallthru
              _
            // Predicated region
            $region52: #{bgcnn_forward.11} parent=39 // pred_check
              _
            $region53: #{bgcnn_forward.11} parent=39 // pred_check_branch
              %378 = sbr.rel target = $region55
            $region54: #{bgcnn_forward.11} parent=39 // pred_region
              _
            $region55: #{bgcnn_forward.11} parent=39 // pred_fallthru
              _
          $region40: #{bgcnn_forward.11} parent=35 // pred_fallthru
            _
          %379 = vnop
        $region36: #{bgcnn_forward.11} parent=31 // pred_fallthru
          _
        // Predicated region
        $region56: #{bgcnn_forward.11} parent=31 // pred_check
          %p380 = pneg %p80
        $region57: #{bgcnn_forward.11} parent=31 // pred_check_branch
          %382 = sbr.rel (%p380) target = $region59
        $region58: #{bgcnn_forward.11} parent=31 // pred_region
          %s383 = smul.u32 4, %s13
          %p384 = scmp.lt.s32.totalorder %s383, 31
          %s385 = scalar_select %p384, %s383, 31
          %s386 = scalar_lea.vmem %s2, %s385
          %s387 = smul.u32 4, %s13
        $region59: #{bgcnn_forward.11} parent=31 // pred_fallthru
          _
        // Predicated region
        $region60: #{bgcnn_forward.11} parent=31 // pred_check
          %p388 = pneg %p106
        $region61: #{bgcnn_forward.11} parent=31 // pred_check_branch
          %390 = sbr.rel (%p388) target = $region63
        $region62: #{bgcnn_forward.11} parent=31 // pred_region
          %s391 = smul.u32 64, %s13
          %p392 = scmp.lt.s32.totalorder %s391, 511
          %s393 = scalar_select %p392, %s391, 511
          %s394 = smul.addr %s393, 4
          %s395 = scalar_lea.vmem %s3, %s394
          %s396 = smul.u32 64, %s13
        $region63: #{bgcnn_forward.11} parent=31 // pred_fallthru
          _
      $region32: #{bgcnn_forward.11} parent=5 // pred_fallthru
        _
      %p397 = scmp.le.s32.totalorder 1, %s13
      %p398 = scmp.lt.s32.totalorder %s13, 9
      %p399 = pnand %p397, %p398
      %p400 = pneg %p399
      // Predicated region
      $region64: #{bgcnn_forward.11} parent=5 // pred_check
        _
      $region65: #{bgcnn_forward.11} parent=5 // pred_check_branch
        %402 = sbr.rel (%p399) target = $region67
      $region66: #{bgcnn_forward.11} parent=5 // pred_region
        %s403 = ssub.s32 %s13, 1
        %s404 = sand.u32 %s47, 1
        %s405 = sand.u32 %s47, 1
        %s406 = smul.addr %s405, 512
        %s407 = scalar_lea.vmem [#allocation3], %s406
        // Predicated region
        $region68: #{bgcnn_forward.11} parent=66 // pred_check
          %p408 = pneg %p60
        $region69: #{bgcnn_forward.11} parent=66 // pred_check_branch
          %410 = sbr.rel (%p408) target = $region71
        $region70: #{bgcnn_forward.11} parent=66 // pred_region
          _
        $region71: #{bgcnn_forward.11} parent=66 // pred_fallthru
          _
        %p411 = pneg %p34
        %p412 = pneg %p31
        %s413 = sand.u32 %s47, 1
        %s414 = sand.u32 %s47, 1
        %s415 = smul.addr %s414, 512
        %s416 = scalar_lea.vmem [#allocation3], %s415
        %p417 = pneg %p60
        %p418 = pneg %p57
        %s419 = smul.u32 4, %s18
        %p420 = scmp.lt.s32.totalorder %s419, 31
        %s421 = scalar_select %p420, %s419, 31
        %s422 = scalar_lea.vmem %s2, %s421
        %p423 = pneg %p86
        %p424 = pneg %p83
        %s425 = smul.u32 64, %s18
        %p426 = scmp.lt.s32.totalorder %s425, 511
        %s427 = scalar_select %p426, %s425, 511
        %s428 = smul.addr %s427, 4
        %s429 = scalar_lea.vmem %s3, %s428
        %p430 = pneg %p112
        %p431 = pneg %p109
        %p432 = pneg %p133
        %p433 = pneg %p130
        %p434 = pneg %p154
        %p435 = pneg %p151
        %p436 = pneg %p175
        %p437 = pneg %p172
        %p438 = pneg %p196
        %p439 = pneg %p193
        %s440 = smul.u32 4, %s18
        %s441 = smul.u32 4, %s18
        %p442 = scmp.lt.s32.totalorder %s441, 31
        %s443 = scalar_select %p442, %s441, 31
        %s444 = scalar_lea.vmem %s2, %s443
        %s445 = smul.u32 4, %s18
        %s446 = smul.u32 64, %s18
        %p447 = scmp.lt.s32.totalorder %s446, 511
        %s448 = scalar_select %p447, %s446, 511
        %s449 = smul.addr %s448, 4
        %s450 = scalar_lea.vmem %s3, %s449
        %s451 = smul.u32 64, %s18
        %p452 = scmp.eq.s32.totalorder %s18, 0
        // Predicated region
        $region72: #{bgcnn_forward.11} parent=66 // pred_check
          %p453 = pneg %p452
        $region73: #{bgcnn_forward.11} parent=66 // pred_check_branch
          %455 = sbr.rel (%p453) target = $region75
        $region74: #{bgcnn_forward.11} parent=66 // pred_region
          %456 = vst [vmem:[#allocation2] sm:$0xff] 0.0
          %457 = vst [vmem:[#allocation2 + $0x8] sm:$0xff] 0.0
        $region75: #{bgcnn_forward.11} parent=66 // pred_fallthru
          _
        %v458 = vld [vmem:[%s0] sm:$0xff]
        %v459 = vld [vmem:[%s0 + $0x8] sm:$0xff]
        %v460 = vld [vmem:[%s407] sm:$0xff]
        %v461 = vld [vmem:[%s407 + $0x8] sm:$0xff]
        %v462 = vld [vmem:[%s407 + $0x10] sm:$0xff]
        %v463 = vld [vmem:[%s407 + $0x18] sm:$0xff]
        %v464 = vld [vmem:[%s407 + $0x20] sm:$0xff]
        %v465 = vld [vmem:[%s407 + $0x28] sm:$0xff]
        %v466 = vld [vmem:[%s407 + $0x30] sm:$0xff]
        %v467 = vld [vmem:[%s407 + $0x38] sm:$0xff]
        %v468 = vld [vmem:[%s407 + $0x40] sm:$0xff]
        %v469 = vld [vmem:[%s407 + $0x48] sm:$0xff]
        %v470 = vld [vmem:[%s407 + $0x50] sm:$0xff]
        %v471 = vld [vmem:[%s407 + $0x58] sm:$0xff]
        %v472 = vld [vmem:[%s407 + $0x60] sm:$0xff]
        %v473 = vld [vmem:[%s407 + $0x68] sm:$0xff]
        %v474 = vld [vmem:[%s407 + $0x70] sm:$0xff]
        %v475 = vld [vmem:[%s407 + $0x78] sm:$0xff]
        %v476 = vld [vmem:[%s407 + $0x80] sm:$0xff]
        %v477 = vld [vmem:[%s407 + $0x88] sm:$0xff]
        %v478 = vld [vmem:[%s407 + $0x90] sm:$0xff]
        %v479 = vld [vmem:[%s407 + $0x98] sm:$0xff]
        %v480 = vld [vmem:[%s407 + $0xa0] sm:$0xff]
        %v481 = vld [vmem:[%s407 + $0xa8] sm:$0xff]
        %v482 = vld [vmem:[%s407 + $0xb0] sm:$0xff]
        %v483 = vld [vmem:[%s407 + $0xb8] sm:$0xff]
        %v484 = vld [vmem:[%s407 + $0xc0] sm:$0xff]
        %v485 = vld [vmem:[%s407 + $0xc8] sm:$0xff]
        %v486 = vld [vmem:[%s407 + $0xd0] sm:$0xff]
        %v487 = vld [vmem:[%s407 + $0xd8] sm:$0xff]
        %v488 = vld [vmem:[%s407 + $0xe0] sm:$0xff]
        %v489 = vld [vmem:[%s407 + $0xe8] sm:$0xff]
        %v490 = vld [vmem:[%s407 + $0xf0] sm:$0xff]
        %v491 = vld [vmem:[%s407 + $0xf8] sm:$0xff]
        %v492 = vld [vmem:[%s407 + $0x100] sm:$0xff]
        %v493 = vld [vmem:[%s407 + $0x108] sm:$0xff]
        %v494 = vld [vmem:[%s407 + $0x110] sm:$0xff]
        %v495 = vld [vmem:[%s407 + $0x118] sm:$0xff]
        %v496 = vld [vmem:[%s407 + $0x120] sm:$0xff]
        %v497 = vld [vmem:[%s407 + $0x128] sm:$0xff]
        %v498 = vld [vmem:[%s407 + $0x130] sm:$0xff]
        %v499 = vld [vmem:[%s407 + $0x138] sm:$0xff]
        %v500 = vld [vmem:[%s407 + $0x140] sm:$0xff]
        %v501 = vld [vmem:[%s407 + $0x148] sm:$0xff]
        %v502 = vld [vmem:[%s407 + $0x150] sm:$0xff]
        %v503 = vld [vmem:[%s407 + $0x158] sm:$0xff]
        %v504 = vld [vmem:[%s407 + $0x160] sm:$0xff]
        %v505 = vld [vmem:[%s407 + $0x168] sm:$0xff]
        %v506 = vld [vmem:[%s407 + $0x170] sm:$0xff]
        %v507 = vld [vmem:[%s407 + $0x178] sm:$0xff]
        %v508 = vld [vmem:[%s407 + $0x180] sm:$0xff]
        %v509 = vld [vmem:[%s407 + $0x188] sm:$0xff]
        %v510 = vld [vmem:[%s407 + $0x190] sm:$0xff]
        %v511 = vld [vmem:[%s407 + $0x198] sm:$0xff]
        %v512 = vld [vmem:[%s407 + $0x1a0] sm:$0xff]
        %v513 = vld [vmem:[%s407 + $0x1a8] sm:$0xff]
        %v514 = vld [vmem:[%s407 + $0x1b0] sm:$0xff]
        %v515 = vld [vmem:[%s407 + $0x1b8] sm:$0xff]
        %v516 = vld [vmem:[%s407 + $0x1c0] sm:$0xff]
        %v517 = vld [vmem:[%s407 + $0x1c8] sm:$0xff]
        %v518 = vld [vmem:[%s407 + $0x1d0] sm:$0xff]
        %v519 = vld [vmem:[%s407 + $0x1d8] sm:$0xff]
        %v520 = vld [vmem:[%s407 + $0x1e0] sm:$0xff]
        %v521 = vld [vmem:[%s407 + $0x1e8] sm:$0xff]
        %v522 = vld [vmem:[%s407 + $0x1f0] sm:$0xff]
        %v523 = vld [vmem:[%s407 + $0x1f8] sm:$0xff]
        %v524 = vld [vmem:[%s444] sm:$0xf]
        %v526 = vperm.slane %v524, 0
        %v527 = vperm.slane %v524, 1
        %v528 = vperm.slane %v524, 2
        %v529 = vperm.slane %v524, 3
        %v536 = vunpack.c.l.b16 %v458
        %v537 = vunpack.c.h.b16 %v458
        %v538 = vunpack.c.l.b16 %v459
        %v539 = vunpack.c.h.b16 %v459
        %v540 = vpack.c.b16 %v538, %v536
        %v541 = vpack.c.b16 %v539, %v537
        %v608 = vunpack.c.l.b16 %v460
        %v609 = vunpack.c.h.b16 %v460
        %v610 = vunpack.c.l.b16 %v461
        %v611 = vunpack.c.h.b16 %v461
        %v612 = vunpack.c.l.b16 %v462
        %v613 = vunpack.c.h.b16 %v462
        %v614 = vunpack.c.l.b16 %v463
        %v615 = vunpack.c.h.b16 %v463
        %v616 = vunpack.c.l.b16 %v464
        %v617 = vunpack.c.h.b16 %v464
        %v618 = vunpack.c.l.b16 %v465
        %v619 = vunpack.c.h.b16 %v465
        %v620 = vunpack.c.l.b16 %v466
        %v621 = vunpack.c.h.b16 %v466
        %v622 = vunpack.c.l.b16 %v467
        %v623 = vunpack.c.h.b16 %v467
        %v624 = vunpack.c.l.b16 %v468
        %v625 = vunpack.c.h.b16 %v468
        %v626 = vunpack.c.l.b16 %v469
        %v627 = vunpack.c.h.b16 %v469
        %v628 = vunpack.c.l.b16 %v470
        %v629 = vunpack.c.h.b16 %v470
        %v630 = vunpack.c.l.b16 %v471
        %v631 = vunpack.c.h.b16 %v471
        %v632 = vunpack.c.l.b16 %v472
        %v633 = vunpack.c.h.b16 %v472
        %v634 = vunpack.c.l.b16 %v473
        %v635 = vunpack.c.h.b16 %v473
        %v636 = vunpack.c.l.b16 %v474
        %v637 = vunpack.c.h.b16 %v474
        %v638 = vunpack.c.l.b16 %v475
        %v639 = vunpack.c.h.b16 %v475
        %v640 = vunpack.c.l.b16 %v476
        %v641 = vunpack.c.h.b16 %v476
        %v642 = vunpack.c.l.b16 %v477
        %v643 = vunpack.c.h.b16 %v477
        %v644 = vunpack.c.l.b16 %v478
        %v645 = vunpack.c.h.b16 %v478
        %v646 = vunpack.c.l.b16 %v479
        %v647 = vunpack.c.h.b16 %v479
        %v648 = vunpack.c.l.b16 %v480
        %v649 = vunpack.c.h.b16 %v480
        %v650 = vunpack.c.l.b16 %v481
        %v651 = vunpack.c.h.b16 %v481
        %v652 = vunpack.c.l.b16 %v482
        %v653 = vunpack.c.h.b16 %v482
        %v654 = vunpack.c.l.b16 %v483
        %v655 = vunpack.c.h.b16 %v483
        %v656 = vunpack.c.l.b16 %v484
        %v657 = vunpack.c.h.b16 %v484
        %v658 = vunpack.c.l.b16 %v485
        %v659 = vunpack.c.h.b16 %v485
        %v660 = vunpack.c.l.b16 %v486
        %v661 = vunpack.c.h.b16 %v486
        %v662 = vunpack.c.l.b16 %v487
        %v663 = vunpack.c.h.b16 %v487
        %v664 = vunpack.c.l.b16 %v488
        %v665 = vunpack.c.h.b16 %v488
        %v666 = vunpack.c.l.b16 %v489
        %v667 = vunpack.c.h.b16 %v489
        %v668 = vunpack.c.l.b16 %v490
        %v669 = vunpack.c.h.b16 %v490
        %v670 = vunpack.c.l.b16 %v491
        %v671 = vunpack.c.h.b16 %v491
        %v672 = vunpack.c.l.b16 %v492
        %v673 = vunpack.c.h.b16 %v492
        %v674 = vunpack.c.l.b16 %v493
        %v675 = vunpack.c.h.b16 %v493
        %v676 = vunpack.c.l.b16 %v494
        %v677 = vunpack.c.h.b16 %v494
        %v678 = vunpack.c.l.b16 %v495
        %v679 = vunpack.c.h.b16 %v495
        %v680 = vunpack.c.l.b16 %v496
        %v681 = vunpack.c.h.b16 %v496
        %v682 = vunpack.c.l.b16 %v497
        %v683 = vunpack.c.h.b16 %v497
        %v684 = vunpack.c.l.b16 %v498
        %v685 = vunpack.c.h.b16 %v498
        %v686 = vunpack.c.l.b16 %v499
        %v687 = vunpack.c.h.b16 %v499
        %v688 = vunpack.c.l.b16 %v500
        %v689 = vunpack.c.h.b16 %v500
        %v690 = vunpack.c.l.b16 %v501
        %v691 = vunpack.c.h.b16 %v501
        %v692 = vunpack.c.l.b16 %v502
        %v693 = vunpack.c.h.b16 %v502
        %v694 = vunpack.c.l.b16 %v503
        %v695 = vunpack.c.h.b16 %v503
        %v696 = vunpack.c.l.b16 %v504
        %v697 = vunpack.c.h.b16 %v504
        %v698 = vunpack.c.l.b16 %v505
        %v699 = vunpack.c.h.b16 %v505
        %v700 = vunpack.c.l.b16 %v506
        %v701 = vunpack.c.h.b16 %v506
        %v702 = vunpack.c.l.b16 %v507
        %v703 = vunpack.c.h.b16 %v507
        %v704 = vunpack.c.l.b16 %v508
        %v705 = vunpack.c.h.b16 %v508
        %v706 = vunpack.c.l.b16 %v509
        %v707 = vunpack.c.h.b16 %v509
        %v708 = vunpack.c.l.b16 %v510
        %v709 = vunpack.c.h.b16 %v510
        %v710 = vunpack.c.l.b16 %v511
        %v711 = vunpack.c.h.b16 %v511
        %v712 = vunpack.c.l.b16 %v512
        %v713 = vunpack.c.h.b16 %v512
        %v714 = vunpack.c.l.b16 %v513
        %v715 = vunpack.c.h.b16 %v513
        %v716 = vunpack.c.l.b16 %v514
        %v717 = vunpack.c.h.b16 %v514
        %v718 = vunpack.c.l.b16 %v515
        %v719 = vunpack.c.h.b16 %v515
        %v720 = vunpack.c.l.b16 %v516
        %v721 = vunpack.c.h.b16 %v516
        %v722 = vunpack.c.l.b16 %v517
        %v723 = vunpack.c.h.b16 %v517
        %v724 = vunpack.c.l.b16 %v518
        %v725 = vunpack.c.h.b16 %v518
        %v726 = vunpack.c.l.b16 %v519
        %v727 = vunpack.c.h.b16 %v519
        %v728 = vunpack.c.l.b16 %v520
        %v729 = vunpack.c.h.b16 %v520
        %v730 = vunpack.c.l.b16 %v521
        %v731 = vunpack.c.h.b16 %v521
        %v732 = vunpack.c.l.b16 %v522
        %v733 = vunpack.c.h.b16 %v522
        %v734 = vunpack.c.l.b16 %v523
        %v735 = vunpack.c.h.b16 %v523
        %v736 = vpack.c.b16 %v612, %v608
        %v737 = vpack.c.b16 %v613, %v609
        %v738 = vpack.c.b16 %v614, %v610
        %v739 = vpack.c.b16 %v615, %v611
        %v740 = vpack.c.b16 %v620, %v616
        %v741 = vpack.c.b16 %v621, %v617
        %v742 = vpack.c.b16 %v622, %v618
        %v743 = vpack.c.b16 %v623, %v619
        %v744 = vpack.c.b16 %v628, %v624
        %v745 = vpack.c.b16 %v629, %v625
        %v746 = vpack.c.b16 %v630, %v626
        %v747 = vpack.c.b16 %v631, %v627
        %v748 = vpack.c.b16 %v636, %v632
        %v749 = vpack.c.b16 %v637, %v633
        %v750 = vpack.c.b16 %v638, %v634
        %v751 = vpack.c.b16 %v639, %v635
        %v752 = vpack.c.b16 %v644, %v640
        %v753 = vpack.c.b16 %v645, %v641
        %v754 = vpack.c.b16 %v646, %v642
        %v755 = vpack.c.b16 %v647, %v643
        %v756 = vpack.c.b16 %v652, %v648
        %v757 = vpack.c.b16 %v653, %v649
        %v758 = vpack.c.b16 %v654, %v650
        %v759 = vpack.c.b16 %v655, %v651
        %v760 = vpack.c.b16 %v660, %v656
        %v761 = vpack.c.b16 %v661, %v657
        %v762 = vpack.c.b16 %v662, %v658
        %v763 = vpack.c.b16 %v663, %v659
        %v764 = vpack.c.b16 %v668, %v664
        %v765 = vpack.c.b16 %v669, %v665
        %v766 = vpack.c.b16 %v670, %v666
        %v767 = vpack.c.b16 %v671, %v667
        %v768 = vpack.c.b16 %v676, %v672
        %v769 = vpack.c.b16 %v677, %v673
        %v770 = vpack.c.b16 %v678, %v674
        %v771 = vpack.c.b16 %v679, %v675
        %v772 = vpack.c.b16 %v684, %v680
        %v773 = vpack.c.b16 %v685, %v681
        %v774 = vpack.c.b16 %v686, %v682
        %v775 = vpack.c.b16 %v687, %v683
        %v776 = vpack.c.b16 %v692, %v688
        %v777 = vpack.c.b16 %v693, %v689
        %v778 = vpack.c.b16 %v694, %v690
        %v779 = vpack.c.b16 %v695, %v691
        %v780 = vpack.c.b16 %v700, %v696
        %v781 = vpack.c.b16 %v701, %v697
        %v782 = vpack.c.b16 %v702, %v698
        %v783 = vpack.c.b16 %v703, %v699
        %v784 = vpack.c.b16 %v708, %v704
        %v785 = vpack.c.b16 %v709, %v705
        %v786 = vpack.c.b16 %v710, %v706
        %v787 = vpack.c.b16 %v711, %v707
        %v788 = vpack.c.b16 %v716, %v712
        %v789 = vpack.c.b16 %v717, %v713
        %v790 = vpack.c.b16 %v718, %v714
        %v791 = vpack.c.b16 %v719, %v715
        %v792 = vpack.c.b16 %v724, %v720
        %v793 = vpack.c.b16 %v725, %v721
        %v794 = vpack.c.b16 %v726, %v722
        %v795 = vpack.c.b16 %v727, %v723
        %v796 = vpack.c.b16 %v732, %v728
        %v797 = vpack.c.b16 %v733, %v729
        %v798 = vpack.c.b16 %v734, %v730
        %v799 = vpack.c.b16 %v735, %v731
        %864 = vmatpush.bf16.msra.mxu0 %v764
        %865 = vmatpush.bf16.msra.mxu0 %v760
        %866 = vmatpush.bf16.msra.mxu0 %v756
        %867 = vmatpush.bf16.msra.mxu0 %v752
        %868 = vmatpush.bf16.msra.mxu0 %v748
        %869 = vmatpush.bf16.msra.mxu0 %v744
        %870 = vmatpush.bf16.msra.mxu0 %v740
        %871 = vmatpush.bf16.msra.mxu0 %v736
        %872 = vmatmul.bf16.gmra.mxu0 %v540
        %v873 = vpop.f32.mrf.mxu0
        %v874 = vadd.f32 %v526, %v873
        %v875 = vpop.f32.mrf.mxu0
        %v876 = vadd.f32 %v526, %v875
        %877 = vdwg.mxu0
        %878 = vmatpush.bf16.msra.mxu0 %v796
        %879 = vmatpush.bf16.msra.mxu0 %v792
        %880 = vmatpush.bf16.msra.mxu0 %v788
        %881 = vmatpush.bf16.msra.mxu0 %v784
        %882 = vmatpush.bf16.msra.mxu0 %v780
        %883 = vmatpush.bf16.msra.mxu0 %v776
        %884 = vmatpush.bf16.msra.mxu0 %v772
        %885 = vmatpush.bf16.msra.mxu0 %v768
        %886 = vmatmul.bf16.gmra.mxu0 %v541
        %v887 = vpop.f32.mrf.mxu0
        %v888 = vadd.f32 %v874, %v887
        %v889 = vpop.f32.mrf.mxu0
        %v890 = vadd.f32 %v876, %v889
        %891 = vdwg.mxu0
        %892 = vmatpush.bf16.msra.mxu0 %v765
        %893 = vmatpush.bf16.msra.mxu0 %v761
        %894 = vmatpush.bf16.msra.mxu0 %v757
        %895 = vmatpush.bf16.msra.mxu0 %v753
        %896 = vmatpush.bf16.msra.mxu0 %v749
        %897 = vmatpush.bf16.msra.mxu0 %v745
        %898 = vmatpush.bf16.msra.mxu0 %v741
        %899 = vmatpush.bf16.msra.mxu0 %v737
        %900 = vmatmul.bf16.gmra.mxu0 %v540
        %v901 = vpop.f32.mrf.mxu0
        %v902 = vadd.f32 %v527, %v901
        %v903 = vpop.f32.mrf.mxu0
        %v904 = vadd.f32 %v527, %v903
        %905 = vdwg.mxu0
        %906 = vmatpush.bf16.msra.mxu0 %v797
        %907 = vmatpush.bf16.msra.mxu0 %v793
        %908 = vmatpush.bf16.msra.mxu0 %v789
        %909 = vmatpush.bf16.msra.mxu0 %v785
        %910 = vmatpush.bf16.msra.mxu0 %v781
        %911 = vmatpush.bf16.msra.mxu0 %v777
        %912 = vmatpush.bf16.msra.mxu0 %v773
        %913 = vmatpush.bf16.msra.mxu0 %v769
        %914 = vmatmul.bf16.gmra.mxu0 %v541
        %v915 = vpop.f32.mrf.mxu0
        %v916 = vadd.f32 %v902, %v915
        %v917 = vpop.f32.mrf.mxu0
        %v918 = vadd.f32 %v904, %v917
        %919 = vdwg.mxu0
        %920 = vmatpush.bf16.msra.mxu0 %v766
        %921 = vmatpush.bf16.msra.mxu0 %v762
        %922 = vmatpush.bf16.msra.mxu0 %v758
        %923 = vmatpush.bf16.msra.mxu0 %v754
        %924 = vmatpush.bf16.msra.mxu0 %v750
        %925 = vmatpush.bf16.msra.mxu0 %v746
        %926 = vmatpush.bf16.msra.mxu0 %v742
        %927 = vmatpush.bf16.msra.mxu0 %v738
        %928 = vmatmul.bf16.gmra.mxu0 %v540
        %v929 = vpop.f32.mrf.mxu0
        %v930 = vadd.f32 %v528, %v929
        %v931 = vpop.f32.mrf.mxu0
        %v932 = vadd.f32 %v528, %v931
        %933 = vdwg.mxu0
        %934 = vmatpush.bf16.msra.mxu0 %v798
        %935 = vmatpush.bf16.msra.mxu0 %v794
        %936 = vmatpush.bf16.msra.mxu0 %v790
        %937 = vmatpush.bf16.msra.mxu0 %v786
        %938 = vmatpush.bf16.msra.mxu0 %v782
        %939 = vmatpush.bf16.msra.mxu0 %v778
        %940 = vmatpush.bf16.msra.mxu0 %v774
        %941 = vmatpush.bf16.msra.mxu0 %v770
        %942 = vmatmul.bf16.gmra.mxu0 %v541
        %v943 = vpop.f32.mrf.mxu0
        %v944 = vadd.f32 %v930, %v943
        %v945 = vpop.f32.mrf.mxu0
        %v946 = vadd.f32 %v932, %v945
        %947 = vdwg.mxu0
        %948 = vmatpush.bf16.msra.mxu0 %v767
        %949 = vmatpush.bf16.msra.mxu0 %v763
        %950 = vmatpush.bf16.msra.mxu0 %v759
        %951 = vmatpush.bf16.msra.mxu0 %v755
        %952 = vmatpush.bf16.msra.mxu0 %v751
        %953 = vmatpush.bf16.msra.mxu0 %v747
        %954 = vmatpush.bf16.msra.mxu0 %v743
        %955 = vmatpush.bf16.msra.mxu0 %v739
        %956 = vmatmul.bf16.gmra.mxu0 %v540
        %v957 = vpop.f32.mrf.mxu0
        %v958 = vadd.f32 %v529, %v957
        %v959 = vpop.f32.mrf.mxu0
        %v960 = vadd.f32 %v529, %v959
        %961 = vdwg.mxu0
        %962 = vmatpush.bf16.msra.mxu0 %v799
        %963 = vmatpush.bf16.msra.mxu0 %v795
        %964 = vmatpush.bf16.msra.mxu0 %v791
        %965 = vmatpush.bf16.msra.mxu0 %v787
        %966 = vmatpush.bf16.msra.mxu0 %v783
        %967 = vmatpush.bf16.msra.mxu0 %v779
        %968 = vmatpush.bf16.msra.mxu0 %v775
        %969 = vmatpush.bf16.msra.mxu0 %v771
        %970 = vmatmul.bf16.gmra.mxu0 %v541
        %v971 = vpop.f32.mrf.mxu0
        %v972 = vadd.f32 %v958, %v971
        %v973 = vpop.f32.mrf.mxu0
        %v974 = vadd.f32 %v960, %v973
        %975 = vdwg.mxu0
        %v976 = vmax.f32 %v888, 0.0
        %v977 = vmax.f32 %v916, 0.0
        %v978 = vmax.f32 %v944, 0.0
        %v979 = vmax.f32 %v972, 0.0
        %v980 = vmax.f32 %v890, 0.0
        %v981 = vmax.f32 %v918, 0.0
        %v982 = vmax.f32 %v946, 0.0
        %v983 = vmax.f32 %v974, 0.0
        %v984 = vld [vmem:[#allocation2] sm:$0xff]
        %v985 = vld [vmem:[#allocation2 + $0x8] sm:$0xff]
        %v986 = vpack.c.bf16 %v980, %v976
        %v987 = vpack.c.bf16 %v981, %v977
        %v988 = vpack.c.bf16 %v982, %v978
        %v989 = vpack.c.bf16 %v983, %v979
        %v990 = vld [vmem:[%s450] sm:$0xf]
        %v991 = vld [vmem:[%s450 + $0x4] sm:$0xf]
        %v992 = vld [vmem:[%s450 + $0x8] sm:$0xf]
        %v993 = vld [vmem:[%s450 + $0xc] sm:$0xf]
        %v994 = vld [vmem:[%s450 + $0x10] sm:$0xf]
        %v995 = vld [vmem:[%s450 + $0x14] sm:$0xf]
        %v996 = vld [vmem:[%s450 + $0x18] sm:$0xf]
        %v997 = vld [vmem:[%s450 + $0x1c] sm:$0xf]
        %v998 = vld [vmem:[%s450 + $0x20] sm:$0xf]
        %v999 = vld [vmem:[%s450 + $0x24] sm:$0xf]
        %v1000 = vld [vmem:[%s450 + $0x28] sm:$0xf]
        %v1001 = vld [vmem:[%s450 + $0x2c] sm:$0xf]
        %v1002 = vld [vmem:[%s450 + $0x30] sm:$0xf]
        %v1003 = vld [vmem:[%s450 + $0x34] sm:$0xf]
        %v1004 = vld [vmem:[%s450 + $0x38] sm:$0xf]
        %v1005 = vld [vmem:[%s450 + $0x3c] sm:$0xf]
        %v1006 = vld [vmem:[%s450 + $0x40] sm:$0xf]
        %v1007 = vld [vmem:[%s450 + $0x44] sm:$0xf]
        %v1008 = vld [vmem:[%s450 + $0x48] sm:$0xf]
        %v1009 = vld [vmem:[%s450 + $0x4c] sm:$0xf]
        %v1010 = vld [vmem:[%s450 + $0x50] sm:$0xf]
        %v1011 = vld [vmem:[%s450 + $0x54] sm:$0xf]
        %v1012 = vld [vmem:[%s450 + $0x58] sm:$0xf]
        %v1013 = vld [vmem:[%s450 + $0x5c] sm:$0xf]
        %v1014 = vld [vmem:[%s450 + $0x60] sm:$0xf]
        %v1015 = vld [vmem:[%s450 + $0x64] sm:$0xf]
        %v1016 = vld [vmem:[%s450 + $0x68] sm:$0xf]
        %v1017 = vld [vmem:[%s450 + $0x6c] sm:$0xf]
        %v1018 = vld [vmem:[%s450 + $0x70] sm:$0xf]
        %v1019 = vld [vmem:[%s450 + $0x74] sm:$0xf]
        %v1020 = vld [vmem:[%s450 + $0x78] sm:$0xf]
        %v1021 = vld [vmem:[%s450 + $0x7c] sm:$0xf]
        %v1022 = vld [vmem:[%s450 + $0x80] sm:$0xf]
        %v1023 = vld [vmem:[%s450 + $0x84] sm:$0xf]
        %v1024 = vld [vmem:[%s450 + $0x88] sm:$0xf]
        %v1025 = vld [vmem:[%s450 + $0x8c] sm:$0xf]
        %v1026 = vld [vmem:[%s450 + $0x90] sm:$0xf]
        %v1027 = vld [vmem:[%s450 + $0x94] sm:$0xf]
        %v1028 = vld [vmem:[%s450 + $0x98] sm:$0xf]
        %v1029 = vld [vmem:[%s450 + $0x9c] sm:$0xf]
        %v1030 = vld [vmem:[%s450 + $0xa0] sm:$0xf]
        %v1031 = vld [vmem:[%s450 + $0xa4] sm:$0xf]
        %v1032 = vld [vmem:[%s450 + $0xa8] sm:$0xf]
        %v1033 = vld [vmem:[%s450 + $0xac] sm:$0xf]
        %v1034 = vld [vmem:[%s450 + $0xb0] sm:$0xf]
        %v1035 = vld [vmem:[%s450 + $0xb4] sm:$0xf]
        %v1036 = vld [vmem:[%s450 + $0xb8] sm:$0xf]
        %v1037 = vld [vmem:[%s450 + $0xbc] sm:$0xf]
        %v1038 = vld [vmem:[%s450 + $0xc0] sm:$0xf]
        %v1039 = vld [vmem:[%s450 + $0xc4] sm:$0xf]
        %v1040 = vld [vmem:[%s450 + $0xc8] sm:$0xf]
        %v1041 = vld [vmem:[%s450 + $0xcc] sm:$0xf]
        %v1042 = vld [vmem:[%s450 + $0xd0] sm:$0xf]
        %v1043 = vld [vmem:[%s450 + $0xd4] sm:$0xf]
        %v1044 = vld [vmem:[%s450 + $0xd8] sm:$0xf]
        %v1045 = vld [vmem:[%s450 + $0xdc] sm:$0xf]
        %v1046 = vld [vmem:[%s450 + $0xe0] sm:$0xf]
        %v1047 = vld [vmem:[%s450 + $0xe4] sm:$0xf]
        %v1048 = vld [vmem:[%s450 + $0xe8] sm:$0xf]
        %v1049 = vld [vmem:[%s450 + $0xec] sm:$0xf]
        %v1050 = vld [vmem:[%s450 + $0xf0] sm:$0xf]
        %v1051 = vld [vmem:[%s450 + $0xf4] sm:$0xf]
        %v1052 = vld [vmem:[%s450 + $0xf8] sm:$0xf]
        %v1053 = vld [vmem:[%s450 + $0xfc] sm:$0xf]
        %v1118 = vunpack.c.l.b16 %v990
        %v1119 = vunpack.c.l.b16 %v991
        %v1120 = vunpack.c.l.b16 %v992
        %v1121 = vunpack.c.l.b16 %v993
        %v1122 = vunpack.c.l.b16 %v994
        %v1123 = vunpack.c.l.b16 %v995
        %v1124 = vunpack.c.l.b16 %v996
        %v1125 = vunpack.c.l.b16 %v997
        %v1126 = vunpack.c.l.b16 %v998
        %v1127 = vunpack.c.l.b16 %v999
        %v1128 = vunpack.c.l.b16 %v1000
        %v1129 = vunpack.c.l.b16 %v1001
        %v1130 = vunpack.c.l.b16 %v1002
        %v1131 = vunpack.c.l.b16 %v1003
        %v1132 = vunpack.c.l.b16 %v1004
        %v1133 = vunpack.c.l.b16 %v1005
        %v1134 = vunpack.c.l.b16 %v1006
        %v1135 = vunpack.c.l.b16 %v1007
        %v1136 = vunpack.c.l.b16 %v1008
        %v1137 = vunpack.c.l.b16 %v1009
        %v1138 = vunpack.c.l.b16 %v1010
        %v1139 = vunpack.c.l.b16 %v1011
        %v1140 = vunpack.c.l.b16 %v1012
        %v1141 = vunpack.c.l.b16 %v1013
        %v1142 = vunpack.c.l.b16 %v1014
        %v1143 = vunpack.c.l.b16 %v1015
        %v1144 = vunpack.c.l.b16 %v1016
        %v1145 = vunpack.c.l.b16 %v1017
        %v1146 = vunpack.c.l.b16 %v1018
        %v1147 = vunpack.c.l.b16 %v1019
        %v1148 = vunpack.c.l.b16 %v1020
        %v1149 = vunpack.c.l.b16 %v1021
        %v1150 = vunpack.c.l.b16 %v1022
        %v1151 = vunpack.c.l.b16 %v1023
        %v1152 = vunpack.c.l.b16 %v1024
        %v1153 = vunpack.c.l.b16 %v1025
        %v1154 = vunpack.c.l.b16 %v1026
        %v1155 = vunpack.c.l.b16 %v1027
        %v1156 = vunpack.c.l.b16 %v1028
        %v1157 = vunpack.c.l.b16 %v1029
        %v1158 = vunpack.c.l.b16 %v1030
        %v1159 = vunpack.c.l.b16 %v1031
        %v1160 = vunpack.c.l.b16 %v1032
        %v1161 = vunpack.c.l.b16 %v1033
        %v1162 = vunpack.c.l.b16 %v1034
        %v1163 = vunpack.c.l.b16 %v1035
        %v1164 = vunpack.c.l.b16 %v1036
        %v1165 = vunpack.c.l.b16 %v1037
        %v1166 = vunpack.c.l.b16 %v1038
        %v1167 = vunpack.c.l.b16 %v1039
        %v1168 = vunpack.c.l.b16 %v1040
        %v1169 = vunpack.c.l.b16 %v1041
        %v1170 = vunpack.c.l.b16 %v1042
        %v1171 = vunpack.c.l.b16 %v1043
        %v1172 = vunpack.c.l.b16 %v1044
        %v1173 = vunpack.c.l.b16 %v1045
        %v1174 = vunpack.c.l.b16 %v1046
        %v1175 = vunpack.c.l.b16 %v1047
        %v1176 = vunpack.c.l.b16 %v1048
        %v1177 = vunpack.c.l.b16 %v1049
        %v1178 = vunpack.c.l.b16 %v1050
        %v1179 = vunpack.c.l.b16 %v1051
        %v1180 = vunpack.c.l.b16 %v1052
        %v1181 = vunpack.c.l.b16 %v1053
        %v1182 = vpack.c.b16 %v1119, %v1118
        %v1183 = vpack.c.b16 %v1121, %v1120
        %v1184 = vpack.c.b16 %v1123, %v1122
        %v1185 = vpack.c.b16 %v1125, %v1124
        %v1186 = vpack.c.b16 %v1127, %v1126
        %v1187 = vpack.c.b16 %v1129, %v1128
        %v1188 = vpack.c.b16 %v1131, %v1130
        %v1189 = vpack.c.b16 %v1133, %v1132
        %v1190 = vpack.c.b16 %v1135, %v1134
        %v1191 = vpack.c.b16 %v1137, %v1136
        %v1192 = vpack.c.b16 %v1139, %v1138
        %v1193 = vpack.c.b16 %v1141, %v1140
        %v1194 = vpack.c.b16 %v1143, %v1142
        %v1195 = vpack.c.b16 %v1145, %v1144
        %v1196 = vpack.c.b16 %v1147, %v1146
        %v1197 = vpack.c.b16 %v1149, %v1148
        %v1198 = vpack.c.b16 %v1151, %v1150
        %v1199 = vpack.c.b16 %v1153, %v1152
        %v1200 = vpack.c.b16 %v1155, %v1154
        %v1201 = vpack.c.b16 %v1157, %v1156
        %v1202 = vpack.c.b16 %v1159, %v1158
        %v1203 = vpack.c.b16 %v1161, %v1160
        %v1204 = vpack.c.b16 %v1163, %v1162
        %v1205 = vpack.c.b16 %v1165, %v1164
        %v1206 = vpack.c.b16 %v1167, %v1166
        %v1207 = vpack.c.b16 %v1169, %v1168
        %v1208 = vpack.c.b16 %v1171, %v1170
        %v1209 = vpack.c.b16 %v1173, %v1172
        %v1210 = vpack.c.b16 %v1175, %v1174
        %v1211 = vpack.c.b16 %v1177, %v1176
        %v1212 = vpack.c.b16 %v1179, %v1178
        %v1213 = vpack.c.b16 %v1181, %v1180
        %1246 = vmatpush.bf16.msra.mxu0 %v1189
        %1247 = vmatpush.bf16.msra.mxu0 %v1188
        %1248 = vmatpush.bf16.msra.mxu0 %v1187
        %1249 = vmatpush.bf16.msra.mxu0 %v1186
        %1250 = vmatpush.bf16.msra.mxu0 %v1185
        %1251 = vmatpush.bf16.msra.mxu0 %v1184
        %1252 = vmatpush.bf16.msra.mxu0 %v1183
        %1253 = vmatpush.bf16.msra.mxu0 %v1182
        %1254 = vmatmul.bf16.gmra.mxu0 %v986
        %v1255 = vpop.f32.mrf.mxu0
        %v1256 = vadd.f32 0.0, %v1255
        %v1257 = vpop.f32.mrf.mxu0
        %v1258 = vadd.f32 0.0, %v1257
        %1259 = vdwg.mxu0
        %1260 = vmatpush.bf16.msra.mxu0 %v1197
        %1261 = vmatpush.bf16.msra.mxu0 %v1196
        %1262 = vmatpush.bf16.msra.mxu0 %v1195
        %1263 = vmatpush.bf16.msra.mxu0 %v1194
        %1264 = vmatpush.bf16.msra.mxu0 %v1193
        %1265 = vmatpush.bf16.msra.mxu0 %v1192
        %1266 = vmatpush.bf16.msra.mxu0 %v1191
        %1267 = vmatpush.bf16.msra.mxu0 %v1190
        %1268 = vmatmul.bf16.gmra.mxu0 %v987
        %v1269 = vpop.f32.mrf.mxu0
        %v1270 = vadd.f32 %v1256, %v1269
        %v1271 = vpop.f32.mrf.mxu0
        %v1272 = vadd.f32 %v1258, %v1271
        %1273 = vdwg.mxu0
        %1274 = vmatpush.bf16.msra.mxu0 %v1205
        %1275 = vmatpush.bf16.msra.mxu0 %v1204
        %1276 = vmatpush.bf16.msra.mxu0 %v1203
        %1277 = vmatpush.bf16.msra.mxu0 %v1202
        %1278 = vmatpush.bf16.msra.mxu0 %v1201
        %1279 = vmatpush.bf16.msra.mxu0 %v1200
        %1280 = vmatpush.bf16.msra.mxu0 %v1199
        %1281 = vmatpush.bf16.msra.mxu0 %v1198
        %1282 = vmatmul.bf16.gmra.mxu0 %v988
        %v1283 = vpop.f32.mrf.mxu0
        %v1284 = vadd.f32 %v1270, %v1283
        %v1285 = vpop.f32.mrf.mxu0
        %v1286 = vadd.f32 %v1272, %v1285
        %1287 = vdwg.mxu0
        %1288 = vmatpush.bf16.msra.mxu0 %v1213
        %1289 = vmatpush.bf16.msra.mxu0 %v1212
        %1290 = vmatpush.bf16.msra.mxu0 %v1211
        %1291 = vmatpush.bf16.msra.mxu0 %v1210
        %1292 = vmatpush.bf16.msra.mxu0 %v1209
        %1293 = vmatpush.bf16.msra.mxu0 %v1208
        %1294 = vmatpush.bf16.msra.mxu0 %v1207
        %1295 = vmatpush.bf16.msra.mxu0 %v1206
        %1296 = vmatmul.bf16.gmra.mxu0 %v989
        %v1297 = vpop.f32.mrf.mxu0
        %v1298 = vadd.f32 %v1284, %v1297
        %v1299 = vpop.f32.mrf.mxu0
        %v1300 = vadd.f32 %v1286, %v1299
        %1301 = vdwg.mxu0
        %v1302 = vadd.f32 %v984, %v1298
        %v1303 = vadd.f32 %v985, %v1300
        %1304 = vst [vmem:[#allocation2] sm:$0xff] %v1302
        %1305 = vst [vmem:[#allocation2 + $0x8] sm:$0xff] %v1303
        %p1306 = scmp.eq.s32.totalorder %s18, 7
        // Predicated region
        $region76: #{bgcnn_forward.11} parent=66 // pred_check
          %p1307 = pneg %p1306
        $region77: #{bgcnn_forward.11} parent=66 // pred_check_branch
          %1309 = sbr.rel (%p1307) target = $region79
        $region78: #{bgcnn_forward.11} parent=66 // pred_region
          %v1310 = vld [vmem:[#allocation2] sm:$0xff]
          %v1311 = vld [vmem:[#allocation2 + $0x8] sm:$0xff]
          %v1312 = vld [vmem:[%s4] sm:$0x1]
          %v1314 = vperm.slane %v1312, 0
          %v1316 = vadd.f32 %v1310, %v1314
          %v1317 = vadd.f32 %v1311, %v1314
          %v1318 = vmax.f32 %v1316, 0.0
          %v1319 = vmax.f32 %v1317, 0.0
          %v1320 = vpack.c.bf16 %v1319, %v1318
          %v1321 = vld [vmem:[%s5] sm:$0xf]
          %v1322 = vld [vmem:[%s5 + $0x4] sm:$0xf]
          %v1323 = vld [vmem:[%s5 + $0x8] sm:$0xf]
          %v1324 = vld [vmem:[%s5 + $0xc] sm:$0xf]
          %v1325 = vld [vmem:[%s5 + $0x10] sm:$0xf]
          %v1326 = vld [vmem:[%s5 + $0x14] sm:$0xf]
          %v1327 = vld [vmem:[%s5 + $0x18] sm:$0xf]
          %v1328 = vld [vmem:[%s5 + $0x1c] sm:$0xf]
          %v1329 = vld [vmem:[%s5 + $0x20] sm:$0xf]
          %v1330 = vld [vmem:[%s5 + $0x24] sm:$0xf]
          %v1331 = vld [vmem:[%s5 + $0x28] sm:$0xf]
          %v1332 = vld [vmem:[%s5 + $0x2c] sm:$0xf]
          %v1333 = vld [vmem:[%s5 + $0x30] sm:$0xf]
          %v1334 = vld [vmem:[%s5 + $0x34] sm:$0xf]
          %v1335 = vld [vmem:[%s5 + $0x38] sm:$0xf]
          %v1336 = vld [vmem:[%s5 + $0x3c] sm:$0xf]
          %v1337 = vld [vmem:[%s6] sm:$0x1]
          %v1339 = vperm.slane %v1337, 0
          %v1357 = vunpack.c.l.b16 %v1321
          %v1358 = vunpack.c.l.b16 %v1322
          %v1359 = vunpack.c.l.b16 %v1323
          %v1360 = vunpack.c.l.b16 %v1324
          %v1361 = vunpack.c.l.b16 %v1325
          %v1362 = vunpack.c.l.b16 %v1326
          %v1363 = vunpack.c.l.b16 %v1327
          %v1364 = vunpack.c.l.b16 %v1328
          %v1365 = vunpack.c.l.b16 %v1329
          %v1366 = vunpack.c.l.b16 %v1330
          %v1367 = vunpack.c.l.b16 %v1331
          %v1368 = vunpack.c.l.b16 %v1332
          %v1369 = vunpack.c.l.b16 %v1333
          %v1370 = vunpack.c.l.b16 %v1334
          %v1371 = vunpack.c.l.b16 %v1335
          %v1372 = vunpack.c.l.b16 %v1336
          %v1373 = vpack.c.b16 %v1358, %v1357
          %v1374 = vpack.c.b16 %v1360, %v1359
          %v1375 = vpack.c.b16 %v1362, %v1361
          %v1376 = vpack.c.b16 %v1364, %v1363
          %v1377 = vpack.c.b16 %v1366, %v1365
          %v1378 = vpack.c.b16 %v1368, %v1367
          %v1379 = vpack.c.b16 %v1370, %v1369
          %v1380 = vpack.c.b16 %v1372, %v1371
          %1389 = vmatpush.bf16.msra.mxu0 %v1380
          %1390 = vmatpush.bf16.msra.mxu0 %v1379
          %1391 = vmatpush.bf16.msra.mxu0 %v1378
          %1392 = vmatpush.bf16.msra.mxu0 %v1377
          %1393 = vmatpush.bf16.msra.mxu0 %v1376
          %1394 = vmatpush.bf16.msra.mxu0 %v1375
          %1395 = vmatpush.bf16.msra.mxu0 %v1374
          %1396 = vmatpush.bf16.msra.mxu0 %v1373
          %1397 = vmatmul.bf16.gmra.mxu0 %v1320
          %v1398 = vpop.f32.mrf.mxu0
          %v1399 = vadd.f32 %v1339, %v1398
          %v1400 = vpop.f32.mrf.mxu0
          %v1401 = vadd.f32 %v1339, %v1400
          %1402 = vdwg.mxu0
          %v1403 = vlaneseq
          %v1404 = vshrl.u32 %v1403, 7
          %v1405 = vadd.s32 %v1404, 8
          %vm1406 = vcmp.lt.s32.totalorder %v1404, 2
          %vm1407 = vcmp.lt.s32.totalorder %v1405, 2
          %v1408 = vsel %vm1406, %v1399, 0.0
          %v1409 = vsel %vm1407, %v1401, 0.0
          %v1410 = vadd.f32 %v1408, %v1409
          %v1411 = vrot.slane %v1410, 4
          %v1412 = vadd.f32 %v1410, %v1411
          %v1413 = vrot.slane %v1412, 2
          %v1414 = vadd.f32 %v1412, %v1413
          %v1415 = vrot.slane %v1414, 1
          %v1416 = vadd.f32 %v1414, %v1415
          %1417 = vst [vmem:[%s7] sm:$0x1] %v1416
        $region79: #{bgcnn_forward.11} parent=66 // pred_fallthru
          _
        // Predicated region
        $region80: #{bgcnn_forward.11} parent=66 // pred_check
          %p1418 = pneg %p193
        $region81: #{bgcnn_forward.11} parent=66 // pred_check_branch
          %1420 = sbr.rel (%p1418) target = $region83
        $region82: #{bgcnn_forward.11} parent=66 // pred_region
          _
        $region83: #{bgcnn_forward.11} parent=66 // pred_fallthru
          _
        // Predicated region
        $region84: #{bgcnn_forward.11} parent=66 // pred_check
          %p1421 = pneg %p193
        $region85: #{bgcnn_forward.11} parent=66 // pred_check_branch
          %1423 = sbr.rel (%p1421) target = $region87
        $region86: #{bgcnn_forward.11} parent=66 // pred_region
          _
        $region87: #{bgcnn_forward.11} parent=66 // pred_fallthru
          _
      $region67: #{bgcnn_forward.11} parent=5 // pred_fallthru
        _
      %p1424 = scmp.le.s32.totalorder 2, %s13
      // Predicated region
      $region88: #{bgcnn_forward.11} parent=5 // pred_check
        %p1425 = pneg %p1424
      $region89: #{bgcnn_forward.11} parent=5 // pred_check_branch
        %1427 = sbr.rel (%p1425) target = $region91
      $region90: #{bgcnn_forward.11} parent=5 // pred_region
        %s1428 = ssub.s32 %s13, 2
      $region91: #{bgcnn_forward.11} parent=5 // pred_fallthru
        _
    $region6: #{bgcnn_forward.11} parent=1 // loop_footer
      %s17 = sadd.s32 1, %s13
    $region7: #{bgcnn_forward.11} parent=1 // loop_footer_branch
      %12 = sbr.rel target = $region3
    $region8: #{bgcnn_forward.11} parent=1 // loop_exit
      _

</llo_original>
